<compile_context>
chip_gen: v7x
topology: tpu7x:2x2x1
jax: 0.10.0
libtpu: 0.0.40
codegen_flags: <defaults>
</compile_context>

<pallas_src>
import functools

import jax
import jax.numpy as jnp
import numpy as np
from jax import lax
from jax.experimental import pallas as pl
from jax.experimental.pallas import tpu as pltpu

EPS = 1e-5
LANE = 128


def _make_conv_block_kernel(H, W):
    """Build the kernel closure for a given spatial size (H, W)."""
    HW = H * W
    # tap offsets (dh, dw) for a 3x3 kernel with padding=1, k = kh*3 + kw
    offsets = [(kh - 1, kw - 1) for kh in range(3) for kw in range(3)]

    def kernel(x_ref, w1_ref, s1_ref, b1_ref, w2_ref, s2_ref, b2_ref,
               o_ref, acc_ref):
        # x_ref  : (1, Cp, HW)   input tile, channels on sublanes, spatial on lanes
        # w*_ref : (9, Cp, Cp)   per-tap weights, (tap, out_ch, in_ch)
        # s*/b*  : (Cp, 1)       folded BN scale / shift (conv bias folded in)
        # o_ref  : (1, Cp, HW)   output tile (lane-dense, 128-lane multiple)
        # acc_ref: (Cp, HW)      f32 VMEM accumulator shared by both convs

        # ---- per-tap boundary masks over the flattened spatial (lane) axis.
        r = lax.broadcasted_iota(jnp.int32, (1, HW), 1)
        ww = r % W
        masks = []
        for dh, dw in offsets:
            if dh == 0 and dw == 0:
                masks.append(None)
                continue
            conds = []
            if dh == -1:
                conds.append(r >= W)                  # h - 1 >= 0
            elif dh == 1:
                conds.append(r < (H - 1) * W)         # h + 1 <= H-1
            if dw == -1:
                conds.append(ww >= 1)                 # w - 1 >= 0
            elif dw == 1:
                conds.append(ww <= W - 2)             # w + 1 <= W-1
            m = conds[0]
            for c in conds[1:]:
                m = m & c
            masks.append(jnp.where(m, 1.0, 0.0))      # (1, HW) f32

        def conv3x3(act, w_ref):
            # act: (Cp, HW) f32.  Centre tap initialises the accumulator
            # (no roll / mask needed), the other 8 taps are lane-rolls (XLU)
            # masked at the image boundary and accumulated on the MXU.
            acc_ref[...] = jnp.dot(w_ref[4], act,
                                   preferred_element_type=jnp.float32)
            for k, (dh, dw) in enumerate(offsets):
                if dh == 0 and dw == 0:
                    continue
                shift = (-(dh * W + dw)) % HW
                patch = pltpu.roll(act, shift=shift, axis=1) * masks[k]
                acc_ref[...] += jnp.dot(w_ref[k], patch,
                                        preferred_element_type=jnp.float32)

        x = x_ref[0]                                   # (Cp, HW)
        conv3x3(x, w1_ref)
        # folded BatchNorm (eval mode) + ReLU, per-output-channel scale/shift
        y = jnp.maximum(acc_ref[...] * s1_ref[...] + b1_ref[...], 0.0)
        conv3x3(y, w2_ref)
        z = jnp.maximum(acc_ref[...] * s2_ref[...] + b2_ref[...], 0.0)
        o_ref[0] = z.astype(o_ref.dtype)

    return kernel


def _fold_bn(conv_bias, gamma, beta, mean, var):
    """Fold conv bias + eval-mode BatchNorm into per-channel scale/shift."""
    scale = gamma / jnp.sqrt(var + EPS)
    shift = scale * (conv_bias - mean) + beta
    return scale, shift


def _pad_to(a, axis, size):
    pad = [(0, 0)] * a.ndim
    pad[axis] = (0, size - a.shape[axis])
    return jnp.pad(a, pad)


@jax.jit
def conv_block_forward(x_nchw, params):
    """x_nchw: (N, Cin, H, W) float32 -> (N, Cout, H, W) float32."""
    w1, b1c, g1, be1, m1, v1, w2, b2c, g2, be2, m2, v2 = params  # weights: OIHW
    N, Cin, H, W = x_nchw.shape
    Cout = w1.shape[0]
    HW = H * W
    Cp = ((max(Cin, Cout) + LANE - 1) // LANE) * LANE   # lane-dense channel pad

    # --- fold conv bias + eval-mode BN into per-channel scale / shift.
    s1, sh1 = _fold_bn(b1c, g1, be1, m1, v1)
    s2, sh2 = _fold_bn(b2c, g2, be2, m2, v2)
    s1 = _pad_to(s1, 0, Cp).reshape(Cp, 1)
    sh1 = _pad_to(sh1, 0, Cp).reshape(Cp, 1)
    s2 = _pad_to(s2, 0, Cp).reshape(Cp, 1)
    sh2 = _pad_to(sh2, 0, Cp).reshape(Cp, 1)

    # --- weights: OIHW -> (tap, out_ch, in_ch), zero-padded to (9, Cp, Cp).
    def prep_w(w):
        wt = jnp.transpose(w, (2, 3, 0, 1)).reshape(9, w.shape[0], w.shape[1])
        return _pad_to(_pad_to(wt, 1, Cp), 2, Cp)

    w1t = prep_w(w1)
    w2t = prep_w(w2)

    # --- NCHW -> (N, Cp, H*W): a pure reshape + channel zero-pad, no transpose.
    x = _pad_to(x_nchw.reshape(N, Cin, HW), 1, Cp)

    kernel = _make_conv_block_kernel(H, W)
    out = pl.pallas_call(
        kernel,
        out_shape=jax.ShapeDtypeStruct((N, Cp, HW), jnp.float32),
        grid_spec=pltpu.PrefetchScalarGridSpec(
            num_scalar_prefetch=0,
            grid=(N,),
            in_specs=[
                pl.BlockSpec((1, Cp, HW), lambda n: (n, 0, 0)),   # x
                pl.BlockSpec((9, Cp, Cp), lambda n: (0, 0, 0)),   # w1
                pl.BlockSpec((Cp, 1), lambda n: (0, 0)),          # scale1
                pl.BlockSpec((Cp, 1), lambda n: (0, 0)),          # shift1
                pl.BlockSpec((9, Cp, Cp), lambda n: (0, 0, 0)),   # w2
                pl.BlockSpec((Cp, 1), lambda n: (0, 0)),          # scale2
                pl.BlockSpec((Cp, 1), lambda n: (0, 0)),          # shift2
            ],
            out_specs=pl.BlockSpec((1, Cp, HW), lambda n: (n, 0, 0)),
            scratch_shapes=[pltpu.VMEM((Cp, HW), jnp.float32)],
        ),
        compiler_params=pltpu.CompilerParams(
            dimension_semantics=("parallel",)),   # batch split across v7x TCs
    )(x, w1t, s1, sh1, w2t, s2, sh2)

    # drop the channel padding and restore (N, Cout, H, W).
    return out[:, :Cout, :].reshape(N, Cout, H, W)


def _reference_forward(x_nchw, params):
    """Pure-JAX reference (lax.conv, NCHW/OIHW) for correctness checking."""
    w1, b1c, g1, be1, m1, v1, w2, b2c, g2, be2, m2, v2 = params

    def conv(x, w, b):
        y = lax.conv_general_dilated(
            x, w, window_strides=(1, 1), padding="SAME",
            dimension_numbers=("NCHW", "OIHW", "NCHW"))
        return y + b[None, :, None, None]

    def bn(x, g, be, m, v):
        inv = g / jnp.sqrt(v + EPS)
        return (x - m[None, :, None, None]) * inv[None, :, None, None] \
            + be[None, :, None, None]

    y = jnp.maximum(bn(conv(x_nchw, w1, b1c), g1, be1, m1, v1), 0.0)
    y = jnp.maximum(bn(conv(y, w2, b2c), g2, be2, m2, v2), 0.0)
    return y


def _init_params(key, in_channels, out_channels):
    """Deterministic synthetic parameters (PyTorch OIHW conventions)."""
    ks = jax.random.split(key, 12)
    f32 = jnp.float32
    w1 = 0.1 * jax.random.normal(ks[0], (out_channels, in_channels, 3, 3), f32)
    b1 = 0.1 * jax.random.normal(ks[1], (out_channels,), f32)
    g1 = 1.0 + 0.1 * jax.random.normal(ks[2], (out_channels,), f32)
    be1 = 0.1 * jax.random.normal(ks[3], (out_channels,), f32)
    m1 = 0.1 * jax.random.normal(ks[4], (out_channels,), f32)
    v1 = 0.5 + jnp.abs(jax.random.normal(ks[5], (out_channels,), f32))
    w2 = 0.1 * jax.random.normal(ks[6], (out_channels, out_channels, 3, 3), f32)
    b2 = 0.1 * jax.random.normal(ks[7], (out_channels,), f32)
    g2 = 1.0 + 0.1 * jax.random.normal(ks[8], (out_channels,), f32)
    be2 = 0.1 * jax.random.normal(ks[9], (out_channels,), f32)
    m2 = 0.1 * jax.random.normal(ks[10], (out_channels,), f32)
    v2 = 0.5 + jnp.abs(jax.random.normal(ks[11], (out_channels,), f32))
    return (w1, b1, g1, be1, m1, v1, w2, b2, g2, be2, m2, v2)


if __name__ == "__main__":
    key = jax.random.PRNGKey(0)
    k_x, k_p = jax.random.split(key)

    N, Cin, Cout, H, W = 2, 4, 8, 16, 16
    x = jax.random.normal(k_x, (N, Cin, H, W), jnp.float32)
    params = _init_params(k_p, Cin, Cout)

    out = jax.block_until_ready(conv_block_forward(x, params))
    ref = jax.block_until_ready(_reference_forward(x, params))

    assert out.shape == (N, Cout, H, W)
    np.testing.assert_allclose(np.asarray(out), np.asarray(ref),
                               rtol=1e-3, atol=1e-3)
    print("KERNEL_OK")
</pallas_src>

<mosaic_0001>
module attributes {stable_mosaic.version = 11 : i64} {
  func.func @kernel(%arg0: i32, %arg1: memref<1x128x256xf32, #tpu.memory_space<vmem>>, %arg2: memref<9x128x128xf32, #tpu.memory_space<vmem>>, %arg3: memref<128x1xf32, #tpu.memory_space<vmem>>, %arg4: memref<128x1xf32, #tpu.memory_space<vmem>>, %arg5: memref<9x128x128xf32, #tpu.memory_space<vmem>>, %arg6: memref<128x1xf32, #tpu.memory_space<vmem>>, %arg7: memref<128x1xf32, #tpu.memory_space<vmem>>, %arg8: memref<1x128x256xf32, #tpu.memory_space<vmem>>, %arg9: memref<128x256xf32, #tpu.memory_space<vmem>>) attributes {dimension_semantics = [#tpu.dimension_semantics<parallel>], iteration_bounds = array<i64: 2>, scalar_prefetch = 0 : i64, scratch_operands = 1 : i64, tpu.core_type = #tpu.core_type<tc>, window_params = [{transform_indices = @transform_0, window_bounds = array<i64: 1, 128, 256>}, {pipeline_mode = #tpu.pipeline_mode<synchronous>, transform_indices = @transform_1, window_bounds = array<i64: 9, 128, 128>}, {pipeline_mode = #tpu.pipeline_mode<synchronous>, transform_indices = @transform_2, window_bounds = array<i64: 128, 1>}, {pipeline_mode = #tpu.pipeline_mode<synchronous>, transform_indices = @transform_3, window_bounds = array<i64: 128, 1>}, {pipeline_mode = #tpu.pipeline_mode<synchronous>, transform_indices = @transform_4, window_bounds = array<i64: 9, 128, 128>}, {pipeline_mode = #tpu.pipeline_mode<synchronous>, transform_indices = @transform_5, window_bounds = array<i64: 128, 1>}, {pipeline_mode = #tpu.pipeline_mode<synchronous>, transform_indices = @transform_6, window_bounds = array<i64: 128, 1>}, {transform_indices = @transform_7, window_bounds = array<i64: 1, 128, 256>}]} {
    %0 = tpu.iota {dimensions = array<i32: 1>} : vector<1x256xi32>
    %c16_i32 = arith.constant 16 : i32
    %c0_i32 = arith.constant 0 : i32
    %1 = arith.cmpi eq, %c16_i32, %c0_i32 : i32
    %c1_i32 = arith.constant 1 : i32
    %2 = arith.select %1, %c1_i32, %c16_i32 : i32
    %3 = vector.broadcast %2 : i32 to vector<1x256xi32>
    %4 = arith.remsi %0, %3 : vector<1x256xi32>
    %c0_i32_0 = arith.constant 0 : i32
    %5 = vector.broadcast %c0_i32_0 : i32 to vector<1x256xi32>
    %6 = arith.cmpi ne, %4, %5 : vector<1x256xi32>
    %c0_i32_1 = arith.constant 0 : i32
    %7 = vector.broadcast %c0_i32_1 : i32 to vector<1x256xi32>
    %8 = arith.cmpi slt, %4, %7 : vector<1x256xi32>
    %c0_i32_2 = arith.constant 0 : i32
    %9 = arith.cmpi slt, %2, %c0_i32_2 : i32
    %10 = vector.broadcast %9 : i1 to vector<1x256xi1>
    %11 = vector.broadcast %10 : vector<1x256xi1> to vector<1x256xi1>
    %12 = arith.xori %8, %11 : vector<1x256xi1>
    %13 = arith.andi %12, %6 : vector<1x256xi1>
    %14 = vector.broadcast %2 : i32 to vector<1x256xi32>
    %15 = arith.addi %4, %14 : vector<1x256xi32>
    %16 = arith.select %13, %15, %4 : vector<1x256xi1>, vector<1x256xi32>
    %c16_i32_3 = arith.constant 16 : i32
    %17 = vector.broadcast %c16_i32_3 : i32 to vector<1x256xi32>
    %18 = arith.cmpi sge, %0, %17 : vector<1x256xi32>
    %c1_i32_4 = arith.constant 1 : i32
    %19 = vector.broadcast %c1_i32_4 : i32 to vector<1x256xi32>
    %20 = arith.cmpi sge, %16, %19 : vector<1x256xi32>
    %21 = arith.andi %18, %20 : vector<1x256xi1>
    %cst = arith.constant 1.000000e+00 : f32
    %cst_5 = arith.constant 0.000000e+00 : f32
    %22 = vector.broadcast %cst : f32 to vector<1x256xf32>
    %23 = vector.broadcast %cst_5 : f32 to vector<1x256xf32>
    %24 = arith.select %21, %22, %23 : vector<1x256xi1>, vector<1x256xf32>
    %c16_i32_6 = arith.constant 16 : i32
    %25 = vector.broadcast %c16_i32_6 : i32 to vector<1x256xi32>
    %26 = arith.cmpi sge, %0, %25 : vector<1x256xi32>
    %cst_7 = arith.constant 1.000000e+00 : f32
    %cst_8 = arith.constant 0.000000e+00 : f32
    %27 = vector.broadcast %cst_7 : f32 to vector<1x256xf32>
    %28 = vector.broadcast %cst_8 : f32 to vector<1x256xf32>
    %29 = arith.select %26, %27, %28 : vector<1x256xi1>, vector<1x256xf32>
    %c16_i32_9 = arith.constant 16 : i32
    %30 = vector.broadcast %c16_i32_9 : i32 to vector<1x256xi32>
    %31 = arith.cmpi sge, %0, %30 : vector<1x256xi32>
    %c14_i32 = arith.constant 14 : i32
    %32 = vector.broadcast %c14_i32 : i32 to vector<1x256xi32>
    %33 = arith.cmpi sle, %16, %32 : vector<1x256xi32>
    %34 = arith.andi %31, %33 : vector<1x256xi1>
    %cst_10 = arith.constant 1.000000e+00 : f32
    %cst_11 = arith.constant 0.000000e+00 : f32
    %35 = vector.broadcast %cst_10 : f32 to vector<1x256xf32>
    %36 = vector.broadcast %cst_11 : f32 to vector<1x256xf32>
    %37 = arith.select %34, %35, %36 : vector<1x256xi1>, vector<1x256xf32>
    %c1_i32_12 = arith.constant 1 : i32
    %38 = vector.broadcast %c1_i32_12 : i32 to vector<1x256xi32>
    %39 = arith.cmpi sge, %16, %38 : vector<1x256xi32>
    %cst_13 = arith.constant 1.000000e+00 : f32
    %cst_14 = arith.constant 0.000000e+00 : f32
    %40 = vector.broadcast %cst_13 : f32 to vector<1x256xf32>
    %41 = vector.broadcast %cst_14 : f32 to vector<1x256xf32>
    %42 = arith.select %39, %40, %41 : vector<1x256xi1>, vector<1x256xf32>
    %c14_i32_15 = arith.constant 14 : i32
    %43 = vector.broadcast %c14_i32_15 : i32 to vector<1x256xi32>
    %44 = arith.cmpi sle, %16, %43 : vector<1x256xi32>
    %cst_16 = arith.constant 1.000000e+00 : f32
    %cst_17 = arith.constant 0.000000e+00 : f32
    %45 = vector.broadcast %cst_16 : f32 to vector<1x256xf32>
    %46 = vector.broadcast %cst_17 : f32 to vector<1x256xf32>
    %47 = arith.select %44, %45, %46 : vector<1x256xi1>, vector<1x256xf32>
    %c240_i32 = arith.constant 240 : i32
    %48 = vector.broadcast %c240_i32 : i32 to vector<1x256xi32>
    %49 = arith.cmpi slt, %0, %48 : vector<1x256xi32>
    %c1_i32_18 = arith.constant 1 : i32
    %50 = vector.broadcast %c1_i32_18 : i32 to vector<1x256xi32>
    %51 = arith.cmpi sge, %16, %50 : vector<1x256xi32>
    %52 = arith.andi %49, %51 : vector<1x256xi1>
    %cst_19 = arith.constant 1.000000e+00 : f32
    %cst_20 = arith.constant 0.000000e+00 : f32
    %53 = vector.broadcast %cst_19 : f32 to vector<1x256xf32>
    %54 = vector.broadcast %cst_20 : f32 to vector<1x256xf32>
    %55 = arith.select %52, %53, %54 : vector<1x256xi1>, vector<1x256xf32>
    %c240_i32_21 = arith.constant 240 : i32
    %56 = vector.broadcast %c240_i32_21 : i32 to vector<1x256xi32>
    %57 = arith.cmpi slt, %0, %56 : vector<1x256xi32>
    %cst_22 = arith.constant 1.000000e+00 : f32
    %cst_23 = arith.constant 0.000000e+00 : f32
    %58 = vector.broadcast %cst_22 : f32 to vector<1x256xf32>
    %59 = vector.broadcast %cst_23 : f32 to vector<1x256xf32>
    %60 = arith.select %57, %58, %59 : vector<1x256xi1>, vector<1x256xf32>
    %c240_i32_24 = arith.constant 240 : i32
    %61 = vector.broadcast %c240_i32_24 : i32 to vector<1x256xi32>
    %62 = arith.cmpi slt, %0, %61 : vector<1x256xi32>
    %c14_i32_25 = arith.constant 14 : i32
    %63 = vector.broadcast %c14_i32_25 : i32 to vector<1x256xi32>
    %64 = arith.cmpi sle, %16, %63 : vector<1x256xi32>
    %65 = arith.andi %62, %64 : vector<1x256xi1>
    %cst_26 = arith.constant 1.000000e+00 : f32
    %cst_27 = arith.constant 0.000000e+00 : f32
    %66 = vector.broadcast %cst_26 : f32 to vector<1x256xf32>
    %67 = vector.broadcast %cst_27 : f32 to vector<1x256xf32>
    %68 = arith.select %65, %66, %67 : vector<1x256xi1>, vector<1x256xf32>
    %c0 = arith.constant 0 : index
    %c0_28 = arith.constant 0 : index
    %c0_29 = arith.constant 0 : index
    %69 = vector.load %arg1[%c0, %c0_28, %c0_29] : memref<1x128x256xf32, #tpu.memory_space<vmem>>, vector<1x128x256xf32>
    %70 = vector.shape_cast %69 : vector<1x128x256xf32> to vector<128x256xf32>
    %c4 = arith.constant 4 : index
    %c0_30 = arith.constant 0 : index
    %c0_31 = arith.constant 0 : index
    %71 = vector.load %arg2[%c4, %c0_30, %c0_31] : memref<9x128x128xf32, #tpu.memory_space<vmem>>, vector<1x128x128xf32>
    %72 = vector.shape_cast %71 : vector<1x128x128xf32> to vector<128x128xf32>
    %cst_32 = arith.constant dense<0.000000e+00> : vector<128x256xf32>
    %73 = tpu.matmul %72, %70, %cst_32 {dimension_numbers = #tpu.dot_dimension_numbers<[1], [0], [0], [1], [0, 0, 1, 1], [], []>} : vector<128x128xf32>, vector<128x256xf32>, vector<128x256xf32> -> vector<128x256xf32>
    %c0_33 = arith.constant 0 : index
    %c0_34 = arith.constant 0 : index
    %74 = vector.load %arg9[%c0_33, %c0_34] : memref<128x256xf32, #tpu.memory_space<vmem>>, vector<128x256xf32>
    tpu.vector_store %arg9[%c0_33, %c0_34], %73 {strides = array<i32>} : memref<128x256xf32, #tpu.memory_space<vmem>>, vector<128x256xf32>,
    %c17_i32 = arith.constant 17 : i32
    %75 = tpu.dynamic_rotate %70 by %c17_i32 dim 1 : vector<128x256xf32>, i32 -> vector<128x256xf32>
    %76 = vector.broadcast %24 : vector<1x256xf32> to vector<128x256xf32>
    %77 = arith.mulf %75, %76 : vector<128x256xf32>
    %c0_35 = arith.constant 0 : index
    %c0_36 = arith.constant 0 : index
    %78 = vector.load %arg9[%c0_35, %c0_36] : memref<128x256xf32, #tpu.memory_space<vmem>>, vector<128x256xf32>
    %c0_37 = arith.constant 0 : index
    %c0_38 = arith.constant 0 : index
    %c0_39 = arith.constant 0 : index
    %79 = vector.load %arg2[%c0_37, %c0_38, %c0_39] : memref<9x128x128xf32, #tpu.memory_space<vmem>>, vector<1x128x128xf32>
    %80 = vector.shape_cast %79 : vector<1x128x128xf32> to vector<128x128xf32>
    %cst_40 = arith.constant dense<0.000000e+00> : vector<128x256xf32>
    %81 = tpu.matmul %80, %77, %cst_40 {dimension_numbers = #tpu.dot_dimension_numbers<[1], [0], [0], [1], [0, 0, 1, 1], [], []>} : vector<128x128xf32>, vector<128x256xf32>, vector<128x256xf32> -> vector<128x256xf32>
    %82 = arith.addf %78, %81 : vector<128x256xf32>
    %c0_41 = arith.constant 0 : index
    %c0_42 = arith.constant 0 : index
    %83 = vector.load %arg9[%c0_41, %c0_42] : memref<128x256xf32, #tpu.memory_space<vmem>>, vector<128x256xf32>
    tpu.vector_store %arg9[%c0_41, %c0_42], %82 {strides = array<i32>} : memref<128x256xf32, #tpu.memory_space<vmem>>, vector<128x256xf32>,
    %c16_i32_43 = arith.constant 16 : i32
    %84 = tpu.dynamic_rotate %70 by %c16_i32_43 dim 1 : vector<128x256xf32>, i32 -> vector<128x256xf32>
    %85 = vector.broadcast %29 : vector<1x256xf32> to vector<128x256xf32>
    %86 = arith.mulf %84, %85 : vector<128x256xf32>
    %c0_44 = arith.constant 0 : index
    %c0_45 = arith.constant 0 : index
    %87 = vector.load %arg9[%c0_44, %c0_45] : memref<128x256xf32, #tpu.memory_space<vmem>>, vector<128x256xf32>
    %c1 = arith.constant 1 : index
    %c0_46 = arith.constant 0 : index
    %c0_47 = arith.constant 0 : index
    %88 = vector.load %arg2[%c1, %c0_46, %c0_47] : memref<9x128x128xf32, #tpu.memory_space<vmem>>, vector<1x128x128xf32>
    %89 = vector.shape_cast %88 : vector<1x128x128xf32> to vector<128x128xf32>
    %cst_48 = arith.constant dense<0.000000e+00> : vector<128x256xf32>
    %90 = tpu.matmul %89, %86, %cst_48 {dimension_numbers = #tpu.dot_dimension_numbers<[1], [0], [0], [1], [0, 0, 1, 1], [], []>} : vector<128x128xf32>, vector<128x256xf32>, vector<128x256xf32> -> vector<128x256xf32>
    %91 = arith.addf %87, %90 : vector<128x256xf32>
    %c0_49 = arith.constant 0 : index
    %c0_50 = arith.constant 0 : index
    %92 = vector.load %arg9[%c0_49, %c0_50] : memref<128x256xf32, #tpu.memory_space<vmem>>, vector<128x256xf32>
    tpu.vector_store %arg9[%c0_49, %c0_50], %91 {strides = array<i32>} : memref<128x256xf32, #tpu.memory_space<vmem>>, vector<128x256xf32>,
    %c15_i32 = arith.constant 15 : i32
    %93 = tpu.dynamic_rotate %70 by %c15_i32 dim 1 : vector<128x256xf32>, i32 -> vector<128x256xf32>
    %94 = vector.broadcast %37 : vector<1x256xf32> to vector<128x256xf32>
    %95 = arith.mulf %93, %94 : vector<128x256xf32>
    %c0_51 = arith.constant 0 : index
    %c0_52 = arith.constant 0 : index
    %96 = vector.load %arg9[%c0_51, %c0_52] : memref<128x256xf32, #tpu.memory_space<vmem>>, vector<128x256xf32>
    %c2 = arith.constant 2 : index
    %c0_53 = arith.constant 0 : index
    %c0_54 = arith.constant 0 : index
    %97 = vector.load %arg2[%c2, %c0_53, %c0_54] : memref<9x128x128xf32, #tpu.memory_space<vmem>>, vector<1x128x128xf32>
    %98 = vector.shape_cast %97 : vector<1x128x128xf32> to vector<128x128xf32>
    %cst_55 = arith.constant dense<0.000000e+00> : vector<128x256xf32>
    %99 = tpu.matmul %98, %95, %cst_55 {dimension_numbers = #tpu.dot_dimension_numbers<[1], [0], [0], [1], [0, 0, 1, 1], [], []>} : vector<128x128xf32>, vector<128x256xf32>, vector<128x256xf32> -> vector<128x256xf32>
    %100 = arith.addf %96, %99 : vector<128x256xf32>
    %c0_56 = arith.constant 0 : index
    %c0_57 = arith.constant 0 : index
    %101 = vector.load %arg9[%c0_56, %c0_57] : memref<128x256xf32, #tpu.memory_space<vmem>>, vector<128x256xf32>
    tpu.vector_store %arg9[%c0_56, %c0_57], %100 {strides = array<i32>} : memref<128x256xf32, #tpu.memory_space<vmem>>, vector<128x256xf32>,
    %c1_i32_58 = arith.constant 1 : i32
    %102 = tpu.dynamic_rotate %70 by %c1_i32_58 dim 1 : vector<128x256xf32>, i32 -> vector<128x256xf32>
    %103 = vector.broadcast %42 : vector<1x256xf32> to vector<128x256xf32>
    %104 = arith.mulf %102, %103 : vector<128x256xf32>
    %c0_59 = arith.constant 0 : index
    %c0_60 = arith.constant 0 : index
    %105 = vector.load %arg9[%c0_59, %c0_60] : memref<128x256xf32, #tpu.memory_space<vmem>>, vector<128x256xf32>
    %c3 = arith.constant 3 : index
    %c0_61 = arith.constant 0 : index
    %c0_62 = arith.constant 0 : index
    %106 = vector.load %arg2[%c3, %c0_61, %c0_62] : memref<9x128x128xf32, #tpu.memory_space<vmem>>, vector<1x128x128xf32>
    %107 = vector.shape_cast %106 : vector<1x128x128xf32> to vector<128x128xf32>
    %cst_63 = arith.constant dense<0.000000e+00> : vector<128x256xf32>
    %108 = tpu.matmul %107, %104, %cst_63 {dimension_numbers = #tpu.dot_dimension_numbers<[1], [0], [0], [1], [0, 0, 1, 1], [], []>} : vector<128x128xf32>, vector<128x256xf32>, vector<128x256xf32> -> vector<128x256xf32>
    %109 = arith.addf %105, %108 : vector<128x256xf32>
    %c0_64 = arith.constant 0 : index
    %c0_65 = arith.constant 0 : index
    %110 = vector.load %arg9[%c0_64, %c0_65] : memref<128x256xf32, #tpu.memory_space<vmem>>, vector<128x256xf32>
    tpu.vector_store %arg9[%c0_64, %c0_65], %109 {strides = array<i32>} : memref<128x256xf32, #tpu.memory_space<vmem>>, vector<128x256xf32>,
    %c255_i32 = arith.constant 255 : i32
    %111 = tpu.dynamic_rotate %70 by %c255_i32 dim 1 : vector<128x256xf32>, i32 -> vector<128x256xf32>
    %112 = vector.broadcast %47 : vector<1x256xf32> to vector<128x256xf32>
    %113 = arith.mulf %111, %112 : vector<128x256xf32>
    %c0_66 = arith.constant 0 : index
    %c0_67 = arith.constant 0 : index
    %114 = vector.load %arg9[%c0_66, %c0_67] : memref<128x256xf32, #tpu.memory_space<vmem>>, vector<128x256xf32>
    %c5 = arith.constant 5 : index
    %c0_68 = arith.constant 0 : index
    %c0_69 = arith.constant 0 : index
    %115 = vector.load %arg2[%c5, %c0_68, %c0_69] : memref<9x128x128xf32, #tpu.memory_space<vmem>>, vector<1x128x128xf32>
    %116 = vector.shape_cast %115 : vector<1x128x128xf32> to vector<128x128xf32>
    %cst_70 = arith.constant dense<0.000000e+00> : vector<128x256xf32>
    %117 = tpu.matmul %116, %113, %cst_70 {dimension_numbers = #tpu.dot_dimension_numbers<[1], [0], [0], [1], [0, 0, 1, 1], [], []>} : vector<128x128xf32>, vector<128x256xf32>, vector<128x256xf32> -> vector<128x256xf32>
    %118 = arith.addf %114, %117 : vector<128x256xf32>
    %c0_71 = arith.constant 0 : index
    %c0_72 = arith.constant 0 : index
    %119 = vector.load %arg9[%c0_71, %c0_72] : memref<128x256xf32, #tpu.memory_space<vmem>>, vector<128x256xf32>
    tpu.vector_store %arg9[%c0_71, %c0_72], %118 {strides = array<i32>} : memref<128x256xf32, #tpu.memory_space<vmem>>, vector<128x256xf32>,
    %c241_i32 = arith.constant 241 : i32
    %120 = tpu.dynamic_rotate %70 by %c241_i32 dim 1 : vector<128x256xf32>, i32 -> vector<128x256xf32>
    %121 = vector.broadcast %55 : vector<1x256xf32> to vector<128x256xf32>
    %122 = arith.mulf %120, %121 : vector<128x256xf32>
    %c0_73 = arith.constant 0 : index
    %c0_74 = arith.constant 0 : index
    %123 = vector.load %arg9[%c0_73, %c0_74] : memref<128x256xf32, #tpu.memory_space<vmem>>, vector<128x256xf32>
    %c6 = arith.constant 6 : index
    %c0_75 = arith.constant 0 : index
    %c0_76 = arith.constant 0 : index
    %124 = vector.load %arg2[%c6, %c0_75, %c0_76] : memref<9x128x128xf32, #tpu.memory_space<vmem>>, vector<1x128x128xf32>
    %125 = vector.shape_cast %124 : vector<1x128x128xf32> to vector<128x128xf32>
    %cst_77 = arith.constant dense<0.000000e+00> : vector<128x256xf32>
    %126 = tpu.matmul %125, %122, %cst_77 {dimension_numbers = #tpu.dot_dimension_numbers<[1], [0], [0], [1], [0, 0, 1, 1], [], []>} : vector<128x128xf32>, vector<128x256xf32>, vector<128x256xf32> -> vector<128x256xf32>
    %127 = arith.addf %123, %126 : vector<128x256xf32>
    %c0_78 = arith.constant 0 : index
    %c0_79 = arith.constant 0 : index
    %128 = vector.load %arg9[%c0_78, %c0_79] : memref<128x256xf32, #tpu.memory_space<vmem>>, vector<128x256xf32>
    tpu.vector_store %arg9[%c0_78, %c0_79], %127 {strides = array<i32>} : memref<128x256xf32, #tpu.memory_space<vmem>>, vector<128x256xf32>,
    %c240_i32_80 = arith.constant 240 : i32
    %129 = tpu.dynamic_rotate %70 by %c240_i32_80 dim 1 : vector<128x256xf32>, i32 -> vector<128x256xf32>
    %130 = vector.broadcast %60 : vector<1x256xf32> to vector<128x256xf32>
    %131 = arith.mulf %129, %130 : vector<128x256xf32>
    %c0_81 = arith.constant 0 : index
    %c0_82 = arith.constant 0 : index
    %132 = vector.load %arg9[%c0_81, %c0_82] : memref<128x256xf32, #tpu.memory_space<vmem>>, vector<128x256xf32>
    %c7 = arith.constant 7 : index
    %c0_83 = arith.constant 0 : index
    %c0_84 = arith.constant 0 : index
    %133 = vector.load %arg2[%c7, %c0_83, %c0_84] : memref<9x128x128xf32, #tpu.memory_space<vmem>>, vector<1x128x128xf32>
    %134 = vector.shape_cast %133 : vector<1x128x128xf32> to vector<128x128xf32>
    %cst_85 = arith.constant dense<0.000000e+00> : vector<128x256xf32>
    %135 = tpu.matmul %134, %131, %cst_85 {dimension_numbers = #tpu.dot_dimension_numbers<[1], [0], [0], [1], [0, 0, 1, 1], [], []>} : vector<128x128xf32>, vector<128x256xf32>, vector<128x256xf32> -> vector<128x256xf32>
    %136 = arith.addf %132, %135 : vector<128x256xf32>
    %c0_86 = arith.constant 0 : index
    %c0_87 = arith.constant 0 : index
    %137 = vector.load %arg9[%c0_86, %c0_87] : memref<128x256xf32, #tpu.memory_space<vmem>>, vector<128x256xf32>
    tpu.vector_store %arg9[%c0_86, %c0_87], %136 {strides = array<i32>} : memref<128x256xf32, #tpu.memory_space<vmem>>, vector<128x256xf32>,
    %c239_i32 = arith.constant 239 : i32
    %138 = tpu.dynamic_rotate %70 by %c239_i32 dim 1 : vector<128x256xf32>, i32 -> vector<128x256xf32>
    %139 = vector.broadcast %68 : vector<1x256xf32> to vector<128x256xf32>
    %140 = arith.mulf %138, %139 : vector<128x256xf32>
    %c0_88 = arith.constant 0 : index
    %c0_89 = arith.constant 0 : index
    %141 = vector.load %arg9[%c0_88, %c0_89] : memref<128x256xf32, #tpu.memory_space<vmem>>, vector<128x256xf32>
    %c8 = arith.constant 8 : index
    %c0_90 = arith.constant 0 : index
    %c0_91 = arith.constant 0 : index
    %142 = vector.load %arg2[%c8, %c0_90, %c0_91] : memref<9x128x128xf32, #tpu.memory_space<vmem>>, vector<1x128x128xf32>
    %143 = vector.shape_cast %142 : vector<1x128x128xf32> to vector<128x128xf32>
    %cst_92 = arith.constant dense<0.000000e+00> : vector<128x256xf32>
    %144 = tpu.matmul %143, %140, %cst_92 {dimension_numbers = #tpu.dot_dimension_numbers<[1], [0], [0], [1], [0, 0, 1, 1], [], []>} : vector<128x128xf32>, vector<128x256xf32>, vector<128x256xf32> -> vector<128x256xf32>
    %145 = arith.addf %141, %144 : vector<128x256xf32>
    %c0_93 = arith.constant 0 : index
    %c0_94 = arith.constant 0 : index
    %146 = vector.load %arg9[%c0_93, %c0_94] : memref<128x256xf32, #tpu.memory_space<vmem>>, vector<128x256xf32>
    tpu.vector_store %arg9[%c0_93, %c0_94], %145 {strides = array<i32>} : memref<128x256xf32, #tpu.memory_space<vmem>>, vector<128x256xf32>,
    %c0_95 = arith.constant 0 : index
    %c0_96 = arith.constant 0 : index
    %147 = vector.load %arg9[%c0_95, %c0_96] : memref<128x256xf32, #tpu.memory_space<vmem>>, vector<128x256xf32>
    %c0_97 = arith.constant 0 : index
    %c0_98 = arith.constant 0 : index
    %148 = vector.load %arg3[%c0_97, %c0_98] : memref<128x1xf32, #tpu.memory_space<vmem>>, vector<128x1xf32>
    %149 = vector.broadcast %148 : vector<128x1xf32> to vector<128x256xf32>
    %150 = arith.mulf %147, %149 : vector<128x256xf32>
    %c0_99 = arith.constant 0 : index
    %c0_100 = arith.constant 0 : index
    %151 = vector.load %arg4[%c0_99, %c0_100] : memref<128x1xf32, #tpu.memory_space<vmem>>, vector<128x1xf32>
    %152 = vector.broadcast %151 : vector<128x1xf32> to vector<128x256xf32>
    %153 = arith.addf %150, %152 : vector<128x256xf32>
    %cst_101 = arith.constant 0.000000e+00 : f32
    %154 = vector.broadcast %cst_101 : f32 to vector<128x256xf32>
    %155 = arith.maximumf %153, %154 : vector<128x256xf32>
    %c4_102 = arith.constant 4 : index
    %c0_103 = arith.constant 0 : index
    %c0_104 = arith.constant 0 : index
    %156 = vector.load %arg5[%c4_102, %c0_103, %c0_104] : memref<9x128x128xf32, #tpu.memory_space<vmem>>, vector<1x128x128xf32>
    %157 = vector.shape_cast %156 : vector<1x128x128xf32> to vector<128x128xf32>
    %cst_105 = arith.constant dense<0.000000e+00> : vector<128x256xf32>
    %158 = tpu.matmul %157, %155, %cst_105 {dimension_numbers = #tpu.dot_dimension_numbers<[1], [0], [0], [1], [0, 0, 1, 1], [], []>} : vector<128x128xf32>, vector<128x256xf32>, vector<128x256xf32> -> vector<128x256xf32>
    %c0_106 = arith.constant 0 : index
    %c0_107 = arith.constant 0 : index
    %159 = vector.load %arg9[%c0_106, %c0_107] : memref<128x256xf32, #tpu.memory_space<vmem>>, vector<128x256xf32>
    tpu.vector_store %arg9[%c0_106, %c0_107], %158 {strides = array<i32>} : memref<128x256xf32, #tpu.memory_space<vmem>>, vector<128x256xf32>,
    %c17_i32_108 = arith.constant 17 : i32
    %160 = tpu.dynamic_rotate %155 by %c17_i32_108 dim 1 : vector<128x256xf32>, i32 -> vector<128x256xf32>
    %161 = vector.broadcast %24 : vector<1x256xf32> to vector<128x256xf32>
    %162 = arith.mulf %160, %161 : vector<128x256xf32>
    %c0_109 = arith.constant 0 : index
    %c0_110 = arith.constant 0 : index
    %163 = vector.load %arg9[%c0_109, %c0_110] : memref<128x256xf32, #tpu.memory_space<vmem>>, vector<128x256xf32>
    %c0_111 = arith.constant 0 : index
    %c0_112 = arith.constant 0 : index
    %c0_113 = arith.constant 0 : index
    %164 = vector.load %arg5[%c0_111, %c0_112, %c0_113] : memref<9x128x128xf32, #tpu.memory_space<vmem>>, vector<1x128x128xf32>
    %165 = vector.shape_cast %164 : vector<1x128x128xf32> to vector<128x128xf32>
    %cst_114 = arith.constant dense<0.000000e+00> : vector<128x256xf32>
    %166 = tpu.matmul %165, %162, %cst_114 {dimension_numbers = #tpu.dot_dimension_numbers<[1], [0], [0], [1], [0, 0, 1, 1], [], []>} : vector<128x128xf32>, vector<128x256xf32>, vector<128x256xf32> -> vector<128x256xf32>
    %167 = arith.addf %163, %166 : vector<128x256xf32>
    %c0_115 = arith.constant 0 : index
    %c0_116 = arith.constant 0 : index
    %168 = vector.load %arg9[%c0_115, %c0_116] : memref<128x256xf32, #tpu.memory_space<vmem>>, vector<128x256xf32>
    tpu.vector_store %arg9[%c0_115, %c0_116], %167 {strides = array<i32>} : memref<128x256xf32, #tpu.memory_space<vmem>>, vector<128x256xf32>,
    %c16_i32_117 = arith.constant 16 : i32
    %169 = tpu.dynamic_rotate %155 by %c16_i32_117 dim 1 : vector<128x256xf32>, i32 -> vector<128x256xf32>
    %170 = vector.broadcast %29 : vector<1x256xf32> to vector<128x256xf32>
    %171 = arith.mulf %169, %170 : vector<128x256xf32>
    %c0_118 = arith.constant 0 : index
    %c0_119 = arith.constant 0 : index
    %172 = vector.load %arg9[%c0_118, %c0_119] : memref<128x256xf32, #tpu.memory_space<vmem>>, vector<128x256xf32>
    %c1_120 = arith.constant 1 : index
    %c0_121 = arith.constant 0 : index
    %c0_122 = arith.constant 0 : index
    %173 = vector.load %arg5[%c1_120, %c0_121, %c0_122] : memref<9x128x128xf32, #tpu.memory_space<vmem>>, vector<1x128x128xf32>
    %174 = vector.shape_cast %173 : vector<1x128x128xf32> to vector<128x128xf32>
    %cst_123 = arith.constant dense<0.000000e+00> : vector<128x256xf32>
    %175 = tpu.matmul %174, %171, %cst_123 {dimension_numbers = #tpu.dot_dimension_numbers<[1], [0], [0], [1], [0, 0, 1, 1], [], []>} : vector<128x128xf32>, vector<128x256xf32>, vector<128x256xf32> -> vector<128x256xf32>
    %176 = arith.addf %172, %175 : vector<128x256xf32>
    %c0_124 = arith.constant 0 : index
    %c0_125 = arith.constant 0 : index
    %177 = vector.load %arg9[%c0_124, %c0_125] : memref<128x256xf32, #tpu.memory_space<vmem>>, vector<128x256xf32>
    tpu.vector_store %arg9[%c0_124, %c0_125], %176 {strides = array<i32>} : memref<128x256xf32, #tpu.memory_space<vmem>>, vector<128x256xf32>,
    %c15_i32_126 = arith.constant 15 : i32
    %178 = tpu.dynamic_rotate %155 by %c15_i32_126 dim 1 : vector<128x256xf32>, i32 -> vector<128x256xf32>
    %179 = vector.broadcast %37 : vector<1x256xf32> to vector<128x256xf32>
    %180 = arith.mulf %178, %179 : vector<128x256xf32>
    %c0_127 = arith.constant 0 : index
    %c0_128 = arith.constant 0 : index
    %181 = vector.load %arg9[%c0_127, %c0_128] : memref<128x256xf32, #tpu.memory_space<vmem>>, vector<128x256xf32>
    %c2_129 = arith.constant 2 : index
    %c0_130 = arith.constant 0 : index
    %c0_131 = arith.constant 0 : index
    %182 = vector.load %arg5[%c2_129, %c0_130, %c0_131] : memref<9x128x128xf32, #tpu.memory_space<vmem>>, vector<1x128x128xf32>
    %183 = vector.shape_cast %182 : vector<1x128x128xf32> to vector<128x128xf32>
    %cst_132 = arith.constant dense<0.000000e+00> : vector<128x256xf32>
    %184 = tpu.matmul %183, %180, %cst_132 {dimension_numbers = #tpu.dot_dimension_numbers<[1], [0], [0], [1], [0, 0, 1, 1], [], []>} : vector<128x128xf32>, vector<128x256xf32>, vector<128x256xf32> -> vector<128x256xf32>
    %185 = arith.addf %181, %184 : vector<128x256xf32>
    %c0_133 = arith.constant 0 : index
    %c0_134 = arith.constant 0 : index
    %186 = vector.load %arg9[%c0_133, %c0_134] : memref<128x256xf32, #tpu.memory_space<vmem>>, vector<128x256xf32>
    tpu.vector_store %arg9[%c0_133, %c0_134], %185 {strides = array<i32>} : memref<128x256xf32, #tpu.memory_space<vmem>>, vector<128x256xf32>,
    %c1_i32_135 = arith.constant 1 : i32
    %187 = tpu.dynamic_rotate %155 by %c1_i32_135 dim 1 : vector<128x256xf32>, i32 -> vector<128x256xf32>
    %188 = vector.broadcast %42 : vector<1x256xf32> to vector<128x256xf32>
    %189 = arith.mulf %187, %188 : vector<128x256xf32>
    %c0_136 = arith.constant 0 : index
    %c0_137 = arith.constant 0 : index
    %190 = vector.load %arg9[%c0_136, %c0_137] : memref<128x256xf32, #tpu.memory_space<vmem>>, vector<128x256xf32>
    %c3_138 = arith.constant 3 : index
    %c0_139 = arith.constant 0 : index
    %c0_140 = arith.constant 0 : index
    %191 = vector.load %arg5[%c3_138, %c0_139, %c0_140] : memref<9x128x128xf32, #tpu.memory_space<vmem>>, vector<1x128x128xf32>
    %192 = vector.shape_cast %191 : vector<1x128x128xf32> to vector<128x128xf32>
    %cst_141 = arith.constant dense<0.000000e+00> : vector<128x256xf32>
    %193 = tpu.matmul %192, %189, %cst_141 {dimension_numbers = #tpu.dot_dimension_numbers<[1], [0], [0], [1], [0, 0, 1, 1], [], []>} : vector<128x128xf32>, vector<128x256xf32>, vector<128x256xf32> -> vector<128x256xf32>
    %194 = arith.addf %190, %193 : vector<128x256xf32>
    %c0_142 = arith.constant 0 : index
    %c0_143 = arith.constant 0 : index
    %195 = vector.load %arg9[%c0_142, %c0_143] : memref<128x256xf32, #tpu.memory_space<vmem>>, vector<128x256xf32>
    tpu.vector_store %arg9[%c0_142, %c0_143], %194 {strides = array<i32>} : memref<128x256xf32, #tpu.memory_space<vmem>>, vector<128x256xf32>,
    %c255_i32_144 = arith.constant 255 : i32
    %196 = tpu.dynamic_rotate %155 by %c255_i32_144 dim 1 : vector<128x256xf32>, i32 -> vector<128x256xf32>
    %197 = vector.broadcast %47 : vector<1x256xf32> to vector<128x256xf32>
    %198 = arith.mulf %196, %197 : vector<128x256xf32>
    %c0_145 = arith.constant 0 : index
    %c0_146 = arith.constant 0 : index
    %199 = vector.load %arg9[%c0_145, %c0_146] : memref<128x256xf32, #tpu.memory_space<vmem>>, vector<128x256xf32>
    %c5_147 = arith.constant 5 : index
    %c0_148 = arith.constant 0 : index
    %c0_149 = arith.constant 0 : index
    %200 = vector.load %arg5[%c5_147, %c0_148, %c0_149] : memref<9x128x128xf32, #tpu.memory_space<vmem>>, vector<1x128x128xf32>
    %201 = vector.shape_cast %200 : vector<1x128x128xf32> to vector<128x128xf32>
    %cst_150 = arith.constant dense<0.000000e+00> : vector<128x256xf32>
    %202 = tpu.matmul %201, %198, %cst_150 {dimension_numbers = #tpu.dot_dimension_numbers<[1], [0], [0], [1], [0, 0, 1, 1], [], []>} : vector<128x128xf32>, vector<128x256xf32>, vector<128x256xf32> -> vector<128x256xf32>
    %203 = arith.addf %199, %202 : vector<128x256xf32>
    %c0_151 = arith.constant 0 : index
    %c0_152 = arith.constant 0 : index
    %204 = vector.load %arg9[%c0_151, %c0_152] : memref<128x256xf32, #tpu.memory_space<vmem>>, vector<128x256xf32>
    tpu.vector_store %arg9[%c0_151, %c0_152], %203 {strides = array<i32>} : memref<128x256xf32, #tpu.memory_space<vmem>>, vector<128x256xf32>,
    %c241_i32_153 = arith.constant 241 : i32
    %205 = tpu.dynamic_rotate %155 by %c241_i32_153 dim 1 : vector<128x256xf32>, i32 -> vector<128x256xf32>
    %206 = vector.broadcast %55 : vector<1x256xf32> to vector<128x256xf32>
    %207 = arith.mulf %205, %206 : vector<128x256xf32>
    %c0_154 = arith.constant 0 : index
    %c0_155 = arith.constant 0 : index
    %208 = vector.load %arg9[%c0_154, %c0_155] : memref<128x256xf32, #tpu.memory_space<vmem>>, vector<128x256xf32>
    %c6_156 = arith.constant 6 : index
    %c0_157 = arith.constant 0 : index
    %c0_158 = arith.constant 0 : index
    %209 = vector.load %arg5[%c6_156, %c0_157, %c0_158] : memref<9x128x128xf32, #tpu.memory_space<vmem>>, vector<1x128x128xf32>
    %210 = vector.shape_cast %209 : vector<1x128x128xf32> to vector<128x128xf32>
    %cst_159 = arith.constant dense<0.000000e+00> : vector<128x256xf32>
    %211 = tpu.matmul %210, %207, %cst_159 {dimension_numbers = #tpu.dot_dimension_numbers<[1], [0], [0], [1], [0, 0, 1, 1], [], []>} : vector<128x128xf32>, vector<128x256xf32>, vector<128x256xf32> -> vector<128x256xf32>
    %212 = arith.addf %208, %211 : vector<128x256xf32>
    %c0_160 = arith.constant 0 : index
    %c0_161 = arith.constant 0 : index
    %213 = vector.load %arg9[%c0_160, %c0_161] : memref<128x256xf32, #tpu.memory_space<vmem>>, vector<128x256xf32>
    tpu.vector_store %arg9[%c0_160, %c0_161], %212 {strides = array<i32>} : memref<128x256xf32, #tpu.memory_space<vmem>>, vector<128x256xf32>,
    %c240_i32_162 = arith.constant 240 : i32
    %214 = tpu.dynamic_rotate %155 by %c240_i32_162 dim 1 : vector<128x256xf32>, i32 -> vector<128x256xf32>
    %215 = vector.broadcast %60 : vector<1x256xf32> to vector<128x256xf32>
    %216 = arith.mulf %214, %215 : vector<128x256xf32>
    %c0_163 = arith.constant 0 : index
    %c0_164 = arith.constant 0 : index
    %217 = vector.load %arg9[%c0_163, %c0_164] : memref<128x256xf32, #tpu.memory_space<vmem>>, vector<128x256xf32>
    %c7_165 = arith.constant 7 : index
    %c0_166 = arith.constant 0 : index
    %c0_167 = arith.constant 0 : index
    %218 = vector.load %arg5[%c7_165, %c0_166, %c0_167] : memref<9x128x128xf32, #tpu.memory_space<vmem>>, vector<1x128x128xf32>
    %219 = vector.shape_cast %218 : vector<1x128x128xf32> to vector<128x128xf32>
    %cst_168 = arith.constant dense<0.000000e+00> : vector<128x256xf32>
    %220 = tpu.matmul %219, %216, %cst_168 {dimension_numbers = #tpu.dot_dimension_numbers<[1], [0], [0], [1], [0, 0, 1, 1], [], []>} : vector<128x128xf32>, vector<128x256xf32>, vector<128x256xf32> -> vector<128x256xf32>
    %221 = arith.addf %217, %220 : vector<128x256xf32>
    %c0_169 = arith.constant 0 : index
    %c0_170 = arith.constant 0 : index
    %222 = vector.load %arg9[%c0_169, %c0_170] : memref<128x256xf32, #tpu.memory_space<vmem>>, vector<128x256xf32>
    tpu.vector_store %arg9[%c0_169, %c0_170], %221 {strides = array<i32>} : memref<128x256xf32, #tpu.memory_space<vmem>>, vector<128x256xf32>,
    %c239_i32_171 = arith.constant 239 : i32
    %223 = tpu.dynamic_rotate %155 by %c239_i32_171 dim 1 : vector<128x256xf32>, i32 -> vector<128x256xf32>
    %224 = vector.broadcast %68 : vector<1x256xf32> to vector<128x256xf32>
    %225 = arith.mulf %223, %224 : vector<128x256xf32>
    %c0_172 = arith.constant 0 : index
    %c0_173 = arith.constant 0 : index
    %226 = vector.load %arg9[%c0_172, %c0_173] : memref<128x256xf32, #tpu.memory_space<vmem>>, vector<128x256xf32>
    %c8_174 = arith.constant 8 : index
    %c0_175 = arith.constant 0 : index
    %c0_176 = arith.constant 0 : index
    %227 = vector.load %arg5[%c8_174, %c0_175, %c0_176] : memref<9x128x128xf32, #tpu.memory_space<vmem>>, vector<1x128x128xf32>
    %228 = vector.shape_cast %227 : vector<1x128x128xf32> to vector<128x128xf32>
    %cst_177 = arith.constant dense<0.000000e+00> : vector<128x256xf32>
    %229 = tpu.matmul %228, %225, %cst_177 {dimension_numbers = #tpu.dot_dimension_numbers<[1], [0], [0], [1], [0, 0, 1, 1], [], []>} : vector<128x128xf32>, vector<128x256xf32>, vector<128x256xf32> -> vector<128x256xf32>
    %230 = arith.addf %226, %229 : vector<128x256xf32>
    %c0_178 = arith.constant 0 : index
    %c0_179 = arith.constant 0 : index
    %231 = vector.load %arg9[%c0_178, %c0_179] : memref<128x256xf32, #tpu.memory_space<vmem>>, vector<128x256xf32>
    tpu.vector_store %arg9[%c0_178, %c0_179], %230 {strides = array<i32>} : memref<128x256xf32, #tpu.memory_space<vmem>>, vector<128x256xf32>,
    %c0_180 = arith.constant 0 : index
    %c0_181 = arith.constant 0 : index
    %232 = vector.load %arg9[%c0_180, %c0_181] : memref<128x256xf32, #tpu.memory_space<vmem>>, vector<128x256xf32>
    %c0_182 = arith.constant 0 : index
    %c0_183 = arith.constant 0 : index
    %233 = vector.load %arg6[%c0_182, %c0_183] : memref<128x1xf32, #tpu.memory_space<vmem>>, vector<128x1xf32>
    %234 = vector.broadcast %233 : vector<128x1xf32> to vector<128x256xf32>
    %235 = arith.mulf %232, %234 : vector<128x256xf32>
    %c0_184 = arith.constant 0 : index
    %c0_185 = arith.constant 0 : index
    %236 = vector.load %arg7[%c0_184, %c0_185] : memref<128x1xf32, #tpu.memory_space<vmem>>, vector<128x1xf32>
    %237 = vector.broadcast %236 : vector<128x1xf32> to vector<128x256xf32>
    %238 = arith.addf %235, %237 : vector<128x256xf32>
    %cst_186 = arith.constant 0.000000e+00 : f32
    %239 = vector.broadcast %cst_186 : f32 to vector<128x256xf32>
    %240 = arith.maximumf %238, %239 : vector<128x256xf32>
    %c0_187 = arith.constant 0 : index
    %c0_188 = arith.constant 0 : index
    %c0_189 = arith.constant 0 : index
    %241 = vector.load %arg8[%c0_187, %c0_188, %c0_189] : memref<1x128x256xf32, #tpu.memory_space<vmem>>, vector<1x128x256xf32>
    %242 = vector.shape_cast %241 : vector<1x128x256xf32> to vector<128x256xf32>
    %243 = vector.shape_cast %240 : vector<128x256xf32> to vector<1x128x256xf32>
    tpu.vector_store %arg8[%c0_187, %c0_188, %c0_189], %243 {strides = array<i32>} : memref<1x128x256xf32, #tpu.memory_space<vmem>>, vector<1x128x256xf32>,
    return
  }
  func.func @transform_0(%arg0: i32) -> (i32, i32, i32) {
    %c0_i32 = arith.constant 0 : i32
    %c0_i32_0 = arith.constant 0 : i32
    %c0_i32_1 = arith.constant 0 : i32
    return %arg0, %c0_i32, %c0_i32_0 : i32, i32, i32
  }
  func.func @transform_1(%arg0: i32) -> (i32, i32, i32) {
    %c0_i32 = arith.constant 0 : i32
    %c0_i32_0 = arith.constant 0 : i32
    %c0_i32_1 = arith.constant 0 : i32
    %c0_i32_2 = arith.constant 0 : i32
    return %c0_i32, %c0_i32_0, %c0_i32_1 : i32, i32, i32
  }
  func.func @transform_2(%arg0: i32) -> (i32, i32) {
    %c0_i32 = arith.constant 0 : i32
    %c0_i32_0 = arith.constant 0 : i32
    %c0_i32_1 = arith.constant 0 : i32
    return %c0_i32, %c0_i32_0 : i32, i32
  }
  func.func @transform_3(%arg0: i32) -> (i32, i32) {
    %c0_i32 = arith.constant 0 : i32
    %c0_i32_0 = arith.constant 0 : i32
    %c0_i32_1 = arith.constant 0 : i32
    return %c0_i32, %c0_i32_0 : i32, i32
  }
  func.func @transform_4(%arg0: i32) -> (i32, i32, i32) {
    %c0_i32 = arith.constant 0 : i32
    %c0_i32_0 = arith.constant 0 : i32
    %c0_i32_1 = arith.constant 0 : i32
    %c0_i32_2 = arith.constant 0 : i32
    return %c0_i32, %c0_i32_0, %c0_i32_1 : i32, i32, i32
  }
  func.func @transform_5(%arg0: i32) -> (i32, i32) {
    %c0_i32 = arith.constant 0 : i32
    %c0_i32_0 = arith.constant 0 : i32
    %c0_i32_1 = arith.constant 0 : i32
    return %c0_i32, %c0_i32_0 : i32, i32
  }
  func.func @transform_6(%arg0: i32) -> (i32, i32) {
    %c0_i32 = arith.constant 0 : i32
    %c0_i32_0 = arith.constant 0 : i32
    %c0_i32_1 = arith.constant 0 : i32
    return %c0_i32, %c0_i32_0 : i32, i32
  }
  func.func @transform_7(%arg0: i32) -> (i32, i32, i32) {
    %c0_i32 = arith.constant 0 : i32
    %c0_i32_0 = arith.constant 0 : i32
    %c0_i32_1 = arith.constant 0 : i32
    return %arg0, %c0_i32, %c0_i32_0 : i32, i32, i32
  }
}

</mosaic_0001>

<llo_original>
// kernel: conv_block_forward.1
$region0: #{conv_block_forward.1}
  #allocation0 [shape = 'u32[]', space=smem, size = 0x4, offset = 0x4, fixed_abs, tag = 'smem constant byte address 0x4 - core index']
  #allocation1 [shape = 'u32[144,128]{1,0:T(1,128)}', space=vmem, size = 0x12000, scoped, tag = 'internal scratch']
  #allocation2 [shape = 'f32[128,256]{1,0:T(8,128)}', space=vmem, size = 0x20000, scoped, tag = 'scratch operand']
  %s0 = inlined_call_operand.vmem [shape: f32[2,128,256], index: 0, kind: input, shape index: {}]
  %s1 = inlined_call_operand.vmem [shape: f32[9,128,128], index: 1, kind: input, shape index: {}]
  %s2 = inlined_call_operand.vmem [shape: f32[128,1], index: 2, kind: input, shape index: {}]
  %s3 = inlined_call_operand.vmem [shape: f32[128,1], index: 3, kind: input, shape index: {}]
  %s4 = inlined_call_operand.vmem [shape: f32[9,128,128], index: 4, kind: input, shape index: {}]
  %s5 = inlined_call_operand.vmem [shape: f32[128,1], index: 5, kind: input, shape index: {}]
  %s6 = inlined_call_operand.vmem [shape: f32[128,1], index: 6, kind: input, shape index: {}]
  %s7 = inlined_call_operand.vmem [shape: f32[2,128,256], index: 7, kind: output, shape index: {}]
  %s8 = sld [smem:[#allocation0]]
  $region61: #{conv_block_forward.1} parent=0
    _
  %s10 = ssub.s32 1, %s8
  %s11 = scalar_select 0, %s10, %s8
  loop: start=0, step=1, limit=4
  $region2: #{conv_block_forward.1} parent=0 // loop_pre_header
    _
  $region3: #{conv_block_forward.1} parent=0 // loop_header
    %s13 = sphi 0, %s17
    %p14 = scmp.ge.s32.totalorder %s13, 4
    %s23 = sphi 0, %s25
    %s26 = sphi 0, %s23
    %s27 = sphi 0, %s26
    %s43 = sphi 0, %s27
    %s47 = sphi 0, %s47
    %s49 = sphi 0, %s47
    %s50 = sphi 0, %s49
    %s64 = sphi 0, %s50
    %s68 = sphi 0, %s68
    %s70 = sphi 0, %s68
    %s71 = sphi 0, %s70
    %s85 = sphi 0, %s71
    %s89 = sphi 0, %s89
    %s91 = sphi 0, %s89
    %s92 = sphi 0, %s91
    %s106 = sphi 0, %s92
    %s110 = sphi 0, %s110
    %s112 = sphi 0, %s110
    %s113 = sphi 0, %s112
    %s127 = sphi 0, %s113
    %s131 = sphi 0, %s131
    %s133 = sphi 0, %s131
    %s134 = sphi 0, %s133
    %s148 = sphi 0, %s134
    %s152 = sphi 0, %s152
    %s154 = sphi 0, %s152
    %s155 = sphi 0, %s154
    %s169 = sphi 0, %s155
    %s175 = sphi 0, %s177
    %s178 = sphi 0, %s175
    %s179 = sphi 0, %s178
    %s195 = sphi 0, %s179
  $region4: #{conv_block_forward.1} parent=0 // loop_header_branch
    %16 = sbr.rel (%p14) target = $region8
  $region5: #{conv_block_forward.1} parent=0 // loop_body
    %s18 = ssub.s32 %s13, 1
    %s19 = ssub.s32 %s13, 2
    %s20 = sadd.s32 %s13, 1
    %s21 = ssub.s32 %s13, %s20
    %p22 = scmp.eq.s32.totalorder %s21, 0
    %s24 = sadd.s32 %s23, 1
    %s25 = scalar_select %p22, %s23, %s24
    %p28 = pneg %p22
    %p29 = scmp.eq.s32.totalorder %s13, 1
    %p30 = por %p28, %p29
    %p31 = scmp.ne.s32.totalorder %s23, %s26
    %p32 = scmp.eq.s32.totalorder %s13, 0
    %p33 = por %p31, %p32
    %p34 = scmp.ne.s32.totalorder %s23, %s26
    %p35 = scmp.eq.s32.totalorder %s18, 1
    %p36 = por %p34, %p35
    %p37 = scmp.ne.s32.totalorder %s26, %s27
    %p38 = scmp.eq.s32.totalorder %s18, 0
    %p39 = por %p37, %p38
    %p40 = scmp.ne.s32.totalorder %s26, %s27
    %p41 = scmp.eq.s32.totalorder %s19, 1
    %p42 = por %p40, %p41
    %p44 = scmp.ne.s32.totalorder %s27, %s43
    %p45 = scmp.eq.s32.totalorder %s19, 0
    %p46 = por %p44, %p45
    %s48 = sadd.s32 %s47, 1
    %p51 = scmp.eq.s32.totalorder %s13, 1
    %p52 = scmp.ne.s32.totalorder %s47, %s49
    %p53 = scmp.eq.s32.totalorder %s13, 0
    %p54 = por %p52, %p53
    %p55 = scmp.ne.s32.totalorder %s47, %s49
    %p56 = scmp.eq.s32.totalorder %s18, 1
    %p57 = por %p55, %p56
    %p58 = scmp.ne.s32.totalorder %s49, %s50
    %p59 = scmp.eq.s32.totalorder %s18, 0
    %p60 = por %p58, %p59
    %p61 = scmp.ne.s32.totalorder %s49, %s50
    %p62 = scmp.eq.s32.totalorder %s19, 1
    %p63 = por %p61, %p62
    %p65 = scmp.ne.s32.totalorder %s50, %s64
    %p66 = scmp.eq.s32.totalorder %s19, 0
    %p67 = por %p65, %p66
    %s69 = sadd.s32 %s68, 1
    %p72 = scmp.eq.s32.totalorder %s13, 1
    %p73 = scmp.ne.s32.totalorder %s68, %s70
    %p74 = scmp.eq.s32.totalorder %s13, 0
    %p75 = por %p73, %p74
    %p76 = scmp.ne.s32.totalorder %s68, %s70
    %p77 = scmp.eq.s32.totalorder %s18, 1
    %p78 = por %p76, %p77
    %p79 = scmp.ne.s32.totalorder %s70, %s71
    %p80 = scmp.eq.s32.totalorder %s18, 0
    %p81 = por %p79, %p80
    %p82 = scmp.ne.s32.totalorder %s70, %s71
    %p83 = scmp.eq.s32.totalorder %s19, 1
    %p84 = por %p82, %p83
    %p86 = scmp.ne.s32.totalorder %s71, %s85
    %p87 = scmp.eq.s32.totalorder %s19, 0
    %p88 = por %p86, %p87
    %s90 = sadd.s32 %s89, 1
    %p93 = scmp.eq.s32.totalorder %s13, 1
    %p94 = scmp.ne.s32.totalorder %s89, %s91
    %p95 = scmp.eq.s32.totalorder %s13, 0
    %p96 = por %p94, %p95
    %p97 = scmp.ne.s32.totalorder %s89, %s91
    %p98 = scmp.eq.s32.totalorder %s18, 1
    %p99 = por %p97, %p98
    %p100 = scmp.ne.s32.totalorder %s91, %s92
    %p101 = scmp.eq.s32.totalorder %s18, 0
    %p102 = por %p100, %p101
    %p103 = scmp.ne.s32.totalorder %s91, %s92
    %p104 = scmp.eq.s32.totalorder %s19, 1
    %p105 = por %p103, %p104
    %p107 = scmp.ne.s32.totalorder %s92, %s106
    %p108 = scmp.eq.s32.totalorder %s19, 0
    %p109 = por %p107, %p108
    %s111 = sadd.s32 %s110, 1
    %p114 = scmp.eq.s32.totalorder %s13, 1
    %p115 = scmp.ne.s32.totalorder %s110, %s112
    %p116 = scmp.eq.s32.totalorder %s13, 0
    %p117 = por %p115, %p116
    %p118 = scmp.ne.s32.totalorder %s110, %s112
    %p119 = scmp.eq.s32.totalorder %s18, 1
    %p120 = por %p118, %p119
    %p121 = scmp.ne.s32.totalorder %s112, %s113
    %p122 = scmp.eq.s32.totalorder %s18, 0
    %p123 = por %p121, %p122
    %p124 = scmp.ne.s32.totalorder %s112, %s113
    %p125 = scmp.eq.s32.totalorder %s19, 1
    %p126 = por %p124, %p125
    %p128 = scmp.ne.s32.totalorder %s113, %s127
    %p129 = scmp.eq.s32.totalorder %s19, 0
    %p130 = por %p128, %p129
    %s132 = sadd.s32 %s131, 1
    %p135 = scmp.eq.s32.totalorder %s13, 1
    %p136 = scmp.ne.s32.totalorder %s131, %s133
    %p137 = scmp.eq.s32.totalorder %s13, 0
    %p138 = por %p136, %p137
    %p139 = scmp.ne.s32.totalorder %s131, %s133
    %p140 = scmp.eq.s32.totalorder %s18, 1
    %p141 = por %p139, %p140
    %p142 = scmp.ne.s32.totalorder %s133, %s134
    %p143 = scmp.eq.s32.totalorder %s18, 0
    %p144 = por %p142, %p143
    %p145 = scmp.ne.s32.totalorder %s133, %s134
    %p146 = scmp.eq.s32.totalorder %s19, 1
    %p147 = por %p145, %p146
    %p149 = scmp.ne.s32.totalorder %s134, %s148
    %p150 = scmp.eq.s32.totalorder %s19, 0
    %p151 = por %p149, %p150
    %s153 = sadd.s32 %s152, 1
    %p156 = scmp.eq.s32.totalorder %s13, 1
    %p157 = scmp.ne.s32.totalorder %s152, %s154
    %p158 = scmp.eq.s32.totalorder %s13, 0
    %p159 = por %p157, %p158
    %p160 = scmp.ne.s32.totalorder %s152, %s154
    %p161 = scmp.eq.s32.totalorder %s18, 1
    %p162 = por %p160, %p161
    %p163 = scmp.ne.s32.totalorder %s154, %s155
    %p164 = scmp.eq.s32.totalorder %s18, 0
    %p165 = por %p163, %p164
    %p166 = scmp.ne.s32.totalorder %s154, %s155
    %p167 = scmp.eq.s32.totalorder %s19, 1
    %p168 = por %p166, %p167
    %p170 = scmp.ne.s32.totalorder %s155, %s169
    %p171 = scmp.eq.s32.totalorder %s19, 0
    %p172 = por %p170, %p171
    %s173 = ssub.s32 %s13, %s20
    %p174 = scmp.eq.s32.totalorder %s173, 0
    %s176 = sadd.s32 %s175, 1
    %s177 = scalar_select %p174, %s175, %s176
    %p180 = pneg %p174
    %p181 = scmp.eq.s32.totalorder %s13, 1
    %p182 = por %p180, %p181
    %p183 = scmp.ne.s32.totalorder %s175, %s178
    %p184 = scmp.eq.s32.totalorder %s13, 0
    %p185 = por %p183, %p184
    %p186 = scmp.ne.s32.totalorder %s175, %s178
    %p187 = scmp.eq.s32.totalorder %s18, 1
    %p188 = por %p186, %p187
    %p189 = scmp.ne.s32.totalorder %s178, %s179
    %p190 = scmp.eq.s32.totalorder %s18, 0
    %p191 = por %p189, %p190
    %p192 = scmp.ne.s32.totalorder %s178, %s179
    %p193 = scmp.eq.s32.totalorder %s19, 1
    %p194 = por %p192, %p193
    %p196 = scmp.ne.s32.totalorder %s179, %s195
    %p197 = scmp.eq.s32.totalorder %s19, 0
    %p198 = por %p196, %p197
    %p199 = scmp.le.s32.totalorder 1, %s13
    %p200 = scmp.lt.s32.totalorder %s13, 3
    %p201 = pnand %p199, %p200
    %p202 = pneg %p201
    // Predicated region
    $region9: #{conv_block_forward.1} parent=5 // pred_check
      _
    $region10: #{conv_block_forward.1} parent=5 // pred_check_branch
      %204 = sbr.rel (%p201) target = $region12
    $region11: #{conv_block_forward.1} parent=5 // pred_region
      %s205 = ssub.s32 %s13, 1
      // Predicated region
      $region13: #{conv_block_forward.1} parent=11 // pred_check
        %p206 = pneg %p60
      $region14: #{conv_block_forward.1} parent=11 // pred_check_branch
        %208 = sbr.rel (%p206) target = $region16
      $region15: #{conv_block_forward.1} parent=11 // pred_region
        _
      $region16: #{conv_block_forward.1} parent=11 // pred_fallthru
        _
      // Predicated region
      $region17: #{conv_block_forward.1} parent=11 // pred_check
        %p209 = pneg %p81
      $region18: #{conv_block_forward.1} parent=11 // pred_check_branch
        %211 = sbr.rel (%p209) target = $region20
      $region19: #{conv_block_forward.1} parent=11 // pred_region
        _
      $region20: #{conv_block_forward.1} parent=11 // pred_fallthru
        _
      // Predicated region
      $region21: #{conv_block_forward.1} parent=11 // pred_check
        %p212 = pneg %p102
      $region22: #{conv_block_forward.1} parent=11 // pred_check_branch
        %214 = sbr.rel (%p212) target = $region24
      $region23: #{conv_block_forward.1} parent=11 // pred_region
        _
      $region24: #{conv_block_forward.1} parent=11 // pred_fallthru
        _
      // Predicated region
      $region25: #{conv_block_forward.1} parent=11 // pred_check
        %p215 = pneg %p123
      $region26: #{conv_block_forward.1} parent=11 // pred_check_branch
        %217 = sbr.rel (%p215) target = $region28
      $region27: #{conv_block_forward.1} parent=11 // pred_region
        _
      $region28: #{conv_block_forward.1} parent=11 // pred_fallthru
        _
      // Predicated region
      $region29: #{conv_block_forward.1} parent=11 // pred_check
        %p218 = pneg %p144
      $region30: #{conv_block_forward.1} parent=11 // pred_check_branch
        %220 = sbr.rel (%p218) target = $region32
      $region31: #{conv_block_forward.1} parent=11 // pred_region
        _
      $region32: #{conv_block_forward.1} parent=11 // pred_fallthru
        _
      // Predicated region
      $region33: #{conv_block_forward.1} parent=11 // pred_check
        %p221 = pneg %p165
      $region34: #{conv_block_forward.1} parent=11 // pred_check_branch
        %223 = sbr.rel (%p221) target = $region36
      $region35: #{conv_block_forward.1} parent=11 // pred_region
        _
      $region36: #{conv_block_forward.1} parent=11 // pred_fallthru
        _
    $region12: #{conv_block_forward.1} parent=5 // pred_fallthru
      _
    %p224 = scmp.lt.s32.totalorder %s13, 2
    // Predicated region
    $region37: #{conv_block_forward.1} parent=5 // pred_check
      %p225 = pneg %p224
    $region38: #{conv_block_forward.1} parent=5 // pred_check_branch
      %227 = sbr.rel (%p225) target = $region40
    $region39: #{conv_block_forward.1} parent=5 // pred_region
      // Predicated region
      $region41: #{conv_block_forward.1} parent=39 // pred_check
        %p228 = pneg %p33
      $region42: #{conv_block_forward.1} parent=39 // pred_check_branch
        %230 = sbr.rel (%p228) target = $region44
      $region43: #{conv_block_forward.1} parent=39 // pred_region
        %p231 = scmp.lt.s32.totalorder %s13, 1
        %s232 = scalar_select %p231, %s13, 1
        %s233 = smul.addr %s232, 32
        %s234 = smul.addr %s233, 8
        %s235 = scalar_lea.vmem %s0, %s234
      $region44: #{conv_block_forward.1} parent=39 // pred_fallthru
        _
    $region40: #{conv_block_forward.1} parent=5 // pred_fallthru
      _
    %p236 = scmp.le.s32.totalorder 1, %s13
    %p237 = scmp.lt.s32.totalorder %s13, 3
    %p238 = pnand %p236, %p237
    %p239 = pneg %p238
    // Predicated region
    $region45: #{conv_block_forward.1} parent=5 // pred_check
      _
    $region46: #{conv_block_forward.1} parent=5 // pred_check_branch
      %241 = sbr.rel (%p238) target = $region48
    $region47: #{conv_block_forward.1} parent=5 // pred_region
      %s242 = ssub.s32 %s13, 1
      %p243 = scmp.lt.s32.totalorder %s18, 1
      %s244 = scalar_select %p243, %s18, 1
      %s245 = smul.addr %s244, 32
      %s246 = smul.addr %s245, 8
      %s247 = scalar_lea.vmem %s0, %s246
      %p248 = pneg %p39
      %p249 = pneg %p36
      %p250 = pneg %p60
      %p251 = pneg %p57
      %p252 = pneg %p81
      %p253 = pneg %p78
      %p254 = pneg %p102
      %p255 = pneg %p99
      %p256 = pneg %p123
      %p257 = pneg %p120
      %p258 = pneg %p144
      %p259 = pneg %p141
      %p260 = pneg %p165
      %p261 = pneg %p162
      %p262 = pneg %p191
      %p263 = pneg %p188
      %p264 = scmp.lt.s32.totalorder %s18, 1
      %s265 = scalar_select %p264, %s18, 1
      %s266 = smul.addr %s265, 32
      %s267 = smul.addr %s266, 8
      %s268 = scalar_lea.vmem %s7, %s267
      %p269 = scmp.lt.s32.totalorder %s18, 1
      %s270 = scalar_select %p269, %s18, 1
      %s271 = smul.addr %s270, 32
      %s272 = smul.addr %s271, 8
      %s273 = scalar_lea.vmem %s0, %s272
      %p274 = scmp.lt.s32.totalorder %s18, 1
      %s275 = scalar_select %p274, %s18, 1
      %s276 = smul.addr %s275, 32
      %s277 = smul.addr %s276, 8
      %s278 = scalar_lea.vmem %s7, %s277
      %v279 = vlaneseq
      %v280 = vand.u32 %v279, 127
      %v281 = vadd.s32 %v280, 128
      %vm282 = vcmp.lt.s32.totalorder %v280, 0
      %v283 = vsub.s32 0, %v280
      %v284 = vsel %vm282, %v283, %v280
      %v285 = vshrl.u32 %v284, 4
      %v286 = vand.u32 %v284, 15
      %v287 = vsub.s32 0, %v286
      %v288 = vsel %vm282, %v287, %v286
      %vm289 = vcmp.lt.s32.totalorder %v281, 0
      %v290 = vsub.s32 0, %v281
      %v291 = vsel %vm289, %v290, %v281
      %v292 = vshrl.u32 %v291, 4
      %v293 = vand.u32 %v291, 15
      %v294 = vsub.s32 0, %v293
      %v295 = vsel %vm289, %v294, %v293
      %vm296 = vcmp.ne.s32.totalorder %v288, 0
      %vm297 = vcmp.ne.s32.totalorder %v295, 0
      %vm298 = vcmp.lt.s32.totalorder %v288, 0
      %vm299 = vcmp.lt.s32.totalorder %v295, 0
      %vm300 = vmand %vm298, %vm296
      %vm301 = vmand %vm299, %vm297
      %v302 = vadd.s32 %v288, 16
      %v303 = vadd.s32 %v295, 16
      %v304 = vsel %vm300, %v302, %v288
      %v305 = vsel %vm301, %v303, %v295
      %vm306 = vcmp.ge.s32.totalorder %v280, 16
      %vm307 = vcmp.ge.s32.totalorder %v281, 16
      %vm308 = vcmp.ge.s32.totalorder %v304, 1
      %vm309 = vcmp.ge.s32.totalorder %v305, 1
      %vm310 = vmand %vm306, %vm308
      %vm311 = vmand %vm307, %vm309
      %v312 = vsel %vm310, 1.0, 0.0
      %v313 = vsel %vm311, 1.0, 0.0
      %v314 = vsel %vm306, 1.0, 0.0
      %v315 = vsel %vm307, 1.0, 0.0
      %vm316 = vcmp.le.s32.totalorder %v304, 14
      %vm317 = vcmp.le.s32.totalorder %v305, 14
      %vm318 = vmand %vm306, %vm316
      %vm319 = vmand %vm307, %vm317
      %v320 = vsel %vm318, 1.0, 0.0
      %v321 = vsel %vm319, 1.0, 0.0
      %v322 = vsel %vm308, 1.0, 0.0
      %v323 = vsel %vm309, 1.0, 0.0
      %v324 = vsel %vm316, 1.0, 0.0
      %v325 = vsel %vm317, 1.0, 0.0
      %vm326 = vcmp.lt.s32.totalorder %v280, 240
      %vm327 = vcmp.lt.s32.totalorder %v281, 240
      %vm328 = vmand %vm326, %vm308
      %vm329 = vmand %vm327, %vm309
      %v330 = vsel %vm328, 1.0, 0.0
      %v331 = vsel %vm329, 1.0, 0.0
      %v332 = vsel %vm326, 1.0, 0.0
      %v333 = vsel %vm327, 1.0, 0.0
      %vm334 = vmand %vm326, %vm316
      %vm335 = vmand %vm327, %vm317
      %v336 = vsel %vm334, 1.0, 0.0
      %v337 = vsel %vm335, 1.0, 0.0
      %v338 = vld [vmem:[%s273] sm:$0xff]
      %v339 = vld [vmem:[%s273 + $0x8] sm:$0xff]
      %v340 = vld [vmem:[%s273 + $0x10] sm:$0xff]
      %v341 = vld [vmem:[%s273 + $0x18] sm:$0xff]
      %v342 = vld [vmem:[%s273 + $0x20] sm:$0xff]
      %v343 = vld [vmem:[%s273 + $0x28] sm:$0xff]
      %v344 = vld [vmem:[%s273 + $0x30] sm:$0xff]
      %v345 = vld [vmem:[%s273 + $0x38] sm:$0xff]
      %v346 = vld [vmem:[%s273 + $0x40] sm:$0xff]
      %v347 = vld [vmem:[%s273 + $0x48] sm:$0xff]
      %v348 = vld [vmem:[%s273 + $0x50] sm:$0xff]
      %v349 = vld [vmem:[%s273 + $0x58] sm:$0xff]
      %v350 = vld [vmem:[%s273 + $0x60] sm:$0xff]
      %v351 = vld [vmem:[%s273 + $0x68] sm:$0xff]
      %v352 = vld [vmem:[%s273 + $0x70] sm:$0xff]
      %v353 = vld [vmem:[%s273 + $0x78] sm:$0xff]
      %v354 = vld [vmem:[%s273 + $0x80] sm:$0xff]
      %v355 = vld [vmem:[%s273 + $0x88] sm:$0xff]
      %v356 = vld [vmem:[%s273 + $0x90] sm:$0xff]
      %v357 = vld [vmem:[%s273 + $0x98] sm:$0xff]
      %v358 = vld [vmem:[%s273 + $0xa0] sm:$0xff]
      %v359 = vld [vmem:[%s273 + $0xa8] sm:$0xff]
      %v360 = vld [vmem:[%s273 + $0xb0] sm:$0xff]
      %v361 = vld [vmem:[%s273 + $0xb8] sm:$0xff]
      %v362 = vld [vmem:[%s273 + $0xc0] sm:$0xff]
      %v363 = vld [vmem:[%s273 + $0xc8] sm:$0xff]
      %v364 = vld [vmem:[%s273 + $0xd0] sm:$0xff]
      %v365 = vld [vmem:[%s273 + $0xd8] sm:$0xff]
      %v366 = vld [vmem:[%s273 + $0xe0] sm:$0xff]
      %v367 = vld [vmem:[%s273 + $0xe8] sm:$0xff]
      %v368 = vld [vmem:[%s273 + $0xf0] sm:$0xff]
      %v369 = vld [vmem:[%s273 + $0xf8] sm:$0xff]
      %s370 = scalar_lea.vmem %s1, 512
      %v371 = vld [vmem:[%s370] sm:$0xff]
      %v372 = vld [vmem:[%s370 + $0x8] sm:$0xff]
      %v373 = vld [vmem:[%s370 + $0x10] sm:$0xff]
      %v374 = vld [vmem:[%s370 + $0x18] sm:$0xff]
      %v375 = vld [vmem:[%s370 + $0x20] sm:$0xff]
      %v376 = vld [vmem:[%s370 + $0x28] sm:$0xff]
      %v377 = vld [vmem:[%s370 + $0x30] sm:$0xff]
      %v378 = vld [vmem:[%s370 + $0x38] sm:$0xff]
      %v379 = vld [vmem:[%s370 + $0x40] sm:$0xff]
      %v380 = vld [vmem:[%s370 + $0x48] sm:$0xff]
      %v381 = vld [vmem:[%s370 + $0x50] sm:$0xff]
      %v382 = vld [vmem:[%s370 + $0x58] sm:$0xff]
      %v383 = vld [vmem:[%s370 + $0x60] sm:$0xff]
      %v384 = vld [vmem:[%s370 + $0x68] sm:$0xff]
      %v385 = vld [vmem:[%s370 + $0x70] sm:$0xff]
      %v386 = vld [vmem:[%s370 + $0x78] sm:$0xff]
      %387 = vmatprep.subr.mxu0 %v339
      %388 = vmatpush1.msra.mxu0 %v338
      %389 = vmatprep.subr.mxu0 %v341
      %390 = vmatpush1.msra.mxu0 %v340
      %391 = vmatprep.subr.mxu0 %v343
      %392 = vmatpush1.msra.mxu0 %v342
      %393 = vmatprep.subr.mxu0 %v345
      %394 = vmatpush1.msra.mxu0 %v344
      %395 = vmatprep.subr.mxu0 %v347
      %396 = vmatpush1.msra.mxu0 %v346
      %397 = vmatprep.subr.mxu0 %v349
      %398 = vmatpush1.msra.mxu0 %v348
      %399 = vmatprep.subr.mxu0 %v351
      %400 = vmatpush1.msra.mxu0 %v350
      %401 = vmatprep.subr.mxu0 %v353
      %402 = vmatpush1.msra.mxu0 %v352
      %403 = vmatprep.subr.mxu0 %v355
      %404 = vmatpush1.msra.mxu0 %v354
      %405 = vmatprep.subr.mxu0 %v357
      %406 = vmatpush1.msra.mxu0 %v356
      %407 = vmatprep.subr.mxu0 %v359
      %408 = vmatpush1.msra.mxu0 %v358
      %409 = vmatprep.subr.mxu0 %v361
      %410 = vmatpush1.msra.mxu0 %v360
      %411 = vmatprep.subr.mxu0 %v363
      %412 = vmatpush1.msra.mxu0 %v362
      %413 = vmatprep.subr.mxu0 %v365
      %414 = vmatpush1.msra.mxu0 %v364
      %415 = vmatprep.subr.mxu0 %v367
      %416 = vmatpush1.msra.mxu0 %v366
      %417 = vmatprep.subr.mxu0 %v369
      %418 = vmatpush1.msra.mxu0 %v368
      %419 = vmatprep.subr.mxu0 0.0
      %420 = vmatpush1.msra.mxu0 0.0
      %421 = vmatprep.subr.mxu0 0.0
      %422 = vmatpush1.msra.mxu0 0.0
      %423 = vmatprep.subr.mxu0 0.0
      %424 = vmatpush1.msra.mxu0 0.0
      %425 = vmatprep.subr.mxu0 0.0
      %426 = vmatpush1.msra.mxu0 0.0
      %427 = vmatprep.subr.mxu0 0.0
      %428 = vmatpush1.msra.mxu0 0.0
      %429 = vmatprep.subr.mxu0 0.0
      %430 = vmatpush1.msra.mxu0 0.0
      %431 = vmatprep.subr.mxu0 0.0
      %432 = vmatpush1.msra.mxu0 0.0
      %433 = vmatprep.subr.mxu0 0.0
      %434 = vmatpush1.msra.mxu0 0.0
      %435 = vmatprep.subr.mxu0 0.0
      %436 = vmatpush1.msra.mxu0 0.0
      %437 = vmatprep.subr.mxu0 0.0
      %438 = vmatpush1.msra.mxu0 0.0
      %439 = vmatprep.subr.mxu0 0.0
      %440 = vmatpush1.msra.mxu0 0.0
      %441 = vmatprep.subr.mxu0 0.0
      %442 = vmatpush1.msra.mxu0 0.0
      %443 = vmatprep.subr.mxu0 0.0
      %444 = vmatpush1.msra.mxu0 0.0
      %445 = vmatprep.subr.mxu0 0.0
      %446 = vmatpush1.msra.mxu0 0.0
      %447 = vmatprep.subr.mxu0 0.0
      %448 = vmatpush1.msra.mxu0 0.0
      %449 = vmatprep.subr.mxu0 0.0
      %450 = vmatpush1.msra.mxu0 0.0
      %451 = vmatprep.mubr.f32.mxu0 0.0
      %452 = vmatmul.mubr.f32.gmra.mrb[0].mxu0 %v371
      %v453 = vpop.f32.mrb[0].mxu0
      %v454 = vadd.f32 0.0, %v453
      %v455 = vpop.f32.mrb[0].mxu0
      %v456 = vadd.f32 0.0, %v455
      %457 = vmatprep.mubr.f32.mxu0 0.0
      %458 = vmatmul.mubr.f32.gmra.mrb[0].mxu0 %v372
      %v459 = vpop.f32.mrb[0].mxu0
      %v460 = vadd.f32 0.0, %v459
      %v461 = vpop.f32.mrb[0].mxu0
      %v462 = vadd.f32 0.0, %v461
      %463 = vmatprep.mubr.f32.mxu0 0.0
      %464 = vmatmul.mubr.f32.gmra.mrb[0].mxu0 %v373
      %v465 = vpop.f32.mrb[0].mxu0
      %v466 = vadd.f32 0.0, %v465
      %v467 = vpop.f32.mrb[0].mxu0
      %v468 = vadd.f32 0.0, %v467
      %469 = vmatprep.mubr.f32.mxu0 0.0
      %470 = vmatmul.mubr.f32.gmra.mrb[0].mxu0 %v374
      %v471 = vpop.f32.mrb[0].mxu0
      %v472 = vadd.f32 0.0, %v471
      %v473 = vpop.f32.mrb[0].mxu0
      %v474 = vadd.f32 0.0, %v473
      %475 = vmatprep.mubr.f32.mxu0 0.0
      %476 = vmatmul.mubr.f32.gmra.mrb[0].mxu0 %v375
      %v477 = vpop.f32.mrb[0].mxu0
      %v478 = vadd.f32 0.0, %v477
      %v479 = vpop.f32.mrb[0].mxu0
      %v480 = vadd.f32 0.0, %v479
      %481 = vmatprep.mubr.f32.mxu0 0.0
      %482 = vmatmul.mubr.f32.gmra.mrb[0].mxu0 %v376
      %v483 = vpop.f32.mrb[0].mxu0
      %v484 = vadd.f32 0.0, %v483
      %v485 = vpop.f32.mrb[0].mxu0
      %v486 = vadd.f32 0.0, %v485
      %487 = vmatprep.mubr.f32.mxu0 0.0
      %488 = vmatmul.mubr.f32.gmra.mrb[0].mxu0 %v377
      %v489 = vpop.f32.mrb[0].mxu0
      %v490 = vadd.f32 0.0, %v489
      %v491 = vpop.f32.mrb[0].mxu0
      %v492 = vadd.f32 0.0, %v491
      %493 = vmatprep.mubr.f32.mxu0 0.0
      %494 = vmatmul.mubr.f32.gmra.mrb[0].mxu0 %v378
      %v495 = vpop.f32.mrb[0].mxu0
      %v496 = vadd.f32 0.0, %v495
      %v497 = vpop.f32.mrb[0].mxu0
      %v498 = vadd.f32 0.0, %v497
      %499 = vmatprep.mubr.f32.mxu0 0.0
      %500 = vmatmul.mubr.f32.gmra.mrb[0].mxu0 %v379
      %v501 = vpop.f32.mrb[0].mxu0
      %v502 = vadd.f32 0.0, %v501
      %v503 = vpop.f32.mrb[0].mxu0
      %v504 = vadd.f32 0.0, %v503
      %505 = vmatprep.mubr.f32.mxu0 0.0
      %506 = vmatmul.mubr.f32.gmra.mrb[0].mxu0 %v380
      %v507 = vpop.f32.mrb[0].mxu0
      %v508 = vadd.f32 0.0, %v507
      %v509 = vpop.f32.mrb[0].mxu0
      %v510 = vadd.f32 0.0, %v509
      %511 = vmatprep.mubr.f32.mxu0 0.0
      %512 = vmatmul.mubr.f32.gmra.mrb[0].mxu0 %v381
      %v513 = vpop.f32.mrb[0].mxu0
      %v514 = vadd.f32 0.0, %v513
      %v515 = vpop.f32.mrb[0].mxu0
      %v516 = vadd.f32 0.0, %v515
      %517 = vmatprep.mubr.f32.mxu0 0.0
      %518 = vmatmul.mubr.f32.gmra.mrb[0].mxu0 %v382
      %v519 = vpop.f32.mrb[0].mxu0
      %v520 = vadd.f32 0.0, %v519
      %v521 = vpop.f32.mrb[0].mxu0
      %v522 = vadd.f32 0.0, %v521
      %523 = vmatprep.mubr.f32.mxu0 0.0
      %524 = vmatmul.mubr.f32.gmra.mrb[0].mxu0 %v383
      %v525 = vpop.f32.mrb[0].mxu0
      %v526 = vadd.f32 0.0, %v525
      %v527 = vpop.f32.mrb[0].mxu0
      %v528 = vadd.f32 0.0, %v527
      %529 = vmatprep.mubr.f32.mxu0 0.0
      %530 = vmatmul.mubr.f32.gmra.mrb[0].mxu0 %v384
      %v531 = vpop.f32.mrb[0].mxu0
      %v532 = vadd.f32 0.0, %v531
      %v533 = vpop.f32.mrb[0].mxu0
      %v534 = vadd.f32 0.0, %v533
      %535 = vmatprep.mubr.f32.mxu0 0.0
      %536 = vmatmul.mubr.f32.gmra.mrb[0].mxu0 %v385
      %v537 = vpop.f32.mrb[0].mxu0
      %v538 = vadd.f32 0.0, %v537
      %v539 = vpop.f32.mrb[0].mxu0
      %v540 = vadd.f32 0.0, %v539
      %541 = vmatprep.mubr.f32.mxu0 0.0
      %542 = vmatmul.mubr.f32.gmra.mrb[0].mxu0 %v386
      %v543 = vpop.f32.mrb[0].mxu0
      %v544 = vadd.f32 0.0, %v543
      %v545 = vpop.f32.mrb[0].mxu0
      %v546 = vadd.f32 0.0, %v545
      %547 = vdwg.mxu0
      %548 = vst [vmem:[#allocation2] sm:$0xff] %v454
      %549 = vst [vmem:[#allocation2 + $0x8] sm:$0xff] %v456
      %550 = vst [vmem:[#allocation2 + $0x10] sm:$0xff] %v460
      %551 = vst [vmem:[#allocation2 + $0x18] sm:$0xff] %v462
      %552 = vst [vmem:[#allocation2 + $0x20] sm:$0xff] %v466
      %553 = vst [vmem:[#allocation2 + $0x28] sm:$0xff] %v468
      %554 = vst [vmem:[#allocation2 + $0x30] sm:$0xff] %v472
      %555 = vst [vmem:[#allocation2 + $0x38] sm:$0xff] %v474
      %556 = vst [vmem:[#allocation2 + $0x40] sm:$0xff] %v478
      %557 = vst [vmem:[#allocation2 + $0x48] sm:$0xff] %v480
      %558 = vst [vmem:[#allocation2 + $0x50] sm:$0xff] %v484
      %559 = vst [vmem:[#allocation2 + $0x58] sm:$0xff] %v486
      %560 = vst [vmem:[#allocation2 + $0x60] sm:$0xff] %v490
      %561 = vst [vmem:[#allocation2 + $0x68] sm:$0xff] %v492
      %562 = vst [vmem:[#allocation2 + $0x70] sm:$0xff] %v496
      %563 = vst [vmem:[#allocation2 + $0x78] sm:$0xff] %v498
      %564 = vst [vmem:[#allocation2 + $0x80] sm:$0xff] %v502
      %565 = vst [vmem:[#allocation2 + $0x88] sm:$0xff] %v504
      %566 = vst [vmem:[#allocation2 + $0x90] sm:$0xff] %v508
      %567 = vst [vmem:[#allocation2 + $0x98] sm:$0xff] %v510
      %568 = vst [vmem:[#allocation2 + $0xa0] sm:$0xff] %v514
      %569 = vst [vmem:[#allocation2 + $0xa8] sm:$0xff] %v516
      %570 = vst [vmem:[#allocation2 + $0xb0] sm:$0xff] %v520
      %571 = vst [vmem:[#allocation2 + $0xb8] sm:$0xff] %v522
      %572 = vst [vmem:[#allocation2 + $0xc0] sm:$0xff] %v526
      %573 = vst [vmem:[#allocation2 + $0xc8] sm:$0xff] %v528
      %574 = vst [vmem:[#allocation2 + $0xd0] sm:$0xff] %v532
      %575 = vst [vmem:[#allocation2 + $0xd8] sm:$0xff] %v534
      %576 = vst [vmem:[#allocation2 + $0xe0] sm:$0xff] %v538
      %577 = vst [vmem:[#allocation2 + $0xe8] sm:$0xff] %v540
      %578 = vst [vmem:[#allocation2 + $0xf0] sm:$0xff] %v544
      %579 = vst [vmem:[#allocation2 + $0xf8] sm:$0xff] %v546
      %580 = vrot.lane.b32.xlu0 %v338, 17
      %v581 = vpop.permute.xlu0 %580
      %582 = vrot.lane.b32.xlu0 %v340, 17
      %v583 = vpop.permute.xlu0 %582
      %584 = vrot.lane.b32.xlu0 %v342, 17
      %v585 = vpop.permute.xlu0 %584
      %586 = vrot.lane.b32.xlu0 %v344, 17
      %v587 = vpop.permute.xlu0 %586
      %588 = vrot.lane.b32.xlu0 %v346, 17
      %v589 = vpop.permute.xlu0 %588
      %590 = vrot.lane.b32.xlu0 %v348, 17
      %v591 = vpop.permute.xlu0 %590
      %592 = vrot.lane.b32.xlu0 %v350, 17
      %v593 = vpop.permute.xlu0 %592
      %594 = vrot.lane.b32.xlu0 %v352, 17
      %v595 = vpop.permute.xlu0 %594
      %596 = vrot.lane.b32.xlu0 %v354, 17
      %v597 = vpop.permute.xlu0 %596
      %598 = vrot.lane.b32.xlu0 %v356, 17
      %v599 = vpop.permute.xlu0 %598
      %600 = vrot.lane.b32.xlu0 %v358, 17
      %v601 = vpop.permute.xlu0 %600
      %602 = vrot.lane.b32.xlu0 %v360, 17
      %v603 = vpop.permute.xlu0 %602
      %604 = vrot.lane.b32.xlu0 %v362, 17
      %v605 = vpop.permute.xlu0 %604
      %606 = vrot.lane.b32.xlu0 %v364, 17
      %v607 = vpop.permute.xlu0 %606
      %608 = vrot.lane.b32.xlu0 %v366, 17
      %v609 = vpop.permute.xlu0 %608
      %610 = vrot.lane.b32.xlu0 %v368, 17
      %v611 = vpop.permute.xlu0 %610
      %612 = vrot.lane.b32.xlu0 %v339, 17
      %v613 = vpop.permute.xlu0 %612
      %614 = vrot.lane.b32.xlu0 %v341, 17
      %v615 = vpop.permute.xlu0 %614
      %616 = vrot.lane.b32.xlu0 %v343, 17
      %v617 = vpop.permute.xlu0 %616
      %618 = vrot.lane.b32.xlu0 %v345, 17
      %v619 = vpop.permute.xlu0 %618
      %620 = vrot.lane.b32.xlu0 %v347, 17
      %v621 = vpop.permute.xlu0 %620
      %622 = vrot.lane.b32.xlu0 %v349, 17
      %v623 = vpop.permute.xlu0 %622
      %624 = vrot.lane.b32.xlu0 %v351, 17
      %v625 = vpop.permute.xlu0 %624
      %626 = vrot.lane.b32.xlu0 %v353, 17
      %v627 = vpop.permute.xlu0 %626
      %628 = vrot.lane.b32.xlu0 %v355, 17
      %v629 = vpop.permute.xlu0 %628
      %630 = vrot.lane.b32.xlu0 %v357, 17
      %v631 = vpop.permute.xlu0 %630
      %632 = vrot.lane.b32.xlu0 %v359, 17
      %v633 = vpop.permute.xlu0 %632
      %634 = vrot.lane.b32.xlu0 %v361, 17
      %v635 = vpop.permute.xlu0 %634
      %636 = vrot.lane.b32.xlu0 %v363, 17
      %v637 = vpop.permute.xlu0 %636
      %638 = vrot.lane.b32.xlu0 %v365, 17
      %v639 = vpop.permute.xlu0 %638
      %640 = vrot.lane.b32.xlu0 %v367, 17
      %v641 = vpop.permute.xlu0 %640
      %642 = vrot.lane.b32.xlu0 %v369, 17
      %v643 = vpop.permute.xlu0 %642
      %vm644 = vcmp.lt.s32.totalorder %v280, 17
      %v645 = vsel %vm644, %v581, %v613
      %v646 = vsel %vm644, %v583, %v615
      %v647 = vsel %vm644, %v585, %v617
      %v648 = vsel %vm644, %v587, %v619
      %v649 = vsel %vm644, %v589, %v621
      %v650 = vsel %vm644, %v591, %v623
      %v651 = vsel %vm644, %v593, %v625
      %v652 = vsel %vm644, %v595, %v627
      %v653 = vsel %vm644, %v597, %v629
      %v654 = vsel %vm644, %v599, %v631
      %v655 = vsel %vm644, %v601, %v633
      %v656 = vsel %vm644, %v603, %v635
      %v657 = vsel %vm644, %v605, %v637
      %v658 = vsel %vm644, %v607, %v639
      %v659 = vsel %vm644, %v609, %v641
      %v660 = vsel %vm644, %v611, %v643
      %v661 = vsel %vm644, %v613, %v581
      %v662 = vsel %vm644, %v615, %v583
      %v663 = vsel %vm644, %v617, %v585
      %v664 = vsel %vm644, %v619, %v587
      %v665 = vsel %vm644, %v621, %v589
      %v666 = vsel %vm644, %v623, %v591
      %v667 = vsel %vm644, %v625, %v593
      %v668 = vsel %vm644, %v627, %v595
      %v669 = vsel %vm644, %v629, %v597
      %v670 = vsel %vm644, %v631, %v599
      %v671 = vsel %vm644, %v633, %v601
      %v672 = vsel %vm644, %v635, %v603
      %v673 = vsel %vm644, %v637, %v605
      %v674 = vsel %vm644, %v639, %v607
      %v675 = vsel %vm644, %v641, %v609
      %v676 = vsel %vm644, %v643, %v611
      %v677 = vmul.f32 %v661, %v312
      %v678 = vmul.f32 %v645, %v313
      %v679 = vmul.f32 %v662, %v312
      %v680 = vmul.f32 %v646, %v313
      %v681 = vmul.f32 %v663, %v312
      %v682 = vmul.f32 %v647, %v313
      %v683 = vmul.f32 %v664, %v312
      %v684 = vmul.f32 %v648, %v313
      %v685 = vmul.f32 %v665, %v312
      %v686 = vmul.f32 %v649, %v313
      %v687 = vmul.f32 %v666, %v312
      %v688 = vmul.f32 %v650, %v313
      %v689 = vmul.f32 %v667, %v312
      %v690 = vmul.f32 %v651, %v313
      %v691 = vmul.f32 %v668, %v312
      %v692 = vmul.f32 %v652, %v313
      %v693 = vmul.f32 %v669, %v312
      %v694 = vmul.f32 %v653, %v313
      %v695 = vmul.f32 %v670, %v312
      %v696 = vmul.f32 %v654, %v313
      %v697 = vmul.f32 %v671, %v312
      %v698 = vmul.f32 %v655, %v313
      %v699 = vmul.f32 %v672, %v312
      %v700 = vmul.f32 %v656, %v313
      %v701 = vmul.f32 %v673, %v312
      %v702 = vmul.f32 %v657, %v313
      %v703 = vmul.f32 %v674, %v312
      %v704 = vmul.f32 %v658, %v313
      %v705 = vmul.f32 %v675, %v312
      %v706 = vmul.f32 %v659, %v313
      %v707 = vmul.f32 %v676, %v312
      %v708 = vmul.f32 %v660, %v313
      %v709 = vld [vmem:[#allocation2] sm:$0xff]
      %v710 = vld [vmem:[#allocation2 + $0x8] sm:$0xff]
      %v711 = vld [vmem:[#allocation2 + $0x10] sm:$0xff]
      %v712 = vld [vmem:[#allocation2 + $0x18] sm:$0xff]
      %v713 = vld [vmem:[#allocation2 + $0x20] sm:$0xff]
      %v714 = vld [vmem:[#allocation2 + $0x28] sm:$0xff]
      %v715 = vld [vmem:[#allocation2 + $0x30] sm:$0xff]
      %v716 = vld [vmem:[#allocation2 + $0x38] sm:$0xff]
      %v717 = vld [vmem:[#allocation2 + $0x40] sm:$0xff]
      %v718 = vld [vmem:[#allocation2 + $0x48] sm:$0xff]
      %v719 = vld [vmem:[#allocation2 + $0x50] sm:$0xff]
      %v720 = vld [vmem:[#allocation2 + $0x58] sm:$0xff]
      %v721 = vld [vmem:[#allocation2 + $0x60] sm:$0xff]
      %v722 = vld [vmem:[#allocation2 + $0x68] sm:$0xff]
      %v723 = vld [vmem:[#allocation2 + $0x70] sm:$0xff]
      %v724 = vld [vmem:[#allocation2 + $0x78] sm:$0xff]
      %v725 = vld [vmem:[#allocation2 + $0x80] sm:$0xff]
      %v726 = vld [vmem:[#allocation2 + $0x88] sm:$0xff]
      %v727 = vld [vmem:[#allocation2 + $0x90] sm:$0xff]
      %v728 = vld [vmem:[#allocation2 + $0x98] sm:$0xff]
      %v729 = vld [vmem:[#allocation2 + $0xa0] sm:$0xff]
      %v730 = vld [vmem:[#allocation2 + $0xa8] sm:$0xff]
      %v731 = vld [vmem:[#allocation2 + $0xb0] sm:$0xff]
      %v732 = vld [vmem:[#allocation2 + $0xb8] sm:$0xff]
      %v733 = vld [vmem:[#allocation2 + $0xc0] sm:$0xff]
      %v734 = vld [vmem:[#allocation2 + $0xc8] sm:$0xff]
      %v735 = vld [vmem:[#allocation2 + $0xd0] sm:$0xff]
      %v736 = vld [vmem:[#allocation2 + $0xd8] sm:$0xff]
      %v737 = vld [vmem:[#allocation2 + $0xe0] sm:$0xff]
      %v738 = vld [vmem:[#allocation2 + $0xe8] sm:$0xff]
      %v739 = vld [vmem:[#allocation2 + $0xf0] sm:$0xff]
      %v740 = vld [vmem:[#allocation2 + $0xf8] sm:$0xff]
      %v741 = vld [vmem:[%s1] sm:$0xff]
      %v742 = vld [vmem:[%s1 + $0x8] sm:$0xff]
      %v743 = vld [vmem:[%s1 + $0x10] sm:$0xff]
      %v744 = vld [vmem:[%s1 + $0x18] sm:$0xff]
      %v745 = vld [vmem:[%s1 + $0x20] sm:$0xff]
      %v746 = vld [vmem:[%s1 + $0x28] sm:$0xff]
      %v747 = vld [vmem:[%s1 + $0x30] sm:$0xff]
      %v748 = vld [vmem:[%s1 + $0x38] sm:$0xff]
      %v749 = vld [vmem:[%s1 + $0x40] sm:$0xff]
      %v750 = vld [vmem:[%s1 + $0x48] sm:$0xff]
      %v751 = vld [vmem:[%s1 + $0x50] sm:$0xff]
      %v752 = vld [vmem:[%s1 + $0x58] sm:$0xff]
      %v753 = vld [vmem:[%s1 + $0x60] sm:$0xff]
      %v754 = vld [vmem:[%s1 + $0x68] sm:$0xff]
      %v755 = vld [vmem:[%s1 + $0x70] sm:$0xff]
      %v756 = vld [vmem:[%s1 + $0x78] sm:$0xff]
      %757 = vmatprep.subr.mxu0 %v678
      %758 = vmatpush1.msra.mxu0 %v677
      %759 = vmatprep.subr.mxu0 %v680
      %760 = vmatpush1.msra.mxu0 %v679
      %761 = vmatprep.subr.mxu0 %v682
      %762 = vmatpush1.msra.mxu0 %v681
      %763 = vmatprep.subr.mxu0 %v684
      %764 = vmatpush1.msra.mxu0 %v683
      %765 = vmatprep.subr.mxu0 %v686
      %766 = vmatpush1.msra.mxu0 %v685
      %767 = vmatprep.subr.mxu0 %v688
      %768 = vmatpush1.msra.mxu0 %v687
      %769 = vmatprep.subr.mxu0 %v690
      %770 = vmatpush1.msra.mxu0 %v689
      %771 = vmatprep.subr.mxu0 %v692
      %772 = vmatpush1.msra.mxu0 %v691
      %773 = vmatprep.subr.mxu0 %v694
      %774 = vmatpush1.msra.mxu0 %v693
      %775 = vmatprep.subr.mxu0 %v696
      %776 = vmatpush1.msra.mxu0 %v695
      %777 = vmatprep.subr.mxu0 %v698
      %778 = vmatpush1.msra.mxu0 %v697
      %779 = vmatprep.subr.mxu0 %v700
      %780 = vmatpush1.msra.mxu0 %v699
      %781 = vmatprep.subr.mxu0 %v702
      %782 = vmatpush1.msra.mxu0 %v701
      %783 = vmatprep.subr.mxu0 %v704
      %784 = vmatpush1.msra.mxu0 %v703
      %785 = vmatprep.subr.mxu0 %v706
      %786 = vmatpush1.msra.mxu0 %v705
      %787 = vmatprep.subr.mxu0 %v708
      %788 = vmatpush1.msra.mxu0 %v707
      %789 = vmatprep.subr.mxu0 0.0
      %790 = vmatpush1.msra.mxu0 0.0
      %791 = vmatprep.subr.mxu0 0.0
      %792 = vmatpush1.msra.mxu0 0.0
      %793 = vmatprep.subr.mxu0 0.0
      %794 = vmatpush1.msra.mxu0 0.0
      %795 = vmatprep.subr.mxu0 0.0
      %796 = vmatpush1.msra.mxu0 0.0
      %797 = vmatprep.subr.mxu0 0.0
      %798 = vmatpush1.msra.mxu0 0.0
      %799 = vmatprep.subr.mxu0 0.0
      %800 = vmatpush1.msra.mxu0 0.0
      %801 = vmatprep.subr.mxu0 0.0
      %802 = vmatpush1.msra.mxu0 0.0
      %803 = vmatprep.subr.mxu0 0.0
      %804 = vmatpush1.msra.mxu0 0.0
      %805 = vmatprep.subr.mxu0 0.0
      %806 = vmatpush1.msra.mxu0 0.0
      %807 = vmatprep.subr.mxu0 0.0
      %808 = vmatpush1.msra.mxu0 0.0
      %809 = vmatprep.subr.mxu0 0.0
      %810 = vmatpush1.msra.mxu0 0.0
      %811 = vmatprep.subr.mxu0 0.0
      %812 = vmatpush1.msra.mxu0 0.0
      %813 = vmatprep.subr.mxu0 0.0
      %814 = vmatpush1.msra.mxu0 0.0
      %815 = vmatprep.subr.mxu0 0.0
      %816 = vmatpush1.msra.mxu0 0.0
      %817 = vmatprep.subr.mxu0 0.0
      %818 = vmatpush1.msra.mxu0 0.0
      %819 = vmatprep.subr.mxu0 0.0
      %820 = vmatpush1.msra.mxu0 0.0
      %821 = vmatprep.mubr.f32.mxu0 0.0
      %822 = vmatmul.mubr.f32.gmra.mrb[0].mxu0 %v741
      %v823 = vpop.f32.mrb[0].mxu0
      %v824 = vadd.f32 0.0, %v823
      %v825 = vpop.f32.mrb[0].mxu0
      %v826 = vadd.f32 0.0, %v825
      %827 = vmatprep.mubr.f32.mxu0 0.0
      %828 = vmatmul.mubr.f32.gmra.mrb[0].mxu0 %v742
      %v829 = vpop.f32.mrb[0].mxu0
      %v830 = vadd.f32 0.0, %v829
      %v831 = vpop.f32.mrb[0].mxu0
      %v832 = vadd.f32 0.0, %v831
      %833 = vmatprep.mubr.f32.mxu0 0.0
      %834 = vmatmul.mubr.f32.gmra.mrb[0].mxu0 %v743
      %v835 = vpop.f32.mrb[0].mxu0
      %v836 = vadd.f32 0.0, %v835
      %v837 = vpop.f32.mrb[0].mxu0
      %v838 = vadd.f32 0.0, %v837
      %839 = vmatprep.mubr.f32.mxu0 0.0
      %840 = vmatmul.mubr.f32.gmra.mrb[0].mxu0 %v744
      %v841 = vpop.f32.mrb[0].mxu0
      %v842 = vadd.f32 0.0, %v841
      %v843 = vpop.f32.mrb[0].mxu0
      %v844 = vadd.f32 0.0, %v843
      %845 = vmatprep.mubr.f32.mxu0 0.0
      %846 = vmatmul.mubr.f32.gmra.mrb[0].mxu0 %v745
      %v847 = vpop.f32.mrb[0].mxu0
      %v848 = vadd.f32 0.0, %v847
      %v849 = vpop.f32.mrb[0].mxu0
      %v850 = vadd.f32 0.0, %v849
      %851 = vmatprep.mubr.f32.mxu0 0.0
      %852 = vmatmul.mubr.f32.gmra.mrb[0].mxu0 %v746
      %v853 = vpop.f32.mrb[0].mxu0
      %v854 = vadd.f32 0.0, %v853
      %v855 = vpop.f32.mrb[0].mxu0
      %v856 = vadd.f32 0.0, %v855
      %857 = vmatprep.mubr.f32.mxu0 0.0
      %858 = vmatmul.mubr.f32.gmra.mrb[0].mxu0 %v747
      %v859 = vpop.f32.mrb[0].mxu0
      %v860 = vadd.f32 0.0, %v859
      %v861 = vpop.f32.mrb[0].mxu0
      %v862 = vadd.f32 0.0, %v861
      %863 = vmatprep.mubr.f32.mxu0 0.0
      %864 = vmatmul.mubr.f32.gmra.mrb[0].mxu0 %v748
      %v865 = vpop.f32.mrb[0].mxu0
      %v866 = vadd.f32 0.0, %v865
      %v867 = vpop.f32.mrb[0].mxu0
      %v868 = vadd.f32 0.0, %v867
      %869 = vmatprep.mubr.f32.mxu0 0.0
      %870 = vmatmul.mubr.f32.gmra.mrb[0].mxu0 %v749
      %v871 = vpop.f32.mrb[0].mxu0
      %v872 = vadd.f32 0.0, %v871
      %v873 = vpop.f32.mrb[0].mxu0
      %v874 = vadd.f32 0.0, %v873
      %875 = vmatprep.mubr.f32.mxu0 0.0
      %876 = vmatmul.mubr.f32.gmra.mrb[0].mxu0 %v750
      %v877 = vpop.f32.mrb[0].mxu0
      %v878 = vadd.f32 0.0, %v877
      %v879 = vpop.f32.mrb[0].mxu0
      %v880 = vadd.f32 0.0, %v879
      %881 = vmatprep.mubr.f32.mxu0 0.0
      %882 = vmatmul.mubr.f32.gmra.mrb[0].mxu0 %v751
      %v883 = vpop.f32.mrb[0].mxu0
      %v884 = vadd.f32 0.0, %v883
      %v885 = vpop.f32.mrb[0].mxu0
      %v886 = vadd.f32 0.0, %v885
      %887 = vmatprep.mubr.f32.mxu0 0.0
      %888 = vmatmul.mubr.f32.gmra.mrb[0].mxu0 %v752
      %v889 = vpop.f32.mrb[0].mxu0
      %v890 = vadd.f32 0.0, %v889
      %v891 = vpop.f32.mrb[0].mxu0
      %v892 = vadd.f32 0.0, %v891
      %893 = vmatprep.mubr.f32.mxu0 0.0
      %894 = vmatmul.mubr.f32.gmra.mrb[0].mxu0 %v753
      %v895 = vpop.f32.mrb[0].mxu0
      %v896 = vadd.f32 0.0, %v895
      %v897 = vpop.f32.mrb[0].mxu0
      %v898 = vadd.f32 0.0, %v897
      %899 = vmatprep.mubr.f32.mxu0 0.0
      %900 = vmatmul.mubr.f32.gmra.mrb[0].mxu0 %v754
      %v901 = vpop.f32.mrb[0].mxu0
      %v902 = vadd.f32 0.0, %v901
      %v903 = vpop.f32.mrb[0].mxu0
      %v904 = vadd.f32 0.0, %v903
      %905 = vmatprep.mubr.f32.mxu0 0.0
      %906 = vmatmul.mubr.f32.gmra.mrb[0].mxu0 %v755
      %v907 = vpop.f32.mrb[0].mxu0
      %v908 = vadd.f32 0.0, %v907
      %v909 = vpop.f32.mrb[0].mxu0
      %v910 = vadd.f32 0.0, %v909
      %911 = vmatprep.mubr.f32.mxu0 0.0
      %912 = vmatmul.mubr.f32.gmra.mrb[0].mxu0 %v756
      %v913 = vpop.f32.mrb[0].mxu0
      %v914 = vadd.f32 0.0, %v913
      %v915 = vpop.f32.mrb[0].mxu0
      %v916 = vadd.f32 0.0, %v915
      %917 = vdwg.mxu0
      %v918 = vadd.f32 %v709, %v824
      %v919 = vadd.f32 %v710, %v826
      %v920 = vadd.f32 %v711, %v830
      %v921 = vadd.f32 %v712, %v832
      %v922 = vadd.f32 %v713, %v836
      %v923 = vadd.f32 %v714, %v838
      %v924 = vadd.f32 %v715, %v842
      %v925 = vadd.f32 %v716, %v844
      %v926 = vadd.f32 %v717, %v848
      %v927 = vadd.f32 %v718, %v850
      %v928 = vadd.f32 %v719, %v854
      %v929 = vadd.f32 %v720, %v856
      %v930 = vadd.f32 %v721, %v860
      %v931 = vadd.f32 %v722, %v862
      %v932 = vadd.f32 %v723, %v866
      %v933 = vadd.f32 %v724, %v868
      %v934 = vadd.f32 %v725, %v872
      %v935 = vadd.f32 %v726, %v874
      %v936 = vadd.f32 %v727, %v878
      %v937 = vadd.f32 %v728, %v880
      %v938 = vadd.f32 %v729, %v884
      %v939 = vadd.f32 %v730, %v886
      %v940 = vadd.f32 %v731, %v890
      %v941 = vadd.f32 %v732, %v892
      %v942 = vadd.f32 %v733, %v896
      %v943 = vadd.f32 %v734, %v898
      %v944 = vadd.f32 %v735, %v902
      %v945 = vadd.f32 %v736, %v904
      %v946 = vadd.f32 %v737, %v908
      %v947 = vadd.f32 %v738, %v910
      %v948 = vadd.f32 %v739, %v914
      %v949 = vadd.f32 %v740, %v916
      %950 = vst [vmem:[#allocation2] sm:$0xff] %v918
      %951 = vst [vmem:[#allocation2 + $0x8] sm:$0xff] %v919
      %952 = vst [vmem:[#allocation2 + $0x10] sm:$0xff] %v920
      %953 = vst [vmem:[#allocation2 + $0x18] sm:$0xff] %v921
      %954 = vst [vmem:[#allocation2 + $0x20] sm:$0xff] %v922
      %955 = vst [vmem:[#allocation2 + $0x28] sm:$0xff] %v923
      %956 = vst [vmem:[#allocation2 + $0x30] sm:$0xff] %v924
      %957 = vst [vmem:[#allocation2 + $0x38] sm:$0xff] %v925
      %958 = vst [vmem:[#allocation2 + $0x40] sm:$0xff] %v926
      %959 = vst [vmem:[#allocation2 + $0x48] sm:$0xff] %v927
      %960 = vst [vmem:[#allocation2 + $0x50] sm:$0xff] %v928
      %961 = vst [vmem:[#allocation2 + $0x58] sm:$0xff] %v929
      %962 = vst [vmem:[#allocation2 + $0x60] sm:$0xff] %v930
      %963 = vst [vmem:[#allocation2 + $0x68] sm:$0xff] %v931
      %964 = vst [vmem:[#allocation2 + $0x70] sm:$0xff] %v932
      %965 = vst [vmem:[#allocation2 + $0x78] sm:$0xff] %v933
      %966 = vst [vmem:[#allocation2 + $0x80] sm:$0xff] %v934
      %967 = vst [vmem:[#allocation2 + $0x88] sm:$0xff] %v935
      %968 = vst [vmem:[#allocation2 + $0x90] sm:$0xff] %v936
      %969 = vst [vmem:[#allocation2 + $0x98] sm:$0xff] %v937
      %970 = vst [vmem:[#allocation2 + $0xa0] sm:$0xff] %v938
      %971 = vst [vmem:[#allocation2 + $0xa8] sm:$0xff] %v939
      %972 = vst [vmem:[#allocation2 + $0xb0] sm:$0xff] %v940
      %973 = vst [vmem:[#allocation2 + $0xb8] sm:$0xff] %v941
      %974 = vst [vmem:[#allocation2 + $0xc0] sm:$0xff] %v942
      %975 = vst [vmem:[#allocation2 + $0xc8] sm:$0xff] %v943
      %976 = vst [vmem:[#allocation2 + $0xd0] sm:$0xff] %v944
      %977 = vst [vmem:[#allocation2 + $0xd8] sm:$0xff] %v945
      %978 = vst [vmem:[#allocation2 + $0xe0] sm:$0xff] %v946
      %979 = vst [vmem:[#allocation2 + $0xe8] sm:$0xff] %v947
      %980 = vst [vmem:[#allocation2 + $0xf0] sm:$0xff] %v948
      %981 = vst [vmem:[#allocation2 + $0xf8] sm:$0xff] %v949
      %982 = vrot.lane.b32.xlu0 %v338, 16
      %v983 = vpop.permute.xlu0 %982
      %984 = vrot.lane.b32.xlu0 %v340, 16
      %v985 = vpop.permute.xlu0 %984
      %986 = vrot.lane.b32.xlu0 %v342, 16
      %v987 = vpop.permute.xlu0 %986
      %988 = vrot.lane.b32.xlu0 %v344, 16
      %v989 = vpop.permute.xlu0 %988
      %990 = vrot.lane.b32.xlu0 %v346, 16
      %v991 = vpop.permute.xlu0 %990
      %992 = vrot.lane.b32.xlu0 %v348, 16
      %v993 = vpop.permute.xlu0 %992
      %994 = vrot.lane.b32.xlu0 %v350, 16
      %v995 = vpop.permute.xlu0 %994
      %996 = vrot.lane.b32.xlu0 %v352, 16
      %v997 = vpop.permute.xlu0 %996
      %998 = vrot.lane.b32.xlu0 %v354, 16
      %v999 = vpop.permute.xlu0 %998
      %1000 = vrot.lane.b32.xlu0 %v356, 16
      %v1001 = vpop.permute.xlu0 %1000
      %1002 = vrot.lane.b32.xlu0 %v358, 16
      %v1003 = vpop.permute.xlu0 %1002
      %1004 = vrot.lane.b32.xlu0 %v360, 16
      %v1005 = vpop.permute.xlu0 %1004
      %1006 = vrot.lane.b32.xlu0 %v362, 16
      %v1007 = vpop.permute.xlu0 %1006
      %1008 = vrot.lane.b32.xlu0 %v364, 16
      %v1009 = vpop.permute.xlu0 %1008
      %1010 = vrot.lane.b32.xlu0 %v366, 16
      %v1011 = vpop.permute.xlu0 %1010
      %1012 = vrot.lane.b32.xlu0 %v368, 16
      %v1013 = vpop.permute.xlu0 %1012
      %1014 = vrot.lane.b32.xlu0 %v339, 16
      %v1015 = vpop.permute.xlu0 %1014
      %1016 = vrot.lane.b32.xlu0 %v341, 16
      %v1017 = vpop.permute.xlu0 %1016
      %1018 = vrot.lane.b32.xlu0 %v343, 16
      %v1019 = vpop.permute.xlu0 %1018
      %1020 = vrot.lane.b32.xlu0 %v345, 16
      %v1021 = vpop.permute.xlu0 %1020
      %1022 = vrot.lane.b32.xlu0 %v347, 16
      %v1023 = vpop.permute.xlu0 %1022
      %1024 = vrot.lane.b32.xlu0 %v349, 16
      %v1025 = vpop.permute.xlu0 %1024
      %1026 = vrot.lane.b32.xlu0 %v351, 16
      %v1027 = vpop.permute.xlu0 %1026
      %1028 = vrot.lane.b32.xlu0 %v353, 16
      %v1029 = vpop.permute.xlu0 %1028
      %1030 = vrot.lane.b32.xlu0 %v355, 16
      %v1031 = vpop.permute.xlu0 %1030
      %1032 = vrot.lane.b32.xlu0 %v357, 16
      %v1033 = vpop.permute.xlu0 %1032
      %1034 = vrot.lane.b32.xlu0 %v359, 16
      %v1035 = vpop.permute.xlu0 %1034
      %1036 = vrot.lane.b32.xlu0 %v361, 16
      %v1037 = vpop.permute.xlu0 %1036
      %1038 = vrot.lane.b32.xlu0 %v363, 16
      %v1039 = vpop.permute.xlu0 %1038
      %1040 = vrot.lane.b32.xlu0 %v365, 16
      %v1041 = vpop.permute.xlu0 %1040
      %1042 = vrot.lane.b32.xlu0 %v367, 16
      %v1043 = vpop.permute.xlu0 %1042
      %1044 = vrot.lane.b32.xlu0 %v369, 16
      %v1045 = vpop.permute.xlu0 %1044
      %vm1046 = vcmp.lt.s32.totalorder %v280, 16
      %v1047 = vsel %vm1046, %v983, %v1015
      %v1048 = vsel %vm1046, %v985, %v1017
      %v1049 = vsel %vm1046, %v987, %v1019
      %v1050 = vsel %vm1046, %v989, %v1021
      %v1051 = vsel %vm1046, %v991, %v1023
      %v1052 = vsel %vm1046, %v993, %v1025
      %v1053 = vsel %vm1046, %v995, %v1027
      %v1054 = vsel %vm1046, %v997, %v1029
      %v1055 = vsel %vm1046, %v999, %v1031
      %v1056 = vsel %vm1046, %v1001, %v1033
      %v1057 = vsel %vm1046, %v1003, %v1035
      %v1058 = vsel %vm1046, %v1005, %v1037
      %v1059 = vsel %vm1046, %v1007, %v1039
      %v1060 = vsel %vm1046, %v1009, %v1041
      %v1061 = vsel %vm1046, %v1011, %v1043
      %v1062 = vsel %vm1046, %v1013, %v1045
      %v1063 = vsel %vm1046, %v1015, %v983
      %v1064 = vsel %vm1046, %v1017, %v985
      %v1065 = vsel %vm1046, %v1019, %v987
      %v1066 = vsel %vm1046, %v1021, %v989
      %v1067 = vsel %vm1046, %v1023, %v991
      %v1068 = vsel %vm1046, %v1025, %v993
      %v1069 = vsel %vm1046, %v1027, %v995
      %v1070 = vsel %vm1046, %v1029, %v997
      %v1071 = vsel %vm1046, %v1031, %v999
      %v1072 = vsel %vm1046, %v1033, %v1001
      %v1073 = vsel %vm1046, %v1035, %v1003
      %v1074 = vsel %vm1046, %v1037, %v1005
      %v1075 = vsel %vm1046, %v1039, %v1007
      %v1076 = vsel %vm1046, %v1041, %v1009
      %v1077 = vsel %vm1046, %v1043, %v1011
      %v1078 = vsel %vm1046, %v1045, %v1013
      %v1079 = vmul.f32 %v1063, %v314
      %v1080 = vmul.f32 %v1047, %v315
      %v1081 = vmul.f32 %v1064, %v314
      %v1082 = vmul.f32 %v1048, %v315
      %v1083 = vmul.f32 %v1065, %v314
      %v1084 = vmul.f32 %v1049, %v315
      %v1085 = vmul.f32 %v1066, %v314
      %v1086 = vmul.f32 %v1050, %v315
      %v1087 = vmul.f32 %v1067, %v314
      %v1088 = vmul.f32 %v1051, %v315
      %v1089 = vmul.f32 %v1068, %v314
      %v1090 = vmul.f32 %v1052, %v315
      %v1091 = vmul.f32 %v1069, %v314
      %v1092 = vmul.f32 %v1053, %v315
      %v1093 = vmul.f32 %v1070, %v314
      %v1094 = vmul.f32 %v1054, %v315
      %v1095 = vmul.f32 %v1071, %v314
      %v1096 = vmul.f32 %v1055, %v315
      %v1097 = vmul.f32 %v1072, %v314
      %v1098 = vmul.f32 %v1056, %v315
      %v1099 = vmul.f32 %v1073, %v314
      %v1100 = vmul.f32 %v1057, %v315
      %v1101 = vmul.f32 %v1074, %v314
      %v1102 = vmul.f32 %v1058, %v315
      %v1103 = vmul.f32 %v1075, %v314
      %v1104 = vmul.f32 %v1059, %v315
      %v1105 = vmul.f32 %v1076, %v314
      %v1106 = vmul.f32 %v1060, %v315
      %v1107 = vmul.f32 %v1077, %v314
      %v1108 = vmul.f32 %v1061, %v315
      %v1109 = vmul.f32 %v1078, %v314
      %v1110 = vmul.f32 %v1062, %v315
      %v1111 = vld [vmem:[#allocation2] sm:$0xff]
      %v1112 = vld [vmem:[#allocation2 + $0x8] sm:$0xff]
      %v1113 = vld [vmem:[#allocation2 + $0x10] sm:$0xff]
      %v1114 = vld [vmem:[#allocation2 + $0x18] sm:$0xff]
      %v1115 = vld [vmem:[#allocation2 + $0x20] sm:$0xff]
      %v1116 = vld [vmem:[#allocation2 + $0x28] sm:$0xff]
      %v1117 = vld [vmem:[#allocation2 + $0x30] sm:$0xff]
      %v1118 = vld [vmem:[#allocation2 + $0x38] sm:$0xff]
      %v1119 = vld [vmem:[#allocation2 + $0x40] sm:$0xff]
      %v1120 = vld [vmem:[#allocation2 + $0x48] sm:$0xff]
      %v1121 = vld [vmem:[#allocation2 + $0x50] sm:$0xff]
      %v1122 = vld [vmem:[#allocation2 + $0x58] sm:$0xff]
      %v1123 = vld [vmem:[#allocation2 + $0x60] sm:$0xff]
      %v1124 = vld [vmem:[#allocation2 + $0x68] sm:$0xff]
      %v1125 = vld [vmem:[#allocation2 + $0x70] sm:$0xff]
      %v1126 = vld [vmem:[#allocation2 + $0x78] sm:$0xff]
      %v1127 = vld [vmem:[#allocation2 + $0x80] sm:$0xff]
      %v1128 = vld [vmem:[#allocation2 + $0x88] sm:$0xff]
      %v1129 = vld [vmem:[#allocation2 + $0x90] sm:$0xff]
      %v1130 = vld [vmem:[#allocation2 + $0x98] sm:$0xff]
      %v1131 = vld [vmem:[#allocation2 + $0xa0] sm:$0xff]
      %v1132 = vld [vmem:[#allocation2 + $0xa8] sm:$0xff]
      %v1133 = vld [vmem:[#allocation2 + $0xb0] sm:$0xff]
      %v1134 = vld [vmem:[#allocation2 + $0xb8] sm:$0xff]
      %v1135 = vld [vmem:[#allocation2 + $0xc0] sm:$0xff]
      %v1136 = vld [vmem:[#allocation2 + $0xc8] sm:$0xff]
      %v1137 = vld [vmem:[#allocation2 + $0xd0] sm:$0xff]
      %v1138 = vld [vmem:[#allocation2 + $0xd8] sm:$0xff]
      %v1139 = vld [vmem:[#allocation2 + $0xe0] sm:$0xff]
      %v1140 = vld [vmem:[#allocation2 + $0xe8] sm:$0xff]
      %v1141 = vld [vmem:[#allocation2 + $0xf0] sm:$0xff]
      %v1142 = vld [vmem:[#allocation2 + $0xf8] sm:$0xff]
      %s1143 = scalar_lea.vmem %s1, 128
      %v1144 = vld [vmem:[%s1143] sm:$0xff]
      %v1145 = vld [vmem:[%s1143 + $0x8] sm:$0xff]
      %v1146 = vld [vmem:[%s1143 + $0x10] sm:$0xff]
      %v1147 = vld [vmem:[%s1143 + $0x18] sm:$0xff]
      %v1148 = vld [vmem:[%s1143 + $0x20] sm:$0xff]
      %v1149 = vld [vmem:[%s1143 + $0x28] sm:$0xff]
      %v1150 = vld [vmem:[%s1143 + $0x30] sm:$0xff]
      %v1151 = vld [vmem:[%s1143 + $0x38] sm:$0xff]
      %v1152 = vld [vmem:[%s1143 + $0x40] sm:$0xff]
      %v1153 = vld [vmem:[%s1143 + $0x48] sm:$0xff]
      %v1154 = vld [vmem:[%s1143 + $0x50] sm:$0xff]
      %v1155 = vld [vmem:[%s1143 + $0x58] sm:$0xff]
      %v1156 = vld [vmem:[%s1143 + $0x60] sm:$0xff]
      %v1157 = vld [vmem:[%s1143 + $0x68] sm:$0xff]
      %v1158 = vld [vmem:[%s1143 + $0x70] sm:$0xff]
      %v1159 = vld [vmem:[%s1143 + $0x78] sm:$0xff]
      %1160 = vmatprep.subr.mxu0 %v1080
      %1161 = vmatpush1.msra.mxu0 %v1079
      %1162 = vmatprep.subr.mxu0 %v1082
      %1163 = vmatpush1.msra.mxu0 %v1081
      %1164 = vmatprep.subr.mxu0 %v1084
      %1165 = vmatpush1.msra.mxu0 %v1083
      %1166 = vmatprep.subr.mxu0 %v1086
      %1167 = vmatpush1.msra.mxu0 %v1085
      %1168 = vmatprep.subr.mxu0 %v1088
      %1169 = vmatpush1.msra.mxu0 %v1087
      %1170 = vmatprep.subr.mxu0 %v1090
      %1171 = vmatpush1.msra.mxu0 %v1089
      %1172 = vmatprep.subr.mxu0 %v1092
      %1173 = vmatpush1.msra.mxu0 %v1091
      %1174 = vmatprep.subr.mxu0 %v1094
      %1175 = vmatpush1.msra.mxu0 %v1093
      %1176 = vmatprep.subr.mxu0 %v1096
      %1177 = vmatpush1.msra.mxu0 %v1095
      %1178 = vmatprep.subr.mxu0 %v1098
      %1179 = vmatpush1.msra.mxu0 %v1097
      %1180 = vmatprep.subr.mxu0 %v1100
      %1181 = vmatpush1.msra.mxu0 %v1099
      %1182 = vmatprep.subr.mxu0 %v1102
      %1183 = vmatpush1.msra.mxu0 %v1101
      %1184 = vmatprep.subr.mxu0 %v1104
      %1185 = vmatpush1.msra.mxu0 %v1103
      %1186 = vmatprep.subr.mxu0 %v1106
      %1187 = vmatpush1.msra.mxu0 %v1105
      %1188 = vmatprep.subr.mxu0 %v1108
      %1189 = vmatpush1.msra.mxu0 %v1107
      %1190 = vmatprep.subr.mxu0 %v1110
      %1191 = vmatpush1.msra.mxu0 %v1109
      %1192 = vmatprep.subr.mxu0 0.0
      %1193 = vmatpush1.msra.mxu0 0.0
      %1194 = vmatprep.subr.mxu0 0.0
      %1195 = vmatpush1.msra.mxu0 0.0
      %1196 = vmatprep.subr.mxu0 0.0
      %1197 = vmatpush1.msra.mxu0 0.0
      %1198 = vmatprep.subr.mxu0 0.0
      %1199 = vmatpush1.msra.mxu0 0.0
      %1200 = vmatprep.subr.mxu0 0.0
      %1201 = vmatpush1.msra.mxu0 0.0
      %1202 = vmatprep.subr.mxu0 0.0
      %1203 = vmatpush1.msra.mxu0 0.0
      %1204 = vmatprep.subr.mxu0 0.0
      %1205 = vmatpush1.msra.mxu0 0.0
      %1206 = vmatprep.subr.mxu0 0.0
      %1207 = vmatpush1.msra.mxu0 0.0
      %1208 = vmatprep.subr.mxu0 0.0
      %1209 = vmatpush1.msra.mxu0 0.0
      %1210 = vmatprep.subr.mxu0 0.0
      %1211 = vmatpush1.msra.mxu0 0.0
      %1212 = vmatprep.subr.mxu0 0.0
      %1213 = vmatpush1.msra.mxu0 0.0
      %1214 = vmatprep.subr.mxu0 0.0
      %1215 = vmatpush1.msra.mxu0 0.0
      %1216 = vmatprep.subr.mxu0 0.0
      %1217 = vmatpush1.msra.mxu0 0.0
      %1218 = vmatprep.subr.mxu0 0.0
      %1219 = vmatpush1.msra.mxu0 0.0
      %1220 = vmatprep.subr.mxu0 0.0
      %1221 = vmatpush1.msra.mxu0 0.0
      %1222 = vmatprep.subr.mxu0 0.0
      %1223 = vmatpush1.msra.mxu0 0.0
      %1224 = vmatprep.mubr.f32.mxu0 0.0
      %1225 = vmatmul.mubr.f32.gmra.mrb[0].mxu0 %v1144
      %v1226 = vpop.f32.mrb[0].mxu0
      %v1227 = vadd.f32 0.0, %v1226
      %v1228 = vpop.f32.mrb[0].mxu0
      %v1229 = vadd.f32 0.0, %v1228
      %1230 = vmatprep.mubr.f32.mxu0 0.0
      %1231 = vmatmul.mubr.f32.gmra.mrb[0].mxu0 %v1145
      %v1232 = vpop.f32.mrb[0].mxu0
      %v1233 = vadd.f32 0.0, %v1232
      %v1234 = vpop.f32.mrb[0].mxu0
      %v1235 = vadd.f32 0.0, %v1234
      %1236 = vmatprep.mubr.f32.mxu0 0.0
      %1237 = vmatmul.mubr.f32.gmra.mrb[0].mxu0 %v1146
      %v1238 = vpop.f32.mrb[0].mxu0
      %v1239 = vadd.f32 0.0, %v1238
      %v1240 = vpop.f32.mrb[0].mxu0
      %v1241 = vadd.f32 0.0, %v1240
      %1242 = vmatprep.mubr.f32.mxu0 0.0
      %1243 = vmatmul.mubr.f32.gmra.mrb[0].mxu0 %v1147
      %v1244 = vpop.f32.mrb[0].mxu0
      %v1245 = vadd.f32 0.0, %v1244
      %v1246 = vpop.f32.mrb[0].mxu0
      %v1247 = vadd.f32 0.0, %v1246
      %1248 = vmatprep.mubr.f32.mxu0 0.0
      %1249 = vmatmul.mubr.f32.gmra.mrb[0].mxu0 %v1148
      %v1250 = vpop.f32.mrb[0].mxu0
      %v1251 = vadd.f32 0.0, %v1250
      %v1252 = vpop.f32.mrb[0].mxu0
      %v1253 = vadd.f32 0.0, %v1252
      %1254 = vmatprep.mubr.f32.mxu0 0.0
      %1255 = vmatmul.mubr.f32.gmra.mrb[0].mxu0 %v1149
      %v1256 = vpop.f32.mrb[0].mxu0
      %v1257 = vadd.f32 0.0, %v1256
      %v1258 = vpop.f32.mrb[0].mxu0
      %v1259 = vadd.f32 0.0, %v1258
      %1260 = vmatprep.mubr.f32.mxu0 0.0
      %1261 = vmatmul.mubr.f32.gmra.mrb[0].mxu0 %v1150
      %v1262 = vpop.f32.mrb[0].mxu0
      %v1263 = vadd.f32 0.0, %v1262
      %v1264 = vpop.f32.mrb[0].mxu0
      %v1265 = vadd.f32 0.0, %v1264
      %1266 = vmatprep.mubr.f32.mxu0 0.0
      %1267 = vmatmul.mubr.f32.gmra.mrb[0].mxu0 %v1151
      %v1268 = vpop.f32.mrb[0].mxu0
      %v1269 = vadd.f32 0.0, %v1268
      %v1270 = vpop.f32.mrb[0].mxu0
      %v1271 = vadd.f32 0.0, %v1270
      %1272 = vmatprep.mubr.f32.mxu0 0.0
      %1273 = vmatmul.mubr.f32.gmra.mrb[0].mxu0 %v1152
      %v1274 = vpop.f32.mrb[0].mxu0
      %v1275 = vadd.f32 0.0, %v1274
      %v1276 = vpop.f32.mrb[0].mxu0
      %v1277 = vadd.f32 0.0, %v1276
      %1278 = vmatprep.mubr.f32.mxu0 0.0
      %1279 = vmatmul.mubr.f32.gmra.mrb[0].mxu0 %v1153
      %v1280 = vpop.f32.mrb[0].mxu0
      %v1281 = vadd.f32 0.0, %v1280
      %v1282 = vpop.f32.mrb[0].mxu0
      %v1283 = vadd.f32 0.0, %v1282
      %1284 = vmatprep.mubr.f32.mxu0 0.0
      %1285 = vmatmul.mubr.f32.gmra.mrb[0].mxu0 %v1154
      %v1286 = vpop.f32.mrb[0].mxu0
      %v1287 = vadd.f32 0.0, %v1286
      %v1288 = vpop.f32.mrb[0].mxu0
      %v1289 = vadd.f32 0.0, %v1288
      %1290 = vmatprep.mubr.f32.mxu0 0.0
      %1291 = vmatmul.mubr.f32.gmra.mrb[0].mxu0 %v1155
      %v1292 = vpop.f32.mrb[0].mxu0
      %v1293 = vadd.f32 0.0, %v1292
      %v1294 = vpop.f32.mrb[0].mxu0
      %v1295 = vadd.f32 0.0, %v1294
      %1296 = vmatprep.mubr.f32.mxu0 0.0
      %1297 = vmatmul.mubr.f32.gmra.mrb[0].mxu0 %v1156
      %v1298 = vpop.f32.mrb[0].mxu0
      %v1299 = vadd.f32 0.0, %v1298
      %v1300 = vpop.f32.mrb[0].mxu0
      %v1301 = vadd.f32 0.0, %v1300
      %1302 = vmatprep.mubr.f32.mxu0 0.0
      %1303 = vmatmul.mubr.f32.gmra.mrb[0].mxu0 %v1157
      %v1304 = vpop.f32.mrb[0].mxu0
      %v1305 = vadd.f32 0.0, %v1304
      %v1306 = vpop.f32.mrb[0].mxu0
      %v1307 = vadd.f32 0.0, %v1306
      %1308 = vmatprep.mubr.f32.mxu0 0.0
      %1309 = vmatmul.mubr.f32.gmra.mrb[0].mxu0 %v1158
      %v1310 = vpop.f32.mrb[0].mxu0
      %v1311 = vadd.f32 0.0, %v1310
      %v1312 = vpop.f32.mrb[0].mxu0
      %v1313 = vadd.f32 0.0, %v1312
      %1314 = vmatprep.mubr.f32.mxu0 0.0
      %1315 = vmatmul.mubr.f32.gmra.mrb[0].mxu0 %v1159
      %v1316 = vpop.f32.mrb[0].mxu0
      %v1317 = vadd.f32 0.0, %v1316
      %v1318 = vpop.f32.mrb[0].mxu0
      %v1319 = vadd.f32 0.0, %v1318
      %1320 = vdwg.mxu0
      %v1321 = vadd.f32 %v1111, %v1227
      %v1322 = vadd.f32 %v1112, %v1229
      %v1323 = vadd.f32 %v1113, %v1233
      %v1324 = vadd.f32 %v1114, %v1235
      %v1325 = vadd.f32 %v1115, %v1239
      %v1326 = vadd.f32 %v1116, %v1241
      %v1327 = vadd.f32 %v1117, %v1245
      %v1328 = vadd.f32 %v1118, %v1247
      %v1329 = vadd.f32 %v1119, %v1251
      %v1330 = vadd.f32 %v1120, %v1253
      %v1331 = vadd.f32 %v1121, %v1257
      %v1332 = vadd.f32 %v1122, %v1259
      %v1333 = vadd.f32 %v1123, %v1263
      %v1334 = vadd.f32 %v1124, %v1265
      %v1335 = vadd.f32 %v1125, %v1269
      %v1336 = vadd.f32 %v1126, %v1271
      %v1337 = vadd.f32 %v1127, %v1275
      %v1338 = vadd.f32 %v1128, %v1277
      %v1339 = vadd.f32 %v1129, %v1281
      %v1340 = vadd.f32 %v1130, %v1283
      %v1341 = vadd.f32 %v1131, %v1287
      %v1342 = vadd.f32 %v1132, %v1289
      %v1343 = vadd.f32 %v1133, %v1293
      %v1344 = vadd.f32 %v1134, %v1295
      %v1345 = vadd.f32 %v1135, %v1299
      %v1346 = vadd.f32 %v1136, %v1301
      %v1347 = vadd.f32 %v1137, %v1305
      %v1348 = vadd.f32 %v1138, %v1307
      %v1349 = vadd.f32 %v1139, %v1311
      %v1350 = vadd.f32 %v1140, %v1313
      %v1351 = vadd.f32 %v1141, %v1317
      %v1352 = vadd.f32 %v1142, %v1319
      %1353 = vst [vmem:[#allocation2] sm:$0xff] %v1321
      %1354 = vst [vmem:[#allocation2 + $0x8] sm:$0xff] %v1322
      %1355 = vst [vmem:[#allocation2 + $0x10] sm:$0xff] %v1323
      %1356 = vst [vmem:[#allocation2 + $0x18] sm:$0xff] %v1324
      %1357 = vst [vmem:[#allocation2 + $0x20] sm:$0xff] %v1325
      %1358 = vst [vmem:[#allocation2 + $0x28] sm:$0xff] %v1326
      %1359 = vst [vmem:[#allocation2 + $0x30] sm:$0xff] %v1327
      %1360 = vst [vmem:[#allocation2 + $0x38] sm:$0xff] %v1328
      %1361 = vst [vmem:[#allocation2 + $0x40] sm:$0xff] %v1329
      %1362 = vst [vmem:[#allocation2 + $0x48] sm:$0xff] %v1330
      %1363 = vst [vmem:[#allocation2 + $0x50] sm:$0xff] %v1331
      %1364 = vst [vmem:[#allocation2 + $0x58] sm:$0xff] %v1332
      %1365 = vst [vmem:[#allocation2 + $0x60] sm:$0xff] %v1333
      %1366 = vst [vmem:[#allocation2 + $0x68] sm:$0xff] %v1334
      %1367 = vst [vmem:[#allocation2 + $0x70] sm:$0xff] %v1335
      %1368 = vst [vmem:[#allocation2 + $0x78] sm:$0xff] %v1336
      %1369 = vst [vmem:[#allocation2 + $0x80] sm:$0xff] %v1337
      %1370 = vst [vmem:[#allocation2 + $0x88] sm:$0xff] %v1338
      %1371 = vst [vmem:[#allocation2 + $0x90] sm:$0xff] %v1339
      %1372 = vst [vmem:[#allocation2 + $0x98] sm:$0xff] %v1340
      %1373 = vst [vmem:[#allocation2 + $0xa0] sm:$0xff] %v1341
      %1374 = vst [vmem:[#allocation2 + $0xa8] sm:$0xff] %v1342
      %1375 = vst [vmem:[#allocation2 + $0xb0] sm:$0xff] %v1343
      %1376 = vst [vmem:[#allocation2 + $0xb8] sm:$0xff] %v1344
      %1377 = vst [vmem:[#allocation2 + $0xc0] sm:$0xff] %v1345
      %1378 = vst [vmem:[#allocation2 + $0xc8] sm:$0xff] %v1346
      %1379 = vst [vmem:[#allocation2 + $0xd0] sm:$0xff] %v1347
      %1380 = vst [vmem:[#allocation2 + $0xd8] sm:$0xff] %v1348
      %1381 = vst [vmem:[#allocation2 + $0xe0] sm:$0xff] %v1349
      %1382 = vst [vmem:[#allocation2 + $0xe8] sm:$0xff] %v1350
      %1383 = vst [vmem:[#allocation2 + $0xf0] sm:$0xff] %v1351
      %1384 = vst [vmem:[#allocation2 + $0xf8] sm:$0xff] %v1352
      %1385 = vrot.lane.b32.xlu0 %v338, 15
      %v1386 = vpop.permute.xlu0 %1385
      %1387 = vrot.lane.b32.xlu0 %v340, 15
      %v1388 = vpop.permute.xlu0 %1387
      %1389 = vrot.lane.b32.xlu0 %v342, 15
      %v1390 = vpop.permute.xlu0 %1389
      %1391 = vrot.lane.b32.xlu0 %v344, 15
      %v1392 = vpop.permute.xlu0 %1391
      %1393 = vrot.lane.b32.xlu0 %v346, 15
      %v1394 = vpop.permute.xlu0 %1393
      %1395 = vrot.lane.b32.xlu0 %v348, 15
      %v1396 = vpop.permute.xlu0 %1395
      %1397 = vrot.lane.b32.xlu0 %v350, 15
      %v1398 = vpop.permute.xlu0 %1397
      %1399 = vrot.lane.b32.xlu0 %v352, 15
      %v1400 = vpop.permute.xlu0 %1399
      %1401 = vrot.lane.b32.xlu0 %v354, 15
      %v1402 = vpop.permute.xlu0 %1401
      %1403 = vrot.lane.b32.xlu0 %v356, 15
      %v1404 = vpop.permute.xlu0 %1403
      %1405 = vrot.lane.b32.xlu0 %v358, 15
      %v1406 = vpop.permute.xlu0 %1405
      %1407 = vrot.lane.b32.xlu0 %v360, 15
      %v1408 = vpop.permute.xlu0 %1407
      %1409 = vrot.lane.b32.xlu0 %v362, 15
      %v1410 = vpop.permute.xlu0 %1409
      %1411 = vrot.lane.b32.xlu0 %v364, 15
      %v1412 = vpop.permute.xlu0 %1411
      %1413 = vrot.lane.b32.xlu0 %v366, 15
      %v1414 = vpop.permute.xlu0 %1413
      %1415 = vrot.lane.b32.xlu0 %v368, 15
      %v1416 = vpop.permute.xlu0 %1415
      %1417 = vrot.lane.b32.xlu0 %v339, 15
      %v1418 = vpop.permute.xlu0 %1417
      %1419 = vrot.lane.b32.xlu0 %v341, 15
      %v1420 = vpop.permute.xlu0 %1419
      %1421 = vrot.lane.b32.xlu0 %v343, 15
      %v1422 = vpop.permute.xlu0 %1421
      %1423 = vrot.lane.b32.xlu0 %v345, 15
      %v1424 = vpop.permute.xlu0 %1423
      %1425 = vrot.lane.b32.xlu0 %v347, 15
      %v1426 = vpop.permute.xlu0 %1425
      %1427 = vrot.lane.b32.xlu0 %v349, 15
      %v1428 = vpop.permute.xlu0 %1427
      %1429 = vrot.lane.b32.xlu0 %v351, 15
      %v1430 = vpop.permute.xlu0 %1429
      %1431 = vrot.lane.b32.xlu0 %v353, 15
      %v1432 = vpop.permute.xlu0 %1431
      %1433 = vrot.lane.b32.xlu0 %v355, 15
      %v1434 = vpop.permute.xlu0 %1433
      %1435 = vrot.lane.b32.xlu0 %v357, 15
      %v1436 = vpop.permute.xlu0 %1435
      %1437 = vrot.lane.b32.xlu0 %v359, 15
      %v1438 = vpop.permute.xlu0 %1437
      %1439 = vrot.lane.b32.xlu0 %v361, 15
      %v1440 = vpop.permute.xlu0 %1439
      %1441 = vrot.lane.b32.xlu0 %v363, 15
      %v1442 = vpop.permute.xlu0 %1441
      %1443 = vrot.lane.b32.xlu0 %v365, 15
      %v1444 = vpop.permute.xlu0 %1443
      %1445 = vrot.lane.b32.xlu0 %v367, 15
      %v1446 = vpop.permute.xlu0 %1445
      %1447 = vrot.lane.b32.xlu0 %v369, 15
      %v1448 = vpop.permute.xlu0 %1447
      %vm1449 = vcmp.lt.s32.totalorder %v280, 15
      %v1450 = vsel %vm1449, %v1386, %v1418
      %v1451 = vsel %vm1449, %v1388, %v1420
      %v1452 = vsel %vm1449, %v1390, %v1422
      %v1453 = vsel %vm1449, %v1392, %v1424
      %v1454 = vsel %vm1449, %v1394, %v1426
      %v1455 = vsel %vm1449, %v1396, %v1428
      %v1456 = vsel %vm1449, %v1398, %v1430
      %v1457 = vsel %vm1449, %v1400, %v1432
      %v1458 = vsel %vm1449, %v1402, %v1434
      %v1459 = vsel %vm1449, %v1404, %v1436
      %v1460 = vsel %vm1449, %v1406, %v1438
      %v1461 = vsel %vm1449, %v1408, %v1440
      %v1462 = vsel %vm1449, %v1410, %v1442
      %v1463 = vsel %vm1449, %v1412, %v1444
      %v1464 = vsel %vm1449, %v1414, %v1446
      %v1465 = vsel %vm1449, %v1416, %v1448
      %v1466 = vsel %vm1449, %v1418, %v1386
      %v1467 = vsel %vm1449, %v1420, %v1388
      %v1468 = vsel %vm1449, %v1422, %v1390
      %v1469 = vsel %vm1449, %v1424, %v1392
      %v1470 = vsel %vm1449, %v1426, %v1394
      %v1471 = vsel %vm1449, %v1428, %v1396
      %v1472 = vsel %vm1449, %v1430, %v1398
      %v1473 = vsel %vm1449, %v1432, %v1400
      %v1474 = vsel %vm1449, %v1434, %v1402
      %v1475 = vsel %vm1449, %v1436, %v1404
      %v1476 = vsel %vm1449, %v1438, %v1406
      %v1477 = vsel %vm1449, %v1440, %v1408
      %v1478 = vsel %vm1449, %v1442, %v1410
      %v1479 = vsel %vm1449, %v1444, %v1412
      %v1480 = vsel %vm1449, %v1446, %v1414
      %v1481 = vsel %vm1449, %v1448, %v1416
      %v1482 = vmul.f32 %v1466, %v320
      %v1483 = vmul.f32 %v1450, %v321
      %v1484 = vmul.f32 %v1467, %v320
      %v1485 = vmul.f32 %v1451, %v321
      %v1486 = vmul.f32 %v1468, %v320
      %v1487 = vmul.f32 %v1452, %v321
      %v1488 = vmul.f32 %v1469, %v320
      %v1489 = vmul.f32 %v1453, %v321
      %v1490 = vmul.f32 %v1470, %v320
      %v1491 = vmul.f32 %v1454, %v321
      %v1492 = vmul.f32 %v1471, %v320
      %v1493 = vmul.f32 %v1455, %v321
      %v1494 = vmul.f32 %v1472, %v320
      %v1495 = vmul.f32 %v1456, %v321
      %v1496 = vmul.f32 %v1473, %v320
      %v1497 = vmul.f32 %v1457, %v321
      %v1498 = vmul.f32 %v1474, %v320
      %v1499 = vmul.f32 %v1458, %v321
      %v1500 = vmul.f32 %v1475, %v320
      %v1501 = vmul.f32 %v1459, %v321
      %v1502 = vmul.f32 %v1476, %v320
      %v1503 = vmul.f32 %v1460, %v321
      %v1504 = vmul.f32 %v1477, %v320
      %v1505 = vmul.f32 %v1461, %v321
      %v1506 = vmul.f32 %v1478, %v320
      %v1507 = vmul.f32 %v1462, %v321
      %v1508 = vmul.f32 %v1479, %v320
      %v1509 = vmul.f32 %v1463, %v321
      %v1510 = vmul.f32 %v1480, %v320
      %v1511 = vmul.f32 %v1464, %v321
      %v1512 = vmul.f32 %v1481, %v320
      %v1513 = vmul.f32 %v1465, %v321
      %v1514 = vld [vmem:[#allocation2] sm:$0xff]
      %v1515 = vld [vmem:[#allocation2 + $0x8] sm:$0xff]
      %v1516 = vld [vmem:[#allocation2 + $0x10] sm:$0xff]
      %v1517 = vld [vmem:[#allocation2 + $0x18] sm:$0xff]
      %v1518 = vld [vmem:[#allocation2 + $0x20] sm:$0xff]
      %v1519 = vld [vmem:[#allocation2 + $0x28] sm:$0xff]
      %v1520 = vld [vmem:[#allocation2 + $0x30] sm:$0xff]
      %v1521 = vld [vmem:[#allocation2 + $0x38] sm:$0xff]
      %v1522 = vld [vmem:[#allocation2 + $0x40] sm:$0xff]
      %v1523 = vld [vmem:[#allocation2 + $0x48] sm:$0xff]
      %v1524 = vld [vmem:[#allocation2 + $0x50] sm:$0xff]
      %v1525 = vld [vmem:[#allocation2 + $0x58] sm:$0xff]
      %v1526 = vld [vmem:[#allocation2 + $0x60] sm:$0xff]
      %v1527 = vld [vmem:[#allocation2 + $0x68] sm:$0xff]
      %v1528 = vld [vmem:[#allocation2 + $0x70] sm:$0xff]
      %v1529 = vld [vmem:[#allocation2 + $0x78] sm:$0xff]
      %v1530 = vld [vmem:[#allocation2 + $0x80] sm:$0xff]
      %v1531 = vld [vmem:[#allocation2 + $0x88] sm:$0xff]
      %v1532 = vld [vmem:[#allocation2 + $0x90] sm:$0xff]
      %v1533 = vld [vmem:[#allocation2 + $0x98] sm:$0xff]
      %v1534 = vld [vmem:[#allocation2 + $0xa0] sm:$0xff]
      %v1535 = vld [vmem:[#allocation2 + $0xa8] sm:$0xff]
      %v1536 = vld [vmem:[#allocation2 + $0xb0] sm:$0xff]
      %v1537 = vld [vmem:[#allocation2 + $0xb8] sm:$0xff]
      %v1538 = vld [vmem:[#allocation2 + $0xc0] sm:$0xff]
      %v1539 = vld [vmem:[#allocation2 + $0xc8] sm:$0xff]
      %v1540 = vld [vmem:[#allocation2 + $0xd0] sm:$0xff]
      %v1541 = vld [vmem:[#allocation2 + $0xd8] sm:$0xff]
      %v1542 = vld [vmem:[#allocation2 + $0xe0] sm:$0xff]
      %v1543 = vld [vmem:[#allocation2 + $0xe8] sm:$0xff]
      %v1544 = vld [vmem:[#allocation2 + $0xf0] sm:$0xff]
      %v1545 = vld [vmem:[#allocation2 + $0xf8] sm:$0xff]
      %s1546 = scalar_lea.vmem %s1, 256
      %v1547 = vld [vmem:[%s1546] sm:$0xff]
      %v1548 = vld [vmem:[%s1546 + $0x8] sm:$0xff]
      %v1549 = vld [vmem:[%s1546 + $0x10] sm:$0xff]
      %v1550 = vld [vmem:[%s1546 + $0x18] sm:$0xff]
      %v1551 = vld [vmem:[%s1546 + $0x20] sm:$0xff]
      %v1552 = vld [vmem:[%s1546 + $0x28] sm:$0xff]
      %v1553 = vld [vmem:[%s1546 + $0x30] sm:$0xff]
      %v1554 = vld [vmem:[%s1546 + $0x38] sm:$0xff]
      %v1555 = vld [vmem:[%s1546 + $0x40] sm:$0xff]
      %v1556 = vld [vmem:[%s1546 + $0x48] sm:$0xff]
      %v1557 = vld [vmem:[%s1546 + $0x50] sm:$0xff]
      %v1558 = vld [vmem:[%s1546 + $0x58] sm:$0xff]
      %v1559 = vld [vmem:[%s1546 + $0x60] sm:$0xff]
      %v1560 = vld [vmem:[%s1546 + $0x68] sm:$0xff]
      %v1561 = vld [vmem:[%s1546 + $0x70] sm:$0xff]
      %v1562 = vld [vmem:[%s1546 + $0x78] sm:$0xff]
      %1563 = vmatprep.subr.mxu0 %v1483
      %1564 = vmatpush1.msra.mxu0 %v1482
      %1565 = vmatprep.subr.mxu0 %v1485
      %1566 = vmatpush1.msra.mxu0 %v1484
      %1567 = vmatprep.subr.mxu0 %v1487
      %1568 = vmatpush1.msra.mxu0 %v1486
      %1569 = vmatprep.subr.mxu0 %v1489
      %1570 = vmatpush1.msra.mxu0 %v1488
      %1571 = vmatprep.subr.mxu0 %v1491
      %1572 = vmatpush1.msra.mxu0 %v1490
      %1573 = vmatprep.subr.mxu0 %v1493
      %1574 = vmatpush1.msra.mxu0 %v1492
      %1575 = vmatprep.subr.mxu0 %v1495
      %1576 = vmatpush1.msra.mxu0 %v1494
      %1577 = vmatprep.subr.mxu0 %v1497
      %1578 = vmatpush1.msra.mxu0 %v1496
      %1579 = vmatprep.subr.mxu0 %v1499
      %1580 = vmatpush1.msra.mxu0 %v1498
      %1581 = vmatprep.subr.mxu0 %v1501
      %1582 = vmatpush1.msra.mxu0 %v1500
      %1583 = vmatprep.subr.mxu0 %v1503
      %1584 = vmatpush1.msra.mxu0 %v1502
      %1585 = vmatprep.subr.mxu0 %v1505
      %1586 = vmatpush1.msra.mxu0 %v1504
      %1587 = vmatprep.subr.mxu0 %v1507
      %1588 = vmatpush1.msra.mxu0 %v1506
      %1589 = vmatprep.subr.mxu0 %v1509
      %1590 = vmatpush1.msra.mxu0 %v1508
      %1591 = vmatprep.subr.mxu0 %v1511
      %1592 = vmatpush1.msra.mxu0 %v1510
      %1593 = vmatprep.subr.mxu0 %v1513
      %1594 = vmatpush1.msra.mxu0 %v1512
      %1595 = vmatprep.subr.mxu0 0.0
      %1596 = vmatpush1.msra.mxu0 0.0
      %1597 = vmatprep.subr.mxu0 0.0
      %1598 = vmatpush1.msra.mxu0 0.0
      %1599 = vmatprep.subr.mxu0 0.0
      %1600 = vmatpush1.msra.mxu0 0.0
      %1601 = vmatprep.subr.mxu0 0.0
      %1602 = vmatpush1.msra.mxu0 0.0
      %1603 = vmatprep.subr.mxu0 0.0
      %1604 = vmatpush1.msra.mxu0 0.0
      %1605 = vmatprep.subr.mxu0 0.0
      %1606 = vmatpush1.msra.mxu0 0.0
      %1607 = vmatprep.subr.mxu0 0.0
      %1608 = vmatpush1.msra.mxu0 0.0
      %1609 = vmatprep.subr.mxu0 0.0
      %1610 = vmatpush1.msra.mxu0 0.0
      %1611 = vmatprep.subr.mxu0 0.0
      %1612 = vmatpush1.msra.mxu0 0.0
      %1613 = vmatprep.subr.mxu0 0.0
      %1614 = vmatpush1.msra.mxu0 0.0
      %1615 = vmatprep.subr.mxu0 0.0
      %1616 = vmatpush1.msra.mxu0 0.0
      %1617 = vmatprep.subr.mxu0 0.0
      %1618 = vmatpush1.msra.mxu0 0.0
      %1619 = vmatprep.subr.mxu0 0.0
      %1620 = vmatpush1.msra.mxu0 0.0
      %1621 = vmatprep.subr.mxu0 0.0
      %1622 = vmatpush1.msra.mxu0 0.0
      %1623 = vmatprep.subr.mxu0 0.0
      %1624 = vmatpush1.msra.mxu0 0.0
      %1625 = vmatprep.subr.mxu0 0.0
      %1626 = vmatpush1.msra.mxu0 0.0
      %1627 = vmatprep.mubr.f32.mxu0 0.0
      %1628 = vmatmul.mubr.f32.gmra.mrb[0].mxu0 %v1547
      %v1629 = vpop.f32.mrb[0].mxu0
      %v1630 = vadd.f32 0.0, %v1629
      %v1631 = vpop.f32.mrb[0].mxu0
      %v1632 = vadd.f32 0.0, %v1631
      %1633 = vmatprep.mubr.f32.mxu0 0.0
      %1634 = vmatmul.mubr.f32.gmra.mrb[0].mxu0 %v1548
      %v1635 = vpop.f32.mrb[0].mxu0
      %v1636 = vadd.f32 0.0, %v1635
      %v1637 = vpop.f32.mrb[0].mxu0
      %v1638 = vadd.f32 0.0, %v1637
      %1639 = vmatprep.mubr.f32.mxu0 0.0
      %1640 = vmatmul.mubr.f32.gmra.mrb[0].mxu0 %v1549
      %v1641 = vpop.f32.mrb[0].mxu0
      %v1642 = vadd.f32 0.0, %v1641
      %v1643 = vpop.f32.mrb[0].mxu0
      %v1644 = vadd.f32 0.0, %v1643
      %1645 = vmatprep.mubr.f32.mxu0 0.0
      %1646 = vmatmul.mubr.f32.gmra.mrb[0].mxu0 %v1550
      %v1647 = vpop.f32.mrb[0].mxu0
      %v1648 = vadd.f32 0.0, %v1647
      %v1649 = vpop.f32.mrb[0].mxu0
      %v1650 = vadd.f32 0.0, %v1649
      %1651 = vmatprep.mubr.f32.mxu0 0.0
      %1652 = vmatmul.mubr.f32.gmra.mrb[0].mxu0 %v1551
      %v1653 = vpop.f32.mrb[0].mxu0
      %v1654 = vadd.f32 0.0, %v1653
      %v1655 = vpop.f32.mrb[0].mxu0
      %v1656 = vadd.f32 0.0, %v1655
      %1657 = vmatprep.mubr.f32.mxu0 0.0
      %1658 = vmatmul.mubr.f32.gmra.mrb[0].mxu0 %v1552
      %v1659 = vpop.f32.mrb[0].mxu0
      %v1660 = vadd.f32 0.0, %v1659
      %v1661 = vpop.f32.mrb[0].mxu0
      %v1662 = vadd.f32 0.0, %v1661
      %1663 = vmatprep.mubr.f32.mxu0 0.0
      %1664 = vmatmul.mubr.f32.gmra.mrb[0].mxu0 %v1553
      %v1665 = vpop.f32.mrb[0].mxu0
      %v1666 = vadd.f32 0.0, %v1665
      %v1667 = vpop.f32.mrb[0].mxu0
      %v1668 = vadd.f32 0.0, %v1667
      %1669 = vmatprep.mubr.f32.mxu0 0.0
      %1670 = vmatmul.mubr.f32.gmra.mrb[0].mxu0 %v1554
      %v1671 = vpop.f32.mrb[0].mxu0
      %v1672 = vadd.f32 0.0, %v1671
      %v1673 = vpop.f32.mrb[0].mxu0
      %v1674 = vadd.f32 0.0, %v1673
      %1675 = vmatprep.mubr.f32.mxu0 0.0
      %1676 = vmatmul.mubr.f32.gmra.mrb[0].mxu0 %v1555
      %v1677 = vpop.f32.mrb[0].mxu0
      %v1678 = vadd.f32 0.0, %v1677
      %v1679 = vpop.f32.mrb[0].mxu0
      %v1680 = vadd.f32 0.0, %v1679
      %1681 = vmatprep.mubr.f32.mxu0 0.0
      %1682 = vmatmul.mubr.f32.gmra.mrb[0].mxu0 %v1556
      %v1683 = vpop.f32.mrb[0].mxu0
      %v1684 = vadd.f32 0.0, %v1683
      %v1685 = vpop.f32.mrb[0].mxu0
      %v1686 = vadd.f32 0.0, %v1685
      %1687 = vmatprep.mubr.f32.mxu0 0.0
      %1688 = vmatmul.mubr.f32.gmra.mrb[0].mxu0 %v1557
      %v1689 = vpop.f32.mrb[0].mxu0
      %v1690 = vadd.f32 0.0, %v1689
      %v1691 = vpop.f32.mrb[0].mxu0
      %v1692 = vadd.f32 0.0, %v1691
      %1693 = vmatprep.mubr.f32.mxu0 0.0
      %1694 = vmatmul.mubr.f32.gmra.mrb[0].mxu0 %v1558
      %v1695 = vpop.f32.mrb[0].mxu0
      %v1696 = vadd.f32 0.0, %v1695
      %v1697 = vpop.f32.mrb[0].mxu0
      %v1698 = vadd.f32 0.0, %v1697
      %1699 = vmatprep.mubr.f32.mxu0 0.0
      %1700 = vmatmul.mubr.f32.gmra.mrb[0].mxu0 %v1559
      %v1701 = vpop.f32.mrb[0].mxu0
      %v1702 = vadd.f32 0.0, %v1701
      %v1703 = vpop.f32.mrb[0].mxu0
      %v1704 = vadd.f32 0.0, %v1703
      %1705 = vmatprep.mubr.f32.mxu0 0.0
      %1706 = vmatmul.mubr.f32.gmra.mrb[0].mxu0 %v1560
      %v1707 = vpop.f32.mrb[0].mxu0
      %v1708 = vadd.f32 0.0, %v1707
      %v1709 = vpop.f32.mrb[0].mxu0
      %v1710 = vadd.f32 0.0, %v1709
      %1711 = vmatprep.mubr.f32.mxu0 0.0
      %1712 = vmatmul.mubr.f32.gmra.mrb[0].mxu0 %v1561
      %v1713 = vpop.f32.mrb[0].mxu0
      %v1714 = vadd.f32 0.0, %v1713
      %v1715 = vpop.f32.mrb[0].mxu0
      %v1716 = vadd.f32 0.0, %v1715
      %1717 = vmatprep.mubr.f32.mxu0 0.0
      %1718 = vmatmul.mubr.f32.gmra.mrb[0].mxu0 %v1562
      %v1719 = vpop.f32.mrb[0].mxu0
      %v1720 = vadd.f32 0.0, %v1719
      %v1721 = vpop.f32.mrb[0].mxu0
      %v1722 = vadd.f32 0.0, %v1721
      %1723 = vdwg.mxu0
      %v1724 = vadd.f32 %v1514, %v1630
      %v1725 = vadd.f32 %v1515, %v1632
      %v1726 = vadd.f32 %v1516, %v1636
      %v1727 = vadd.f32 %v1517, %v1638
      %v1728 = vadd.f32 %v1518, %v1642
      %v1729 = vadd.f32 %v1519, %v1644
      %v1730 = vadd.f32 %v1520, %v1648
      %v1731 = vadd.f32 %v1521, %v1650
      %v1732 = vadd.f32 %v1522, %v1654
      %v1733 = vadd.f32 %v1523, %v1656
      %v1734 = vadd.f32 %v1524, %v1660
      %v1735 = vadd.f32 %v1525, %v1662
      %v1736 = vadd.f32 %v1526, %v1666
      %v1737 = vadd.f32 %v1527, %v1668
      %v1738 = vadd.f32 %v1528, %v1672
      %v1739 = vadd.f32 %v1529, %v1674
      %v1740 = vadd.f32 %v1530, %v1678
      %v1741 = vadd.f32 %v1531, %v1680
      %v1742 = vadd.f32 %v1532, %v1684
      %v1743 = vadd.f32 %v1533, %v1686
      %v1744 = vadd.f32 %v1534, %v1690
      %v1745 = vadd.f32 %v1535, %v1692
      %v1746 = vadd.f32 %v1536, %v1696
      %v1747 = vadd.f32 %v1537, %v1698
      %v1748 = vadd.f32 %v1538, %v1702
      %v1749 = vadd.f32 %v1539, %v1704
      %v1750 = vadd.f32 %v1540, %v1708
      %v1751 = vadd.f32 %v1541, %v1710
      %v1752 = vadd.f32 %v1542, %v1714
      %v1753 = vadd.f32 %v1543, %v1716
      %v1754 = vadd.f32 %v1544, %v1720
      %v1755 = vadd.f32 %v1545, %v1722
      %1756 = vst [vmem:[#allocation2] sm:$0xff] %v1724
      %1757 = vst [vmem:[#allocation2 + $0x8] sm:$0xff] %v1725
      %1758 = vst [vmem:[#allocation2 + $0x10] sm:$0xff] %v1726
      %1759 = vst [vmem:[#allocation2 + $0x18] sm:$0xff] %v1727
      %1760 = vst [vmem:[#allocation2 + $0x20] sm:$0xff] %v1728
      %1761 = vst [vmem:[#allocation2 + $0x28] sm:$0xff] %v1729
      %1762 = vst [vmem:[#allocation2 + $0x30] sm:$0xff] %v1730
      %1763 = vst [vmem:[#allocation2 + $0x38] sm:$0xff] %v1731
      %1764 = vst [vmem:[#allocation2 + $0x40] sm:$0xff] %v1732
      %1765 = vst [vmem:[#allocation2 + $0x48] sm:$0xff] %v1733
      %1766 = vst [vmem:[#allocation2 + $0x50] sm:$0xff] %v1734
      %1767 = vst [vmem:[#allocation2 + $0x58] sm:$0xff] %v1735
      %1768 = vst [vmem:[#allocation2 + $0x60] sm:$0xff] %v1736
      %1769 = vst [vmem:[#allocation2 + $0x68] sm:$0xff] %v1737
      %1770 = vst [vmem:[#allocation2 + $0x70] sm:$0xff] %v1738
      %1771 = vst [vmem:[#allocation2 + $0x78] sm:$0xff] %v1739
      %1772 = vst [vmem:[#allocation2 + $0x80] sm:$0xff] %v1740
      %1773 = vst [vmem:[#allocation2 + $0x88] sm:$0xff] %v1741
      %1774 = vst [vmem:[#allocation2 + $0x90] sm:$0xff] %v1742
      %1775 = vst [vmem:[#allocation2 + $0x98] sm:$0xff] %v1743
      %1776 = vst [vmem:[#allocation2 + $0xa0] sm:$0xff] %v1744
      %1777 = vst [vmem:[#allocation2 + $0xa8] sm:$0xff] %v1745
      %1778 = vst [vmem:[#allocation2 + $0xb0] sm:$0xff] %v1746
      %1779 = vst [vmem:[#allocation2 + $0xb8] sm:$0xff] %v1747
      %1780 = vst [vmem:[#allocation2 + $0xc0] sm:$0xff] %v1748
      %1781 = vst [vmem:[#allocation2 + $0xc8] sm:$0xff] %v1749
      %1782 = vst [vmem:[#allocation2 + $0xd0] sm:$0xff] %v1750
      %1783 = vst [vmem:[#allocation2 + $0xd8] sm:$0xff] %v1751
      %1784 = vst [vmem:[#allocation2 + $0xe0] sm:$0xff] %v1752
      %1785 = vst [vmem:[#allocation2 + $0xe8] sm:$0xff] %v1753
      %1786 = vst [vmem:[#allocation2 + $0xf0] sm:$0xff] %v1754
      %1787 = vst [vmem:[#allocation2 + $0xf8] sm:$0xff] %v1755
      %1788 = vrot.lane.b32.xlu0 %v338, 1
      %v1789 = vpop.permute.xlu0 %1788
      %1790 = vrot.lane.b32.xlu0 %v340, 1
      %v1791 = vpop.permute.xlu0 %1790
      %1792 = vrot.lane.b32.xlu0 %v342, 1
      %v1793 = vpop.permute.xlu0 %1792
      %1794 = vrot.lane.b32.xlu0 %v344, 1
      %v1795 = vpop.permute.xlu0 %1794
      %1796 = vrot.lane.b32.xlu0 %v346, 1
      %v1797 = vpop.permute.xlu0 %1796
      %1798 = vrot.lane.b32.xlu0 %v348, 1
      %v1799 = vpop.permute.xlu0 %1798
      %1800 = vrot.lane.b32.xlu0 %v350, 1
      %v1801 = vpop.permute.xlu0 %1800
      %1802 = vrot.lane.b32.xlu0 %v352, 1
      %v1803 = vpop.permute.xlu0 %1802
      %1804 = vrot.lane.b32.xlu0 %v354, 1
      %v1805 = vpop.permute.xlu0 %1804
      %1806 = vrot.lane.b32.xlu0 %v356, 1
      %v1807 = vpop.permute.xlu0 %1806
      %1808 = vrot.lane.b32.xlu0 %v358, 1
      %v1809 = vpop.permute.xlu0 %1808
      %1810 = vrot.lane.b32.xlu0 %v360, 1
      %v1811 = vpop.permute.xlu0 %1810
      %1812 = vrot.lane.b32.xlu0 %v362, 1
      %v1813 = vpop.permute.xlu0 %1812
      %1814 = vrot.lane.b32.xlu0 %v364, 1
      %v1815 = vpop.permute.xlu0 %1814
      %1816 = vrot.lane.b32.xlu0 %v366, 1
      %v1817 = vpop.permute.xlu0 %1816
      %1818 = vrot.lane.b32.xlu0 %v368, 1
      %v1819 = vpop.permute.xlu0 %1818
      %1820 = vrot.lane.b32.xlu0 %v339, 1
      %v1821 = vpop.permute.xlu0 %1820
      %1822 = vrot.lane.b32.xlu0 %v341, 1
      %v1823 = vpop.permute.xlu0 %1822
      %1824 = vrot.lane.b32.xlu0 %v343, 1
      %v1825 = vpop.permute.xlu0 %1824
      %1826 = vrot.lane.b32.xlu0 %v345, 1
      %v1827 = vpop.permute.xlu0 %1826
      %1828 = vrot.lane.b32.xlu0 %v347, 1
      %v1829 = vpop.permute.xlu0 %1828
      %1830 = vrot.lane.b32.xlu0 %v349, 1
      %v1831 = vpop.permute.xlu0 %1830
      %1832 = vrot.lane.b32.xlu0 %v351, 1
      %v1833 = vpop.permute.xlu0 %1832
      %1834 = vrot.lane.b32.xlu0 %v353, 1
      %v1835 = vpop.permute.xlu0 %1834
      %1836 = vrot.lane.b32.xlu0 %v355, 1
      %v1837 = vpop.permute.xlu0 %1836
      %1838 = vrot.lane.b32.xlu0 %v357, 1
      %v1839 = vpop.permute.xlu0 %1838
      %1840 = vrot.lane.b32.xlu0 %v359, 1
      %v1841 = vpop.permute.xlu0 %1840
      %1842 = vrot.lane.b32.xlu0 %v361, 1
      %v1843 = vpop.permute.xlu0 %1842
      %1844 = vrot.lane.b32.xlu0 %v363, 1
      %v1845 = vpop.permute.xlu0 %1844
      %1846 = vrot.lane.b32.xlu0 %v365, 1
      %v1847 = vpop.permute.xlu0 %1846
      %1848 = vrot.lane.b32.xlu0 %v367, 1
      %v1849 = vpop.permute.xlu0 %1848
      %1850 = vrot.lane.b32.xlu0 %v369, 1
      %v1851 = vpop.permute.xlu0 %1850
      %vm1852 = vcmp.lt.s32.totalorder %v280, 1
      %v1853 = vsel %vm1852, %v1789, %v1821
      %v1854 = vsel %vm1852, %v1791, %v1823
      %v1855 = vsel %vm1852, %v1793, %v1825
      %v1856 = vsel %vm1852, %v1795, %v1827
      %v1857 = vsel %vm1852, %v1797, %v1829
      %v1858 = vsel %vm1852, %v1799, %v1831
      %v1859 = vsel %vm1852, %v1801, %v1833
      %v1860 = vsel %vm1852, %v1803, %v1835
      %v1861 = vsel %vm1852, %v1805, %v1837
      %v1862 = vsel %vm1852, %v1807, %v1839
      %v1863 = vsel %vm1852, %v1809, %v1841
      %v1864 = vsel %vm1852, %v1811, %v1843
      %v1865 = vsel %vm1852, %v1813, %v1845
      %v1866 = vsel %vm1852, %v1815, %v1847
      %v1867 = vsel %vm1852, %v1817, %v1849
      %v1868 = vsel %vm1852, %v1819, %v1851
      %v1869 = vsel %vm1852, %v1821, %v1789
      %v1870 = vsel %vm1852, %v1823, %v1791
      %v1871 = vsel %vm1852, %v1825, %v1793
      %v1872 = vsel %vm1852, %v1827, %v1795
      %v1873 = vsel %vm1852, %v1829, %v1797
      %v1874 = vsel %vm1852, %v1831, %v1799
      %v1875 = vsel %vm1852, %v1833, %v1801
      %v1876 = vsel %vm1852, %v1835, %v1803
      %v1877 = vsel %vm1852, %v1837, %v1805
      %v1878 = vsel %vm1852, %v1839, %v1807
      %v1879 = vsel %vm1852, %v1841, %v1809
      %v1880 = vsel %vm1852, %v1843, %v1811
      %v1881 = vsel %vm1852, %v1845, %v1813
      %v1882 = vsel %vm1852, %v1847, %v1815
      %v1883 = vsel %vm1852, %v1849, %v1817
      %v1884 = vsel %vm1852, %v1851, %v1819
      %v1885 = vmul.f32 %v1869, %v322
      %v1886 = vmul.f32 %v1853, %v323
      %v1887 = vmul.f32 %v1870, %v322
      %v1888 = vmul.f32 %v1854, %v323
      %v1889 = vmul.f32 %v1871, %v322
      %v1890 = vmul.f32 %v1855, %v323
      %v1891 = vmul.f32 %v1872, %v322
      %v1892 = vmul.f32 %v1856, %v323
      %v1893 = vmul.f32 %v1873, %v322
      %v1894 = vmul.f32 %v1857, %v323
      %v1895 = vmul.f32 %v1874, %v322
      %v1896 = vmul.f32 %v1858, %v323
      %v1897 = vmul.f32 %v1875, %v322
      %v1898 = vmul.f32 %v1859, %v323
      %v1899 = vmul.f32 %v1876, %v322
      %v1900 = vmul.f32 %v1860, %v323
      %v1901 = vmul.f32 %v1877, %v322
      %v1902 = vmul.f32 %v1861, %v323
      %v1903 = vmul.f32 %v1878, %v322
      %v1904 = vmul.f32 %v1862, %v323
      %v1905 = vmul.f32 %v1879, %v322
      %v1906 = vmul.f32 %v1863, %v323
      %v1907 = vmul.f32 %v1880, %v322
      %v1908 = vmul.f32 %v1864, %v323
      %v1909 = vmul.f32 %v1881, %v322
      %v1910 = vmul.f32 %v1865, %v323
      %v1911 = vmul.f32 %v1882, %v322
      %v1912 = vmul.f32 %v1866, %v323
      %v1913 = vmul.f32 %v1883, %v322
      %v1914 = vmul.f32 %v1867, %v323
      %v1915 = vmul.f32 %v1884, %v322
      %v1916 = vmul.f32 %v1868, %v323
      %v1917 = vld [vmem:[#allocation2] sm:$0xff]
      %v1918 = vld [vmem:[#allocation2 + $0x8] sm:$0xff]
      %v1919 = vld [vmem:[#allocation2 + $0x10] sm:$0xff]
      %v1920 = vld [vmem:[#allocation2 + $0x18] sm:$0xff]
      %v1921 = vld [vmem:[#allocation2 + $0x20] sm:$0xff]
      %v1922 = vld [vmem:[#allocation2 + $0x28] sm:$0xff]
      %v1923 = vld [vmem:[#allocation2 + $0x30] sm:$0xff]
      %v1924 = vld [vmem:[#allocation2 + $0x38] sm:$0xff]
      %v1925 = vld [vmem:[#allocation2 + $0x40] sm:$0xff]
      %v1926 = vld [vmem:[#allocation2 + $0x48] sm:$0xff]
      %v1927 = vld [vmem:[#allocation2 + $0x50] sm:$0xff]
      %v1928 = vld [vmem:[#allocation2 + $0x58] sm:$0xff]
      %v1929 = vld [vmem:[#allocation2 + $0x60] sm:$0xff]
      %v1930 = vld [vmem:[#allocation2 + $0x68] sm:$0xff]
      %v1931 = vld [vmem:[#allocation2 + $0x70] sm:$0xff]
      %v1932 = vld [vmem:[#allocation2 + $0x78] sm:$0xff]
      %v1933 = vld [vmem:[#allocation2 + $0x80] sm:$0xff]
      %v1934 = vld [vmem:[#allocation2 + $0x88] sm:$0xff]
      %v1935 = vld [vmem:[#allocation2 + $0x90] sm:$0xff]
      %v1936 = vld [vmem:[#allocation2 + $0x98] sm:$0xff]
      %v1937 = vld [vmem:[#allocation2 + $0xa0] sm:$0xff]
      %v1938 = vld [vmem:[#allocation2 + $0xa8] sm:$0xff]
      %v1939 = vld [vmem:[#allocation2 + $0xb0] sm:$0xff]
      %v1940 = vld [vmem:[#allocation2 + $0xb8] sm:$0xff]
      %v1941 = vld [vmem:[#allocation2 + $0xc0] sm:$0xff]
      %v1942 = vld [vmem:[#allocation2 + $0xc8] sm:$0xff]
      %v1943 = vld [vmem:[#allocation2 + $0xd0] sm:$0xff]
      %v1944 = vld [vmem:[#allocation2 + $0xd8] sm:$0xff]
      %v1945 = vld [vmem:[#allocation2 + $0xe0] sm:$0xff]
      %v1946 = vld [vmem:[#allocation2 + $0xe8] sm:$0xff]
      %v1947 = vld [vmem:[#allocation2 + $0xf0] sm:$0xff]
      %v1948 = vld [vmem:[#allocation2 + $0xf8] sm:$0xff]
      %s1949 = scalar_lea.vmem %s1, 384
      %v1950 = vld [vmem:[%s1949] sm:$0xff]
      %v1951 = vld [vmem:[%s1949 + $0x8] sm:$0xff]
      %v1952 = vld [vmem:[%s1949 + $0x10] sm:$0xff]
      %v1953 = vld [vmem:[%s1949 + $0x18] sm:$0xff]
      %v1954 = vld [vmem:[%s1949 + $0x20] sm:$0xff]
      %v1955 = vld [vmem:[%s1949 + $0x28] sm:$0xff]
      %v1956 = vld [vmem:[%s1949 + $0x30] sm:$0xff]
      %v1957 = vld [vmem:[%s1949 + $0x38] sm:$0xff]
      %v1958 = vld [vmem:[%s1949 + $0x40] sm:$0xff]
      %v1959 = vld [vmem:[%s1949 + $0x48] sm:$0xff]
      %v1960 = vld [vmem:[%s1949 + $0x50] sm:$0xff]
      %v1961 = vld [vmem:[%s1949 + $0x58] sm:$0xff]
      %v1962 = vld [vmem:[%s1949 + $0x60] sm:$0xff]
      %v1963 = vld [vmem:[%s1949 + $0x68] sm:$0xff]
      %v1964 = vld [vmem:[%s1949 + $0x70] sm:$0xff]
      %v1965 = vld [vmem:[%s1949 + $0x78] sm:$0xff]
      %1966 = vmatprep.subr.mxu0 %v1886
      %1967 = vmatpush1.msra.mxu0 %v1885
      %1968 = vmatprep.subr.mxu0 %v1888
      %1969 = vmatpush1.msra.mxu0 %v1887
      %1970 = vmatprep.subr.mxu0 %v1890
      %1971 = vmatpush1.msra.mxu0 %v1889
      %1972 = vmatprep.subr.mxu0 %v1892
      %1973 = vmatpush1.msra.mxu0 %v1891
      %1974 = vmatprep.subr.mxu0 %v1894
      %1975 = vmatpush1.msra.mxu0 %v1893
      %1976 = vmatprep.subr.mxu0 %v1896
      %1977 = vmatpush1.msra.mxu0 %v1895
      %1978 = vmatprep.subr.mxu0 %v1898
      %1979 = vmatpush1.msra.mxu0 %v1897
      %1980 = vmatprep.subr.mxu0 %v1900
      %1981 = vmatpush1.msra.mxu0 %v1899
      %1982 = vmatprep.subr.mxu0 %v1902
      %1983 = vmatpush1.msra.mxu0 %v1901
      %1984 = vmatprep.subr.mxu0 %v1904
      %1985 = vmatpush1.msra.mxu0 %v1903
      %1986 = vmatprep.subr.mxu0 %v1906
      %1987 = vmatpush1.msra.mxu0 %v1905
      %1988 = vmatprep.subr.mxu0 %v1908
      %1989 = vmatpush1.msra.mxu0 %v1907
      %1990 = vmatprep.subr.mxu0 %v1910
      %1991 = vmatpush1.msra.mxu0 %v1909
      %1992 = vmatprep.subr.mxu0 %v1912
      %1993 = vmatpush1.msra.mxu0 %v1911
      %1994 = vmatprep.subr.mxu0 %v1914
      %1995 = vmatpush1.msra.mxu0 %v1913
      %1996 = vmatprep.subr.mxu0 %v1916
      %1997 = vmatpush1.msra.mxu0 %v1915
      %1998 = vmatprep.subr.mxu0 0.0
      %1999 = vmatpush1.msra.mxu0 0.0
      %2000 = vmatprep.subr.mxu0 0.0
      %2001 = vmatpush1.msra.mxu0 0.0
      %2002 = vmatprep.subr.mxu0 0.0
      %2003 = vmatpush1.msra.mxu0 0.0
      %2004 = vmatprep.subr.mxu0 0.0
      %2005 = vmatpush1.msra.mxu0 0.0
      %2006 = vmatprep.subr.mxu0 0.0
      %2007 = vmatpush1.msra.mxu0 0.0
      %2008 = vmatprep.subr.mxu0 0.0
      %2009 = vmatpush1.msra.mxu0 0.0
      %2010 = vmatprep.subr.mxu0 0.0
      %2011 = vmatpush1.msra.mxu0 0.0
      %2012 = vmatprep.subr.mxu0 0.0
      %2013 = vmatpush1.msra.mxu0 0.0
      %2014 = vmatprep.subr.mxu0 0.0
      %2015 = vmatpush1.msra.mxu0 0.0
      %2016 = vmatprep.subr.mxu0 0.0
      %2017 = vmatpush1.msra.mxu0 0.0
      %2018 = vmatprep.subr.mxu0 0.0
      %2019 = vmatpush1.msra.mxu0 0.0
      %2020 = vmatprep.subr.mxu0 0.0
      %2021 = vmatpush1.msra.mxu0 0.0
      %2022 = vmatprep.subr.mxu0 0.0
      %2023 = vmatpush1.msra.mxu0 0.0
      %2024 = vmatprep.subr.mxu0 0.0
      %2025 = vmatpush1.msra.mxu0 0.0
      %2026 = vmatprep.subr.mxu0 0.0
      %2027 = vmatpush1.msra.mxu0 0.0
      %2028 = vmatprep.subr.mxu0 0.0
      %2029 = vmatpush1.msra.mxu0 0.0
      %2030 = vmatprep.mubr.f32.mxu0 0.0
      %2031 = vmatmul.mubr.f32.gmra.mrb[0].mxu0 %v1950
      %v2032 = vpop.f32.mrb[0].mxu0
      %v2033 = vadd.f32 0.0, %v2032
      %v2034 = vpop.f32.mrb[0].mxu0
      %v2035 = vadd.f32 0.0, %v2034
      %2036 = vmatprep.mubr.f32.mxu0 0.0
      %2037 = vmatmul.mubr.f32.gmra.mrb[0].mxu0 %v1951
      %v2038 = vpop.f32.mrb[0].mxu0
      %v2039 = vadd.f32 0.0, %v2038
      %v2040 = vpop.f32.mrb[0].mxu0
      %v2041 = vadd.f32 0.0, %v2040
      %2042 = vmatprep.mubr.f32.mxu0 0.0
      %2043 = vmatmul.mubr.f32.gmra.mrb[0].mxu0 %v1952
      %v2044 = vpop.f32.mrb[0].mxu0
      %v2045 = vadd.f32 0.0, %v2044
      %v2046 = vpop.f32.mrb[0].mxu0
      %v2047 = vadd.f32 0.0, %v2046
      %2048 = vmatprep.mubr.f32.mxu0 0.0
      %2049 = vmatmul.mubr.f32.gmra.mrb[0].mxu0 %v1953
      %v2050 = vpop.f32.mrb[0].mxu0
      %v2051 = vadd.f32 0.0, %v2050
      %v2052 = vpop.f32.mrb[0].mxu0
      %v2053 = vadd.f32 0.0, %v2052
      %2054 = vmatprep.mubr.f32.mxu0 0.0
      %2055 = vmatmul.mubr.f32.gmra.mrb[0].mxu0 %v1954
      %v2056 = vpop.f32.mrb[0].mxu0
      %v2057 = vadd.f32 0.0, %v2056
      %v2058 = vpop.f32.mrb[0].mxu0
      %v2059 = vadd.f32 0.0, %v2058
      %2060 = vmatprep.mubr.f32.mxu0 0.0
      %2061 = vmatmul.mubr.f32.gmra.mrb[0].mxu0 %v1955
      %v2062 = vpop.f32.mrb[0].mxu0
      %v2063 = vadd.f32 0.0, %v2062
      %v2064 = vpop.f32.mrb[0].mxu0
      %v2065 = vadd.f32 0.0, %v2064
      %2066 = vmatprep.mubr.f32.mxu0 0.0
      %2067 = vmatmul.mubr.f32.gmra.mrb[0].mxu0 %v1956
      %v2068 = vpop.f32.mrb[0].mxu0
      %v2069 = vadd.f32 0.0, %v2068
      %v2070 = vpop.f32.mrb[0].mxu0
      %v2071 = vadd.f32 0.0, %v2070
      %2072 = vmatprep.mubr.f32.mxu0 0.0
      %2073 = vmatmul.mubr.f32.gmra.mrb[0].mxu0 %v1957
      %v2074 = vpop.f32.mrb[0].mxu0
      %v2075 = vadd.f32 0.0, %v2074
      %v2076 = vpop.f32.mrb[0].mxu0
      %v2077 = vadd.f32 0.0, %v2076
      %2078 = vmatprep.mubr.f32.mxu0 0.0
      %2079 = vmatmul.mubr.f32.gmra.mrb[0].mxu0 %v1958
      %v2080 = vpop.f32.mrb[0].mxu0
      %v2081 = vadd.f32 0.0, %v2080
      %v2082 = vpop.f32.mrb[0].mxu0
      %v2083 = vadd.f32 0.0, %v2082
      %2084 = vmatprep.mubr.f32.mxu0 0.0
      %2085 = vmatmul.mubr.f32.gmra.mrb[0].mxu0 %v1959
      %v2086 = vpop.f32.mrb[0].mxu0
      %v2087 = vadd.f32 0.0, %v2086
      %v2088 = vpop.f32.mrb[0].mxu0
      %v2089 = vadd.f32 0.0, %v2088
      %2090 = vmatprep.mubr.f32.mxu0 0.0
      %2091 = vmatmul.mubr.f32.gmra.mrb[0].mxu0 %v1960
      %v2092 = vpop.f32.mrb[0].mxu0
      %v2093 = vadd.f32 0.0, %v2092
      %v2094 = vpop.f32.mrb[0].mxu0
      %v2095 = vadd.f32 0.0, %v2094
      %2096 = vmatprep.mubr.f32.mxu0 0.0
      %2097 = vmatmul.mubr.f32.gmra.mrb[0].mxu0 %v1961
      %v2098 = vpop.f32.mrb[0].mxu0
      %v2099 = vadd.f32 0.0, %v2098
      %v2100 = vpop.f32.mrb[0].mxu0
      %v2101 = vadd.f32 0.0, %v2100
      %2102 = vmatprep.mubr.f32.mxu0 0.0
      %2103 = vmatmul.mubr.f32.gmra.mrb[0].mxu0 %v1962
      %v2104 = vpop.f32.mrb[0].mxu0
      %v2105 = vadd.f32 0.0, %v2104
      %v2106 = vpop.f32.mrb[0].mxu0
      %v2107 = vadd.f32 0.0, %v2106
      %2108 = vmatprep.mubr.f32.mxu0 0.0
      %2109 = vmatmul.mubr.f32.gmra.mrb[0].mxu0 %v1963
      %v2110 = vpop.f32.mrb[0].mxu0
      %v2111 = vadd.f32 0.0, %v2110
      %v2112 = vpop.f32.mrb[0].mxu0
      %v2113 = vadd.f32 0.0, %v2112
      %2114 = vmatprep.mubr.f32.mxu0 0.0
      %2115 = vmatmul.mubr.f32.gmra.mrb[0].mxu0 %v1964
      %v2116 = vpop.f32.mrb[0].mxu0
      %v2117 = vadd.f32 0.0, %v2116
      %v2118 = vpop.f32.mrb[0].mxu0
      %v2119 = vadd.f32 0.0, %v2118
      %2120 = vmatprep.mubr.f32.mxu0 0.0
      %2121 = vmatmul.mubr.f32.gmra.mrb[0].mxu0 %v1965
      %v2122 = vpop.f32.mrb[0].mxu0
      %v2123 = vadd.f32 0.0, %v2122
      %v2124 = vpop.f32.mrb[0].mxu0
      %v2125 = vadd.f32 0.0, %v2124
      %2126 = vdwg.mxu0
      %v2127 = vadd.f32 %v1917, %v2033
      %v2128 = vadd.f32 %v1918, %v2035
      %v2129 = vadd.f32 %v1919, %v2039
      %v2130 = vadd.f32 %v1920, %v2041
      %v2131 = vadd.f32 %v1921, %v2045
      %v2132 = vadd.f32 %v1922, %v2047
      %v2133 = vadd.f32 %v1923, %v2051
      %v2134 = vadd.f32 %v1924, %v2053
      %v2135 = vadd.f32 %v1925, %v2057
      %v2136 = vadd.f32 %v1926, %v2059
      %v2137 = vadd.f32 %v1927, %v2063
      %v2138 = vadd.f32 %v1928, %v2065
      %v2139 = vadd.f32 %v1929, %v2069
      %v2140 = vadd.f32 %v1930, %v2071
      %v2141 = vadd.f32 %v1931, %v2075
      %v2142 = vadd.f32 %v1932, %v2077
      %v2143 = vadd.f32 %v1933, %v2081
      %v2144 = vadd.f32 %v1934, %v2083
      %v2145 = vadd.f32 %v1935, %v2087
      %v2146 = vadd.f32 %v1936, %v2089
      %v2147 = vadd.f32 %v1937, %v2093
      %v2148 = vadd.f32 %v1938, %v2095
      %v2149 = vadd.f32 %v1939, %v2099
      %v2150 = vadd.f32 %v1940, %v2101
      %v2151 = vadd.f32 %v1941, %v2105
      %v2152 = vadd.f32 %v1942, %v2107
      %v2153 = vadd.f32 %v1943, %v2111
      %v2154 = vadd.f32 %v1944, %v2113
      %v2155 = vadd.f32 %v1945, %v2117
      %v2156 = vadd.f32 %v1946, %v2119
      %v2157 = vadd.f32 %v1947, %v2123
      %v2158 = vadd.f32 %v1948, %v2125
      %2159 = vst [vmem:[#allocation2] sm:$0xff] %v2127
      %2160 = vst [vmem:[#allocation2 + $0x8] sm:$0xff] %v2128
      %2161 = vst [vmem:[#allocation2 + $0x10] sm:$0xff] %v2129
      %2162 = vst [vmem:[#allocation2 + $0x18] sm:$0xff] %v2130
      %2163 = vst [vmem:[#allocation2 + $0x20] sm:$0xff] %v2131
      %2164 = vst [vmem:[#allocation2 + $0x28] sm:$0xff] %v2132
      %2165 = vst [vmem:[#allocation2 + $0x30] sm:$0xff] %v2133
      %2166 = vst [vmem:[#allocation2 + $0x38] sm:$0xff] %v2134
      %2167 = vst [vmem:[#allocation2 + $0x40] sm:$0xff] %v2135
      %2168 = vst [vmem:[#allocation2 + $0x48] sm:$0xff] %v2136
      %2169 = vst [vmem:[#allocation2 + $0x50] sm:$0xff] %v2137
      %2170 = vst [vmem:[#allocation2 + $0x58] sm:$0xff] %v2138
      %2171 = vst [vmem:[#allocation2 + $0x60] sm:$0xff] %v2139
      %2172 = vst [vmem:[#allocation2 + $0x68] sm:$0xff] %v2140
      %2173 = vst [vmem:[#allocation2 + $0x70] sm:$0xff] %v2141
      %2174 = vst [vmem:[#allocation2 + $0x78] sm:$0xff] %v2142
      %2175 = vst [vmem:[#allocation2 + $0x80] sm:$0xff] %v2143
      %2176 = vst [vmem:[#allocation2 + $0x88] sm:$0xff] %v2144
      %2177 = vst [vmem:[#allocation2 + $0x90] sm:$0xff] %v2145
      %2178 = vst [vmem:[#allocation2 + $0x98] sm:$0xff] %v2146
      %2179 = vst [vmem:[#allocation2 + $0xa0] sm:$0xff] %v2147
      %2180 = vst [vmem:[#allocation2 + $0xa8] sm:$0xff] %v2148
      %2181 = vst [vmem:[#allocation2 + $0xb0] sm:$0xff] %v2149
      %2182 = vst [vmem:[#allocation2 + $0xb8] sm:$0xff] %v2150
      %2183 = vst [vmem:[#allocation2 + $0xc0] sm:$0xff] %v2151
      %2184 = vst [vmem:[#allocation2 + $0xc8] sm:$0xff] %v2152
      %2185 = vst [vmem:[#allocation2 + $0xd0] sm:$0xff] %v2153
      %2186 = vst [vmem:[#allocation2 + $0xd8] sm:$0xff] %v2154
      %2187 = vst [vmem:[#allocation2 + $0xe0] sm:$0xff] %v2155
      %2188 = vst [vmem:[#allocation2 + $0xe8] sm:$0xff] %v2156
      %2189 = vst [vmem:[#allocation2 + $0xf0] sm:$0xff] %v2157
      %2190 = vst [vmem:[#allocation2 + $0xf8] sm:$0xff] %v2158
      %2191 = vrot.lane.b32.xlu0 %v338, 127
      %v2192 = vpop.permute.xlu0 %2191
      %2193 = vrot.lane.b32.xlu0 %v340, 127
      %v2194 = vpop.permute.xlu0 %2193
      %2195 = vrot.lane.b32.xlu0 %v342, 127
      %v2196 = vpop.permute.xlu0 %2195
      %2197 = vrot.lane.b32.xlu0 %v344, 127
      %v2198 = vpop.permute.xlu0 %2197
      %2199 = vrot.lane.b32.xlu0 %v346, 127
      %v2200 = vpop.permute.xlu0 %2199
      %2201 = vrot.lane.b32.xlu0 %v348, 127
      %v2202 = vpop.permute.xlu0 %2201
      %2203 = vrot.lane.b32.xlu0 %v350, 127
      %v2204 = vpop.permute.xlu0 %2203
      %2205 = vrot.lane.b32.xlu0 %v352, 127
      %v2206 = vpop.permute.xlu0 %2205
      %2207 = vrot.lane.b32.xlu0 %v354, 127
      %v2208 = vpop.permute.xlu0 %2207
      %2209 = vrot.lane.b32.xlu0 %v356, 127
      %v2210 = vpop.permute.xlu0 %2209
      %2211 = vrot.lane.b32.xlu0 %v358, 127
      %v2212 = vpop.permute.xlu0 %2211
      %2213 = vrot.lane.b32.xlu0 %v360, 127
      %v2214 = vpop.permute.xlu0 %2213
      %2215 = vrot.lane.b32.xlu0 %v362, 127
      %v2216 = vpop.permute.xlu0 %2215
      %2217 = vrot.lane.b32.xlu0 %v364, 127
      %v2218 = vpop.permute.xlu0 %2217
      %2219 = vrot.lane.b32.xlu0 %v366, 127
      %v2220 = vpop.permute.xlu0 %2219
      %2221 = vrot.lane.b32.xlu0 %v368, 127
      %v2222 = vpop.permute.xlu0 %2221
      %2223 = vrot.lane.b32.xlu0 %v339, 127
      %v2224 = vpop.permute.xlu0 %2223
      %2225 = vrot.lane.b32.xlu0 %v341, 127
      %v2226 = vpop.permute.xlu0 %2225
      %2227 = vrot.lane.b32.xlu0 %v343, 127
      %v2228 = vpop.permute.xlu0 %2227
      %2229 = vrot.lane.b32.xlu0 %v345, 127
      %v2230 = vpop.permute.xlu0 %2229
      %2231 = vrot.lane.b32.xlu0 %v347, 127
      %v2232 = vpop.permute.xlu0 %2231
      %2233 = vrot.lane.b32.xlu0 %v349, 127
      %v2234 = vpop.permute.xlu0 %2233
      %2235 = vrot.lane.b32.xlu0 %v351, 127
      %v2236 = vpop.permute.xlu0 %2235
      %2237 = vrot.lane.b32.xlu0 %v353, 127
      %v2238 = vpop.permute.xlu0 %2237
      %2239 = vrot.lane.b32.xlu0 %v355, 127
      %v2240 = vpop.permute.xlu0 %2239
      %2241 = vrot.lane.b32.xlu0 %v357, 127
      %v2242 = vpop.permute.xlu0 %2241
      %2243 = vrot.lane.b32.xlu0 %v359, 127
      %v2244 = vpop.permute.xlu0 %2243
      %2245 = vrot.lane.b32.xlu0 %v361, 127
      %v2246 = vpop.permute.xlu0 %2245
      %2247 = vrot.lane.b32.xlu0 %v363, 127
      %v2248 = vpop.permute.xlu0 %2247
      %2249 = vrot.lane.b32.xlu0 %v365, 127
      %v2250 = vpop.permute.xlu0 %2249
      %2251 = vrot.lane.b32.xlu0 %v367, 127
      %v2252 = vpop.permute.xlu0 %2251
      %2253 = vrot.lane.b32.xlu0 %v369, 127
      %v2254 = vpop.permute.xlu0 %2253
      %vm2255 = vcmp.lt.s32.totalorder %v280, 127
      %v2256 = vsel %vm2255, %v2192, %v2224
      %v2257 = vsel %vm2255, %v2194, %v2226
      %v2258 = vsel %vm2255, %v2196, %v2228
      %v2259 = vsel %vm2255, %v2198, %v2230
      %v2260 = vsel %vm2255, %v2200, %v2232
      %v2261 = vsel %vm2255, %v2202, %v2234
      %v2262 = vsel %vm2255, %v2204, %v2236
      %v2263 = vsel %vm2255, %v2206, %v2238
      %v2264 = vsel %vm2255, %v2208, %v2240
      %v2265 = vsel %vm2255, %v2210, %v2242
      %v2266 = vsel %vm2255, %v2212, %v2244
      %v2267 = vsel %vm2255, %v2214, %v2246
      %v2268 = vsel %vm2255, %v2216, %v2248
      %v2269 = vsel %vm2255, %v2218, %v2250
      %v2270 = vsel %vm2255, %v2220, %v2252
      %v2271 = vsel %vm2255, %v2222, %v2254
      %v2272 = vsel %vm2255, %v2224, %v2192
      %v2273 = vsel %vm2255, %v2226, %v2194
      %v2274 = vsel %vm2255, %v2228, %v2196
      %v2275 = vsel %vm2255, %v2230, %v2198
      %v2276 = vsel %vm2255, %v2232, %v2200
      %v2277 = vsel %vm2255, %v2234, %v2202
      %v2278 = vsel %vm2255, %v2236, %v2204
      %v2279 = vsel %vm2255, %v2238, %v2206
      %v2280 = vsel %vm2255, %v2240, %v2208
      %v2281 = vsel %vm2255, %v2242, %v2210
      %v2282 = vsel %vm2255, %v2244, %v2212
      %v2283 = vsel %vm2255, %v2246, %v2214
      %v2284 = vsel %vm2255, %v2248, %v2216
      %v2285 = vsel %vm2255, %v2250, %v2218
      %v2286 = vsel %vm2255, %v2252, %v2220
      %v2287 = vsel %vm2255, %v2254, %v2222
      %v2288 = vmul.f32 %v2256, %v324
      %v2289 = vmul.f32 %v2272, %v325
      %v2290 = vmul.f32 %v2257, %v324
      %v2291 = vmul.f32 %v2273, %v325
      %v2292 = vmul.f32 %v2258, %v324
      %v2293 = vmul.f32 %v2274, %v325
      %v2294 = vmul.f32 %v2259, %v324
      %v2295 = vmul.f32 %v2275, %v325
      %v2296 = vmul.f32 %v2260, %v324
      %v2297 = vmul.f32 %v2276, %v325
      %v2298 = vmul.f32 %v2261, %v324
      %v2299 = vmul.f32 %v2277, %v325
      %v2300 = vmul.f32 %v2262, %v324
      %v2301 = vmul.f32 %v2278, %v325
      %v2302 = vmul.f32 %v2263, %v324
      %v2303 = vmul.f32 %v2279, %v325
      %v2304 = vmul.f32 %v2264, %v324
      %v2305 = vmul.f32 %v2280, %v325
      %v2306 = vmul.f32 %v2265, %v324
      %v2307 = vmul.f32 %v2281, %v325
      %v2308 = vmul.f32 %v2266, %v324
      %v2309 = vmul.f32 %v2282, %v325
      %v2310 = vmul.f32 %v2267, %v324
      %v2311 = vmul.f32 %v2283, %v325
      %v2312 = vmul.f32 %v2268, %v324
      %v2313 = vmul.f32 %v2284, %v325
      %v2314 = vmul.f32 %v2269, %v324
      %v2315 = vmul.f32 %v2285, %v325
      %v2316 = vmul.f32 %v2270, %v324
      %v2317 = vmul.f32 %v2286, %v325
      %v2318 = vmul.f32 %v2271, %v324
      %v2319 = vmul.f32 %v2287, %v325
      %v2320 = vld [vmem:[#allocation2] sm:$0xff]
      %v2321 = vld [vmem:[#allocation2 + $0x8] sm:$0xff]
      %v2322 = vld [vmem:[#allocation2 + $0x10] sm:$0xff]
      %v2323 = vld [vmem:[#allocation2 + $0x18] sm:$0xff]
      %v2324 = vld [vmem:[#allocation2 + $0x20] sm:$0xff]
      %v2325 = vld [vmem:[#allocation2 + $0x28] sm:$0xff]
      %v2326 = vld [vmem:[#allocation2 + $0x30] sm:$0xff]
      %v2327 = vld [vmem:[#allocation2 + $0x38] sm:$0xff]
      %v2328 = vld [vmem:[#allocation2 + $0x40] sm:$0xff]
      %v2329 = vld [vmem:[#allocation2 + $0x48] sm:$0xff]
      %v2330 = vld [vmem:[#allocation2 + $0x50] sm:$0xff]
      %v2331 = vld [vmem:[#allocation2 + $0x58] sm:$0xff]
      %v2332 = vld [vmem:[#allocation2 + $0x60] sm:$0xff]
      %v2333 = vld [vmem:[#allocation2 + $0x68] sm:$0xff]
      %v2334 = vld [vmem:[#allocation2 + $0x70] sm:$0xff]
      %v2335 = vld [vmem:[#allocation2 + $0x78] sm:$0xff]
      %v2336 = vld [vmem:[#allocation2 + $0x80] sm:$0xff]
      %v2337 = vld [vmem:[#allocation2 + $0x88] sm:$0xff]
      %v2338 = vld [vmem:[#allocation2 + $0x90] sm:$0xff]
      %v2339 = vld [vmem:[#allocation2 + $0x98] sm:$0xff]
      %v2340 = vld [vmem:[#allocation2 + $0xa0] sm:$0xff]
      %v2341 = vld [vmem:[#allocation2 + $0xa8] sm:$0xff]
      %v2342 = vld [vmem:[#allocation2 + $0xb0] sm:$0xff]
      %v2343 = vld [vmem:[#allocation2 + $0xb8] sm:$0xff]
      %v2344 = vld [vmem:[#allocation2 + $0xc0] sm:$0xff]
      %v2345 = vld [vmem:[#allocation2 + $0xc8] sm:$0xff]
      %v2346 = vld [vmem:[#allocation2 + $0xd0] sm:$0xff]
      %v2347 = vld [vmem:[#allocation2 + $0xd8] sm:$0xff]
      %v2348 = vld [vmem:[#allocation2 + $0xe0] sm:$0xff]
      %v2349 = vld [vmem:[#allocation2 + $0xe8] sm:$0xff]
      %v2350 = vld [vmem:[#allocation2 + $0xf0] sm:$0xff]
      %v2351 = vld [vmem:[#allocation2 + $0xf8] sm:$0xff]
      %s2352 = scalar_lea.vmem %s1, 640
      %v2353 = vld [vmem:[%s2352] sm:$0xff]
      %v2354 = vld [vmem:[%s2352 + $0x8] sm:$0xff]
      %v2355 = vld [vmem:[%s2352 + $0x10] sm:$0xff]
      %v2356 = vld [vmem:[%s2352 + $0x18] sm:$0xff]
      %v2357 = vld [vmem:[%s2352 + $0x20] sm:$0xff]
      %v2358 = vld [vmem:[%s2352 + $0x28] sm:$0xff]
      %v2359 = vld [vmem:[%s2352 + $0x30] sm:$0xff]
      %v2360 = vld [vmem:[%s2352 + $0x38] sm:$0xff]
      %v2361 = vld [vmem:[%s2352 + $0x40] sm:$0xff]
      %v2362 = vld [vmem:[%s2352 + $0x48] sm:$0xff]
      %v2363 = vld [vmem:[%s2352 + $0x50] sm:$0xff]
      %v2364 = vld [vmem:[%s2352 + $0x58] sm:$0xff]
      %v2365 = vld [vmem:[%s2352 + $0x60] sm:$0xff]
      %v2366 = vld [vmem:[%s2352 + $0x68] sm:$0xff]
      %v2367 = vld [vmem:[%s2352 + $0x70] sm:$0xff]
      %v2368 = vld [vmem:[%s2352 + $0x78] sm:$0xff]
      %2369 = vmatprep.subr.mxu0 %v2289
      %2370 = vmatpush1.msra.mxu0 %v2288
      %2371 = vmatprep.subr.mxu0 %v2291
      %2372 = vmatpush1.msra.mxu0 %v2290
      %2373 = vmatprep.subr.mxu0 %v2293
      %2374 = vmatpush1.msra.mxu0 %v2292
      %2375 = vmatprep.subr.mxu0 %v2295
      %2376 = vmatpush1.msra.mxu0 %v2294
      %2377 = vmatprep.subr.mxu0 %v2297
      %2378 = vmatpush1.msra.mxu0 %v2296
      %2379 = vmatprep.subr.mxu0 %v2299
      %2380 = vmatpush1.msra.mxu0 %v2298
      %2381 = vmatprep.subr.mxu0 %v2301
      %2382 = vmatpush1.msra.mxu0 %v2300
      %2383 = vmatprep.subr.mxu0 %v2303
      %2384 = vmatpush1.msra.mxu0 %v2302
      %2385 = vmatprep.subr.mxu0 %v2305
      %2386 = vmatpush1.msra.mxu0 %v2304
      %2387 = vmatprep.subr.mxu0 %v2307
      %2388 = vmatpush1.msra.mxu0 %v2306
      %2389 = vmatprep.subr.mxu0 %v2309
      %2390 = vmatpush1.msra.mxu0 %v2308
      %2391 = vmatprep.subr.mxu0 %v2311
      %2392 = vmatpush1.msra.mxu0 %v2310
      %2393 = vmatprep.subr.mxu0 %v2313
      %2394 = vmatpush1.msra.mxu0 %v2312
      %2395 = vmatprep.subr.mxu0 %v2315
      %2396 = vmatpush1.msra.mxu0 %v2314
      %2397 = vmatprep.subr.mxu0 %v2317
      %2398 = vmatpush1.msra.mxu0 %v2316
      %2399 = vmatprep.subr.mxu0 %v2319
      %2400 = vmatpush1.msra.mxu0 %v2318
      %2401 = vmatprep.subr.mxu0 0.0
      %2402 = vmatpush1.msra.mxu0 0.0
      %2403 = vmatprep.subr.mxu0 0.0
      %2404 = vmatpush1.msra.mxu0 0.0
      %2405 = vmatprep.subr.mxu0 0.0
      %2406 = vmatpush1.msra.mxu0 0.0
      %2407 = vmatprep.subr.mxu0 0.0
      %2408 = vmatpush1.msra.mxu0 0.0
      %2409 = vmatprep.subr.mxu0 0.0
      %2410 = vmatpush1.msra.mxu0 0.0
      %2411 = vmatprep.subr.mxu0 0.0
      %2412 = vmatpush1.msra.mxu0 0.0
      %2413 = vmatprep.subr.mxu0 0.0
      %2414 = vmatpush1.msra.mxu0 0.0
      %2415 = vmatprep.subr.mxu0 0.0
      %2416 = vmatpush1.msra.mxu0 0.0
      %2417 = vmatprep.subr.mxu0 0.0
      %2418 = vmatpush1.msra.mxu0 0.0
      %2419 = vmatprep.subr.mxu0 0.0
      %2420 = vmatpush1.msra.mxu0 0.0
      %2421 = vmatprep.subr.mxu0 0.0
      %2422 = vmatpush1.msra.mxu0 0.0
      %2423 = vmatprep.subr.mxu0 0.0
      %2424 = vmatpush1.msra.mxu0 0.0
      %2425 = vmatprep.subr.mxu0 0.0
      %2426 = vmatpush1.msra.mxu0 0.0
      %2427 = vmatprep.subr.mxu0 0.0
      %2428 = vmatpush1.msra.mxu0 0.0
      %2429 = vmatprep.subr.mxu0 0.0
      %2430 = vmatpush1.msra.mxu0 0.0
      %2431 = vmatprep.subr.mxu0 0.0
      %2432 = vmatpush1.msra.mxu0 0.0
      %2433 = vmatprep.mubr.f32.mxu0 0.0
      %2434 = vmatmul.mubr.f32.gmra.mrb[0].mxu0 %v2353
      %v2435 = vpop.f32.mrb[0].mxu0
      %v2436 = vadd.f32 0.0, %v2435
      %v2437 = vpop.f32.mrb[0].mxu0
      %v2438 = vadd.f32 0.0, %v2437
      %2439 = vmatprep.mubr.f32.mxu0 0.0
      %2440 = vmatmul.mubr.f32.gmra.mrb[0].mxu0 %v2354
      %v2441 = vpop.f32.mrb[0].mxu0
      %v2442 = vadd.f32 0.0, %v2441
      %v2443 = vpop.f32.mrb[0].mxu0
      %v2444 = vadd.f32 0.0, %v2443
      %2445 = vmatprep.mubr.f32.mxu0 0.0
      %2446 = vmatmul.mubr.f32.gmra.mrb[0].mxu0 %v2355
      %v2447 = vpop.f32.mrb[0].mxu0
      %v2448 = vadd.f32 0.0, %v2447
      %v2449 = vpop.f32.mrb[0].mxu0
      %v2450 = vadd.f32 0.0, %v2449
      %2451 = vmatprep.mubr.f32.mxu0 0.0
      %2452 = vmatmul.mubr.f32.gmra.mrb[0].mxu0 %v2356
      %v2453 = vpop.f32.mrb[0].mxu0
      %v2454 = vadd.f32 0.0, %v2453
      %v2455 = vpop.f32.mrb[0].mxu0
      %v2456 = vadd.f32 0.0, %v2455
      %2457 = vmatprep.mubr.f32.mxu0 0.0
      %2458 = vmatmul.mubr.f32.gmra.mrb[0].mxu0 %v2357
      %v2459 = vpop.f32.mrb[0].mxu0
      %v2460 = vadd.f32 0.0, %v2459
      %v2461 = vpop.f32.mrb[0].mxu0
      %v2462 = vadd.f32 0.0, %v2461
      %2463 = vmatprep.mubr.f32.mxu0 0.0
      %2464 = vmatmul.mubr.f32.gmra.mrb[0].mxu0 %v2358
      %v2465 = vpop.f32.mrb[0].mxu0
      %v2466 = vadd.f32 0.0, %v2465
      %v2467 = vpop.f32.mrb[0].mxu0
      %v2468 = vadd.f32 0.0, %v2467
      %2469 = vmatprep.mubr.f32.mxu0 0.0
      %2470 = vmatmul.mubr.f32.gmra.mrb[0].mxu0 %v2359
      %v2471 = vpop.f32.mrb[0].mxu0
      %v2472 = vadd.f32 0.0, %v2471
      %v2473 = vpop.f32.mrb[0].mxu0
      %v2474 = vadd.f32 0.0, %v2473
      %2475 = vmatprep.mubr.f32.mxu0 0.0
      %2476 = vmatmul.mubr.f32.gmra.mrb[0].mxu0 %v2360
      %v2477 = vpop.f32.mrb[0].mxu0
      %v2478 = vadd.f32 0.0, %v2477
      %v2479 = vpop.f32.mrb[0].mxu0
      %v2480 = vadd.f32 0.0, %v2479
      %2481 = vmatprep.mubr.f32.mxu0 0.0
      %2482 = vmatmul.mubr.f32.gmra.mrb[0].mxu0 %v2361
      %v2483 = vpop.f32.mrb[0].mxu0
      %v2484 = vadd.f32 0.0, %v2483
      %v2485 = vpop.f32.mrb[0].mxu0
      %v2486 = vadd.f32 0.0, %v2485
      %2487 = vmatprep.mubr.f32.mxu0 0.0
      %2488 = vmatmul.mubr.f32.gmra.mrb[0].mxu0 %v2362
      %v2489 = vpop.f32.mrb[0].mxu0
      %v2490 = vadd.f32 0.0, %v2489
      %v2491 = vpop.f32.mrb[0].mxu0
      %v2492 = vadd.f32 0.0, %v2491
      %2493 = vmatprep.mubr.f32.mxu0 0.0
      %2494 = vmatmul.mubr.f32.gmra.mrb[0].mxu0 %v2363
      %v2495 = vpop.f32.mrb[0].mxu0
      %v2496 = vadd.f32 0.0, %v2495
      %v2497 = vpop.f32.mrb[0].mxu0
      %v2498 = vadd.f32 0.0, %v2497
      %2499 = vmatprep.mubr.f32.mxu0 0.0
      %2500 = vmatmul.mubr.f32.gmra.mrb[0].mxu0 %v2364
      %v2501 = vpop.f32.mrb[0].mxu0
      %v2502 = vadd.f32 0.0, %v2501
      %v2503 = vpop.f32.mrb[0].mxu0
      %v2504 = vadd.f32 0.0, %v2503
      %2505 = vmatprep.mubr.f32.mxu0 0.0
      %2506 = vmatmul.mubr.f32.gmra.mrb[0].mxu0 %v2365
      %v2507 = vpop.f32.mrb[0].mxu0
      %v2508 = vadd.f32 0.0, %v2507
      %v2509 = vpop.f32.mrb[0].mxu0
      %v2510 = vadd.f32 0.0, %v2509
      %2511 = vmatprep.mubr.f32.mxu0 0.0
      %2512 = vmatmul.mubr.f32.gmra.mrb[0].mxu0 %v2366
      %v2513 = vpop.f32.mrb[0].mxu0
      %v2514 = vadd.f32 0.0, %v2513
      %v2515 = vpop.f32.mrb[0].mxu0
      %v2516 = vadd.f32 0.0, %v2515
      %2517 = vmatprep.mubr.f32.mxu0 0.0
      %2518 = vmatmul.mubr.f32.gmra.mrb[0].mxu0 %v2367
      %v2519 = vpop.f32.mrb[0].mxu0
      %v2520 = vadd.f32 0.0, %v2519
      %v2521 = vpop.f32.mrb[0].mxu0
      %v2522 = vadd.f32 0.0, %v2521
      %2523 = vmatprep.mubr.f32.mxu0 0.0
      %2524 = vmatmul.mubr.f32.gmra.mrb[0].mxu0 %v2368
      %v2525 = vpop.f32.mrb[0].mxu0
      %v2526 = vadd.f32 0.0, %v2525
      %v2527 = vpop.f32.mrb[0].mxu0
      %v2528 = vadd.f32 0.0, %v2527
      %2529 = vdwg.mxu0
      %v2530 = vadd.f32 %v2320, %v2436
      %v2531 = vadd.f32 %v2321, %v2438
      %v2532 = vadd.f32 %v2322, %v2442
      %v2533 = vadd.f32 %v2323, %v2444
      %v2534 = vadd.f32 %v2324, %v2448
      %v2535 = vadd.f32 %v2325, %v2450
      %v2536 = vadd.f32 %v2326, %v2454
      %v2537 = vadd.f32 %v2327, %v2456
      %v2538 = vadd.f32 %v2328, %v2460
      %v2539 = vadd.f32 %v2329, %v2462
      %v2540 = vadd.f32 %v2330, %v2466
      %v2541 = vadd.f32 %v2331, %v2468
      %v2542 = vadd.f32 %v2332, %v2472
      %v2543 = vadd.f32 %v2333, %v2474
      %v2544 = vadd.f32 %v2334, %v2478
      %v2545 = vadd.f32 %v2335, %v2480
      %v2546 = vadd.f32 %v2336, %v2484
      %v2547 = vadd.f32 %v2337, %v2486
      %v2548 = vadd.f32 %v2338, %v2490
      %v2549 = vadd.f32 %v2339, %v2492
      %v2550 = vadd.f32 %v2340, %v2496
      %v2551 = vadd.f32 %v2341, %v2498
      %v2552 = vadd.f32 %v2342, %v2502
      %v2553 = vadd.f32 %v2343, %v2504
      %v2554 = vadd.f32 %v2344, %v2508
      %v2555 = vadd.f32 %v2345, %v2510
      %v2556 = vadd.f32 %v2346, %v2514
      %v2557 = vadd.f32 %v2347, %v2516
      %v2558 = vadd.f32 %v2348, %v2520
      %v2559 = vadd.f32 %v2349, %v2522
      %v2560 = vadd.f32 %v2350, %v2526
      %v2561 = vadd.f32 %v2351, %v2528
      %2562 = vst [vmem:[#allocation2] sm:$0xff] %v2530
      %2563 = vst [vmem:[#allocation2 + $0x8] sm:$0xff] %v2531
      %2564 = vst [vmem:[#allocation2 + $0x10] sm:$0xff] %v2532
      %2565 = vst [vmem:[#allocation2 + $0x18] sm:$0xff] %v2533
      %2566 = vst [vmem:[#allocation2 + $0x20] sm:$0xff] %v2534
      %2567 = vst [vmem:[#allocation2 + $0x28] sm:$0xff] %v2535
      %2568 = vst [vmem:[#allocation2 + $0x30] sm:$0xff] %v2536
      %2569 = vst [vmem:[#allocation2 + $0x38] sm:$0xff] %v2537
      %2570 = vst [vmem:[#allocation2 + $0x40] sm:$0xff] %v2538
      %2571 = vst [vmem:[#allocation2 + $0x48] sm:$0xff] %v2539
      %2572 = vst [vmem:[#allocation2 + $0x50] sm:$0xff] %v2540
      %2573 = vst [vmem:[#allocation2 + $0x58] sm:$0xff] %v2541
      %2574 = vst [vmem:[#allocation2 + $0x60] sm:$0xff] %v2542
      %2575 = vst [vmem:[#allocation2 + $0x68] sm:$0xff] %v2543
      %2576 = vst [vmem:[#allocation2 + $0x70] sm:$0xff] %v2544
      %2577 = vst [vmem:[#allocation2 + $0x78] sm:$0xff] %v2545
      %2578 = vst [vmem:[#allocation2 + $0x80] sm:$0xff] %v2546
      %2579 = vst [vmem:[#allocation2 + $0x88] sm:$0xff] %v2547
      %2580 = vst [vmem:[#allocation2 + $0x90] sm:$0xff] %v2548
      %2581 = vst [vmem:[#allocation2 + $0x98] sm:$0xff] %v2549
      %2582 = vst [vmem:[#allocation2 + $0xa0] sm:$0xff] %v2550
      %2583 = vst [vmem:[#allocation2 + $0xa8] sm:$0xff] %v2551
      %2584 = vst [vmem:[#allocation2 + $0xb0] sm:$0xff] %v2552
      %2585 = vst [vmem:[#allocation2 + $0xb8] sm:$0xff] %v2553
      %2586 = vst [vmem:[#allocation2 + $0xc0] sm:$0xff] %v2554
      %2587 = vst [vmem:[#allocation2 + $0xc8] sm:$0xff] %v2555
      %2588 = vst [vmem:[#allocation2 + $0xd0] sm:$0xff] %v2556
      %2589 = vst [vmem:[#allocation2 + $0xd8] sm:$0xff] %v2557
      %2590 = vst [vmem:[#allocation2 + $0xe0] sm:$0xff] %v2558
      %2591 = vst [vmem:[#allocation2 + $0xe8] sm:$0xff] %v2559
      %2592 = vst [vmem:[#allocation2 + $0xf0] sm:$0xff] %v2560
      %2593 = vst [vmem:[#allocation2 + $0xf8] sm:$0xff] %v2561
      %2594 = vrot.lane.b32.xlu0 %v338, 113
      %v2595 = vpop.permute.xlu0 %2594
      %2596 = vrot.lane.b32.xlu0 %v340, 113
      %v2597 = vpop.permute.xlu0 %2596
      %2598 = vrot.lane.b32.xlu0 %v342, 113
      %v2599 = vpop.permute.xlu0 %2598
      %2600 = vrot.lane.b32.xlu0 %v344, 113
      %v2601 = vpop.permute.xlu0 %2600
      %2602 = vrot.lane.b32.xlu0 %v346, 113
      %v2603 = vpop.permute.xlu0 %2602
      %2604 = vrot.lane.b32.xlu0 %v348, 113
      %v2605 = vpop.permute.xlu0 %2604
      %2606 = vrot.lane.b32.xlu0 %v350, 113
      %v2607 = vpop.permute.xlu0 %2606
      %2608 = vrot.lane.b32.xlu0 %v352, 113
      %v2609 = vpop.permute.xlu0 %2608
      %2610 = vrot.lane.b32.xlu0 %v354, 113
      %v2611 = vpop.permute.xlu0 %2610
      %2612 = vrot.lane.b32.xlu0 %v356, 113
      %v2613 = vpop.permute.xlu0 %2612
      %2614 = vrot.lane.b32.xlu0 %v358, 113
      %v2615 = vpop.permute.xlu0 %2614
      %2616 = vrot.lane.b32.xlu0 %v360, 113
      %v2617 = vpop.permute.xlu0 %2616
      %2618 = vrot.lane.b32.xlu0 %v362, 113
      %v2619 = vpop.permute.xlu0 %2618
      %2620 = vrot.lane.b32.xlu0 %v364, 113
      %v2621 = vpop.permute.xlu0 %2620
      %2622 = vrot.lane.b32.xlu0 %v366, 113
      %v2623 = vpop.permute.xlu0 %2622
      %2624 = vrot.lane.b32.xlu0 %v368, 113
      %v2625 = vpop.permute.xlu0 %2624
      %2626 = vrot.lane.b32.xlu0 %v339, 113
      %v2627 = vpop.permute.xlu0 %2626
      %2628 = vrot.lane.b32.xlu0 %v341, 113
      %v2629 = vpop.permute.xlu0 %2628
      %2630 = vrot.lane.b32.xlu0 %v343, 113
      %v2631 = vpop.permute.xlu0 %2630
      %2632 = vrot.lane.b32.xlu0 %v345, 113
      %v2633 = vpop.permute.xlu0 %2632
      %2634 = vrot.lane.b32.xlu0 %v347, 113
      %v2635 = vpop.permute.xlu0 %2634
      %2636 = vrot.lane.b32.xlu0 %v349, 113
      %v2637 = vpop.permute.xlu0 %2636
      %2638 = vrot.lane.b32.xlu0 %v351, 113
      %v2639 = vpop.permute.xlu0 %2638
      %2640 = vrot.lane.b32.xlu0 %v353, 113
      %v2641 = vpop.permute.xlu0 %2640
      %2642 = vrot.lane.b32.xlu0 %v355, 113
      %v2643 = vpop.permute.xlu0 %2642
      %2644 = vrot.lane.b32.xlu0 %v357, 113
      %v2645 = vpop.permute.xlu0 %2644
      %2646 = vrot.lane.b32.xlu0 %v359, 113
      %v2647 = vpop.permute.xlu0 %2646
      %2648 = vrot.lane.b32.xlu0 %v361, 113
      %v2649 = vpop.permute.xlu0 %2648
      %2650 = vrot.lane.b32.xlu0 %v363, 113
      %v2651 = vpop.permute.xlu0 %2650
      %2652 = vrot.lane.b32.xlu0 %v365, 113
      %v2653 = vpop.permute.xlu0 %2652
      %2654 = vrot.lane.b32.xlu0 %v367, 113
      %v2655 = vpop.permute.xlu0 %2654
      %2656 = vrot.lane.b32.xlu0 %v369, 113
      %v2657 = vpop.permute.xlu0 %2656
      %vm2658 = vcmp.lt.s32.totalorder %v280, 113
      %v2659 = vsel %vm2658, %v2595, %v2627
      %v2660 = vsel %vm2658, %v2597, %v2629
      %v2661 = vsel %vm2658, %v2599, %v2631
      %v2662 = vsel %vm2658, %v2601, %v2633
      %v2663 = vsel %vm2658, %v2603, %v2635
      %v2664 = vsel %vm2658, %v2605, %v2637
      %v2665 = vsel %vm2658, %v2607, %v2639
      %v2666 = vsel %vm2658, %v2609, %v2641
      %v2667 = vsel %vm2658, %v2611, %v2643
      %v2668 = vsel %vm2658, %v2613, %v2645
      %v2669 = vsel %vm2658, %v2615, %v2647
      %v2670 = vsel %vm2658, %v2617, %v2649
      %v2671 = vsel %vm2658, %v2619, %v2651
      %v2672 = vsel %vm2658, %v2621, %v2653
      %v2673 = vsel %vm2658, %v2623, %v2655
      %v2674 = vsel %vm2658, %v2625, %v2657
      %v2675 = vsel %vm2658, %v2627, %v2595
      %v2676 = vsel %vm2658, %v2629, %v2597
      %v2677 = vsel %vm2658, %v2631, %v2599
      %v2678 = vsel %vm2658, %v2633, %v2601
      %v2679 = vsel %vm2658, %v2635, %v2603
      %v2680 = vsel %vm2658, %v2637, %v2605
      %v2681 = vsel %vm2658, %v2639, %v2607
      %v2682 = vsel %vm2658, %v2641, %v2609
      %v2683 = vsel %vm2658, %v2643, %v2611
      %v2684 = vsel %vm2658, %v2645, %v2613
      %v2685 = vsel %vm2658, %v2647, %v2615
      %v2686 = vsel %vm2658, %v2649, %v2617
      %v2687 = vsel %vm2658, %v2651, %v2619
      %v2688 = vsel %vm2658, %v2653, %v2621
      %v2689 = vsel %vm2658, %v2655, %v2623
      %v2690 = vsel %vm2658, %v2657, %v2625
      %v2691 = vmul.f32 %v2659, %v330
      %v2692 = vmul.f32 %v2675, %v331
      %v2693 = vmul.f32 %v2660, %v330
      %v2694 = vmul.f32 %v2676, %v331
      %v2695 = vmul.f32 %v2661, %v330
      %v2696 = vmul.f32 %v2677, %v331
      %v2697 = vmul.f32 %v2662, %v330
      %v2698 = vmul.f32 %v2678, %v331
      %v2699 = vmul.f32 %v2663, %v330
      %v2700 = vmul.f32 %v2679, %v331
      %v2701 = vmul.f32 %v2664, %v330
      %v2702 = vmul.f32 %v2680, %v331
      %v2703 = vmul.f32 %v2665, %v330
      %v2704 = vmul.f32 %v2681, %v331
      %v2705 = vmul.f32 %v2666, %v330
      %v2706 = vmul.f32 %v2682, %v331
      %v2707 = vmul.f32 %v2667, %v330
      %v2708 = vmul.f32 %v2683, %v331
      %v2709 = vmul.f32 %v2668, %v330
      %v2710 = vmul.f32 %v2684, %v331
      %v2711 = vmul.f32 %v2669, %v330
      %v2712 = vmul.f32 %v2685, %v331
      %v2713 = vmul.f32 %v2670, %v330
      %v2714 = vmul.f32 %v2686, %v331
      %v2715 = vmul.f32 %v2671, %v330
      %v2716 = vmul.f32 %v2687, %v331
      %v2717 = vmul.f32 %v2672, %v330
      %v2718 = vmul.f32 %v2688, %v331
      %v2719 = vmul.f32 %v2673, %v330
      %v2720 = vmul.f32 %v2689, %v331
      %v2721 = vmul.f32 %v2674, %v330
      %v2722 = vmul.f32 %v2690, %v331
      %v2723 = vld [vmem:[#allocation2] sm:$0xff]
      %v2724 = vld [vmem:[#allocation2 + $0x8] sm:$0xff]
      %v2725 = vld [vmem:[#allocation2 + $0x10] sm:$0xff]
      %v2726 = vld [vmem:[#allocation2 + $0x18] sm:$0xff]
      %v2727 = vld [vmem:[#allocation2 + $0x20] sm:$0xff]
      %v2728 = vld [vmem:[#allocation2 + $0x28] sm:$0xff]
      %v2729 = vld [vmem:[#allocation2 + $0x30] sm:$0xff]
      %v2730 = vld [vmem:[#allocation2 + $0x38] sm:$0xff]
      %v2731 = vld [vmem:[#allocation2 + $0x40] sm:$0xff]
      %v2732 = vld [vmem:[#allocation2 + $0x48] sm:$0xff]
      %v2733 = vld [vmem:[#allocation2 + $0x50] sm:$0xff]
      %v2734 = vld [vmem:[#allocation2 + $0x58] sm:$0xff]
      %v2735 = vld [vmem:[#allocation2 + $0x60] sm:$0xff]
      %v2736 = vld [vmem:[#allocation2 + $0x68] sm:$0xff]
      %v2737 = vld [vmem:[#allocation2 + $0x70] sm:$0xff]
      %v2738 = vld [vmem:[#allocation2 + $0x78] sm:$0xff]
      %v2739 = vld [vmem:[#allocation2 + $0x80] sm:$0xff]
      %v2740 = vld [vmem:[#allocation2 + $0x88] sm:$0xff]
      %v2741 = vld [vmem:[#allocation2 + $0x90] sm:$0xff]
      %v2742 = vld [vmem:[#allocation2 + $0x98] sm:$0xff]
      %v2743 = vld [vmem:[#allocation2 + $0xa0] sm:$0xff]
      %v2744 = vld [vmem:[#allocation2 + $0xa8] sm:$0xff]
      %v2745 = vld [vmem:[#allocation2 + $0xb0] sm:$0xff]
      %v2746 = vld [vmem:[#allocation2 + $0xb8] sm:$0xff]
      %v2747 = vld [vmem:[#allocation2 + $0xc0] sm:$0xff]
      %v2748 = vld [vmem:[#allocation2 + $0xc8] sm:$0xff]
      %v2749 = vld [vmem:[#allocation2 + $0xd0] sm:$0xff]
      %v2750 = vld [vmem:[#allocation2 + $0xd8] sm:$0xff]
      %v2751 = vld [vmem:[#allocation2 + $0xe0] sm:$0xff]
      %v2752 = vld [vmem:[#allocation2 + $0xe8] sm:$0xff]
      %v2753 = vld [vmem:[#allocation2 + $0xf0] sm:$0xff]
      %v2754 = vld [vmem:[#allocation2 + $0xf8] sm:$0xff]
      %s2755 = scalar_lea.vmem %s1, 768
      %v2756 = vld [vmem:[%s2755] sm:$0xff]
      %v2757 = vld [vmem:[%s2755 + $0x8] sm:$0xff]
      %v2758 = vld [vmem:[%s2755 + $0x10] sm:$0xff]
      %v2759 = vld [vmem:[%s2755 + $0x18] sm:$0xff]
      %v2760 = vld [vmem:[%s2755 + $0x20] sm:$0xff]
      %v2761 = vld [vmem:[%s2755 + $0x28] sm:$0xff]
      %v2762 = vld [vmem:[%s2755 + $0x30] sm:$0xff]
      %v2763 = vld [vmem:[%s2755 + $0x38] sm:$0xff]
      %v2764 = vld [vmem:[%s2755 + $0x40] sm:$0xff]
      %v2765 = vld [vmem:[%s2755 + $0x48] sm:$0xff]
      %v2766 = vld [vmem:[%s2755 + $0x50] sm:$0xff]
      %v2767 = vld [vmem:[%s2755 + $0x58] sm:$0xff]
      %v2768 = vld [vmem:[%s2755 + $0x60] sm:$0xff]
      %v2769 = vld [vmem:[%s2755 + $0x68] sm:$0xff]
      %v2770 = vld [vmem:[%s2755 + $0x70] sm:$0xff]
      %v2771 = vld [vmem:[%s2755 + $0x78] sm:$0xff]
      %2772 = vmatprep.subr.mxu0 %v2692
      %2773 = vmatpush1.msra.mxu0 %v2691
      %2774 = vmatprep.subr.mxu0 %v2694
      %2775 = vmatpush1.msra.mxu0 %v2693
      %2776 = vmatprep.subr.mxu0 %v2696
      %2777 = vmatpush1.msra.mxu0 %v2695
      %2778 = vmatprep.subr.mxu0 %v2698
      %2779 = vmatpush1.msra.mxu0 %v2697
      %2780 = vmatprep.subr.mxu0 %v2700
      %2781 = vmatpush1.msra.mxu0 %v2699
      %2782 = vmatprep.subr.mxu0 %v2702
      %2783 = vmatpush1.msra.mxu0 %v2701
      %2784 = vmatprep.subr.mxu0 %v2704
      %2785 = vmatpush1.msra.mxu0 %v2703
      %2786 = vmatprep.subr.mxu0 %v2706
      %2787 = vmatpush1.msra.mxu0 %v2705
      %2788 = vmatprep.subr.mxu0 %v2708
      %2789 = vmatpush1.msra.mxu0 %v2707
      %2790 = vmatprep.subr.mxu0 %v2710
      %2791 = vmatpush1.msra.mxu0 %v2709
      %2792 = vmatprep.subr.mxu0 %v2712
      %2793 = vmatpush1.msra.mxu0 %v2711
      %2794 = vmatprep.subr.mxu0 %v2714
      %2795 = vmatpush1.msra.mxu0 %v2713
      %2796 = vmatprep.subr.mxu0 %v2716
      %2797 = vmatpush1.msra.mxu0 %v2715
      %2798 = vmatprep.subr.mxu0 %v2718
      %2799 = vmatpush1.msra.mxu0 %v2717
      %2800 = vmatprep.subr.mxu0 %v2720
      %2801 = vmatpush1.msra.mxu0 %v2719
      %2802 = vmatprep.subr.mxu0 %v2722
      %2803 = vmatpush1.msra.mxu0 %v2721
      %2804 = vmatprep.subr.mxu0 0.0
      %2805 = vmatpush1.msra.mxu0 0.0
      %2806 = vmatprep.subr.mxu0 0.0
      %2807 = vmatpush1.msra.mxu0 0.0
      %2808 = vmatprep.subr.mxu0 0.0
      %2809 = vmatpush1.msra.mxu0 0.0
      %2810 = vmatprep.subr.mxu0 0.0
      %2811 = vmatpush1.msra.mxu0 0.0
      %2812 = vmatprep.subr.mxu0 0.0
      %2813 = vmatpush1.msra.mxu0 0.0
      %2814 = vmatprep.subr.mxu0 0.0
      %2815 = vmatpush1.msra.mxu0 0.0
      %2816 = vmatprep.subr.mxu0 0.0
      %2817 = vmatpush1.msra.mxu0 0.0
      %2818 = vmatprep.subr.mxu0 0.0
      %2819 = vmatpush1.msra.mxu0 0.0
      %2820 = vmatprep.subr.mxu0 0.0
      %2821 = vmatpush1.msra.mxu0 0.0
      %2822 = vmatprep.subr.mxu0 0.0
      %2823 = vmatpush1.msra.mxu0 0.0
      %2824 = vmatprep.subr.mxu0 0.0
      %2825 = vmatpush1.msra.mxu0 0.0
      %2826 = vmatprep.subr.mxu0 0.0
      %2827 = vmatpush1.msra.mxu0 0.0
      %2828 = vmatprep.subr.mxu0 0.0
      %2829 = vmatpush1.msra.mxu0 0.0
      %2830 = vmatprep.subr.mxu0 0.0
      %2831 = vmatpush1.msra.mxu0 0.0
      %2832 = vmatprep.subr.mxu0 0.0
      %2833 = vmatpush1.msra.mxu0 0.0
      %2834 = vmatprep.subr.mxu0 0.0
      %2835 = vmatpush1.msra.mxu0 0.0
      %2836 = vmatprep.mubr.f32.mxu0 0.0
      %2837 = vmatmul.mubr.f32.gmra.mrb[0].mxu0 %v2756
      %v2838 = vpop.f32.mrb[0].mxu0
      %v2839 = vadd.f32 0.0, %v2838
      %v2840 = vpop.f32.mrb[0].mxu0
      %v2841 = vadd.f32 0.0, %v2840
      %2842 = vmatprep.mubr.f32.mxu0 0.0
      %2843 = vmatmul.mubr.f32.gmra.mrb[0].mxu0 %v2757
      %v2844 = vpop.f32.mrb[0].mxu0
      %v2845 = vadd.f32 0.0, %v2844
      %v2846 = vpop.f32.mrb[0].mxu0
      %v2847 = vadd.f32 0.0, %v2846
      %2848 = vmatprep.mubr.f32.mxu0 0.0
      %2849 = vmatmul.mubr.f32.gmra.mrb[0].mxu0 %v2758
      %v2850 = vpop.f32.mrb[0].mxu0
      %v2851 = vadd.f32 0.0, %v2850
      %v2852 = vpop.f32.mrb[0].mxu0
      %v2853 = vadd.f32 0.0, %v2852
      %2854 = vmatprep.mubr.f32.mxu0 0.0
      %2855 = vmatmul.mubr.f32.gmra.mrb[0].mxu0 %v2759
      %v2856 = vpop.f32.mrb[0].mxu0
      %v2857 = vadd.f32 0.0, %v2856
      %v2858 = vpop.f32.mrb[0].mxu0
      %v2859 = vadd.f32 0.0, %v2858
      %2860 = vmatprep.mubr.f32.mxu0 0.0
      %2861 = vmatmul.mubr.f32.gmra.mrb[0].mxu0 %v2760
      %v2862 = vpop.f32.mrb[0].mxu0
      %v2863 = vadd.f32 0.0, %v2862
      %v2864 = vpop.f32.mrb[0].mxu0
      %v2865 = vadd.f32 0.0, %v2864
      %2866 = vmatprep.mubr.f32.mxu0 0.0
      %2867 = vmatmul.mubr.f32.gmra.mrb[0].mxu0 %v2761
      %v2868 = vpop.f32.mrb[0].mxu0
      %v2869 = vadd.f32 0.0, %v2868
      %v2870 = vpop.f32.mrb[0].mxu0
      %v2871 = vadd.f32 0.0, %v2870
      %2872 = vmatprep.mubr.f32.mxu0 0.0
      %2873 = vmatmul.mubr.f32.gmra.mrb[0].mxu0 %v2762
      %v2874 = vpop.f32.mrb[0].mxu0
      %v2875 = vadd.f32 0.0, %v2874
      %v2876 = vpop.f32.mrb[0].mxu0
      %v2877 = vadd.f32 0.0, %v2876
      %2878 = vmatprep.mubr.f32.mxu0 0.0
      %2879 = vmatmul.mubr.f32.gmra.mrb[0].mxu0 %v2763
      %v2880 = vpop.f32.mrb[0].mxu0
      %v2881 = vadd.f32 0.0, %v2880
      %v2882 = vpop.f32.mrb[0].mxu0
      %v2883 = vadd.f32 0.0, %v2882
      %2884 = vmatprep.mubr.f32.mxu0 0.0
      %2885 = vmatmul.mubr.f32.gmra.mrb[0].mxu0 %v2764
      %v2886 = vpop.f32.mrb[0].mxu0
      %v2887 = vadd.f32 0.0, %v2886
      %v2888 = vpop.f32.mrb[0].mxu0
      %v2889 = vadd.f32 0.0, %v2888
      %2890 = vmatprep.mubr.f32.mxu0 0.0
      %2891 = vmatmul.mubr.f32.gmra.mrb[0].mxu0 %v2765
      %v2892 = vpop.f32.mrb[0].mxu0
      %v2893 = vadd.f32 0.0, %v2892
      %v2894 = vpop.f32.mrb[0].mxu0
      %v2895 = vadd.f32 0.0, %v2894
      %2896 = vmatprep.mubr.f32.mxu0 0.0
      %2897 = vmatmul.mubr.f32.gmra.mrb[0].mxu0 %v2766
      %v2898 = vpop.f32.mrb[0].mxu0
      %v2899 = vadd.f32 0.0, %v2898
      %v2900 = vpop.f32.mrb[0].mxu0
      %v2901 = vadd.f32 0.0, %v2900
      %2902 = vmatprep.mubr.f32.mxu0 0.0
      %2903 = vmatmul.mubr.f32.gmra.mrb[0].mxu0 %v2767
      %v2904 = vpop.f32.mrb[0].mxu0
      %v2905 = vadd.f32 0.0, %v2904
      %v2906 = vpop.f32.mrb[0].mxu0
      %v2907 = vadd.f32 0.0, %v2906
      %2908 = vmatprep.mubr.f32.mxu0 0.0
      %2909 = vmatmul.mubr.f32.gmra.mrb[0].mxu0 %v2768
      %v2910 = vpop.f32.mrb[0].mxu0
      %v2911 = vadd.f32 0.0, %v2910
      %v2912 = vpop.f32.mrb[0].mxu0
      %v2913 = vadd.f32 0.0, %v2912
      %2914 = vmatprep.mubr.f32.mxu0 0.0
      %2915 = vmatmul.mubr.f32.gmra.mrb[0].mxu0 %v2769
      %v2916 = vpop.f32.mrb[0].mxu0
      %v2917 = vadd.f32 0.0, %v2916
      %v2918 = vpop.f32.mrb[0].mxu0
      %v2919 = vadd.f32 0.0, %v2918
      %2920 = vmatprep.mubr.f32.mxu0 0.0
      %2921 = vmatmul.mubr.f32.gmra.mrb[0].mxu0 %v2770
      %v2922 = vpop.f32.mrb[0].mxu0
      %v2923 = vadd.f32 0.0, %v2922
      %v2924 = vpop.f32.mrb[0].mxu0
      %v2925 = vadd.f32 0.0, %v2924
      %2926 = vmatprep.mubr.f32.mxu0 0.0
      %2927 = vmatmul.mubr.f32.gmra.mrb[0].mxu0 %v2771
      %v2928 = vpop.f32.mrb[0].mxu0
      %v2929 = vadd.f32 0.0, %v2928
      %v2930 = vpop.f32.mrb[0].mxu0
      %v2931 = vadd.f32 0.0, %v2930
      %2932 = vdwg.mxu0
      %v2933 = vadd.f32 %v2723, %v2839
      %v2934 = vadd.f32 %v2724, %v2841
      %v2935 = vadd.f32 %v2725, %v2845
      %v2936 = vadd.f32 %v2726, %v2847
      %v2937 = vadd.f32 %v2727, %v2851
      %v2938 = vadd.f32 %v2728, %v2853
      %v2939 = vadd.f32 %v2729, %v2857
      %v2940 = vadd.f32 %v2730, %v2859
      %v2941 = vadd.f32 %v2731, %v2863
      %v2942 = vadd.f32 %v2732, %v2865
      %v2943 = vadd.f32 %v2733, %v2869
      %v2944 = vadd.f32 %v2734, %v2871
      %v2945 = vadd.f32 %v2735, %v2875
      %v2946 = vadd.f32 %v2736, %v2877
      %v2947 = vadd.f32 %v2737, %v2881
      %v2948 = vadd.f32 %v2738, %v2883
      %v2949 = vadd.f32 %v2739, %v2887
      %v2950 = vadd.f32 %v2740, %v2889
      %v2951 = vadd.f32 %v2741, %v2893
      %v2952 = vadd.f32 %v2742, %v2895
      %v2953 = vadd.f32 %v2743, %v2899
      %v2954 = vadd.f32 %v2744, %v2901
      %v2955 = vadd.f32 %v2745, %v2905
      %v2956 = vadd.f32 %v2746, %v2907
      %v2957 = vadd.f32 %v2747, %v2911
      %v2958 = vadd.f32 %v2748, %v2913
      %v2959 = vadd.f32 %v2749, %v2917
      %v2960 = vadd.f32 %v2750, %v2919
      %v2961 = vadd.f32 %v2751, %v2923
      %v2962 = vadd.f32 %v2752, %v2925
      %v2963 = vadd.f32 %v2753, %v2929
      %v2964 = vadd.f32 %v2754, %v2931
      %2965 = vst [vmem:[#allocation2] sm:$0xff] %v2933
      %2966 = vst [vmem:[#allocation2 + $0x8] sm:$0xff] %v2934
      %2967 = vst [vmem:[#allocation2 + $0x10] sm:$0xff] %v2935
      %2968 = vst [vmem:[#allocation2 + $0x18] sm:$0xff] %v2936
      %2969 = vst [vmem:[#allocation2 + $0x20] sm:$0xff] %v2937
      %2970 = vst [vmem:[#allocation2 + $0x28] sm:$0xff] %v2938
      %2971 = vst [vmem:[#allocation2 + $0x30] sm:$0xff] %v2939
      %2972 = vst [vmem:[#allocation2 + $0x38] sm:$0xff] %v2940
      %2973 = vst [vmem:[#allocation2 + $0x40] sm:$0xff] %v2941
      %2974 = vst [vmem:[#allocation2 + $0x48] sm:$0xff] %v2942
      %2975 = vst [vmem:[#allocation2 + $0x50] sm:$0xff] %v2943
      %2976 = vst [vmem:[#allocation2 + $0x58] sm:$0xff] %v2944
      %2977 = vst [vmem:[#allocation2 + $0x60] sm:$0xff] %v2945
      %2978 = vst [vmem:[#allocation2 + $0x68] sm:$0xff] %v2946
      %2979 = vst [vmem:[#allocation2 + $0x70] sm:$0xff] %v2947
      %2980 = vst [vmem:[#allocation2 + $0x78] sm:$0xff] %v2948
      %2981 = vst [vmem:[#allocation2 + $0x80] sm:$0xff] %v2949
      %2982 = vst [vmem:[#allocation2 + $0x88] sm:$0xff] %v2950
      %2983 = vst [vmem:[#allocation2 + $0x90] sm:$0xff] %v2951
      %2984 = vst [vmem:[#allocation2 + $0x98] sm:$0xff] %v2952
      %2985 = vst [vmem:[#allocation2 + $0xa0] sm:$0xff] %v2953
      %2986 = vst [vmem:[#allocation2 + $0xa8] sm:$0xff] %v2954
      %2987 = vst [vmem:[#allocation2 + $0xb0] sm:$0xff] %v2955
      %2988 = vst [vmem:[#allocation2 + $0xb8] sm:$0xff] %v2956
      %2989 = vst [vmem:[#allocation2 + $0xc0] sm:$0xff] %v2957
      %2990 = vst [vmem:[#allocation2 + $0xc8] sm:$0xff] %v2958
      %2991 = vst [vmem:[#allocation2 + $0xd0] sm:$0xff] %v2959
      %2992 = vst [vmem:[#allocation2 + $0xd8] sm:$0xff] %v2960
      %2993 = vst [vmem:[#allocation2 + $0xe0] sm:$0xff] %v2961
      %2994 = vst [vmem:[#allocation2 + $0xe8] sm:$0xff] %v2962
      %2995 = vst [vmem:[#allocation2 + $0xf0] sm:$0xff] %v2963
      %2996 = vst [vmem:[#allocation2 + $0xf8] sm:$0xff] %v2964
      %2997 = vrot.lane.b32.xlu0 %v338, 112
      %v2998 = vpop.permute.xlu0 %2997
      %2999 = vrot.lane.b32.xlu0 %v340, 112
      %v3000 = vpop.permute.xlu0 %2999
      %3001 = vrot.lane.b32.xlu0 %v342, 112
      %v3002 = vpop.permute.xlu0 %3001
      %3003 = vrot.lane.b32.xlu0 %v344, 112
      %v3004 = vpop.permute.xlu0 %3003
      %3005 = vrot.lane.b32.xlu0 %v346, 112
      %v3006 = vpop.permute.xlu0 %3005
      %3007 = vrot.lane.b32.xlu0 %v348, 112
      %v3008 = vpop.permute.xlu0 %3007
      %3009 = vrot.lane.b32.xlu0 %v350, 112
      %v3010 = vpop.permute.xlu0 %3009
      %3011 = vrot.lane.b32.xlu0 %v352, 112
      %v3012 = vpop.permute.xlu0 %3011
      %3013 = vrot.lane.b32.xlu0 %v354, 112
      %v3014 = vpop.permute.xlu0 %3013
      %3015 = vrot.lane.b32.xlu0 %v356, 112
      %v3016 = vpop.permute.xlu0 %3015
      %3017 = vrot.lane.b32.xlu0 %v358, 112
      %v3018 = vpop.permute.xlu0 %3017
      %3019 = vrot.lane.b32.xlu0 %v360, 112
      %v3020 = vpop.permute.xlu0 %3019
      %3021 = vrot.lane.b32.xlu0 %v362, 112
      %v3022 = vpop.permute.xlu0 %3021
      %3023 = vrot.lane.b32.xlu0 %v364, 112
      %v3024 = vpop.permute.xlu0 %3023
      %3025 = vrot.lane.b32.xlu0 %v366, 112
      %v3026 = vpop.permute.xlu0 %3025
      %3027 = vrot.lane.b32.xlu0 %v368, 112
      %v3028 = vpop.permute.xlu0 %3027
      %3029 = vrot.lane.b32.xlu0 %v339, 112
      %v3030 = vpop.permute.xlu0 %3029
      %3031 = vrot.lane.b32.xlu0 %v341, 112
      %v3032 = vpop.permute.xlu0 %3031
      %3033 = vrot.lane.b32.xlu0 %v343, 112
      %v3034 = vpop.permute.xlu0 %3033
      %3035 = vrot.lane.b32.xlu0 %v345, 112
      %v3036 = vpop.permute.xlu0 %3035
      %3037 = vrot.lane.b32.xlu0 %v347, 112
      %v3038 = vpop.permute.xlu0 %3037
      %3039 = vrot.lane.b32.xlu0 %v349, 112
      %v3040 = vpop.permute.xlu0 %3039
      %3041 = vrot.lane.b32.xlu0 %v351, 112
      %v3042 = vpop.permute.xlu0 %3041
      %3043 = vrot.lane.b32.xlu0 %v353, 112
      %v3044 = vpop.permute.xlu0 %3043
      %3045 = vrot.lane.b32.xlu0 %v355, 112
      %v3046 = vpop.permute.xlu0 %3045
      %3047 = vrot.lane.b32.xlu0 %v357, 112
      %v3048 = vpop.permute.xlu0 %3047
      %3049 = vrot.lane.b32.xlu0 %v359, 112
      %v3050 = vpop.permute.xlu0 %3049
      %3051 = vrot.lane.b32.xlu0 %v361, 112
      %v3052 = vpop.permute.xlu0 %3051
      %3053 = vrot.lane.b32.xlu0 %v363, 112
      %v3054 = vpop.permute.xlu0 %3053
      %3055 = vrot.lane.b32.xlu0 %v365, 112
      %v3056 = vpop.permute.xlu0 %3055
      %3057 = vrot.lane.b32.xlu0 %v367, 112
      %v3058 = vpop.permute.xlu0 %3057
      %3059 = vrot.lane.b32.xlu0 %v369, 112
      %v3060 = vpop.permute.xlu0 %3059
      %vm3061 = vcmp.lt.s32.totalorder %v280, 112
      %v3062 = vsel %vm3061, %v2998, %v3030
      %v3063 = vsel %vm3061, %v3000, %v3032
      %v3064 = vsel %vm3061, %v3002, %v3034
      %v3065 = vsel %vm3061, %v3004, %v3036
      %v3066 = vsel %vm3061, %v3006, %v3038
      %v3067 = vsel %vm3061, %v3008, %v3040
      %v3068 = vsel %vm3061, %v3010, %v3042
      %v3069 = vsel %vm3061, %v3012, %v3044
      %v3070 = vsel %vm3061, %v3014, %v3046
      %v3071 = vsel %vm3061, %v3016, %v3048
      %v3072 = vsel %vm3061, %v3018, %v3050
      %v3073 = vsel %vm3061, %v3020, %v3052
      %v3074 = vsel %vm3061, %v3022, %v3054
      %v3075 = vsel %vm3061, %v3024, %v3056
      %v3076 = vsel %vm3061, %v3026, %v3058
      %v3077 = vsel %vm3061, %v3028, %v3060
      %v3078 = vsel %vm3061, %v3030, %v2998
      %v3079 = vsel %vm3061, %v3032, %v3000
      %v3080 = vsel %vm3061, %v3034, %v3002
      %v3081 = vsel %vm3061, %v3036, %v3004
      %v3082 = vsel %vm3061, %v3038, %v3006
      %v3083 = vsel %vm3061, %v3040, %v3008
      %v3084 = vsel %vm3061, %v3042, %v3010
      %v3085 = vsel %vm3061, %v3044, %v3012
      %v3086 = vsel %vm3061, %v3046, %v3014
      %v3087 = vsel %vm3061, %v3048, %v3016
      %v3088 = vsel %vm3061, %v3050, %v3018
      %v3089 = vsel %vm3061, %v3052, %v3020
      %v3090 = vsel %vm3061, %v3054, %v3022
      %v3091 = vsel %vm3061, %v3056, %v3024
      %v3092 = vsel %vm3061, %v3058, %v3026
      %v3093 = vsel %vm3061, %v3060, %v3028
      %v3094 = vmul.f32 %v3062, %v332
      %v3095 = vmul.f32 %v3078, %v333
      %v3096 = vmul.f32 %v3063, %v332
      %v3097 = vmul.f32 %v3079, %v333
      %v3098 = vmul.f32 %v3064, %v332
      %v3099 = vmul.f32 %v3080, %v333
      %v3100 = vmul.f32 %v3065, %v332
      %v3101 = vmul.f32 %v3081, %v333
      %v3102 = vmul.f32 %v3066, %v332
      %v3103 = vmul.f32 %v3082, %v333
      %v3104 = vmul.f32 %v3067, %v332
      %v3105 = vmul.f32 %v3083, %v333
      %v3106 = vmul.f32 %v3068, %v332
      %v3107 = vmul.f32 %v3084, %v333
      %v3108 = vmul.f32 %v3069, %v332
      %v3109 = vmul.f32 %v3085, %v333
      %v3110 = vmul.f32 %v3070, %v332
      %v3111 = vmul.f32 %v3086, %v333
      %v3112 = vmul.f32 %v3071, %v332
      %v3113 = vmul.f32 %v3087, %v333
      %v3114 = vmul.f32 %v3072, %v332
      %v3115 = vmul.f32 %v3088, %v333
      %v3116 = vmul.f32 %v3073, %v332
      %v3117 = vmul.f32 %v3089, %v333
      %v3118 = vmul.f32 %v3074, %v332
      %v3119 = vmul.f32 %v3090, %v333
      %v3120 = vmul.f32 %v3075, %v332
      %v3121 = vmul.f32 %v3091, %v333
      %v3122 = vmul.f32 %v3076, %v332
      %v3123 = vmul.f32 %v3092, %v333
      %v3124 = vmul.f32 %v3077, %v332
      %v3125 = vmul.f32 %v3093, %v333
      %v3126 = vld [vmem:[#allocation2] sm:$0xff]
      %v3127 = vld [vmem:[#allocation2 + $0x8] sm:$0xff]
      %v3128 = vld [vmem:[#allocation2 + $0x10] sm:$0xff]
      %v3129 = vld [vmem:[#allocation2 + $0x18] sm:$0xff]
      %v3130 = vld [vmem:[#allocation2 + $0x20] sm:$0xff]
      %v3131 = vld [vmem:[#allocation2 + $0x28] sm:$0xff]
      %v3132 = vld [vmem:[#allocation2 + $0x30] sm:$0xff]
      %v3133 = vld [vmem:[#allocation2 + $0x38] sm:$0xff]
      %v3134 = vld [vmem:[#allocation2 + $0x40] sm:$0xff]
      %v3135 = vld [vmem:[#allocation2 + $0x48] sm:$0xff]
      %v3136 = vld [vmem:[#allocation2 + $0x50] sm:$0xff]
      %v3137 = vld [vmem:[#allocation2 + $0x58] sm:$0xff]
      %v3138 = vld [vmem:[#allocation2 + $0x60] sm:$0xff]
      %v3139 = vld [vmem:[#allocation2 + $0x68] sm:$0xff]
      %v3140 = vld [vmem:[#allocation2 + $0x70] sm:$0xff]
      %v3141 = vld [vmem:[#allocation2 + $0x78] sm:$0xff]
      %v3142 = vld [vmem:[#allocation2 + $0x80] sm:$0xff]
      %v3143 = vld [vmem:[#allocation2 + $0x88] sm:$0xff]
      %v3144 = vld [vmem:[#allocation2 + $0x90] sm:$0xff]
      %v3145 = vld [vmem:[#allocation2 + $0x98] sm:$0xff]
      %v3146 = vld [vmem:[#allocation2 + $0xa0] sm:$0xff]
      %v3147 = vld [vmem:[#allocation2 + $0xa8] sm:$0xff]
      %v3148 = vld [vmem:[#allocation2 + $0xb0] sm:$0xff]
      %v3149 = vld [vmem:[#allocation2 + $0xb8] sm:$0xff]
      %v3150 = vld [vmem:[#allocation2 + $0xc0] sm:$0xff]
      %v3151 = vld [vmem:[#allocation2 + $0xc8] sm:$0xff]
      %v3152 = vld [vmem:[#allocation2 + $0xd0] sm:$0xff]
      %v3153 = vld [vmem:[#allocation2 + $0xd8] sm:$0xff]
      %v3154 = vld [vmem:[#allocation2 + $0xe0] sm:$0xff]
      %v3155 = vld [vmem:[#allocation2 + $0xe8] sm:$0xff]
      %v3156 = vld [vmem:[#allocation2 + $0xf0] sm:$0xff]
      %v3157 = vld [vmem:[#allocation2 + $0xf8] sm:$0xff]
      %s3158 = scalar_lea.vmem %s1, 896
      %v3159 = vld [vmem:[%s3158] sm:$0xff]
      %v3160 = vld [vmem:[%s3158 + $0x8] sm:$0xff]
      %v3161 = vld [vmem:[%s3158 + $0x10] sm:$0xff]
      %v3162 = vld [vmem:[%s3158 + $0x18] sm:$0xff]
      %v3163 = vld [vmem:[%s3158 + $0x20] sm:$0xff]
      %v3164 = vld [vmem:[%s3158 + $0x28] sm:$0xff]
      %v3165 = vld [vmem:[%s3158 + $0x30] sm:$0xff]
      %v3166 = vld [vmem:[%s3158 + $0x38] sm:$0xff]
      %v3167 = vld [vmem:[%s3158 + $0x40] sm:$0xff]
      %v3168 = vld [vmem:[%s3158 + $0x48] sm:$0xff]
      %v3169 = vld [vmem:[%s3158 + $0x50] sm:$0xff]
      %v3170 = vld [vmem:[%s3158 + $0x58] sm:$0xff]
      %v3171 = vld [vmem:[%s3158 + $0x60] sm:$0xff]
      %v3172 = vld [vmem:[%s3158 + $0x68] sm:$0xff]
      %v3173 = vld [vmem:[%s3158 + $0x70] sm:$0xff]
      %v3174 = vld [vmem:[%s3158 + $0x78] sm:$0xff]
      %3175 = vmatprep.subr.mxu0 %v3095
      %3176 = vmatpush1.msra.mxu0 %v3094
      %3177 = vmatprep.subr.mxu0 %v3097
      %3178 = vmatpush1.msra.mxu0 %v3096
      %3179 = vmatprep.subr.mxu0 %v3099
      %3180 = vmatpush1.msra.mxu0 %v3098
      %3181 = vmatprep.subr.mxu0 %v3101
      %3182 = vmatpush1.msra.mxu0 %v3100
      %3183 = vmatprep.subr.mxu0 %v3103
      %3184 = vmatpush1.msra.mxu0 %v3102
      %3185 = vmatprep.subr.mxu0 %v3105
      %3186 = vmatpush1.msra.mxu0 %v3104
      %3187 = vmatprep.subr.mxu0 %v3107
      %3188 = vmatpush1.msra.mxu0 %v3106
      %3189 = vmatprep.subr.mxu0 %v3109
      %3190 = vmatpush1.msra.mxu0 %v3108
      %3191 = vmatprep.subr.mxu0 %v3111
      %3192 = vmatpush1.msra.mxu0 %v3110
      %3193 = vmatprep.subr.mxu0 %v3113
      %3194 = vmatpush1.msra.mxu0 %v3112
      %3195 = vmatprep.subr.mxu0 %v3115
      %3196 = vmatpush1.msra.mxu0 %v3114
      %3197 = vmatprep.subr.mxu0 %v3117
      %3198 = vmatpush1.msra.mxu0 %v3116
      %3199 = vmatprep.subr.mxu0 %v3119
      %3200 = vmatpush1.msra.mxu0 %v3118
      %3201 = vmatprep.subr.mxu0 %v3121
      %3202 = vmatpush1.msra.mxu0 %v3120
      %3203 = vmatprep.subr.mxu0 %v3123
      %3204 = vmatpush1.msra.mxu0 %v3122
      %3205 = vmatprep.subr.mxu0 %v3125
      %3206 = vmatpush1.msra.mxu0 %v3124
      %3207 = vmatprep.subr.mxu0 0.0
      %3208 = vmatpush1.msra.mxu0 0.0
      %3209 = vmatprep.subr.mxu0 0.0
      %3210 = vmatpush1.msra.mxu0 0.0
      %3211 = vmatprep.subr.mxu0 0.0
      %3212 = vmatpush1.msra.mxu0 0.0
      %3213 = vmatprep.subr.mxu0 0.0
      %3214 = vmatpush1.msra.mxu0 0.0
      %3215 = vmatprep.subr.mxu0 0.0
      %3216 = vmatpush1.msra.mxu0 0.0
      %3217 = vmatprep.subr.mxu0 0.0
      %3218 = vmatpush1.msra.mxu0 0.0
      %3219 = vmatprep.subr.mxu0 0.0
      %3220 = vmatpush1.msra.mxu0 0.0
      %3221 = vmatprep.subr.mxu0 0.0
      %3222 = vmatpush1.msra.mxu0 0.0
      %3223 = vmatprep.subr.mxu0 0.0
      %3224 = vmatpush1.msra.mxu0 0.0
      %3225 = vmatprep.subr.mxu0 0.0
      %3226 = vmatpush1.msra.mxu0 0.0
      %3227 = vmatprep.subr.mxu0 0.0
      %3228 = vmatpush1.msra.mxu0 0.0
      %3229 = vmatprep.subr.mxu0 0.0
      %3230 = vmatpush1.msra.mxu0 0.0
      %3231 = vmatprep.subr.mxu0 0.0
      %3232 = vmatpush1.msra.mxu0 0.0
      %3233 = vmatprep.subr.mxu0 0.0
      %3234 = vmatpush1.msra.mxu0 0.0
      %3235 = vmatprep.subr.mxu0 0.0
      %3236 = vmatpush1.msra.mxu0 0.0
      %3237 = vmatprep.subr.mxu0 0.0
      %3238 = vmatpush1.msra.mxu0 0.0
      %3239 = vmatprep.mubr.f32.mxu0 0.0
      %3240 = vmatmul.mubr.f32.gmra.mrb[0].mxu0 %v3159
      %v3241 = vpop.f32.mrb[0].mxu0
      %v3242 = vadd.f32 0.0, %v3241
      %v3243 = vpop.f32.mrb[0].mxu0
      %v3244 = vadd.f32 0.0, %v3243
      %3245 = vmatprep.mubr.f32.mxu0 0.0
      %3246 = vmatmul.mubr.f32.gmra.mrb[0].mxu0 %v3160
      %v3247 = vpop.f32.mrb[0].mxu0
      %v3248 = vadd.f32 0.0, %v3247
      %v3249 = vpop.f32.mrb[0].mxu0
      %v3250 = vadd.f32 0.0, %v3249
      %3251 = vmatprep.mubr.f32.mxu0 0.0
      %3252 = vmatmul.mubr.f32.gmra.mrb[0].mxu0 %v3161
      %v3253 = vpop.f32.mrb[0].mxu0
      %v3254 = vadd.f32 0.0, %v3253
      %v3255 = vpop.f32.mrb[0].mxu0
      %v3256 = vadd.f32 0.0, %v3255
      %3257 = vmatprep.mubr.f32.mxu0 0.0
      %3258 = vmatmul.mubr.f32.gmra.mrb[0].mxu0 %v3162
      %v3259 = vpop.f32.mrb[0].mxu0
      %v3260 = vadd.f32 0.0, %v3259
      %v3261 = vpop.f32.mrb[0].mxu0
      %v3262 = vadd.f32 0.0, %v3261
      %3263 = vmatprep.mubr.f32.mxu0 0.0
      %3264 = vmatmul.mubr.f32.gmra.mrb[0].mxu0 %v3163
      %v3265 = vpop.f32.mrb[0].mxu0
      %v3266 = vadd.f32 0.0, %v3265
      %v3267 = vpop.f32.mrb[0].mxu0
      %v3268 = vadd.f32 0.0, %v3267
      %3269 = vmatprep.mubr.f32.mxu0 0.0
      %3270 = vmatmul.mubr.f32.gmra.mrb[0].mxu0 %v3164
      %v3271 = vpop.f32.mrb[0].mxu0
      %v3272 = vadd.f32 0.0, %v3271
      %v3273 = vpop.f32.mrb[0].mxu0
      %v3274 = vadd.f32 0.0, %v3273
      %3275 = vmatprep.mubr.f32.mxu0 0.0
      %3276 = vmatmul.mubr.f32.gmra.mrb[0].mxu0 %v3165
      %v3277 = vpop.f32.mrb[0].mxu0
      %v3278 = vadd.f32 0.0, %v3277
      %v3279 = vpop.f32.mrb[0].mxu0
      %v3280 = vadd.f32 0.0, %v3279
      %3281 = vmatprep.mubr.f32.mxu0 0.0
      %3282 = vmatmul.mubr.f32.gmra.mrb[0].mxu0 %v3166
      %v3283 = vpop.f32.mrb[0].mxu0
      %v3284 = vadd.f32 0.0, %v3283
      %v3285 = vpop.f32.mrb[0].mxu0
      %v3286 = vadd.f32 0.0, %v3285
      %3287 = vmatprep.mubr.f32.mxu0 0.0
      %3288 = vmatmul.mubr.f32.gmra.mrb[0].mxu0 %v3167
      %v3289 = vpop.f32.mrb[0].mxu0
      %v3290 = vadd.f32 0.0, %v3289
      %v3291 = vpop.f32.mrb[0].mxu0
      %v3292 = vadd.f32 0.0, %v3291
      %3293 = vmatprep.mubr.f32.mxu0 0.0
      %3294 = vmatmul.mubr.f32.gmra.mrb[0].mxu0 %v3168
      %v3295 = vpop.f32.mrb[0].mxu0
      %v3296 = vadd.f32 0.0, %v3295
      %v3297 = vpop.f32.mrb[0].mxu0
      %v3298 = vadd.f32 0.0, %v3297
      %3299 = vmatprep.mubr.f32.mxu0 0.0
      %3300 = vmatmul.mubr.f32.gmra.mrb[0].mxu0 %v3169
      %v3301 = vpop.f32.mrb[0].mxu0
      %v3302 = vadd.f32 0.0, %v3301
      %v3303 = vpop.f32.mrb[0].mxu0
      %v3304 = vadd.f32 0.0, %v3303
      %3305 = vmatprep.mubr.f32.mxu0 0.0
      %3306 = vmatmul.mubr.f32.gmra.mrb[0].mxu0 %v3170
      %v3307 = vpop.f32.mrb[0].mxu0
      %v3308 = vadd.f32 0.0, %v3307
      %v3309 = vpop.f32.mrb[0].mxu0
      %v3310 = vadd.f32 0.0, %v3309
      %3311 = vmatprep.mubr.f32.mxu0 0.0
      %3312 = vmatmul.mubr.f32.gmra.mrb[0].mxu0 %v3171
      %v3313 = vpop.f32.mrb[0].mxu0
      %v3314 = vadd.f32 0.0, %v3313
      %v3315 = vpop.f32.mrb[0].mxu0
      %v3316 = vadd.f32 0.0, %v3315
      %3317 = vmatprep.mubr.f32.mxu0 0.0
      %3318 = vmatmul.mubr.f32.gmra.mrb[0].mxu0 %v3172
      %v3319 = vpop.f32.mrb[0].mxu0
      %v3320 = vadd.f32 0.0, %v3319
      %v3321 = vpop.f32.mrb[0].mxu0
      %v3322 = vadd.f32 0.0, %v3321
      %3323 = vmatprep.mubr.f32.mxu0 0.0
      %3324 = vmatmul.mubr.f32.gmra.mrb[0].mxu0 %v3173
      %v3325 = vpop.f32.mrb[0].mxu0
      %v3326 = vadd.f32 0.0, %v3325
      %v3327 = vpop.f32.mrb[0].mxu0
      %v3328 = vadd.f32 0.0, %v3327
      %3329 = vmatprep.mubr.f32.mxu0 0.0
      %3330 = vmatmul.mubr.f32.gmra.mrb[0].mxu0 %v3174
      %v3331 = vpop.f32.mrb[0].mxu0
      %v3332 = vadd.f32 0.0, %v3331
      %v3333 = vpop.f32.mrb[0].mxu0
      %v3334 = vadd.f32 0.0, %v3333
      %3335 = vdwg.mxu0
      %v3336 = vadd.f32 %v3126, %v3242
      %v3337 = vadd.f32 %v3127, %v3244
      %v3338 = vadd.f32 %v3128, %v3248
      %v3339 = vadd.f32 %v3129, %v3250
      %v3340 = vadd.f32 %v3130, %v3254
      %v3341 = vadd.f32 %v3131, %v3256
      %v3342 = vadd.f32 %v3132, %v3260
      %v3343 = vadd.f32 %v3133, %v3262
      %v3344 = vadd.f32 %v3134, %v3266
      %v3345 = vadd.f32 %v3135, %v3268
      %v3346 = vadd.f32 %v3136, %v3272
      %v3347 = vadd.f32 %v3137, %v3274
      %v3348 = vadd.f32 %v3138, %v3278
      %v3349 = vadd.f32 %v3139, %v3280
      %v3350 = vadd.f32 %v3140, %v3284
      %v3351 = vadd.f32 %v3141, %v3286
      %v3352 = vadd.f32 %v3142, %v3290
      %v3353 = vadd.f32 %v3143, %v3292
      %v3354 = vadd.f32 %v3144, %v3296
      %v3355 = vadd.f32 %v3145, %v3298
      %v3356 = vadd.f32 %v3146, %v3302
      %v3357 = vadd.f32 %v3147, %v3304
      %v3358 = vadd.f32 %v3148, %v3308
      %v3359 = vadd.f32 %v3149, %v3310
      %v3360 = vadd.f32 %v3150, %v3314
      %v3361 = vadd.f32 %v3151, %v3316
      %v3362 = vadd.f32 %v3152, %v3320
      %v3363 = vadd.f32 %v3153, %v3322
      %v3364 = vadd.f32 %v3154, %v3326
      %v3365 = vadd.f32 %v3155, %v3328
      %v3366 = vadd.f32 %v3156, %v3332
      %v3367 = vadd.f32 %v3157, %v3334
      %3368 = vst [vmem:[#allocation2] sm:$0xff] %v3336
      %3369 = vst [vmem:[#allocation2 + $0x8] sm:$0xff] %v3337
      %3370 = vst [vmem:[#allocation2 + $0x10] sm:$0xff] %v3338
      %3371 = vst [vmem:[#allocation2 + $0x18] sm:$0xff] %v3339
      %3372 = vst [vmem:[#allocation2 + $0x20] sm:$0xff] %v3340
      %3373 = vst [vmem:[#allocation2 + $0x28] sm:$0xff] %v3341
      %3374 = vst [vmem:[#allocation2 + $0x30] sm:$0xff] %v3342
      %3375 = vst [vmem:[#allocation2 + $0x38] sm:$0xff] %v3343
      %3376 = vst [vmem:[#allocation2 + $0x40] sm:$0xff] %v3344
      %3377 = vst [vmem:[#allocation2 + $0x48] sm:$0xff] %v3345
      %3378 = vst [vmem:[#allocation2 + $0x50] sm:$0xff] %v3346
      %3379 = vst [vmem:[#allocation2 + $0x58] sm:$0xff] %v3347
      %3380 = vst [vmem:[#allocation2 + $0x60] sm:$0xff] %v3348
      %3381 = vst [vmem:[#allocation2 + $0x68] sm:$0xff] %v3349
      %3382 = vst [vmem:[#allocation2 + $0x70] sm:$0xff] %v3350
      %3383 = vst [vmem:[#allocation2 + $0x78] sm:$0xff] %v3351
      %3384 = vst [vmem:[#allocation2 + $0x80] sm:$0xff] %v3352
      %3385 = vst [vmem:[#allocation2 + $0x88] sm:$0xff] %v3353
      %3386 = vst [vmem:[#allocation2 + $0x90] sm:$0xff] %v3354
      %3387 = vst [vmem:[#allocation2 + $0x98] sm:$0xff] %v3355
      %3388 = vst [vmem:[#allocation2 + $0xa0] sm:$0xff] %v3356
      %3389 = vst [vmem:[#allocation2 + $0xa8] sm:$0xff] %v3357
      %3390 = vst [vmem:[#allocation2 + $0xb0] sm:$0xff] %v3358
      %3391 = vst [vmem:[#allocation2 + $0xb8] sm:$0xff] %v3359
      %3392 = vst [vmem:[#allocation2 + $0xc0] sm:$0xff] %v3360
      %3393 = vst [vmem:[#allocation2 + $0xc8] sm:$0xff] %v3361
      %3394 = vst [vmem:[#allocation2 + $0xd0] sm:$0xff] %v3362
      %3395 = vst [vmem:[#allocation2 + $0xd8] sm:$0xff] %v3363
      %3396 = vst [vmem:[#allocation2 + $0xe0] sm:$0xff] %v3364
      %3397 = vst [vmem:[#allocation2 + $0xe8] sm:$0xff] %v3365
      %3398 = vst [vmem:[#allocation2 + $0xf0] sm:$0xff] %v3366
      %3399 = vst [vmem:[#allocation2 + $0xf8] sm:$0xff] %v3367
      %3400 = vrot.lane.b32.xlu0 %v338, 111
      %v3401 = vpop.permute.xlu0 %3400
      %3402 = vrot.lane.b32.xlu0 %v340, 111
      %v3403 = vpop.permute.xlu0 %3402
      %3404 = vrot.lane.b32.xlu0 %v342, 111
      %v3405 = vpop.permute.xlu0 %3404
      %3406 = vrot.lane.b32.xlu0 %v344, 111
      %v3407 = vpop.permute.xlu0 %3406
      %3408 = vrot.lane.b32.xlu0 %v346, 111
      %v3409 = vpop.permute.xlu0 %3408
      %3410 = vrot.lane.b32.xlu0 %v348, 111
      %v3411 = vpop.permute.xlu0 %3410
      %3412 = vrot.lane.b32.xlu0 %v350, 111
      %v3413 = vpop.permute.xlu0 %3412
      %3414 = vrot.lane.b32.xlu0 %v352, 111
      %v3415 = vpop.permute.xlu0 %3414
      %3416 = vrot.lane.b32.xlu0 %v354, 111
      %v3417 = vpop.permute.xlu0 %3416
      %3418 = vrot.lane.b32.xlu0 %v356, 111
      %v3419 = vpop.permute.xlu0 %3418
      %3420 = vrot.lane.b32.xlu0 %v358, 111
      %v3421 = vpop.permute.xlu0 %3420
      %3422 = vrot.lane.b32.xlu0 %v360, 111
      %v3423 = vpop.permute.xlu0 %3422
      %3424 = vrot.lane.b32.xlu0 %v362, 111
      %v3425 = vpop.permute.xlu0 %3424
      %3426 = vrot.lane.b32.xlu0 %v364, 111
      %v3427 = vpop.permute.xlu0 %3426
      %3428 = vrot.lane.b32.xlu0 %v366, 111
      %v3429 = vpop.permute.xlu0 %3428
      %3430 = vrot.lane.b32.xlu0 %v368, 111
      %v3431 = vpop.permute.xlu0 %3430
      %3432 = vrot.lane.b32.xlu0 %v339, 111
      %v3433 = vpop.permute.xlu0 %3432
      %3434 = vrot.lane.b32.xlu0 %v341, 111
      %v3435 = vpop.permute.xlu0 %3434
      %3436 = vrot.lane.b32.xlu0 %v343, 111
      %v3437 = vpop.permute.xlu0 %3436
      %3438 = vrot.lane.b32.xlu0 %v345, 111
      %v3439 = vpop.permute.xlu0 %3438
      %3440 = vrot.lane.b32.xlu0 %v347, 111
      %v3441 = vpop.permute.xlu0 %3440
      %3442 = vrot.lane.b32.xlu0 %v349, 111
      %v3443 = vpop.permute.xlu0 %3442
      %3444 = vrot.lane.b32.xlu0 %v351, 111
      %v3445 = vpop.permute.xlu0 %3444
      %3446 = vrot.lane.b32.xlu0 %v353, 111
      %v3447 = vpop.permute.xlu0 %3446
      %3448 = vrot.lane.b32.xlu0 %v355, 111
      %v3449 = vpop.permute.xlu0 %3448
      %3450 = vrot.lane.b32.xlu0 %v357, 111
      %v3451 = vpop.permute.xlu0 %3450
      %3452 = vrot.lane.b32.xlu0 %v359, 111
      %v3453 = vpop.permute.xlu0 %3452
      %3454 = vrot.lane.b32.xlu0 %v361, 111
      %v3455 = vpop.permute.xlu0 %3454
      %3456 = vrot.lane.b32.xlu0 %v363, 111
      %v3457 = vpop.permute.xlu0 %3456
      %3458 = vrot.lane.b32.xlu0 %v365, 111
      %v3459 = vpop.permute.xlu0 %3458
      %3460 = vrot.lane.b32.xlu0 %v367, 111
      %v3461 = vpop.permute.xlu0 %3460
      %3462 = vrot.lane.b32.xlu0 %v369, 111
      %v3463 = vpop.permute.xlu0 %3462
      %vm3464 = vcmp.lt.s32.totalorder %v280, 111
      %v3465 = vsel %vm3464, %v3401, %v3433
      %v3466 = vsel %vm3464, %v3403, %v3435
      %v3467 = vsel %vm3464, %v3405, %v3437
      %v3468 = vsel %vm3464, %v3407, %v3439
      %v3469 = vsel %vm3464, %v3409, %v3441
      %v3470 = vsel %vm3464, %v3411, %v3443
      %v3471 = vsel %vm3464, %v3413, %v3445
      %v3472 = vsel %vm3464, %v3415, %v3447
      %v3473 = vsel %vm3464, %v3417, %v3449
      %v3474 = vsel %vm3464, %v3419, %v3451
      %v3475 = vsel %vm3464, %v3421, %v3453
      %v3476 = vsel %vm3464, %v3423, %v3455
      %v3477 = vsel %vm3464, %v3425, %v3457
      %v3478 = vsel %vm3464, %v3427, %v3459
      %v3479 = vsel %vm3464, %v3429, %v3461
      %v3480 = vsel %vm3464, %v3431, %v3463
      %v3481 = vsel %vm3464, %v3433, %v3401
      %v3482 = vsel %vm3464, %v3435, %v3403
      %v3483 = vsel %vm3464, %v3437, %v3405
      %v3484 = vsel %vm3464, %v3439, %v3407
      %v3485 = vsel %vm3464, %v3441, %v3409
      %v3486 = vsel %vm3464, %v3443, %v3411
      %v3487 = vsel %vm3464, %v3445, %v3413
      %v3488 = vsel %vm3464, %v3447, %v3415
      %v3489 = vsel %vm3464, %v3449, %v3417
      %v3490 = vsel %vm3464, %v3451, %v3419
      %v3491 = vsel %vm3464, %v3453, %v3421
      %v3492 = vsel %vm3464, %v3455, %v3423
      %v3493 = vsel %vm3464, %v3457, %v3425
      %v3494 = vsel %vm3464, %v3459, %v3427
      %v3495 = vsel %vm3464, %v3461, %v3429
      %v3496 = vsel %vm3464, %v3463, %v3431
      %v3497 = vmul.f32 %v3465, %v336
      %v3498 = vmul.f32 %v3481, %v337
      %v3499 = vmul.f32 %v3466, %v336
      %v3500 = vmul.f32 %v3482, %v337
      %v3501 = vmul.f32 %v3467, %v336
      %v3502 = vmul.f32 %v3483, %v337
      %v3503 = vmul.f32 %v3468, %v336
      %v3504 = vmul.f32 %v3484, %v337
      %v3505 = vmul.f32 %v3469, %v336
      %v3506 = vmul.f32 %v3485, %v337
      %v3507 = vmul.f32 %v3470, %v336
      %v3508 = vmul.f32 %v3486, %v337
      %v3509 = vmul.f32 %v3471, %v336
      %v3510 = vmul.f32 %v3487, %v337
      %v3511 = vmul.f32 %v3472, %v336
      %v3512 = vmul.f32 %v3488, %v337
      %v3513 = vmul.f32 %v3473, %v336
      %v3514 = vmul.f32 %v3489, %v337
      %v3515 = vmul.f32 %v3474, %v336
      %v3516 = vmul.f32 %v3490, %v337
      %v3517 = vmul.f32 %v3475, %v336
      %v3518 = vmul.f32 %v3491, %v337
      %v3519 = vmul.f32 %v3476, %v336
      %v3520 = vmul.f32 %v3492, %v337
      %v3521 = vmul.f32 %v3477, %v336
      %v3522 = vmul.f32 %v3493, %v337
      %v3523 = vmul.f32 %v3478, %v336
      %v3524 = vmul.f32 %v3494, %v337
      %v3525 = vmul.f32 %v3479, %v336
      %v3526 = vmul.f32 %v3495, %v337
      %v3527 = vmul.f32 %v3480, %v336
      %v3528 = vmul.f32 %v3496, %v337
      %v3529 = vld [vmem:[#allocation2] sm:$0xff]
      %v3530 = vld [vmem:[#allocation2 + $0x8] sm:$0xff]
      %v3531 = vld [vmem:[#allocation2 + $0x10] sm:$0xff]
      %v3532 = vld [vmem:[#allocation2 + $0x18] sm:$0xff]
      %v3533 = vld [vmem:[#allocation2 + $0x20] sm:$0xff]
      %v3534 = vld [vmem:[#allocation2 + $0x28] sm:$0xff]
      %v3535 = vld [vmem:[#allocation2 + $0x30] sm:$0xff]
      %v3536 = vld [vmem:[#allocation2 + $0x38] sm:$0xff]
      %v3537 = vld [vmem:[#allocation2 + $0x40] sm:$0xff]
      %v3538 = vld [vmem:[#allocation2 + $0x48] sm:$0xff]
      %v3539 = vld [vmem:[#allocation2 + $0x50] sm:$0xff]
      %v3540 = vld [vmem:[#allocation2 + $0x58] sm:$0xff]
      %v3541 = vld [vmem:[#allocation2 + $0x60] sm:$0xff]
      %v3542 = vld [vmem:[#allocation2 + $0x68] sm:$0xff]
      %v3543 = vld [vmem:[#allocation2 + $0x70] sm:$0xff]
      %v3544 = vld [vmem:[#allocation2 + $0x78] sm:$0xff]
      %v3545 = vld [vmem:[#allocation2 + $0x80] sm:$0xff]
      %v3546 = vld [vmem:[#allocation2 + $0x88] sm:$0xff]
      %v3547 = vld [vmem:[#allocation2 + $0x90] sm:$0xff]
      %v3548 = vld [vmem:[#allocation2 + $0x98] sm:$0xff]
      %v3549 = vld [vmem:[#allocation2 + $0xa0] sm:$0xff]
      %v3550 = vld [vmem:[#allocation2 + $0xa8] sm:$0xff]
      %v3551 = vld [vmem:[#allocation2 + $0xb0] sm:$0xff]
      %v3552 = vld [vmem:[#allocation2 + $0xb8] sm:$0xff]
      %v3553 = vld [vmem:[#allocation2 + $0xc0] sm:$0xff]
      %v3554 = vld [vmem:[#allocation2 + $0xc8] sm:$0xff]
      %v3555 = vld [vmem:[#allocation2 + $0xd0] sm:$0xff]
      %v3556 = vld [vmem:[#allocation2 + $0xd8] sm:$0xff]
      %v3557 = vld [vmem:[#allocation2 + $0xe0] sm:$0xff]
      %v3558 = vld [vmem:[#allocation2 + $0xe8] sm:$0xff]
      %v3559 = vld [vmem:[#allocation2 + $0xf0] sm:$0xff]
      %v3560 = vld [vmem:[#allocation2 + $0xf8] sm:$0xff]
      %s3561 = scalar_lea.vmem %s1, 1024
      %v3562 = vld [vmem:[%s3561] sm:$0xff]
      %v3563 = vld [vmem:[%s3561 + $0x8] sm:$0xff]
      %v3564 = vld [vmem:[%s3561 + $0x10] sm:$0xff]
      %v3565 = vld [vmem:[%s3561 + $0x18] sm:$0xff]
      %v3566 = vld [vmem:[%s3561 + $0x20] sm:$0xff]
      %v3567 = vld [vmem:[%s3561 + $0x28] sm:$0xff]
      %v3568 = vld [vmem:[%s3561 + $0x30] sm:$0xff]
      %v3569 = vld [vmem:[%s3561 + $0x38] sm:$0xff]
      %v3570 = vld [vmem:[%s3561 + $0x40] sm:$0xff]
      %v3571 = vld [vmem:[%s3561 + $0x48] sm:$0xff]
      %v3572 = vld [vmem:[%s3561 + $0x50] sm:$0xff]
      %v3573 = vld [vmem:[%s3561 + $0x58] sm:$0xff]
      %v3574 = vld [vmem:[%s3561 + $0x60] sm:$0xff]
      %v3575 = vld [vmem:[%s3561 + $0x68] sm:$0xff]
      %v3576 = vld [vmem:[%s3561 + $0x70] sm:$0xff]
      %v3577 = vld [vmem:[%s3561 + $0x78] sm:$0xff]
      %3578 = vmatprep.subr.mxu0 %v3498
      %3579 = vmatpush1.msra.mxu0 %v3497
      %3580 = vmatprep.subr.mxu0 %v3500
      %3581 = vmatpush1.msra.mxu0 %v3499
      %3582 = vmatprep.subr.mxu0 %v3502
      %3583 = vmatpush1.msra.mxu0 %v3501
      %3584 = vmatprep.subr.mxu0 %v3504
      %3585 = vmatpush1.msra.mxu0 %v3503
      %3586 = vmatprep.subr.mxu0 %v3506
      %3587 = vmatpush1.msra.mxu0 %v3505
      %3588 = vmatprep.subr.mxu0 %v3508
      %3589 = vmatpush1.msra.mxu0 %v3507
      %3590 = vmatprep.subr.mxu0 %v3510
      %3591 = vmatpush1.msra.mxu0 %v3509
      %3592 = vmatprep.subr.mxu0 %v3512
      %3593 = vmatpush1.msra.mxu0 %v3511
      %3594 = vmatprep.subr.mxu0 %v3514
      %3595 = vmatpush1.msra.mxu0 %v3513
      %3596 = vmatprep.subr.mxu0 %v3516
      %3597 = vmatpush1.msra.mxu0 %v3515
      %3598 = vmatprep.subr.mxu0 %v3518
      %3599 = vmatpush1.msra.mxu0 %v3517
      %3600 = vmatprep.subr.mxu0 %v3520
      %3601 = vmatpush1.msra.mxu0 %v3519
      %3602 = vmatprep.subr.mxu0 %v3522
      %3603 = vmatpush1.msra.mxu0 %v3521
      %3604 = vmatprep.subr.mxu0 %v3524
      %3605 = vmatpush1.msra.mxu0 %v3523
      %3606 = vmatprep.subr.mxu0 %v3526
      %3607 = vmatpush1.msra.mxu0 %v3525
      %3608 = vmatprep.subr.mxu0 %v3528
      %3609 = vmatpush1.msra.mxu0 %v3527
      %3610 = vmatprep.subr.mxu0 0.0
      %3611 = vmatpush1.msra.mxu0 0.0
      %3612 = vmatprep.subr.mxu0 0.0
      %3613 = vmatpush1.msra.mxu0 0.0
      %3614 = vmatprep.subr.mxu0 0.0
      %3615 = vmatpush1.msra.mxu0 0.0
      %3616 = vmatprep.subr.mxu0 0.0
      %3617 = vmatpush1.msra.mxu0 0.0
      %3618 = vmatprep.subr.mxu0 0.0
      %3619 = vmatpush1.msra.mxu0 0.0
      %3620 = vmatprep.subr.mxu0 0.0
      %3621 = vmatpush1.msra.mxu0 0.0
      %3622 = vmatprep.subr.mxu0 0.0
      %3623 = vmatpush1.msra.mxu0 0.0
      %3624 = vmatprep.subr.mxu0 0.0
      %3625 = vmatpush1.msra.mxu0 0.0
      %3626 = vmatprep.subr.mxu0 0.0
      %3627 = vmatpush1.msra.mxu0 0.0
      %3628 = vmatprep.subr.mxu0 0.0
      %3629 = vmatpush1.msra.mxu0 0.0
      %3630 = vmatprep.subr.mxu0 0.0
      %3631 = vmatpush1.msra.mxu0 0.0
      %3632 = vmatprep.subr.mxu0 0.0
      %3633 = vmatpush1.msra.mxu0 0.0
      %3634 = vmatprep.subr.mxu0 0.0
      %3635 = vmatpush1.msra.mxu0 0.0
      %3636 = vmatprep.subr.mxu0 0.0
      %3637 = vmatpush1.msra.mxu0 0.0
      %3638 = vmatprep.subr.mxu0 0.0
      %3639 = vmatpush1.msra.mxu0 0.0
      %3640 = vmatprep.subr.mxu0 0.0
      %3641 = vmatpush1.msra.mxu0 0.0
      %3642 = vmatprep.mubr.f32.mxu0 0.0
      %3643 = vmatmul.mubr.f32.gmra.mrb[0].mxu0 %v3562
      %v3644 = vpop.f32.mrb[0].mxu0
      %v3645 = vadd.f32 0.0, %v3644
      %v3646 = vpop.f32.mrb[0].mxu0
      %v3647 = vadd.f32 0.0, %v3646
      %3648 = vmatprep.mubr.f32.mxu0 0.0
      %3649 = vmatmul.mubr.f32.gmra.mrb[0].mxu0 %v3563
      %v3650 = vpop.f32.mrb[0].mxu0
      %v3651 = vadd.f32 0.0, %v3650
      %v3652 = vpop.f32.mrb[0].mxu0
      %v3653 = vadd.f32 0.0, %v3652
      %3654 = vmatprep.mubr.f32.mxu0 0.0
      %3655 = vmatmul.mubr.f32.gmra.mrb[0].mxu0 %v3564
      %v3656 = vpop.f32.mrb[0].mxu0
      %v3657 = vadd.f32 0.0, %v3656
      %v3658 = vpop.f32.mrb[0].mxu0
      %v3659 = vadd.f32 0.0, %v3658
      %3660 = vmatprep.mubr.f32.mxu0 0.0
      %3661 = vmatmul.mubr.f32.gmra.mrb[0].mxu0 %v3565
      %v3662 = vpop.f32.mrb[0].mxu0
      %v3663 = vadd.f32 0.0, %v3662
      %v3664 = vpop.f32.mrb[0].mxu0
      %v3665 = vadd.f32 0.0, %v3664
      %3666 = vmatprep.mubr.f32.mxu0 0.0
      %3667 = vmatmul.mubr.f32.gmra.mrb[0].mxu0 %v3566
      %v3668 = vpop.f32.mrb[0].mxu0
      %v3669 = vadd.f32 0.0, %v3668
      %v3670 = vpop.f32.mrb[0].mxu0
      %v3671 = vadd.f32 0.0, %v3670
      %3672 = vmatprep.mubr.f32.mxu0 0.0
      %3673 = vmatmul.mubr.f32.gmra.mrb[0].mxu0 %v3567
      %v3674 = vpop.f32.mrb[0].mxu0
      %v3675 = vadd.f32 0.0, %v3674
      %v3676 = vpop.f32.mrb[0].mxu0
      %v3677 = vadd.f32 0.0, %v3676
      %3678 = vmatprep.mubr.f32.mxu0 0.0
      %3679 = vmatmul.mubr.f32.gmra.mrb[0].mxu0 %v3568
      %v3680 = vpop.f32.mrb[0].mxu0
      %v3681 = vadd.f32 0.0, %v3680
      %v3682 = vpop.f32.mrb[0].mxu0
      %v3683 = vadd.f32 0.0, %v3682
      %3684 = vmatprep.mubr.f32.mxu0 0.0
      %3685 = vmatmul.mubr.f32.gmra.mrb[0].mxu0 %v3569
      %v3686 = vpop.f32.mrb[0].mxu0
      %v3687 = vadd.f32 0.0, %v3686
      %v3688 = vpop.f32.mrb[0].mxu0
      %v3689 = vadd.f32 0.0, %v3688
      %3690 = vmatprep.mubr.f32.mxu0 0.0
      %3691 = vmatmul.mubr.f32.gmra.mrb[0].mxu0 %v3570
      %v3692 = vpop.f32.mrb[0].mxu0
      %v3693 = vadd.f32 0.0, %v3692
      %v3694 = vpop.f32.mrb[0].mxu0
      %v3695 = vadd.f32 0.0, %v3694
      %3696 = vmatprep.mubr.f32.mxu0 0.0
      %3697 = vmatmul.mubr.f32.gmra.mrb[0].mxu0 %v3571
      %v3698 = vpop.f32.mrb[0].mxu0
      %v3699 = vadd.f32 0.0, %v3698
      %v3700 = vpop.f32.mrb[0].mxu0
      %v3701 = vadd.f32 0.0, %v3700
      %3702 = vmatprep.mubr.f32.mxu0 0.0
      %3703 = vmatmul.mubr.f32.gmra.mrb[0].mxu0 %v3572
      %v3704 = vpop.f32.mrb[0].mxu0
      %v3705 = vadd.f32 0.0, %v3704
      %v3706 = vpop.f32.mrb[0].mxu0
      %v3707 = vadd.f32 0.0, %v3706
      %3708 = vmatprep.mubr.f32.mxu0 0.0
      %3709 = vmatmul.mubr.f32.gmra.mrb[0].mxu0 %v3573
      %v3710 = vpop.f32.mrb[0].mxu0
      %v3711 = vadd.f32 0.0, %v3710
      %v3712 = vpop.f32.mrb[0].mxu0
      %v3713 = vadd.f32 0.0, %v3712
      %3714 = vmatprep.mubr.f32.mxu0 0.0
      %3715 = vmatmul.mubr.f32.gmra.mrb[0].mxu0 %v3574
      %v3716 = vpop.f32.mrb[0].mxu0
      %v3717 = vadd.f32 0.0, %v3716
      %v3718 = vpop.f32.mrb[0].mxu0
      %v3719 = vadd.f32 0.0, %v3718
      %3720 = vmatprep.mubr.f32.mxu0 0.0
      %3721 = vmatmul.mubr.f32.gmra.mrb[0].mxu0 %v3575
      %v3722 = vpop.f32.mrb[0].mxu0
      %v3723 = vadd.f32 0.0, %v3722
      %v3724 = vpop.f32.mrb[0].mxu0
      %v3725 = vadd.f32 0.0, %v3724
      %3726 = vmatprep.mubr.f32.mxu0 0.0
      %3727 = vmatmul.mubr.f32.gmra.mrb[0].mxu0 %v3576
      %v3728 = vpop.f32.mrb[0].mxu0
      %v3729 = vadd.f32 0.0, %v3728
      %v3730 = vpop.f32.mrb[0].mxu0
      %v3731 = vadd.f32 0.0, %v3730
      %3732 = vmatprep.mubr.f32.mxu0 0.0
      %3733 = vmatmul.mubr.f32.gmra.mrb[0].mxu0 %v3577
      %v3734 = vpop.f32.mrb[0].mxu0
      %v3735 = vadd.f32 0.0, %v3734
      %v3736 = vpop.f32.mrb[0].mxu0
      %v3737 = vadd.f32 0.0, %v3736
      %3738 = vdwg.mxu0
      %v3739 = vadd.f32 %v3529, %v3645
      %v3740 = vadd.f32 %v3530, %v3647
      %v3741 = vadd.f32 %v3531, %v3651
      %v3742 = vadd.f32 %v3532, %v3653
      %v3743 = vadd.f32 %v3533, %v3657
      %v3744 = vadd.f32 %v3534, %v3659
      %v3745 = vadd.f32 %v3535, %v3663
      %v3746 = vadd.f32 %v3536, %v3665
      %v3747 = vadd.f32 %v3537, %v3669
      %v3748 = vadd.f32 %v3538, %v3671
      %v3749 = vadd.f32 %v3539, %v3675
      %v3750 = vadd.f32 %v3540, %v3677
      %v3751 = vadd.f32 %v3541, %v3681
      %v3752 = vadd.f32 %v3542, %v3683
      %v3753 = vadd.f32 %v3543, %v3687
      %v3754 = vadd.f32 %v3544, %v3689
      %v3755 = vadd.f32 %v3545, %v3693
      %v3756 = vadd.f32 %v3546, %v3695
      %v3757 = vadd.f32 %v3547, %v3699
      %v3758 = vadd.f32 %v3548, %v3701
      %v3759 = vadd.f32 %v3549, %v3705
      %v3760 = vadd.f32 %v3550, %v3707
      %v3761 = vadd.f32 %v3551, %v3711
      %v3762 = vadd.f32 %v3552, %v3713
      %v3763 = vadd.f32 %v3553, %v3717
      %v3764 = vadd.f32 %v3554, %v3719
      %v3765 = vadd.f32 %v3555, %v3723
      %v3766 = vadd.f32 %v3556, %v3725
      %v3767 = vadd.f32 %v3557, %v3729
      %v3768 = vadd.f32 %v3558, %v3731
      %v3769 = vadd.f32 %v3559, %v3735
      %v3770 = vadd.f32 %v3560, %v3737
      %3771 = vst [vmem:[#allocation2] sm:$0xff] %v3739
      %3772 = vst [vmem:[#allocation2 + $0x8] sm:$0xff] %v3740
      %3773 = vst [vmem:[#allocation2 + $0x10] sm:$0xff] %v3741
      %3774 = vst [vmem:[#allocation2 + $0x18] sm:$0xff] %v3742
      %3775 = vst [vmem:[#allocation2 + $0x20] sm:$0xff] %v3743
      %3776 = vst [vmem:[#allocation2 + $0x28] sm:$0xff] %v3744
      %3777 = vst [vmem:[#allocation2 + $0x30] sm:$0xff] %v3745
      %3778 = vst [vmem:[#allocation2 + $0x38] sm:$0xff] %v3746
      %3779 = vst [vmem:[#allocation2 + $0x40] sm:$0xff] %v3747
      %3780 = vst [vmem:[#allocation2 + $0x48] sm:$0xff] %v3748
      %3781 = vst [vmem:[#allocation2 + $0x50] sm:$0xff] %v3749
      %3782 = vst [vmem:[#allocation2 + $0x58] sm:$0xff] %v3750
      %3783 = vst [vmem:[#allocation2 + $0x60] sm:$0xff] %v3751
      %3784 = vst [vmem:[#allocation2 + $0x68] sm:$0xff] %v3752
      %3785 = vst [vmem:[#allocation2 + $0x70] sm:$0xff] %v3753
      %3786 = vst [vmem:[#allocation2 + $0x78] sm:$0xff] %v3754
      %3787 = vst [vmem:[#allocation2 + $0x80] sm:$0xff] %v3755
      %3788 = vst [vmem:[#allocation2 + $0x88] sm:$0xff] %v3756
      %3789 = vst [vmem:[#allocation2 + $0x90] sm:$0xff] %v3757
      %3790 = vst [vmem:[#allocation2 + $0x98] sm:$0xff] %v3758
      %3791 = vst [vmem:[#allocation2 + $0xa0] sm:$0xff] %v3759
      %3792 = vst [vmem:[#allocation2 + $0xa8] sm:$0xff] %v3760
      %3793 = vst [vmem:[#allocation2 + $0xb0] sm:$0xff] %v3761
      %3794 = vst [vmem:[#allocation2 + $0xb8] sm:$0xff] %v3762
      %3795 = vst [vmem:[#allocation2 + $0xc0] sm:$0xff] %v3763
      %3796 = vst [vmem:[#allocation2 + $0xc8] sm:$0xff] %v3764
      %3797 = vst [vmem:[#allocation2 + $0xd0] sm:$0xff] %v3765
      %3798 = vst [vmem:[#allocation2 + $0xd8] sm:$0xff] %v3766
      %3799 = vst [vmem:[#allocation2 + $0xe0] sm:$0xff] %v3767
      %3800 = vst [vmem:[#allocation2 + $0xe8] sm:$0xff] %v3768
      %3801 = vst [vmem:[#allocation2 + $0xf0] sm:$0xff] %v3769
      %3802 = vst [vmem:[#allocation2 + $0xf8] sm:$0xff] %v3770
      %v3803 = vld [vmem:[#allocation2] sm:$0xff]
      %v3804 = vld [vmem:[#allocation2 + $0x8] sm:$0xff]
      %v3805 = vld [vmem:[#allocation2 + $0x10] sm:$0xff]
      %v3806 = vld [vmem:[#allocation2 + $0x18] sm:$0xff]
      %v3807 = vld [vmem:[#allocation2 + $0x20] sm:$0xff]
      %v3808 = vld [vmem:[#allocation2 + $0x28] sm:$0xff]
      %v3809 = vld [vmem:[#allocation2 + $0x30] sm:$0xff]
      %v3810 = vld [vmem:[#allocation2 + $0x38] sm:$0xff]
      %v3811 = vld [vmem:[#allocation2 + $0x40] sm:$0xff]
      %v3812 = vld [vmem:[#allocation2 + $0x48] sm:$0xff]
      %v3813 = vld [vmem:[#allocation2 + $0x50] sm:$0xff]
      %v3814 = vld [vmem:[#allocation2 + $0x58] sm:$0xff]
      %v3815 = vld [vmem:[#allocation2 + $0x60] sm:$0xff]
      %v3816 = vld [vmem:[#allocation2 + $0x68] sm:$0xff]
      %v3817 = vld [vmem:[#allocation2 + $0x70] sm:$0xff]
      %v3818 = vld [vmem:[#allocation2 + $0x78] sm:$0xff]
      %v3819 = vld [vmem:[#allocation2 + $0x80] sm:$0xff]
      %v3820 = vld [vmem:[#allocation2 + $0x88] sm:$0xff]
      %v3821 = vld [vmem:[#allocation2 + $0x90] sm:$0xff]
      %v3822 = vld [vmem:[#allocation2 + $0x98] sm:$0xff]
      %v3823 = vld [vmem:[#allocation2 + $0xa0] sm:$0xff]
      %v3824 = vld [vmem:[#allocation2 + $0xa8] sm:$0xff]
      %v3825 = vld [vmem:[#allocation2 + $0xb0] sm:$0xff]
      %v3826 = vld [vmem:[#allocation2 + $0xb8] sm:$0xff]
      %v3827 = vld [vmem:[#allocation2 + $0xc0] sm:$0xff]
      %v3828 = vld [vmem:[#allocation2 + $0xc8] sm:$0xff]
      %v3829 = vld [vmem:[#allocation2 + $0xd0] sm:$0xff]
      %v3830 = vld [vmem:[#allocation2 + $0xd8] sm:$0xff]
      %v3831 = vld [vmem:[#allocation2 + $0xe0] sm:$0xff]
      %v3832 = vld [vmem:[#allocation2 + $0xe8] sm:$0xff]
      %v3833 = vld [vmem:[#allocation2 + $0xf0] sm:$0xff]
      %v3834 = vld [vmem:[#allocation2 + $0xf8] sm:$0xff]
      %v3835 = vld [vmem:[%s2] sm:$0xff]
      %v3836 = vld [vmem:[%s2 + $0x8] sm:$0xff]
      %v3837 = vld [vmem:[%s2 + $0x10] sm:$0xff]
      %v3838 = vld [vmem:[%s2 + $0x18] sm:$0xff]
      %v3839 = vld [vmem:[%s2 + $0x20] sm:$0xff]
      %v3840 = vld [vmem:[%s2 + $0x28] sm:$0xff]
      %v3841 = vld [vmem:[%s2 + $0x30] sm:$0xff]
      %v3842 = vld [vmem:[%s2 + $0x38] sm:$0xff]
      %v3843 = vld [vmem:[%s2 + $0x40] sm:$0xff]
      %v3844 = vld [vmem:[%s2 + $0x48] sm:$0xff]
      %v3845 = vld [vmem:[%s2 + $0x50] sm:$0xff]
      %v3846 = vld [vmem:[%s2 + $0x58] sm:$0xff]
      %v3847 = vld [vmem:[%s2 + $0x60] sm:$0xff]
      %v3848 = vld [vmem:[%s2 + $0x68] sm:$0xff]
      %v3849 = vld [vmem:[%s2 + $0x70] sm:$0xff]
      %v3850 = vld [vmem:[%s2 + $0x78] sm:$0xff]
      %3852 = vset.pattern.permute.xlu0 0
      %3853 = vperm.xlu0 %3852, %v3835
      %v3854 = vpop.permute.xlu0 %3853
      %3857 = vset.pattern.permute.xlu0 0
      %3858 = vperm.xlu0 %3857, %v3836
      %v3859 = vpop.permute.xlu0 %3858
      %3862 = vset.pattern.permute.xlu0 0
      %3863 = vperm.xlu0 %3862, %v3837
      %v3864 = vpop.permute.xlu0 %3863
      %3867 = vset.pattern.permute.xlu0 0
      %3868 = vperm.xlu0 %3867, %v3838
      %v3869 = vpop.permute.xlu0 %3868
      %3872 = vset.pattern.permute.xlu0 0
      %3873 = vperm.xlu0 %3872, %v3839
      %v3874 = vpop.permute.xlu0 %3873
      %3877 = vset.pattern.permute.xlu0 0
      %3878 = vperm.xlu0 %3877, %v3840
      %v3879 = vpop.permute.xlu0 %3878
      %3882 = vset.pattern.permute.xlu0 0
      %3883 = vperm.xlu0 %3882, %v3841
      %v3884 = vpop.permute.xlu0 %3883
      %3887 = vset.pattern.permute.xlu0 0
      %3888 = vperm.xlu0 %3887, %v3842
      %v3889 = vpop.permute.xlu0 %3888
      %3892 = vset.pattern.permute.xlu0 0
      %3893 = vperm.xlu0 %3892, %v3843
      %v3894 = vpop.permute.xlu0 %3893
      %3897 = vset.pattern.permute.xlu0 0
      %3898 = vperm.xlu0 %3897, %v3844
      %v3899 = vpop.permute.xlu0 %3898
      %3902 = vset.pattern.permute.xlu0 0
      %3903 = vperm.xlu0 %3902, %v3845
      %v3904 = vpop.permute.xlu0 %3903
      %3907 = vset.pattern.permute.xlu0 0
      %3908 = vperm.xlu0 %3907, %v3846
      %v3909 = vpop.permute.xlu0 %3908
      %3912 = vset.pattern.permute.xlu0 0
      %3913 = vperm.xlu0 %3912, %v3847
      %v3914 = vpop.permute.xlu0 %3913
      %3917 = vset.pattern.permute.xlu0 0
      %3918 = vperm.xlu0 %3917, %v3848
      %v3919 = vpop.permute.xlu0 %3918
      %3922 = vset.pattern.permute.xlu0 0
      %3923 = vperm.xlu0 %3922, %v3849
      %v3924 = vpop.permute.xlu0 %3923
      %3927 = vset.pattern.permute.xlu0 0
      %3928 = vperm.xlu0 %3927, %v3850
      %v3929 = vpop.permute.xlu0 %3928
      %v3931 = vmul.f32 %v3803, %v3854
      %v3932 = vmul.f32 %v3804, %v3854
      %v3933 = vmul.f32 %v3805, %v3859
      %v3934 = vmul.f32 %v3806, %v3859
      %v3935 = vmul.f32 %v3807, %v3864
      %v3936 = vmul.f32 %v3808, %v3864
      %v3937 = vmul.f32 %v3809, %v3869
      %v3938 = vmul.f32 %v3810, %v3869
      %v3939 = vmul.f32 %v3811, %v3874
      %v3940 = vmul.f32 %v3812, %v3874
      %v3941 = vmul.f32 %v3813, %v3879
      %v3942 = vmul.f32 %v3814, %v3879
      %v3943 = vmul.f32 %v3815, %v3884
      %v3944 = vmul.f32 %v3816, %v3884
      %v3945 = vmul.f32 %v3817, %v3889
      %v3946 = vmul.f32 %v3818, %v3889
      %v3947 = vmul.f32 %v3819, %v3894
      %v3948 = vmul.f32 %v3820, %v3894
      %v3949 = vmul.f32 %v3821, %v3899
      %v3950 = vmul.f32 %v3822, %v3899
      %v3951 = vmul.f32 %v3823, %v3904
      %v3952 = vmul.f32 %v3824, %v3904
      %v3953 = vmul.f32 %v3825, %v3909
      %v3954 = vmul.f32 %v3826, %v3909
      %v3955 = vmul.f32 %v3827, %v3914
      %v3956 = vmul.f32 %v3828, %v3914
      %v3957 = vmul.f32 %v3829, %v3919
      %v3958 = vmul.f32 %v3830, %v3919
      %v3959 = vmul.f32 %v3831, %v3924
      %v3960 = vmul.f32 %v3832, %v3924
      %v3961 = vmul.f32 %v3833, %v3929
      %v3962 = vmul.f32 %v3834, %v3929
      %v3963 = vld [vmem:[%s3] sm:$0xff]
      %v3964 = vld [vmem:[%s3 + $0x8] sm:$0xff]
      %v3965 = vld [vmem:[%s3 + $0x10] sm:$0xff]
      %v3966 = vld [vmem:[%s3 + $0x18] sm:$0xff]
      %v3967 = vld [vmem:[%s3 + $0x20] sm:$0xff]
      %v3968 = vld [vmem:[%s3 + $0x28] sm:$0xff]
      %v3969 = vld [vmem:[%s3 + $0x30] sm:$0xff]
      %v3970 = vld [vmem:[%s3 + $0x38] sm:$0xff]
      %v3971 = vld [vmem:[%s3 + $0x40] sm:$0xff]
      %v3972 = vld [vmem:[%s3 + $0x48] sm:$0xff]
      %v3973 = vld [vmem:[%s3 + $0x50] sm:$0xff]
      %v3974 = vld [vmem:[%s3 + $0x58] sm:$0xff]
      %v3975 = vld [vmem:[%s3 + $0x60] sm:$0xff]
      %v3976 = vld [vmem:[%s3 + $0x68] sm:$0xff]
      %v3977 = vld [vmem:[%s3 + $0x70] sm:$0xff]
      %v3978 = vld [vmem:[%s3 + $0x78] sm:$0xff]
      %3980 = vset.pattern.permute.xlu0 0
      %3981 = vperm.xlu0 %3980, %v3963
      %v3982 = vpop.permute.xlu0 %3981
      %3985 = vset.pattern.permute.xlu0 0
      %3986 = vperm.xlu0 %3985, %v3964
      %v3987 = vpop.permute.xlu0 %3986
      %3990 = vset.pattern.permute.xlu0 0
      %3991 = vperm.xlu0 %3990, %v3965
      %v3992 = vpop.permute.xlu0 %3991
      %3995 = vset.pattern.permute.xlu0 0
      %3996 = vperm.xlu0 %3995, %v3966
      %v3997 = vpop.permute.xlu0 %3996
      %4000 = vset.pattern.permute.xlu0 0
      %4001 = vperm.xlu0 %4000, %v3967
      %v4002 = vpop.permute.xlu0 %4001
      %4005 = vset.pattern.permute.xlu0 0
      %4006 = vperm.xlu0 %4005, %v3968
      %v4007 = vpop.permute.xlu0 %4006
      %4010 = vset.pattern.permute.xlu0 0
      %4011 = vperm.xlu0 %4010, %v3969
      %v4012 = vpop.permute.xlu0 %4011
      %4015 = vset.pattern.permute.xlu0 0
      %4016 = vperm.xlu0 %4015, %v3970
      %v4017 = vpop.permute.xlu0 %4016
      %4020 = vset.pattern.permute.xlu0 0
      %4021 = vperm.xlu0 %4020, %v3971
      %v4022 = vpop.permute.xlu0 %4021
      %4025 = vset.pattern.permute.xlu0 0
      %4026 = vperm.xlu0 %4025, %v3972
      %v4027 = vpop.permute.xlu0 %4026
      %4030 = vset.pattern.permute.xlu0 0
      %4031 = vperm.xlu0 %4030, %v3973
      %v4032 = vpop.permute.xlu0 %4031
      %4035 = vset.pattern.permute.xlu0 0
      %4036 = vperm.xlu0 %4035, %v3974
      %v4037 = vpop.permute.xlu0 %4036
      %4040 = vset.pattern.permute.xlu0 0
      %4041 = vperm.xlu0 %4040, %v3975
      %v4042 = vpop.permute.xlu0 %4041
      %4045 = vset.pattern.permute.xlu0 0
      %4046 = vperm.xlu0 %4045, %v3976
      %v4047 = vpop.permute.xlu0 %4046
      %4050 = vset.pattern.permute.xlu0 0
      %4051 = vperm.xlu0 %4050, %v3977
      %v4052 = vpop.permute.xlu0 %4051
      %4055 = vset.pattern.permute.xlu0 0
      %4056 = vperm.xlu0 %4055, %v3978
      %v4057 = vpop.permute.xlu0 %4056
      %v4059 = vadd.f32 %v3931, %v3982
      %v4060 = vadd.f32 %v3932, %v3982
      %v4061 = vadd.f32 %v3933, %v3987
      %v4062 = vadd.f32 %v3934, %v3987
      %v4063 = vadd.f32 %v3935, %v3992
      %v4064 = vadd.f32 %v3936, %v3992
      %v4065 = vadd.f32 %v3937, %v3997
      %v4066 = vadd.f32 %v3938, %v3997
      %v4067 = vadd.f32 %v3939, %v4002
      %v4068 = vadd.f32 %v3940, %v4002
      %v4069 = vadd.f32 %v3941, %v4007
      %v4070 = vadd.f32 %v3942, %v4007
      %v4071 = vadd.f32 %v3943, %v4012
      %v4072 = vadd.f32 %v3944, %v4012
      %v4073 = vadd.f32 %v3945, %v4017
      %v4074 = vadd.f32 %v3946, %v4017
      %v4075 = vadd.f32 %v3947, %v4022
      %v4076 = vadd.f32 %v3948, %v4022
      %v4077 = vadd.f32 %v3949, %v4027
      %v4078 = vadd.f32 %v3950, %v4027
      %v4079 = vadd.f32 %v3951, %v4032
      %v4080 = vadd.f32 %v3952, %v4032
      %v4081 = vadd.f32 %v3953, %v4037
      %v4082 = vadd.f32 %v3954, %v4037
      %v4083 = vadd.f32 %v3955, %v4042
      %v4084 = vadd.f32 %v3956, %v4042
      %v4085 = vadd.f32 %v3957, %v4047
      %v4086 = vadd.f32 %v3958, %v4047
      %v4087 = vadd.f32 %v3959, %v4052
      %v4088 = vadd.f32 %v3960, %v4052
      %v4089 = vadd.f32 %v3961, %v4057
      %v4090 = vadd.f32 %v3962, %v4057
      %v4091 = vmax.f32 %v4059, 0.0
      %v4092 = vmax.f32 %v4060, 0.0
      %v4093 = vmax.f32 %v4061, 0.0
      %v4094 = vmax.f32 %v4062, 0.0
      %v4095 = vmax.f32 %v4063, 0.0
      %v4096 = vmax.f32 %v4064, 0.0
      %v4097 = vmax.f32 %v4065, 0.0
      %v4098 = vmax.f32 %v4066, 0.0
      %v4099 = vmax.f32 %v4067, 0.0
      %v4100 = vmax.f32 %v4068, 0.0
      %v4101 = vmax.f32 %v4069, 0.0
      %v4102 = vmax.f32 %v4070, 0.0
      %v4103 = vmax.f32 %v4071, 0.0
      %v4104 = vmax.f32 %v4072, 0.0
      %v4105 = vmax.f32 %v4073, 0.0
      %v4106 = vmax.f32 %v4074, 0.0
      %v4107 = vmax.f32 %v4075, 0.0
      %v4108 = vmax.f32 %v4076, 0.0
      %v4109 = vmax.f32 %v4077, 0.0
      %v4110 = vmax.f32 %v4078, 0.0
      %v4111 = vmax.f32 %v4079, 0.0
      %v4112 = vmax.f32 %v4080, 0.0
      %v4113 = vmax.f32 %v4081, 0.0
      %v4114 = vmax.f32 %v4082, 0.0
      %v4115 = vmax.f32 %v4083, 0.0
      %v4116 = vmax.f32 %v4084, 0.0
      %v4117 = vmax.f32 %v4085, 0.0
      %v4118 = vmax.f32 %v4086, 0.0
      %v4119 = vmax.f32 %v4087, 0.0
      %v4120 = vmax.f32 %v4088, 0.0
      %v4121 = vmax.f32 %v4089, 0.0
      %v4122 = vmax.f32 %v4090, 0.0
      %s4123 = scalar_lea.vmem %s4, 512
      %v4124 = vld [vmem:[%s4123] sm:$0xff]
      %v4125 = vld [vmem:[%s4123 + $0x8] sm:$0xff]
      %v4126 = vld [vmem:[%s4123 + $0x10] sm:$0xff]
      %v4127 = vld [vmem:[%s4123 + $0x18] sm:$0xff]
      %v4128 = vld [vmem:[%s4123 + $0x20] sm:$0xff]
      %v4129 = vld [vmem:[%s4123 + $0x28] sm:$0xff]
      %v4130 = vld [vmem:[%s4123 + $0x30] sm:$0xff]
      %v4131 = vld [vmem:[%s4123 + $0x38] sm:$0xff]
      %v4132 = vld [vmem:[%s4123 + $0x40] sm:$0xff]
      %v4133 = vld [vmem:[%s4123 + $0x48] sm:$0xff]
      %v4134 = vld [vmem:[%s4123 + $0x50] sm:$0xff]
      %v4135 = vld [vmem:[%s4123 + $0x58] sm:$0xff]
      %v4136 = vld [vmem:[%s4123 + $0x60] sm:$0xff]
      %v4137 = vld [vmem:[%s4123 + $0x68] sm:$0xff]
      %v4138 = vld [vmem:[%s4123 + $0x70] sm:$0xff]
      %v4139 = vld [vmem:[%s4123 + $0x78] sm:$0xff]
      %4140 = vmatprep.subr.mxu0 %v4092
      %4141 = vmatpush1.msra.mxu0 %v4091
      %4142 = vmatprep.subr.mxu0 %v4094
      %4143 = vmatpush1.msra.mxu0 %v4093
      %4144 = vmatprep.subr.mxu0 %v4096
      %4145 = vmatpush1.msra.mxu0 %v4095
      %4146 = vmatprep.subr.mxu0 %v4098
      %4147 = vmatpush1.msra.mxu0 %v4097
      %4148 = vmatprep.subr.mxu0 %v4100
      %4149 = vmatpush1.msra.mxu0 %v4099
      %4150 = vmatprep.subr.mxu0 %v4102
      %4151 = vmatpush1.msra.mxu0 %v4101
      %4152 = vmatprep.subr.mxu0 %v4104
      %4153 = vmatpush1.msra.mxu0 %v4103
      %4154 = vmatprep.subr.mxu0 %v4106
      %4155 = vmatpush1.msra.mxu0 %v4105
      %4156 = vmatprep.subr.mxu0 %v4108
      %4157 = vmatpush1.msra.mxu0 %v4107
      %4158 = vmatprep.subr.mxu0 %v4110
      %4159 = vmatpush1.msra.mxu0 %v4109
      %4160 = vmatprep.subr.mxu0 %v4112
      %4161 = vmatpush1.msra.mxu0 %v4111
      %4162 = vmatprep.subr.mxu0 %v4114
      %4163 = vmatpush1.msra.mxu0 %v4113
      %4164 = vmatprep.subr.mxu0 %v4116
      %4165 = vmatpush1.msra.mxu0 %v4115
      %4166 = vmatprep.subr.mxu0 %v4118
      %4167 = vmatpush1.msra.mxu0 %v4117
      %4168 = vmatprep.subr.mxu0 %v4120
      %4169 = vmatpush1.msra.mxu0 %v4119
      %4170 = vmatprep.subr.mxu0 %v4122
      %4171 = vmatpush1.msra.mxu0 %v4121
      %4172 = vmatprep.subr.mxu0 0.0
      %4173 = vmatpush1.msra.mxu0 0.0
      %4174 = vmatprep.subr.mxu0 0.0
      %4175 = vmatpush1.msra.mxu0 0.0
      %4176 = vmatprep.subr.mxu0 0.0
      %4177 = vmatpush1.msra.mxu0 0.0
      %4178 = vmatprep.subr.mxu0 0.0
      %4179 = vmatpush1.msra.mxu0 0.0
      %4180 = vmatprep.subr.mxu0 0.0
      %4181 = vmatpush1.msra.mxu0 0.0
      %4182 = vmatprep.subr.mxu0 0.0
      %4183 = vmatpush1.msra.mxu0 0.0
      %4184 = vmatprep.subr.mxu0 0.0
      %4185 = vmatpush1.msra.mxu0 0.0
      %4186 = vmatprep.subr.mxu0 0.0
      %4187 = vmatpush1.msra.mxu0 0.0
      %4188 = vmatprep.subr.mxu0 0.0
      %4189 = vmatpush1.msra.mxu0 0.0
      %4190 = vmatprep.subr.mxu0 0.0
      %4191 = vmatpush1.msra.mxu0 0.0
      %4192 = vmatprep.subr.mxu0 0.0
      %4193 = vmatpush1.msra.mxu0 0.0
      %4194 = vmatprep.subr.mxu0 0.0
      %4195 = vmatpush1.msra.mxu0 0.0
      %4196 = vmatprep.subr.mxu0 0.0
      %4197 = vmatpush1.msra.mxu0 0.0
      %4198 = vmatprep.subr.mxu0 0.0
      %4199 = vmatpush1.msra.mxu0 0.0
      %4200 = vmatprep.subr.mxu0 0.0
      %4201 = vmatpush1.msra.mxu0 0.0
      %4202 = vmatprep.subr.mxu0 0.0
      %4203 = vmatpush1.msra.mxu0 0.0
      %4204 = vmatprep.mubr.f32.mxu0 0.0
      %4205 = vmatmul.mubr.f32.gmra.mrb[0].mxu0 %v4124
      %v4206 = vpop.f32.mrb[0].mxu0
      %v4207 = vadd.f32 0.0, %v4206
      %v4208 = vpop.f32.mrb[0].mxu0
      %v4209 = vadd.f32 0.0, %v4208
      %4210 = vmatprep.mubr.f32.mxu0 0.0
      %4211 = vmatmul.mubr.f32.gmra.mrb[0].mxu0 %v4125
      %v4212 = vpop.f32.mrb[0].mxu0
      %v4213 = vadd.f32 0.0, %v4212
      %v4214 = vpop.f32.mrb[0].mxu0
      %v4215 = vadd.f32 0.0, %v4214
      %4216 = vmatprep.mubr.f32.mxu0 0.0
      %4217 = vmatmul.mubr.f32.gmra.mrb[0].mxu0 %v4126
      %v4218 = vpop.f32.mrb[0].mxu0
      %v4219 = vadd.f32 0.0, %v4218
      %v4220 = vpop.f32.mrb[0].mxu0
      %v4221 = vadd.f32 0.0, %v4220
      %4222 = vmatprep.mubr.f32.mxu0 0.0
      %4223 = vmatmul.mubr.f32.gmra.mrb[0].mxu0 %v4127
      %v4224 = vpop.f32.mrb[0].mxu0
      %v4225 = vadd.f32 0.0, %v4224
      %v4226 = vpop.f32.mrb[0].mxu0
      %v4227 = vadd.f32 0.0, %v4226
      %4228 = vmatprep.mubr.f32.mxu0 0.0
      %4229 = vmatmul.mubr.f32.gmra.mrb[0].mxu0 %v4128
      %v4230 = vpop.f32.mrb[0].mxu0
      %v4231 = vadd.f32 0.0, %v4230
      %v4232 = vpop.f32.mrb[0].mxu0
      %v4233 = vadd.f32 0.0, %v4232
      %4234 = vmatprep.mubr.f32.mxu0 0.0
      %4235 = vmatmul.mubr.f32.gmra.mrb[0].mxu0 %v4129
      %v4236 = vpop.f32.mrb[0].mxu0
      %v4237 = vadd.f32 0.0, %v4236
      %v4238 = vpop.f32.mrb[0].mxu0
      %v4239 = vadd.f32 0.0, %v4238
      %4240 = vmatprep.mubr.f32.mxu0 0.0
      %4241 = vmatmul.mubr.f32.gmra.mrb[0].mxu0 %v4130
      %v4242 = vpop.f32.mrb[0].mxu0
      %v4243 = vadd.f32 0.0, %v4242
      %v4244 = vpop.f32.mrb[0].mxu0
      %v4245 = vadd.f32 0.0, %v4244
      %4246 = vmatprep.mubr.f32.mxu0 0.0
      %4247 = vmatmul.mubr.f32.gmra.mrb[0].mxu0 %v4131
      %v4248 = vpop.f32.mrb[0].mxu0
      %v4249 = vadd.f32 0.0, %v4248
      %v4250 = vpop.f32.mrb[0].mxu0
      %v4251 = vadd.f32 0.0, %v4250
      %4252 = vmatprep.mubr.f32.mxu0 0.0
      %4253 = vmatmul.mubr.f32.gmra.mrb[0].mxu0 %v4132
      %v4254 = vpop.f32.mrb[0].mxu0
      %v4255 = vadd.f32 0.0, %v4254
      %v4256 = vpop.f32.mrb[0].mxu0
      %v4257 = vadd.f32 0.0, %v4256
      %4258 = vmatprep.mubr.f32.mxu0 0.0
      %4259 = vmatmul.mubr.f32.gmra.mrb[0].mxu0 %v4133
      %v4260 = vpop.f32.mrb[0].mxu0
      %v4261 = vadd.f32 0.0, %v4260
      %v4262 = vpop.f32.mrb[0].mxu0
      %v4263 = vadd.f32 0.0, %v4262
      %4264 = vmatprep.mubr.f32.mxu0 0.0
      %4265 = vmatmul.mubr.f32.gmra.mrb[0].mxu0 %v4134
      %v4266 = vpop.f32.mrb[0].mxu0
      %v4267 = vadd.f32 0.0, %v4266
      %v4268 = vpop.f32.mrb[0].mxu0
      %v4269 = vadd.f32 0.0, %v4268
      %4270 = vmatprep.mubr.f32.mxu0 0.0
      %4271 = vmatmul.mubr.f32.gmra.mrb[0].mxu0 %v4135
      %v4272 = vpop.f32.mrb[0].mxu0
      %v4273 = vadd.f32 0.0, %v4272
      %v4274 = vpop.f32.mrb[0].mxu0
      %v4275 = vadd.f32 0.0, %v4274
      %4276 = vmatprep.mubr.f32.mxu0 0.0
      %4277 = vmatmul.mubr.f32.gmra.mrb[0].mxu0 %v4136
      %v4278 = vpop.f32.mrb[0].mxu0
      %v4279 = vadd.f32 0.0, %v4278
      %v4280 = vpop.f32.mrb[0].mxu0
      %v4281 = vadd.f32 0.0, %v4280
      %4282 = vmatprep.mubr.f32.mxu0 0.0
      %4283 = vmatmul.mubr.f32.gmra.mrb[0].mxu0 %v4137
      %v4284 = vpop.f32.mrb[0].mxu0
      %v4285 = vadd.f32 0.0, %v4284
      %v4286 = vpop.f32.mrb[0].mxu0
      %v4287 = vadd.f32 0.0, %v4286
      %4288 = vmatprep.mubr.f32.mxu0 0.0
      %4289 = vmatmul.mubr.f32.gmra.mrb[0].mxu0 %v4138
      %v4290 = vpop.f32.mrb[0].mxu0
      %v4291 = vadd.f32 0.0, %v4290
      %v4292 = vpop.f32.mrb[0].mxu0
      %v4293 = vadd.f32 0.0, %v4292
      %4294 = vmatprep.mubr.f32.mxu0 0.0
      %4295 = vmatmul.mubr.f32.gmra.mrb[0].mxu0 %v4139
      %v4296 = vpop.f32.mrb[0].mxu0
      %v4297 = vadd.f32 0.0, %v4296
      %v4298 = vpop.f32.mrb[0].mxu0
      %v4299 = vadd.f32 0.0, %v4298
      %4300 = vdwg.mxu0
      %4301 = vst [vmem:[#allocation2] sm:$0xff] %v4207
      %4302 = vst [vmem:[#allocation2 + $0x8] sm:$0xff] %v4209
      %4303 = vst [vmem:[#allocation2 + $0x10] sm:$0xff] %v4213
      %4304 = vst [vmem:[#allocation2 + $0x18] sm:$0xff] %v4215
      %4305 = vst [vmem:[#allocation2 + $0x20] sm:$0xff] %v4219
      %4306 = vst [vmem:[#allocation2 + $0x28] sm:$0xff] %v4221
      %4307 = vst [vmem:[#allocation2 + $0x30] sm:$0xff] %v4225
      %4308 = vst [vmem:[#allocation2 + $0x38] sm:$0xff] %v4227
      %4309 = vst [vmem:[#allocation2 + $0x40] sm:$0xff] %v4231
      %4310 = vst [vmem:[#allocation2 + $0x48] sm:$0xff] %v4233
      %4311 = vst [vmem:[#allocation2 + $0x50] sm:$0xff] %v4237
      %4312 = vst [vmem:[#allocation2 + $0x58] sm:$0xff] %v4239
      %4313 = vst [vmem:[#allocation2 + $0x60] sm:$0xff] %v4243
      %4314 = vst [vmem:[#allocation2 + $0x68] sm:$0xff] %v4245
      %4315 = vst [vmem:[#allocation2 + $0x70] sm:$0xff] %v4249
      %4316 = vst [vmem:[#allocation2 + $0x78] sm:$0xff] %v4251
      %4317 = vst [vmem:[#allocation2 + $0x80] sm:$0xff] %v4255
      %4318 = vst [vmem:[#allocation2 + $0x88] sm:$0xff] %v4257
      %4319 = vst [vmem:[#allocation2 + $0x90] sm:$0xff] %v4261
      %4320 = vst [vmem:[#allocation2 + $0x98] sm:$0xff] %v4263
      %4321 = vst [vmem:[#allocation2 + $0xa0] sm:$0xff] %v4267
      %4322 = vst [vmem:[#allocation2 + $0xa8] sm:$0xff] %v4269
      %4323 = vst [vmem:[#allocation2 + $0xb0] sm:$0xff] %v4273
      %4324 = vst [vmem:[#allocation2 + $0xb8] sm:$0xff] %v4275
      %4325 = vst [vmem:[#allocation2 + $0xc0] sm:$0xff] %v4279
      %4326 = vst [vmem:[#allocation2 + $0xc8] sm:$0xff] %v4281
      %4327 = vst [vmem:[#allocation2 + $0xd0] sm:$0xff] %v4285
      %4328 = vst [vmem:[#allocation2 + $0xd8] sm:$0xff] %v4287
      %4329 = vst [vmem:[#allocation2 + $0xe0] sm:$0xff] %v4291
      %4330 = vst [vmem:[#allocation2 + $0xe8] sm:$0xff] %v4293
      %4331 = vst [vmem:[#allocation2 + $0xf0] sm:$0xff] %v4297
      %4332 = vst [vmem:[#allocation2 + $0xf8] sm:$0xff] %v4299
      %4333 = vrot.lane.b32.xlu0 %v4091, 17
      %v4334 = vpop.permute.xlu0 %4333
      %4335 = vrot.lane.b32.xlu0 %v4093, 17
      %v4336 = vpop.permute.xlu0 %4335
      %4337 = vrot.lane.b32.xlu0 %v4095, 17
      %v4338 = vpop.permute.xlu0 %4337
      %4339 = vrot.lane.b32.xlu0 %v4097, 17
      %v4340 = vpop.permute.xlu0 %4339
      %4341 = vrot.lane.b32.xlu0 %v4099, 17
      %v4342 = vpop.permute.xlu0 %4341
      %4343 = vrot.lane.b32.xlu0 %v4101, 17
      %v4344 = vpop.permute.xlu0 %4343
      %4345 = vrot.lane.b32.xlu0 %v4103, 17
      %v4346 = vpop.permute.xlu0 %4345
      %4347 = vrot.lane.b32.xlu0 %v4105, 17
      %v4348 = vpop.permute.xlu0 %4347
      %4349 = vrot.lane.b32.xlu0 %v4107, 17
      %v4350 = vpop.permute.xlu0 %4349
      %4351 = vrot.lane.b32.xlu0 %v4109, 17
      %v4352 = vpop.permute.xlu0 %4351
      %4353 = vrot.lane.b32.xlu0 %v4111, 17
      %v4354 = vpop.permute.xlu0 %4353
      %4355 = vrot.lane.b32.xlu0 %v4113, 17
      %v4356 = vpop.permute.xlu0 %4355
      %4357 = vrot.lane.b32.xlu0 %v4115, 17
      %v4358 = vpop.permute.xlu0 %4357
      %4359 = vrot.lane.b32.xlu0 %v4117, 17
      %v4360 = vpop.permute.xlu0 %4359
      %4361 = vrot.lane.b32.xlu0 %v4119, 17
      %v4362 = vpop.permute.xlu0 %4361
      %4363 = vrot.lane.b32.xlu0 %v4121, 17
      %v4364 = vpop.permute.xlu0 %4363
      %4365 = vrot.lane.b32.xlu0 %v4092, 17
      %v4366 = vpop.permute.xlu0 %4365
      %4367 = vrot.lane.b32.xlu0 %v4094, 17
      %v4368 = vpop.permute.xlu0 %4367
      %4369 = vrot.lane.b32.xlu0 %v4096, 17
      %v4370 = vpop.permute.xlu0 %4369
      %4371 = vrot.lane.b32.xlu0 %v4098, 17
      %v4372 = vpop.permute.xlu0 %4371
      %4373 = vrot.lane.b32.xlu0 %v4100, 17
      %v4374 = vpop.permute.xlu0 %4373
      %4375 = vrot.lane.b32.xlu0 %v4102, 17
      %v4376 = vpop.permute.xlu0 %4375
      %4377 = vrot.lane.b32.xlu0 %v4104, 17
      %v4378 = vpop.permute.xlu0 %4377
      %4379 = vrot.lane.b32.xlu0 %v4106, 17
      %v4380 = vpop.permute.xlu0 %4379
      %4381 = vrot.lane.b32.xlu0 %v4108, 17
      %v4382 = vpop.permute.xlu0 %4381
      %4383 = vrot.lane.b32.xlu0 %v4110, 17
      %v4384 = vpop.permute.xlu0 %4383
      %4385 = vrot.lane.b32.xlu0 %v4112, 17
      %v4386 = vpop.permute.xlu0 %4385
      %4387 = vrot.lane.b32.xlu0 %v4114, 17
      %v4388 = vpop.permute.xlu0 %4387
      %4389 = vrot.lane.b32.xlu0 %v4116, 17
      %v4390 = vpop.permute.xlu0 %4389
      %4391 = vrot.lane.b32.xlu0 %v4118, 17
      %v4392 = vpop.permute.xlu0 %4391
      %4393 = vrot.lane.b32.xlu0 %v4120, 17
      %v4394 = vpop.permute.xlu0 %4393
      %4395 = vrot.lane.b32.xlu0 %v4122, 17
      %v4396 = vpop.permute.xlu0 %4395
      %v4397 = vsel %vm644, %v4334, %v4366
      %v4398 = vsel %vm644, %v4336, %v4368
      %v4399 = vsel %vm644, %v4338, %v4370
      %v4400 = vsel %vm644, %v4340, %v4372
      %v4401 = vsel %vm644, %v4342, %v4374
      %v4402 = vsel %vm644, %v4344, %v4376
      %v4403 = vsel %vm644, %v4346, %v4378
      %v4404 = vsel %vm644, %v4348, %v4380
      %v4405 = vsel %vm644, %v4350, %v4382
      %v4406 = vsel %vm644, %v4352, %v4384
      %v4407 = vsel %vm644, %v4354, %v4386
      %v4408 = vsel %vm644, %v4356, %v4388
      %v4409 = vsel %vm644, %v4358, %v4390
      %v4410 = vsel %vm644, %v4360, %v4392
      %v4411 = vsel %vm644, %v4362, %v4394
      %v4412 = vsel %vm644, %v4364, %v4396
      %v4413 = vsel %vm644, %v4366, %v4334
      %v4414 = vsel %vm644, %v4368, %v4336
      %v4415 = vsel %vm644, %v4370, %v4338
      %v4416 = vsel %vm644, %v4372, %v4340
      %v4417 = vsel %vm644, %v4374, %v4342
      %v4418 = vsel %vm644, %v4376, %v4344
      %v4419 = vsel %vm644, %v4378, %v4346
      %v4420 = vsel %vm644, %v4380, %v4348
      %v4421 = vsel %vm644, %v4382, %v4350
      %v4422 = vsel %vm644, %v4384, %v4352
      %v4423 = vsel %vm644, %v4386, %v4354
      %v4424 = vsel %vm644, %v4388, %v4356
      %v4425 = vsel %vm644, %v4390, %v4358
      %v4426 = vsel %vm644, %v4392, %v4360
      %v4427 = vsel %vm644, %v4394, %v4362
      %v4428 = vsel %vm644, %v4396, %v4364
      %v4429 = vmul.f32 %v4413, %v312
      %v4430 = vmul.f32 %v4397, %v313
      %v4431 = vmul.f32 %v4414, %v312
      %v4432 = vmul.f32 %v4398, %v313
      %v4433 = vmul.f32 %v4415, %v312
      %v4434 = vmul.f32 %v4399, %v313
      %v4435 = vmul.f32 %v4416, %v312
      %v4436 = vmul.f32 %v4400, %v313
      %v4437 = vmul.f32 %v4417, %v312
      %v4438 = vmul.f32 %v4401, %v313
      %v4439 = vmul.f32 %v4418, %v312
      %v4440 = vmul.f32 %v4402, %v313
      %v4441 = vmul.f32 %v4419, %v312
      %v4442 = vmul.f32 %v4403, %v313
      %v4443 = vmul.f32 %v4420, %v312
      %v4444 = vmul.f32 %v4404, %v313
      %v4445 = vmul.f32 %v4421, %v312
      %v4446 = vmul.f32 %v4405, %v313
      %v4447 = vmul.f32 %v4422, %v312
      %v4448 = vmul.f32 %v4406, %v313
      %v4449 = vmul.f32 %v4423, %v312
      %v4450 = vmul.f32 %v4407, %v313
      %v4451 = vmul.f32 %v4424, %v312
      %v4452 = vmul.f32 %v4408, %v313
      %v4453 = vmul.f32 %v4425, %v312
      %v4454 = vmul.f32 %v4409, %v313
      %v4455 = vmul.f32 %v4426, %v312
      %v4456 = vmul.f32 %v4410, %v313
      %v4457 = vmul.f32 %v4427, %v312
      %v4458 = vmul.f32 %v4411, %v313
      %v4459 = vmul.f32 %v4428, %v312
      %v4460 = vmul.f32 %v4412, %v313
      %v4461 = vld [vmem:[#allocation2] sm:$0xff]
      %v4462 = vld [vmem:[#allocation2 + $0x8] sm:$0xff]
      %v4463 = vld [vmem:[#allocation2 + $0x10] sm:$0xff]
      %v4464 = vld [vmem:[#allocation2 + $0x18] sm:$0xff]
      %v4465 = vld [vmem:[#allocation2 + $0x20] sm:$0xff]
      %v4466 = vld [vmem:[#allocation2 + $0x28] sm:$0xff]
      %v4467 = vld [vmem:[#allocation2 + $0x30] sm:$0xff]
      %v4468 = vld [vmem:[#allocation2 + $0x38] sm:$0xff]
      %v4469 = vld [vmem:[#allocation2 + $0x40] sm:$0xff]
      %v4470 = vld [vmem:[#allocation2 + $0x48] sm:$0xff]
      %v4471 = vld [vmem:[#allocation2 + $0x50] sm:$0xff]
      %v4472 = vld [vmem:[#allocation2 + $0x58] sm:$0xff]
      %v4473 = vld [vmem:[#allocation2 + $0x60] sm:$0xff]
      %v4474 = vld [vmem:[#allocation2 + $0x68] sm:$0xff]
      %v4475 = vld [vmem:[#allocation2 + $0x70] sm:$0xff]
      %v4476 = vld [vmem:[#allocation2 + $0x78] sm:$0xff]
      %v4477 = vld [vmem:[#allocation2 + $0x80] sm:$0xff]
      %v4478 = vld [vmem:[#allocation2 + $0x88] sm:$0xff]
      %v4479 = vld [vmem:[#allocation2 + $0x90] sm:$0xff]
      %v4480 = vld [vmem:[#allocation2 + $0x98] sm:$0xff]
      %v4481 = vld [vmem:[#allocation2 + $0xa0] sm:$0xff]
      %v4482 = vld [vmem:[#allocation2 + $0xa8] sm:$0xff]
      %v4483 = vld [vmem:[#allocation2 + $0xb0] sm:$0xff]
      %v4484 = vld [vmem:[#allocation2 + $0xb8] sm:$0xff]
      %v4485 = vld [vmem:[#allocation2 + $0xc0] sm:$0xff]
      %v4486 = vld [vmem:[#allocation2 + $0xc8] sm:$0xff]
      %v4487 = vld [vmem:[#allocation2 + $0xd0] sm:$0xff]
      %v4488 = vld [vmem:[#allocation2 + $0xd8] sm:$0xff]
      %v4489 = vld [vmem:[#allocation2 + $0xe0] sm:$0xff]
      %v4490 = vld [vmem:[#allocation2 + $0xe8] sm:$0xff]
      %v4491 = vld [vmem:[#allocation2 + $0xf0] sm:$0xff]
      %v4492 = vld [vmem:[#allocation2 + $0xf8] sm:$0xff]
      %v4493 = vld [vmem:[%s4] sm:$0xff]
      %v4494 = vld [vmem:[%s4 + $0x8] sm:$0xff]
      %v4495 = vld [vmem:[%s4 + $0x10] sm:$0xff]
      %v4496 = vld [vmem:[%s4 + $0x18] sm:$0xff]
      %v4497 = vld [vmem:[%s4 + $0x20] sm:$0xff]
      %v4498 = vld [vmem:[%s4 + $0x28] sm:$0xff]
      %v4499 = vld [vmem:[%s4 + $0x30] sm:$0xff]
      %v4500 = vld [vmem:[%s4 + $0x38] sm:$0xff]
      %v4501 = vld [vmem:[%s4 + $0x40] sm:$0xff]
      %v4502 = vld [vmem:[%s4 + $0x48] sm:$0xff]
      %v4503 = vld [vmem:[%s4 + $0x50] sm:$0xff]
      %v4504 = vld [vmem:[%s4 + $0x58] sm:$0xff]
      %v4505 = vld [vmem:[%s4 + $0x60] sm:$0xff]
      %v4506 = vld [vmem:[%s4 + $0x68] sm:$0xff]
      %v4507 = vld [vmem:[%s4 + $0x70] sm:$0xff]
      %v4508 = vld [vmem:[%s4 + $0x78] sm:$0xff]
      %4509 = vmatprep.subr.mxu0 %v4430
      %4510 = vmatpush1.msra.mxu0 %v4429
      %4511 = vmatprep.subr.mxu0 %v4432
      %4512 = vmatpush1.msra.mxu0 %v4431
      %4513 = vmatprep.subr.mxu0 %v4434
      %4514 = vmatpush1.msra.mxu0 %v4433
      %4515 = vmatprep.subr.mxu0 %v4436
      %4516 = vmatpush1.msra.mxu0 %v4435
      %4517 = vmatprep.subr.mxu0 %v4438
      %4518 = vmatpush1.msra.mxu0 %v4437
      %4519 = vmatprep.subr.mxu0 %v4440
      %4520 = vmatpush1.msra.mxu0 %v4439
      %4521 = vmatprep.subr.mxu0 %v4442
      %4522 = vmatpush1.msra.mxu0 %v4441
      %4523 = vmatprep.subr.mxu0 %v4444
      %4524 = vmatpush1.msra.mxu0 %v4443
      %4525 = vmatprep.subr.mxu0 %v4446
      %4526 = vmatpush1.msra.mxu0 %v4445
      %4527 = vmatprep.subr.mxu0 %v4448
      %4528 = vmatpush1.msra.mxu0 %v4447
      %4529 = vmatprep.subr.mxu0 %v4450
      %4530 = vmatpush1.msra.mxu0 %v4449
      %4531 = vmatprep.subr.mxu0 %v4452
      %4532 = vmatpush1.msra.mxu0 %v4451
      %4533 = vmatprep.subr.mxu0 %v4454
      %4534 = vmatpush1.msra.mxu0 %v4453
      %4535 = vmatprep.subr.mxu0 %v4456
      %4536 = vmatpush1.msra.mxu0 %v4455
      %4537 = vmatprep.subr.mxu0 %v4458
      %4538 = vmatpush1.msra.mxu0 %v4457
      %4539 = vmatprep.subr.mxu0 %v4460
      %4540 = vmatpush1.msra.mxu0 %v4459
      %4541 = vmatprep.subr.mxu0 0.0
      %4542 = vmatpush1.msra.mxu0 0.0
      %4543 = vmatprep.subr.mxu0 0.0
      %4544 = vmatpush1.msra.mxu0 0.0
      %4545 = vmatprep.subr.mxu0 0.0
      %4546 = vmatpush1.msra.mxu0 0.0
      %4547 = vmatprep.subr.mxu0 0.0
      %4548 = vmatpush1.msra.mxu0 0.0
      %4549 = vmatprep.subr.mxu0 0.0
      %4550 = vmatpush1.msra.mxu0 0.0
      %4551 = vmatprep.subr.mxu0 0.0
      %4552 = vmatpush1.msra.mxu0 0.0
      %4553 = vmatprep.subr.mxu0 0.0
      %4554 = vmatpush1.msra.mxu0 0.0
      %4555 = vmatprep.subr.mxu0 0.0
      %4556 = vmatpush1.msra.mxu0 0.0
      %4557 = vmatprep.subr.mxu0 0.0
      %4558 = vmatpush1.msra.mxu0 0.0
      %4559 = vmatprep.subr.mxu0 0.0
      %4560 = vmatpush1.msra.mxu0 0.0
      %4561 = vmatprep.subr.mxu0 0.0
      %4562 = vmatpush1.msra.mxu0 0.0
      %4563 = vmatprep.subr.mxu0 0.0
      %4564 = vmatpush1.msra.mxu0 0.0
      %4565 = vmatprep.subr.mxu0 0.0
      %4566 = vmatpush1.msra.mxu0 0.0
      %4567 = vmatprep.subr.mxu0 0.0
      %4568 = vmatpush1.msra.mxu0 0.0
      %4569 = vmatprep.subr.mxu0 0.0
      %4570 = vmatpush1.msra.mxu0 0.0
      %4571 = vmatprep.subr.mxu0 0.0
      %4572 = vmatpush1.msra.mxu0 0.0
      %4573 = vmatprep.mubr.f32.mxu0 0.0
      %4574 = vmatmul.mubr.f32.gmra.mrb[0].mxu0 %v4493
      %v4575 = vpop.f32.mrb[0].mxu0
      %v4576 = vadd.f32 0.0, %v4575
      %v4577 = vpop.f32.mrb[0].mxu0
      %v4578 = vadd.f32 0.0, %v4577
      %4579 = vmatprep.mubr.f32.mxu0 0.0
      %4580 = vmatmul.mubr.f32.gmra.mrb[0].mxu0 %v4494
      %v4581 = vpop.f32.mrb[0].mxu0
      %v4582 = vadd.f32 0.0, %v4581
      %v4583 = vpop.f32.mrb[0].mxu0
      %v4584 = vadd.f32 0.0, %v4583
      %4585 = vmatprep.mubr.f32.mxu0 0.0
      %4586 = vmatmul.mubr.f32.gmra.mrb[0].mxu0 %v4495
      %v4587 = vpop.f32.mrb[0].mxu0
      %v4588 = vadd.f32 0.0, %v4587
      %v4589 = vpop.f32.mrb[0].mxu0
      %v4590 = vadd.f32 0.0, %v4589
      %4591 = vmatprep.mubr.f32.mxu0 0.0
      %4592 = vmatmul.mubr.f32.gmra.mrb[0].mxu0 %v4496
      %v4593 = vpop.f32.mrb[0].mxu0
      %v4594 = vadd.f32 0.0, %v4593
      %v4595 = vpop.f32.mrb[0].mxu0
      %v4596 = vadd.f32 0.0, %v4595
      %4597 = vmatprep.mubr.f32.mxu0 0.0
      %4598 = vmatmul.mubr.f32.gmra.mrb[0].mxu0 %v4497
      %v4599 = vpop.f32.mrb[0].mxu0
      %v4600 = vadd.f32 0.0, %v4599
      %v4601 = vpop.f32.mrb[0].mxu0
      %v4602 = vadd.f32 0.0, %v4601
      %4603 = vmatprep.mubr.f32.mxu0 0.0
      %4604 = vmatmul.mubr.f32.gmra.mrb[0].mxu0 %v4498
      %v4605 = vpop.f32.mrb[0].mxu0
      %v4606 = vadd.f32 0.0, %v4605
      %v4607 = vpop.f32.mrb[0].mxu0
      %v4608 = vadd.f32 0.0, %v4607
      %4609 = vmatprep.mubr.f32.mxu0 0.0
      %4610 = vmatmul.mubr.f32.gmra.mrb[0].mxu0 %v4499
      %v4611 = vpop.f32.mrb[0].mxu0
      %v4612 = vadd.f32 0.0, %v4611
      %v4613 = vpop.f32.mrb[0].mxu0
      %v4614 = vadd.f32 0.0, %v4613
      %4615 = vmatprep.mubr.f32.mxu0 0.0
      %4616 = vmatmul.mubr.f32.gmra.mrb[0].mxu0 %v4500
      %v4617 = vpop.f32.mrb[0].mxu0
      %v4618 = vadd.f32 0.0, %v4617
      %v4619 = vpop.f32.mrb[0].mxu0
      %v4620 = vadd.f32 0.0, %v4619
      %4621 = vmatprep.mubr.f32.mxu0 0.0
      %4622 = vmatmul.mubr.f32.gmra.mrb[0].mxu0 %v4501
      %v4623 = vpop.f32.mrb[0].mxu0
      %v4624 = vadd.f32 0.0, %v4623
      %v4625 = vpop.f32.mrb[0].mxu0
      %v4626 = vadd.f32 0.0, %v4625
      %4627 = vmatprep.mubr.f32.mxu0 0.0
      %4628 = vmatmul.mubr.f32.gmra.mrb[0].mxu0 %v4502
      %v4629 = vpop.f32.mrb[0].mxu0
      %v4630 = vadd.f32 0.0, %v4629
      %v4631 = vpop.f32.mrb[0].mxu0
      %v4632 = vadd.f32 0.0, %v4631
      %4633 = vmatprep.mubr.f32.mxu0 0.0
      %4634 = vmatmul.mubr.f32.gmra.mrb[0].mxu0 %v4503
      %v4635 = vpop.f32.mrb[0].mxu0
      %v4636 = vadd.f32 0.0, %v4635
      %v4637 = vpop.f32.mrb[0].mxu0
      %v4638 = vadd.f32 0.0, %v4637
      %4639 = vmatprep.mubr.f32.mxu0 0.0
      %4640 = vmatmul.mubr.f32.gmra.mrb[0].mxu0 %v4504
      %v4641 = vpop.f32.mrb[0].mxu0
      %v4642 = vadd.f32 0.0, %v4641
      %v4643 = vpop.f32.mrb[0].mxu0
      %v4644 = vadd.f32 0.0, %v4643
      %4645 = vmatprep.mubr.f32.mxu0 0.0
      %4646 = vmatmul.mubr.f32.gmra.mrb[0].mxu0 %v4505
      %v4647 = vpop.f32.mrb[0].mxu0
      %v4648 = vadd.f32 0.0, %v4647
      %v4649 = vpop.f32.mrb[0].mxu0
      %v4650 = vadd.f32 0.0, %v4649
      %4651 = vmatprep.mubr.f32.mxu0 0.0
      %4652 = vmatmul.mubr.f32.gmra.mrb[0].mxu0 %v4506
      %v4653 = vpop.f32.mrb[0].mxu0
      %v4654 = vadd.f32 0.0, %v4653
      %v4655 = vpop.f32.mrb[0].mxu0
      %v4656 = vadd.f32 0.0, %v4655
      %4657 = vmatprep.mubr.f32.mxu0 0.0
      %4658 = vmatmul.mubr.f32.gmra.mrb[0].mxu0 %v4507
      %v4659 = vpop.f32.mrb[0].mxu0
      %v4660 = vadd.f32 0.0, %v4659
      %v4661 = vpop.f32.mrb[0].mxu0
      %v4662 = vadd.f32 0.0, %v4661
      %4663 = vmatprep.mubr.f32.mxu0 0.0
      %4664 = vmatmul.mubr.f32.gmra.mrb[0].mxu0 %v4508
      %v4665 = vpop.f32.mrb[0].mxu0
      %v4666 = vadd.f32 0.0, %v4665
      %v4667 = vpop.f32.mrb[0].mxu0
      %v4668 = vadd.f32 0.0, %v4667
      %4669 = vdwg.mxu0
      %v4670 = vadd.f32 %v4461, %v4576
      %v4671 = vadd.f32 %v4462, %v4578
      %v4672 = vadd.f32 %v4463, %v4582
      %v4673 = vadd.f32 %v4464, %v4584
      %v4674 = vadd.f32 %v4465, %v4588
      %v4675 = vadd.f32 %v4466, %v4590
      %v4676 = vadd.f32 %v4467, %v4594
      %v4677 = vadd.f32 %v4468, %v4596
      %v4678 = vadd.f32 %v4469, %v4600
      %v4679 = vadd.f32 %v4470, %v4602
      %v4680 = vadd.f32 %v4471, %v4606
      %v4681 = vadd.f32 %v4472, %v4608
      %v4682 = vadd.f32 %v4473, %v4612
      %v4683 = vadd.f32 %v4474, %v4614
      %v4684 = vadd.f32 %v4475, %v4618
      %v4685 = vadd.f32 %v4476, %v4620
      %v4686 = vadd.f32 %v4477, %v4624
      %v4687 = vadd.f32 %v4478, %v4626
      %v4688 = vadd.f32 %v4479, %v4630
      %v4689 = vadd.f32 %v4480, %v4632
      %v4690 = vadd.f32 %v4481, %v4636
      %v4691 = vadd.f32 %v4482, %v4638
      %v4692 = vadd.f32 %v4483, %v4642
      %v4693 = vadd.f32 %v4484, %v4644
      %v4694 = vadd.f32 %v4485, %v4648
      %v4695 = vadd.f32 %v4486, %v4650
      %v4696 = vadd.f32 %v4487, %v4654
      %v4697 = vadd.f32 %v4488, %v4656
      %v4698 = vadd.f32 %v4489, %v4660
      %v4699 = vadd.f32 %v4490, %v4662
      %v4700 = vadd.f32 %v4491, %v4666
      %v4701 = vadd.f32 %v4492, %v4668
      %4702 = vst [vmem:[#allocation2] sm:$0xff] %v4670
      %4703 = vst [vmem:[#allocation2 + $0x8] sm:$0xff] %v4671
      %4704 = vst [vmem:[#allocation2 + $0x10] sm:$0xff] %v4672
      %4705 = vst [vmem:[#allocation2 + $0x18] sm:$0xff] %v4673
      %4706 = vst [vmem:[#allocation2 + $0x20] sm:$0xff] %v4674
      %4707 = vst [vmem:[#allocation2 + $0x28] sm:$0xff] %v4675
      %4708 = vst [vmem:[#allocation2 + $0x30] sm:$0xff] %v4676
      %4709 = vst [vmem:[#allocation2 + $0x38] sm:$0xff] %v4677
      %4710 = vst [vmem:[#allocation2 + $0x40] sm:$0xff] %v4678
      %4711 = vst [vmem:[#allocation2 + $0x48] sm:$0xff] %v4679
      %4712 = vst [vmem:[#allocation2 + $0x50] sm:$0xff] %v4680
      %4713 = vst [vmem:[#allocation2 + $0x58] sm:$0xff] %v4681
      %4714 = vst [vmem:[#allocation2 + $0x60] sm:$0xff] %v4682
      %4715 = vst [vmem:[#allocation2 + $0x68] sm:$0xff] %v4683
      %4716 = vst [vmem:[#allocation2 + $0x70] sm:$0xff] %v4684
      %4717 = vst [vmem:[#allocation2 + $0x78] sm:$0xff] %v4685
      %4718 = vst [vmem:[#allocation2 + $0x80] sm:$0xff] %v4686
      %4719 = vst [vmem:[#allocation2 + $0x88] sm:$0xff] %v4687
      %4720 = vst [vmem:[#allocation2 + $0x90] sm:$0xff] %v4688
      %4721 = vst [vmem:[#allocation2 + $0x98] sm:$0xff] %v4689
      %4722 = vst [vmem:[#allocation2 + $0xa0] sm:$0xff] %v4690
      %4723 = vst [vmem:[#allocation2 + $0xa8] sm:$0xff] %v4691
      %4724 = vst [vmem:[#allocation2 + $0xb0] sm:$0xff] %v4692
      %4725 = vst [vmem:[#allocation2 + $0xb8] sm:$0xff] %v4693
      %4726 = vst [vmem:[#allocation2 + $0xc0] sm:$0xff] %v4694
      %4727 = vst [vmem:[#allocation2 + $0xc8] sm:$0xff] %v4695
      %4728 = vst [vmem:[#allocation2 + $0xd0] sm:$0xff] %v4696
      %4729 = vst [vmem:[#allocation2 + $0xd8] sm:$0xff] %v4697
      %4730 = vst [vmem:[#allocation2 + $0xe0] sm:$0xff] %v4698
      %4731 = vst [vmem:[#allocation2 + $0xe8] sm:$0xff] %v4699
      %4732 = vst [vmem:[#allocation2 + $0xf0] sm:$0xff] %v4700
      %4733 = vst [vmem:[#allocation2 + $0xf8] sm:$0xff] %v4701
      %4734 = vrot.lane.b32.xlu0 %v4091, 16
      %v4735 = vpop.permute.xlu0 %4734
      %4736 = vrot.lane.b32.xlu0 %v4093, 16
      %v4737 = vpop.permute.xlu0 %4736
      %4738 = vrot.lane.b32.xlu0 %v4095, 16
      %v4739 = vpop.permute.xlu0 %4738
      %4740 = vrot.lane.b32.xlu0 %v4097, 16
      %v4741 = vpop.permute.xlu0 %4740
      %4742 = vrot.lane.b32.xlu0 %v4099, 16
      %v4743 = vpop.permute.xlu0 %4742
      %4744 = vrot.lane.b32.xlu0 %v4101, 16
      %v4745 = vpop.permute.xlu0 %4744
      %4746 = vrot.lane.b32.xlu0 %v4103, 16
      %v4747 = vpop.permute.xlu0 %4746
      %4748 = vrot.lane.b32.xlu0 %v4105, 16
      %v4749 = vpop.permute.xlu0 %4748
      %4750 = vrot.lane.b32.xlu0 %v4107, 16
      %v4751 = vpop.permute.xlu0 %4750
      %4752 = vrot.lane.b32.xlu0 %v4109, 16
      %v4753 = vpop.permute.xlu0 %4752
      %4754 = vrot.lane.b32.xlu0 %v4111, 16
      %v4755 = vpop.permute.xlu0 %4754
      %4756 = vrot.lane.b32.xlu0 %v4113, 16
      %v4757 = vpop.permute.xlu0 %4756
      %4758 = vrot.lane.b32.xlu0 %v4115, 16
      %v4759 = vpop.permute.xlu0 %4758
      %4760 = vrot.lane.b32.xlu0 %v4117, 16
      %v4761 = vpop.permute.xlu0 %4760
      %4762 = vrot.lane.b32.xlu0 %v4119, 16
      %v4763 = vpop.permute.xlu0 %4762
      %4764 = vrot.lane.b32.xlu0 %v4121, 16
      %v4765 = vpop.permute.xlu0 %4764
      %4766 = vrot.lane.b32.xlu0 %v4092, 16
      %v4767 = vpop.permute.xlu0 %4766
      %4768 = vrot.lane.b32.xlu0 %v4094, 16
      %v4769 = vpop.permute.xlu0 %4768
      %4770 = vrot.lane.b32.xlu0 %v4096, 16
      %v4771 = vpop.permute.xlu0 %4770
      %4772 = vrot.lane.b32.xlu0 %v4098, 16
      %v4773 = vpop.permute.xlu0 %4772
      %4774 = vrot.lane.b32.xlu0 %v4100, 16
      %v4775 = vpop.permute.xlu0 %4774
      %4776 = vrot.lane.b32.xlu0 %v4102, 16
      %v4777 = vpop.permute.xlu0 %4776
      %4778 = vrot.lane.b32.xlu0 %v4104, 16
      %v4779 = vpop.permute.xlu0 %4778
      %4780 = vrot.lane.b32.xlu0 %v4106, 16
      %v4781 = vpop.permute.xlu0 %4780
      %4782 = vrot.lane.b32.xlu0 %v4108, 16
      %v4783 = vpop.permute.xlu0 %4782
      %4784 = vrot.lane.b32.xlu0 %v4110, 16
      %v4785 = vpop.permute.xlu0 %4784
      %4786 = vrot.lane.b32.xlu0 %v4112, 16
      %v4787 = vpop.permute.xlu0 %4786
      %4788 = vrot.lane.b32.xlu0 %v4114, 16
      %v4789 = vpop.permute.xlu0 %4788
      %4790 = vrot.lane.b32.xlu0 %v4116, 16
      %v4791 = vpop.permute.xlu0 %4790
      %4792 = vrot.lane.b32.xlu0 %v4118, 16
      %v4793 = vpop.permute.xlu0 %4792
      %4794 = vrot.lane.b32.xlu0 %v4120, 16
      %v4795 = vpop.permute.xlu0 %4794
      %4796 = vrot.lane.b32.xlu0 %v4122, 16
      %v4797 = vpop.permute.xlu0 %4796
      %v4798 = vsel %vm1046, %v4735, %v4767
      %v4799 = vsel %vm1046, %v4737, %v4769
      %v4800 = vsel %vm1046, %v4739, %v4771
      %v4801 = vsel %vm1046, %v4741, %v4773
      %v4802 = vsel %vm1046, %v4743, %v4775
      %v4803 = vsel %vm1046, %v4745, %v4777
      %v4804 = vsel %vm1046, %v4747, %v4779
      %v4805 = vsel %vm1046, %v4749, %v4781
      %v4806 = vsel %vm1046, %v4751, %v4783
      %v4807 = vsel %vm1046, %v4753, %v4785
      %v4808 = vsel %vm1046, %v4755, %v4787
      %v4809 = vsel %vm1046, %v4757, %v4789
      %v4810 = vsel %vm1046, %v4759, %v4791
      %v4811 = vsel %vm1046, %v4761, %v4793
      %v4812 = vsel %vm1046, %v4763, %v4795
      %v4813 = vsel %vm1046, %v4765, %v4797
      %v4814 = vsel %vm1046, %v4767, %v4735
      %v4815 = vsel %vm1046, %v4769, %v4737
      %v4816 = vsel %vm1046, %v4771, %v4739
      %v4817 = vsel %vm1046, %v4773, %v4741
      %v4818 = vsel %vm1046, %v4775, %v4743
      %v4819 = vsel %vm1046, %v4777, %v4745
      %v4820 = vsel %vm1046, %v4779, %v4747
      %v4821 = vsel %vm1046, %v4781, %v4749
      %v4822 = vsel %vm1046, %v4783, %v4751
      %v4823 = vsel %vm1046, %v4785, %v4753
      %v4824 = vsel %vm1046, %v4787, %v4755
      %v4825 = vsel %vm1046, %v4789, %v4757
      %v4826 = vsel %vm1046, %v4791, %v4759
      %v4827 = vsel %vm1046, %v4793, %v4761
      %v4828 = vsel %vm1046, %v4795, %v4763
      %v4829 = vsel %vm1046, %v4797, %v4765
      %v4830 = vmul.f32 %v4814, %v314
      %v4831 = vmul.f32 %v4798, %v315
      %v4832 = vmul.f32 %v4815, %v314
      %v4833 = vmul.f32 %v4799, %v315
      %v4834 = vmul.f32 %v4816, %v314
      %v4835 = vmul.f32 %v4800, %v315
      %v4836 = vmul.f32 %v4817, %v314
      %v4837 = vmul.f32 %v4801, %v315
      %v4838 = vmul.f32 %v4818, %v314
      %v4839 = vmul.f32 %v4802, %v315
      %v4840 = vmul.f32 %v4819, %v314
      %v4841 = vmul.f32 %v4803, %v315
      %v4842 = vmul.f32 %v4820, %v314
      %v4843 = vmul.f32 %v4804, %v315
      %v4844 = vmul.f32 %v4821, %v314
      %v4845 = vmul.f32 %v4805, %v315
      %v4846 = vmul.f32 %v4822, %v314
      %v4847 = vmul.f32 %v4806, %v315
      %v4848 = vmul.f32 %v4823, %v314
      %v4849 = vmul.f32 %v4807, %v315
      %v4850 = vmul.f32 %v4824, %v314
      %v4851 = vmul.f32 %v4808, %v315
      %v4852 = vmul.f32 %v4825, %v314
      %v4853 = vmul.f32 %v4809, %v315
      %v4854 = vmul.f32 %v4826, %v314
      %v4855 = vmul.f32 %v4810, %v315
      %v4856 = vmul.f32 %v4827, %v314
      %v4857 = vmul.f32 %v4811, %v315
      %v4858 = vmul.f32 %v4828, %v314
      %v4859 = vmul.f32 %v4812, %v315
      %v4860 = vmul.f32 %v4829, %v314
      %v4861 = vmul.f32 %v4813, %v315
      %v4862 = vld [vmem:[#allocation2] sm:$0xff]
      %v4863 = vld [vmem:[#allocation2 + $0x8] sm:$0xff]
      %v4864 = vld [vmem:[#allocation2 + $0x10] sm:$0xff]
      %v4865 = vld [vmem:[#allocation2 + $0x18] sm:$0xff]
      %v4866 = vld [vmem:[#allocation2 + $0x20] sm:$0xff]
      %v4867 = vld [vmem:[#allocation2 + $0x28] sm:$0xff]
      %v4868 = vld [vmem:[#allocation2 + $0x30] sm:$0xff]
      %v4869 = vld [vmem:[#allocation2 + $0x38] sm:$0xff]
      %v4870 = vld [vmem:[#allocation2 + $0x40] sm:$0xff]
      %v4871 = vld [vmem:[#allocation2 + $0x48] sm:$0xff]
      %v4872 = vld [vmem:[#allocation2 + $0x50] sm:$0xff]
      %v4873 = vld [vmem:[#allocation2 + $0x58] sm:$0xff]
      %v4874 = vld [vmem:[#allocation2 + $0x60] sm:$0xff]
      %v4875 = vld [vmem:[#allocation2 + $0x68] sm:$0xff]
      %v4876 = vld [vmem:[#allocation2 + $0x70] sm:$0xff]
      %v4877 = vld [vmem:[#allocation2 + $0x78] sm:$0xff]
      %v4878 = vld [vmem:[#allocation2 + $0x80] sm:$0xff]
      %v4879 = vld [vmem:[#allocation2 + $0x88] sm:$0xff]
      %v4880 = vld [vmem:[#allocation2 + $0x90] sm:$0xff]
      %v4881 = vld [vmem:[#allocation2 + $0x98] sm:$0xff]
      %v4882 = vld [vmem:[#allocation2 + $0xa0] sm:$0xff]
      %v4883 = vld [vmem:[#allocation2 + $0xa8] sm:$0xff]
      %v4884 = vld [vmem:[#allocation2 + $0xb0] sm:$0xff]
      %v4885 = vld [vmem:[#allocation2 + $0xb8] sm:$0xff]
      %v4886 = vld [vmem:[#allocation2 + $0xc0] sm:$0xff]
      %v4887 = vld [vmem:[#allocation2 + $0xc8] sm:$0xff]
      %v4888 = vld [vmem:[#allocation2 + $0xd0] sm:$0xff]
      %v4889 = vld [vmem:[#allocation2 + $0xd8] sm:$0xff]
      %v4890 = vld [vmem:[#allocation2 + $0xe0] sm:$0xff]
      %v4891 = vld [vmem:[#allocation2 + $0xe8] sm:$0xff]
      %v4892 = vld [vmem:[#allocation2 + $0xf0] sm:$0xff]
      %v4893 = vld [vmem:[#allocation2 + $0xf8] sm:$0xff]
      %s4894 = scalar_lea.vmem %s4, 128
      %v4895 = vld [vmem:[%s4894] sm:$0xff]
      %v4896 = vld [vmem:[%s4894 + $0x8] sm:$0xff]
      %v4897 = vld [vmem:[%s4894 + $0x10] sm:$0xff]
      %v4898 = vld [vmem:[%s4894 + $0x18] sm:$0xff]
      %v4899 = vld [vmem:[%s4894 + $0x20] sm:$0xff]
      %v4900 = vld [vmem:[%s4894 + $0x28] sm:$0xff]
      %v4901 = vld [vmem:[%s4894 + $0x30] sm:$0xff]
      %v4902 = vld [vmem:[%s4894 + $0x38] sm:$0xff]
      %v4903 = vld [vmem:[%s4894 + $0x40] sm:$0xff]
      %v4904 = vld [vmem:[%s4894 + $0x48] sm:$0xff]
      %v4905 = vld [vmem:[%s4894 + $0x50] sm:$0xff]
      %v4906 = vld [vmem:[%s4894 + $0x58] sm:$0xff]
      %v4907 = vld [vmem:[%s4894 + $0x60] sm:$0xff]
      %v4908 = vld [vmem:[%s4894 + $0x68] sm:$0xff]
      %v4909 = vld [vmem:[%s4894 + $0x70] sm:$0xff]
      %v4910 = vld [vmem:[%s4894 + $0x78] sm:$0xff]
      %4911 = vmatprep.subr.mxu0 %v4831
      %4912 = vmatpush1.msra.mxu0 %v4830
      %4913 = vmatprep.subr.mxu0 %v4833
      %4914 = vmatpush1.msra.mxu0 %v4832
      %4915 = vmatprep.subr.mxu0 %v4835
      %4916 = vmatpush1.msra.mxu0 %v4834
      %4917 = vmatprep.subr.mxu0 %v4837
      %4918 = vmatpush1.msra.mxu0 %v4836
      %4919 = vmatprep.subr.mxu0 %v4839
      %4920 = vmatpush1.msra.mxu0 %v4838
      %4921 = vmatprep.subr.mxu0 %v4841
      %4922 = vmatpush1.msra.mxu0 %v4840
      %4923 = vmatprep.subr.mxu0 %v4843
      %4924 = vmatpush1.msra.mxu0 %v4842
      %4925 = vmatprep.subr.mxu0 %v4845
      %4926 = vmatpush1.msra.mxu0 %v4844
      %4927 = vmatprep.subr.mxu0 %v4847
      %4928 = vmatpush1.msra.mxu0 %v4846
      %4929 = vmatprep.subr.mxu0 %v4849
      %4930 = vmatpush1.msra.mxu0 %v4848
      %4931 = vmatprep.subr.mxu0 %v4851
      %4932 = vmatpush1.msra.mxu0 %v4850
      %4933 = vmatprep.subr.mxu0 %v4853
      %4934 = vmatpush1.msra.mxu0 %v4852
      %4935 = vmatprep.subr.mxu0 %v4855
      %4936 = vmatpush1.msra.mxu0 %v4854
      %4937 = vmatprep.subr.mxu0 %v4857
      %4938 = vmatpush1.msra.mxu0 %v4856
      %4939 = vmatprep.subr.mxu0 %v4859
      %4940 = vmatpush1.msra.mxu0 %v4858
      %4941 = vmatprep.subr.mxu0 %v4861
      %4942 = vmatpush1.msra.mxu0 %v4860
      %4943 = vmatprep.subr.mxu0 0.0
      %4944 = vmatpush1.msra.mxu0 0.0
      %4945 = vmatprep.subr.mxu0 0.0
      %4946 = vmatpush1.msra.mxu0 0.0
      %4947 = vmatprep.subr.mxu0 0.0
      %4948 = vmatpush1.msra.mxu0 0.0
      %4949 = vmatprep.subr.mxu0 0.0
      %4950 = vmatpush1.msra.mxu0 0.0
      %4951 = vmatprep.subr.mxu0 0.0
      %4952 = vmatpush1.msra.mxu0 0.0
      %4953 = vmatprep.subr.mxu0 0.0
      %4954 = vmatpush1.msra.mxu0 0.0
      %4955 = vmatprep.subr.mxu0 0.0
      %4956 = vmatpush1.msra.mxu0 0.0
      %4957 = vmatprep.subr.mxu0 0.0
      %4958 = vmatpush1.msra.mxu0 0.0
      %4959 = vmatprep.subr.mxu0 0.0
      %4960 = vmatpush1.msra.mxu0 0.0
      %4961 = vmatprep.subr.mxu0 0.0
      %4962 = vmatpush1.msra.mxu0 0.0
      %4963 = vmatprep.subr.mxu0 0.0
      %4964 = vmatpush1.msra.mxu0 0.0
      %4965 = vmatprep.subr.mxu0 0.0
      %4966 = vmatpush1.msra.mxu0 0.0
      %4967 = vmatprep.subr.mxu0 0.0
      %4968 = vmatpush1.msra.mxu0 0.0
      %4969 = vmatprep.subr.mxu0 0.0
      %4970 = vmatpush1.msra.mxu0 0.0
      %4971 = vmatprep.subr.mxu0 0.0
      %4972 = vmatpush1.msra.mxu0 0.0
      %4973 = vmatprep.subr.mxu0 0.0
      %4974 = vmatpush1.msra.mxu0 0.0
      %4975 = vmatprep.mubr.f32.mxu0 0.0
      %4976 = vmatmul.mubr.f32.gmra.mrb[0].mxu0 %v4895
      %v4977 = vpop.f32.mrb[0].mxu0
      %v4978 = vadd.f32 0.0, %v4977
      %v4979 = vpop.f32.mrb[0].mxu0
      %v4980 = vadd.f32 0.0, %v4979
      %4981 = vmatprep.mubr.f32.mxu0 0.0
      %4982 = vmatmul.mubr.f32.gmra.mrb[0].mxu0 %v4896
      %v4983 = vpop.f32.mrb[0].mxu0
      %v4984 = vadd.f32 0.0, %v4983
      %v4985 = vpop.f32.mrb[0].mxu0
      %v4986 = vadd.f32 0.0, %v4985
      %4987 = vmatprep.mubr.f32.mxu0 0.0
      %4988 = vmatmul.mubr.f32.gmra.mrb[0].mxu0 %v4897
      %v4989 = vpop.f32.mrb[0].mxu0
      %v4990 = vadd.f32 0.0, %v4989
      %v4991 = vpop.f32.mrb[0].mxu0
      %v4992 = vadd.f32 0.0, %v4991
      %4993 = vmatprep.mubr.f32.mxu0 0.0
      %4994 = vmatmul.mubr.f32.gmra.mrb[0].mxu0 %v4898
      %v4995 = vpop.f32.mrb[0].mxu0
      %v4996 = vadd.f32 0.0, %v4995
      %v4997 = vpop.f32.mrb[0].mxu0
      %v4998 = vadd.f32 0.0, %v4997
      %4999 = vmatprep.mubr.f32.mxu0 0.0
      %5000 = vmatmul.mubr.f32.gmra.mrb[0].mxu0 %v4899
      %v5001 = vpop.f32.mrb[0].mxu0
      %v5002 = vadd.f32 0.0, %v5001
      %v5003 = vpop.f32.mrb[0].mxu0
      %v5004 = vadd.f32 0.0, %v5003
      %5005 = vmatprep.mubr.f32.mxu0 0.0
      %5006 = vmatmul.mubr.f32.gmra.mrb[0].mxu0 %v4900
      %v5007 = vpop.f32.mrb[0].mxu0
      %v5008 = vadd.f32 0.0, %v5007
      %v5009 = vpop.f32.mrb[0].mxu0
      %v5010 = vadd.f32 0.0, %v5009
      %5011 = vmatprep.mubr.f32.mxu0 0.0
      %5012 = vmatmul.mubr.f32.gmra.mrb[0].mxu0 %v4901
      %v5013 = vpop.f32.mrb[0].mxu0
      %v5014 = vadd.f32 0.0, %v5013
      %v5015 = vpop.f32.mrb[0].mxu0
      %v5016 = vadd.f32 0.0, %v5015
      %5017 = vmatprep.mubr.f32.mxu0 0.0
      %5018 = vmatmul.mubr.f32.gmra.mrb[0].mxu0 %v4902
      %v5019 = vpop.f32.mrb[0].mxu0
      %v5020 = vadd.f32 0.0, %v5019
      %v5021 = vpop.f32.mrb[0].mxu0
      %v5022 = vadd.f32 0.0, %v5021
      %5023 = vmatprep.mubr.f32.mxu0 0.0
      %5024 = vmatmul.mubr.f32.gmra.mrb[0].mxu0 %v4903
      %v5025 = vpop.f32.mrb[0].mxu0
      %v5026 = vadd.f32 0.0, %v5025
      %v5027 = vpop.f32.mrb[0].mxu0
      %v5028 = vadd.f32 0.0, %v5027
      %5029 = vmatprep.mubr.f32.mxu0 0.0
      %5030 = vmatmul.mubr.f32.gmra.mrb[0].mxu0 %v4904
      %v5031 = vpop.f32.mrb[0].mxu0
      %v5032 = vadd.f32 0.0, %v5031
      %v5033 = vpop.f32.mrb[0].mxu0
      %v5034 = vadd.f32 0.0, %v5033
      %5035 = vmatprep.mubr.f32.mxu0 0.0
      %5036 = vmatmul.mubr.f32.gmra.mrb[0].mxu0 %v4905
      %v5037 = vpop.f32.mrb[0].mxu0
      %v5038 = vadd.f32 0.0, %v5037
      %v5039 = vpop.f32.mrb[0].mxu0
      %v5040 = vadd.f32 0.0, %v5039
      %5041 = vmatprep.mubr.f32.mxu0 0.0
      %5042 = vmatmul.mubr.f32.gmra.mrb[0].mxu0 %v4906
      %v5043 = vpop.f32.mrb[0].mxu0
      %v5044 = vadd.f32 0.0, %v5043
      %v5045 = vpop.f32.mrb[0].mxu0
      %v5046 = vadd.f32 0.0, %v5045
      %5047 = vmatprep.mubr.f32.mxu0 0.0
      %5048 = vmatmul.mubr.f32.gmra.mrb[0].mxu0 %v4907
      %v5049 = vpop.f32.mrb[0].mxu0
      %v5050 = vadd.f32 0.0, %v5049
      %v5051 = vpop.f32.mrb[0].mxu0
      %v5052 = vadd.f32 0.0, %v5051
      %5053 = vmatprep.mubr.f32.mxu0 0.0
      %5054 = vmatmul.mubr.f32.gmra.mrb[0].mxu0 %v4908
      %v5055 = vpop.f32.mrb[0].mxu0
      %v5056 = vadd.f32 0.0, %v5055
      %v5057 = vpop.f32.mrb[0].mxu0
      %v5058 = vadd.f32 0.0, %v5057
      %5059 = vmatprep.mubr.f32.mxu0 0.0
      %5060 = vmatmul.mubr.f32.gmra.mrb[0].mxu0 %v4909
      %v5061 = vpop.f32.mrb[0].mxu0
      %v5062 = vadd.f32 0.0, %v5061
      %v5063 = vpop.f32.mrb[0].mxu0
      %v5064 = vadd.f32 0.0, %v5063
      %5065 = vmatprep.mubr.f32.mxu0 0.0
      %5066 = vmatmul.mubr.f32.gmra.mrb[0].mxu0 %v4910
      %v5067 = vpop.f32.mrb[0].mxu0
      %v5068 = vadd.f32 0.0, %v5067
      %v5069 = vpop.f32.mrb[0].mxu0
      %v5070 = vadd.f32 0.0, %v5069
      %5071 = vdwg.mxu0
      %v5072 = vadd.f32 %v4862, %v4978
      %v5073 = vadd.f32 %v4863, %v4980
      %v5074 = vadd.f32 %v4864, %v4984
      %v5075 = vadd.f32 %v4865, %v4986
      %v5076 = vadd.f32 %v4866, %v4990
      %v5077 = vadd.f32 %v4867, %v4992
      %v5078 = vadd.f32 %v4868, %v4996
      %v5079 = vadd.f32 %v4869, %v4998
      %v5080 = vadd.f32 %v4870, %v5002
      %v5081 = vadd.f32 %v4871, %v5004
      %v5082 = vadd.f32 %v4872, %v5008
      %v5083 = vadd.f32 %v4873, %v5010
      %v5084 = vadd.f32 %v4874, %v5014
      %v5085 = vadd.f32 %v4875, %v5016
      %v5086 = vadd.f32 %v4876, %v5020
      %v5087 = vadd.f32 %v4877, %v5022
      %v5088 = vadd.f32 %v4878, %v5026
      %v5089 = vadd.f32 %v4879, %v5028
      %v5090 = vadd.f32 %v4880, %v5032
      %v5091 = vadd.f32 %v4881, %v5034
      %v5092 = vadd.f32 %v4882, %v5038
      %v5093 = vadd.f32 %v4883, %v5040
      %v5094 = vadd.f32 %v4884, %v5044
      %v5095 = vadd.f32 %v4885, %v5046
      %v5096 = vadd.f32 %v4886, %v5050
      %v5097 = vadd.f32 %v4887, %v5052
      %v5098 = vadd.f32 %v4888, %v5056
      %v5099 = vadd.f32 %v4889, %v5058
      %v5100 = vadd.f32 %v4890, %v5062
      %v5101 = vadd.f32 %v4891, %v5064
      %v5102 = vadd.f32 %v4892, %v5068
      %v5103 = vadd.f32 %v4893, %v5070
      %5104 = vst [vmem:[#allocation2] sm:$0xff] %v5072
      %5105 = vst [vmem:[#allocation2 + $0x8] sm:$0xff] %v5073
      %5106 = vst [vmem:[#allocation2 + $0x10] sm:$0xff] %v5074
      %5107 = vst [vmem:[#allocation2 + $0x18] sm:$0xff] %v5075
      %5108 = vst [vmem:[#allocation2 + $0x20] sm:$0xff] %v5076
      %5109 = vst [vmem:[#allocation2 + $0x28] sm:$0xff] %v5077
      %5110 = vst [vmem:[#allocation2 + $0x30] sm:$0xff] %v5078
      %5111 = vst [vmem:[#allocation2 + $0x38] sm:$0xff] %v5079
      %5112 = vst [vmem:[#allocation2 + $0x40] sm:$0xff] %v5080
      %5113 = vst [vmem:[#allocation2 + $0x48] sm:$0xff] %v5081
      %5114 = vst [vmem:[#allocation2 + $0x50] sm:$0xff] %v5082
      %5115 = vst [vmem:[#allocation2 + $0x58] sm:$0xff] %v5083
      %5116 = vst [vmem:[#allocation2 + $0x60] sm:$0xff] %v5084
      %5117 = vst [vmem:[#allocation2 + $0x68] sm:$0xff] %v5085
      %5118 = vst [vmem:[#allocation2 + $0x70] sm:$0xff] %v5086
      %5119 = vst [vmem:[#allocation2 + $0x78] sm:$0xff] %v5087
      %5120 = vst [vmem:[#allocation2 + $0x80] sm:$0xff] %v5088
      %5121 = vst [vmem:[#allocation2 + $0x88] sm:$0xff] %v5089
      %5122 = vst [vmem:[#allocation2 + $0x90] sm:$0xff] %v5090
      %5123 = vst [vmem:[#allocation2 + $0x98] sm:$0xff] %v5091
      %5124 = vst [vmem:[#allocation2 + $0xa0] sm:$0xff] %v5092
      %5125 = vst [vmem:[#allocation2 + $0xa8] sm:$0xff] %v5093
      %5126 = vst [vmem:[#allocation2 + $0xb0] sm:$0xff] %v5094
      %5127 = vst [vmem:[#allocation2 + $0xb8] sm:$0xff] %v5095
      %5128 = vst [vmem:[#allocation2 + $0xc0] sm:$0xff] %v5096
      %5129 = vst [vmem:[#allocation2 + $0xc8] sm:$0xff] %v5097
      %5130 = vst [vmem:[#allocation2 + $0xd0] sm:$0xff] %v5098
      %5131 = vst [vmem:[#allocation2 + $0xd8] sm:$0xff] %v5099
      %5132 = vst [vmem:[#allocation2 + $0xe0] sm:$0xff] %v5100
      %5133 = vst [vmem:[#allocation2 + $0xe8] sm:$0xff] %v5101
      %5134 = vst [vmem:[#allocation2 + $0xf0] sm:$0xff] %v5102
      %5135 = vst [vmem:[#allocation2 + $0xf8] sm:$0xff] %v5103
      %5136 = vrot.lane.b32.xlu0 %v4091, 15
      %v5137 = vpop.permute.xlu0 %5136
      %5138 = vrot.lane.b32.xlu0 %v4093, 15
      %v5139 = vpop.permute.xlu0 %5138
      %5140 = vrot.lane.b32.xlu0 %v4095, 15
      %v5141 = vpop.permute.xlu0 %5140
      %5142 = vrot.lane.b32.xlu0 %v4097, 15
      %v5143 = vpop.permute.xlu0 %5142
      %5144 = vrot.lane.b32.xlu0 %v4099, 15
      %v5145 = vpop.permute.xlu0 %5144
      %5146 = vrot.lane.b32.xlu0 %v4101, 15
      %v5147 = vpop.permute.xlu0 %5146
      %5148 = vrot.lane.b32.xlu0 %v4103, 15
      %v5149 = vpop.permute.xlu0 %5148
      %5150 = vrot.lane.b32.xlu0 %v4105, 15
      %v5151 = vpop.permute.xlu0 %5150
      %5152 = vrot.lane.b32.xlu0 %v4107, 15
      %v5153 = vpop.permute.xlu0 %5152
      %5154 = vrot.lane.b32.xlu0 %v4109, 15
      %v5155 = vpop.permute.xlu0 %5154
      %5156 = vrot.lane.b32.xlu0 %v4111, 15
      %v5157 = vpop.permute.xlu0 %5156
      %5158 = vrot.lane.b32.xlu0 %v4113, 15
      %v5159 = vpop.permute.xlu0 %5158
      %5160 = vrot.lane.b32.xlu0 %v4115, 15
      %v5161 = vpop.permute.xlu0 %5160
      %5162 = vrot.lane.b32.xlu0 %v4117, 15
      %v5163 = vpop.permute.xlu0 %5162
      %5164 = vrot.lane.b32.xlu0 %v4119, 15
      %v5165 = vpop.permute.xlu0 %5164
      %5166 = vrot.lane.b32.xlu0 %v4121, 15
      %v5167 = vpop.permute.xlu0 %5166
      %5168 = vrot.lane.b32.xlu0 %v4092, 15
      %v5169 = vpop.permute.xlu0 %5168
      %5170 = vrot.lane.b32.xlu0 %v4094, 15
      %v5171 = vpop.permute.xlu0 %5170
      %5172 = vrot.lane.b32.xlu0 %v4096, 15
      %v5173 = vpop.permute.xlu0 %5172
      %5174 = vrot.lane.b32.xlu0 %v4098, 15
      %v5175 = vpop.permute.xlu0 %5174
      %5176 = vrot.lane.b32.xlu0 %v4100, 15
      %v5177 = vpop.permute.xlu0 %5176
      %5178 = vrot.lane.b32.xlu0 %v4102, 15
      %v5179 = vpop.permute.xlu0 %5178
      %5180 = vrot.lane.b32.xlu0 %v4104, 15
      %v5181 = vpop.permute.xlu0 %5180
      %5182 = vrot.lane.b32.xlu0 %v4106, 15
      %v5183 = vpop.permute.xlu0 %5182
      %5184 = vrot.lane.b32.xlu0 %v4108, 15
      %v5185 = vpop.permute.xlu0 %5184
      %5186 = vrot.lane.b32.xlu0 %v4110, 15
      %v5187 = vpop.permute.xlu0 %5186
      %5188 = vrot.lane.b32.xlu0 %v4112, 15
      %v5189 = vpop.permute.xlu0 %5188
      %5190 = vrot.lane.b32.xlu0 %v4114, 15
      %v5191 = vpop.permute.xlu0 %5190
      %5192 = vrot.lane.b32.xlu0 %v4116, 15
      %v5193 = vpop.permute.xlu0 %5192
      %5194 = vrot.lane.b32.xlu0 %v4118, 15
      %v5195 = vpop.permute.xlu0 %5194
      %5196 = vrot.lane.b32.xlu0 %v4120, 15
      %v5197 = vpop.permute.xlu0 %5196
      %5198 = vrot.lane.b32.xlu0 %v4122, 15
      %v5199 = vpop.permute.xlu0 %5198
      %v5200 = vsel %vm1449, %v5137, %v5169
      %v5201 = vsel %vm1449, %v5139, %v5171
      %v5202 = vsel %vm1449, %v5141, %v5173
      %v5203 = vsel %vm1449, %v5143, %v5175
      %v5204 = vsel %vm1449, %v5145, %v5177
      %v5205 = vsel %vm1449, %v5147, %v5179
      %v5206 = vsel %vm1449, %v5149, %v5181
      %v5207 = vsel %vm1449, %v5151, %v5183
      %v5208 = vsel %vm1449, %v5153, %v5185
      %v5209 = vsel %vm1449, %v5155, %v5187
      %v5210 = vsel %vm1449, %v5157, %v5189
      %v5211 = vsel %vm1449, %v5159, %v5191
      %v5212 = vsel %vm1449, %v5161, %v5193
      %v5213 = vsel %vm1449, %v5163, %v5195
      %v5214 = vsel %vm1449, %v5165, %v5197
      %v5215 = vsel %vm1449, %v5167, %v5199
      %v5216 = vsel %vm1449, %v5169, %v5137
      %v5217 = vsel %vm1449, %v5171, %v5139
      %v5218 = vsel %vm1449, %v5173, %v5141
      %v5219 = vsel %vm1449, %v5175, %v5143
      %v5220 = vsel %vm1449, %v5177, %v5145
      %v5221 = vsel %vm1449, %v5179, %v5147
      %v5222 = vsel %vm1449, %v5181, %v5149
      %v5223 = vsel %vm1449, %v5183, %v5151
      %v5224 = vsel %vm1449, %v5185, %v5153
      %v5225 = vsel %vm1449, %v5187, %v5155
      %v5226 = vsel %vm1449, %v5189, %v5157
      %v5227 = vsel %vm1449, %v5191, %v5159
      %v5228 = vsel %vm1449, %v5193, %v5161
      %v5229 = vsel %vm1449, %v5195, %v5163
      %v5230 = vsel %vm1449, %v5197, %v5165
      %v5231 = vsel %vm1449, %v5199, %v5167
      %v5232 = vmul.f32 %v5216, %v320
      %v5233 = vmul.f32 %v5200, %v321
      %v5234 = vmul.f32 %v5217, %v320
      %v5235 = vmul.f32 %v5201, %v321
      %v5236 = vmul.f32 %v5218, %v320
      %v5237 = vmul.f32 %v5202, %v321
      %v5238 = vmul.f32 %v5219, %v320
      %v5239 = vmul.f32 %v5203, %v321
      %v5240 = vmul.f32 %v5220, %v320
      %v5241 = vmul.f32 %v5204, %v321
      %v5242 = vmul.f32 %v5221, %v320
      %v5243 = vmul.f32 %v5205, %v321
      %v5244 = vmul.f32 %v5222, %v320
      %v5245 = vmul.f32 %v5206, %v321
      %v5246 = vmul.f32 %v5223, %v320
      %v5247 = vmul.f32 %v5207, %v321
      %v5248 = vmul.f32 %v5224, %v320
      %v5249 = vmul.f32 %v5208, %v321
      %v5250 = vmul.f32 %v5225, %v320
      %v5251 = vmul.f32 %v5209, %v321
      %v5252 = vmul.f32 %v5226, %v320
      %v5253 = vmul.f32 %v5210, %v321
      %v5254 = vmul.f32 %v5227, %v320
      %v5255 = vmul.f32 %v5211, %v321
      %v5256 = vmul.f32 %v5228, %v320
      %v5257 = vmul.f32 %v5212, %v321
      %v5258 = vmul.f32 %v5229, %v320
      %v5259 = vmul.f32 %v5213, %v321
      %v5260 = vmul.f32 %v5230, %v320
      %v5261 = vmul.f32 %v5214, %v321
      %v5262 = vmul.f32 %v5231, %v320
      %v5263 = vmul.f32 %v5215, %v321
      %v5264 = vld [vmem:[#allocation2] sm:$0xff]
      %v5265 = vld [vmem:[#allocation2 + $0x8] sm:$0xff]
      %v5266 = vld [vmem:[#allocation2 + $0x10] sm:$0xff]
      %v5267 = vld [vmem:[#allocation2 + $0x18] sm:$0xff]
      %v5268 = vld [vmem:[#allocation2 + $0x20] sm:$0xff]
      %v5269 = vld [vmem:[#allocation2 + $0x28] sm:$0xff]
      %v5270 = vld [vmem:[#allocation2 + $0x30] sm:$0xff]
      %v5271 = vld [vmem:[#allocation2 + $0x38] sm:$0xff]
      %v5272 = vld [vmem:[#allocation2 + $0x40] sm:$0xff]
      %v5273 = vld [vmem:[#allocation2 + $0x48] sm:$0xff]
      %v5274 = vld [vmem:[#allocation2 + $0x50] sm:$0xff]
      %v5275 = vld [vmem:[#allocation2 + $0x58] sm:$0xff]
      %v5276 = vld [vmem:[#allocation2 + $0x60] sm:$0xff]
      %v5277 = vld [vmem:[#allocation2 + $0x68] sm:$0xff]
      %v5278 = vld [vmem:[#allocation2 + $0x70] sm:$0xff]
      %v5279 = vld [vmem:[#allocation2 + $0x78] sm:$0xff]
      %v5280 = vld [vmem:[#allocation2 + $0x80] sm:$0xff]
      %v5281 = vld [vmem:[#allocation2 + $0x88] sm:$0xff]
      %v5282 = vld [vmem:[#allocation2 + $0x90] sm:$0xff]
      %v5283 = vld [vmem:[#allocation2 + $0x98] sm:$0xff]
      %v5284 = vld [vmem:[#allocation2 + $0xa0] sm:$0xff]
      %v5285 = vld [vmem:[#allocation2 + $0xa8] sm:$0xff]
      %v5286 = vld [vmem:[#allocation2 + $0xb0] sm:$0xff]
      %v5287 = vld [vmem:[#allocation2 + $0xb8] sm:$0xff]
      %v5288 = vld [vmem:[#allocation2 + $0xc0] sm:$0xff]
      %v5289 = vld [vmem:[#allocation2 + $0xc8] sm:$0xff]
      %v5290 = vld [vmem:[#allocation2 + $0xd0] sm:$0xff]
      %v5291 = vld [vmem:[#allocation2 + $0xd8] sm:$0xff]
      %v5292 = vld [vmem:[#allocation2 + $0xe0] sm:$0xff]
      %v5293 = vld [vmem:[#allocation2 + $0xe8] sm:$0xff]
      %v5294 = vld [vmem:[#allocation2 + $0xf0] sm:$0xff]
      %v5295 = vld [vmem:[#allocation2 + $0xf8] sm:$0xff]
      %s5296 = scalar_lea.vmem %s4, 256
      %v5297 = vld [vmem:[%s5296] sm:$0xff]
      %v5298 = vld [vmem:[%s5296 + $0x8] sm:$0xff]
      %v5299 = vld [vmem:[%s5296 + $0x10] sm:$0xff]
      %v5300 = vld [vmem:[%s5296 + $0x18] sm:$0xff]
      %v5301 = vld [vmem:[%s5296 + $0x20] sm:$0xff]
      %v5302 = vld [vmem:[%s5296 + $0x28] sm:$0xff]
      %v5303 = vld [vmem:[%s5296 + $0x30] sm:$0xff]
      %v5304 = vld [vmem:[%s5296 + $0x38] sm:$0xff]
      %v5305 = vld [vmem:[%s5296 + $0x40] sm:$0xff]
      %v5306 = vld [vmem:[%s5296 + $0x48] sm:$0xff]
      %v5307 = vld [vmem:[%s5296 + $0x50] sm:$0xff]
      %v5308 = vld [vmem:[%s5296 + $0x58] sm:$0xff]
      %v5309 = vld [vmem:[%s5296 + $0x60] sm:$0xff]
      %v5310 = vld [vmem:[%s5296 + $0x68] sm:$0xff]
      %v5311 = vld [vmem:[%s5296 + $0x70] sm:$0xff]
      %v5312 = vld [vmem:[%s5296 + $0x78] sm:$0xff]
      %5313 = vmatprep.subr.mxu0 %v5233
      %5314 = vmatpush1.msra.mxu0 %v5232
      %5315 = vmatprep.subr.mxu0 %v5235
      %5316 = vmatpush1.msra.mxu0 %v5234
      %5317 = vmatprep.subr.mxu0 %v5237
      %5318 = vmatpush1.msra.mxu0 %v5236
      %5319 = vmatprep.subr.mxu0 %v5239
      %5320 = vmatpush1.msra.mxu0 %v5238
      %5321 = vmatprep.subr.mxu0 %v5241
      %5322 = vmatpush1.msra.mxu0 %v5240
      %5323 = vmatprep.subr.mxu0 %v5243
      %5324 = vmatpush1.msra.mxu0 %v5242
      %5325 = vmatprep.subr.mxu0 %v5245
      %5326 = vmatpush1.msra.mxu0 %v5244
      %5327 = vmatprep.subr.mxu0 %v5247
      %5328 = vmatpush1.msra.mxu0 %v5246
      %5329 = vmatprep.subr.mxu0 %v5249
      %5330 = vmatpush1.msra.mxu0 %v5248
      %5331 = vmatprep.subr.mxu0 %v5251
      %5332 = vmatpush1.msra.mxu0 %v5250
      %5333 = vmatprep.subr.mxu0 %v5253
      %5334 = vmatpush1.msra.mxu0 %v5252
      %5335 = vmatprep.subr.mxu0 %v5255
      %5336 = vmatpush1.msra.mxu0 %v5254
      %5337 = vmatprep.subr.mxu0 %v5257
      %5338 = vmatpush1.msra.mxu0 %v5256
      %5339 = vmatprep.subr.mxu0 %v5259
      %5340 = vmatpush1.msra.mxu0 %v5258
      %5341 = vmatprep.subr.mxu0 %v5261
      %5342 = vmatpush1.msra.mxu0 %v5260
      %5343 = vmatprep.subr.mxu0 %v5263
      %5344 = vmatpush1.msra.mxu0 %v5262
      %5345 = vmatprep.subr.mxu0 0.0
      %5346 = vmatpush1.msra.mxu0 0.0
      %5347 = vmatprep.subr.mxu0 0.0
      %5348 = vmatpush1.msra.mxu0 0.0
      %5349 = vmatprep.subr.mxu0 0.0
      %5350 = vmatpush1.msra.mxu0 0.0
      %5351 = vmatprep.subr.mxu0 0.0
      %5352 = vmatpush1.msra.mxu0 0.0
      %5353 = vmatprep.subr.mxu0 0.0
      %5354 = vmatpush1.msra.mxu0 0.0
      %5355 = vmatprep.subr.mxu0 0.0
      %5356 = vmatpush1.msra.mxu0 0.0
      %5357 = vmatprep.subr.mxu0 0.0
      %5358 = vmatpush1.msra.mxu0 0.0
      %5359 = vmatprep.subr.mxu0 0.0
      %5360 = vmatpush1.msra.mxu0 0.0
      %5361 = vmatprep.subr.mxu0 0.0
      %5362 = vmatpush1.msra.mxu0 0.0
      %5363 = vmatprep.subr.mxu0 0.0
      %5364 = vmatpush1.msra.mxu0 0.0
      %5365 = vmatprep.subr.mxu0 0.0
      %5366 = vmatpush1.msra.mxu0 0.0
      %5367 = vmatprep.subr.mxu0 0.0
      %5368 = vmatpush1.msra.mxu0 0.0
      %5369 = vmatprep.subr.mxu0 0.0
      %5370 = vmatpush1.msra.mxu0 0.0
      %5371 = vmatprep.subr.mxu0 0.0
      %5372 = vmatpush1.msra.mxu0 0.0
      %5373 = vmatprep.subr.mxu0 0.0
      %5374 = vmatpush1.msra.mxu0 0.0
      %5375 = vmatprep.subr.mxu0 0.0
      %5376 = vmatpush1.msra.mxu0 0.0
      %5377 = vmatprep.mubr.f32.mxu0 0.0
      %5378 = vmatmul.mubr.f32.gmra.mrb[0].mxu0 %v5297
      %v5379 = vpop.f32.mrb[0].mxu0
      %v5380 = vadd.f32 0.0, %v5379
      %v5381 = vpop.f32.mrb[0].mxu0
      %v5382 = vadd.f32 0.0, %v5381
      %5383 = vmatprep.mubr.f32.mxu0 0.0
      %5384 = vmatmul.mubr.f32.gmra.mrb[0].mxu0 %v5298
      %v5385 = vpop.f32.mrb[0].mxu0
      %v5386 = vadd.f32 0.0, %v5385
      %v5387 = vpop.f32.mrb[0].mxu0
      %v5388 = vadd.f32 0.0, %v5387
      %5389 = vmatprep.mubr.f32.mxu0 0.0
      %5390 = vmatmul.mubr.f32.gmra.mrb[0].mxu0 %v5299
      %v5391 = vpop.f32.mrb[0].mxu0
      %v5392 = vadd.f32 0.0, %v5391
      %v5393 = vpop.f32.mrb[0].mxu0
      %v5394 = vadd.f32 0.0, %v5393
      %5395 = vmatprep.mubr.f32.mxu0 0.0
      %5396 = vmatmul.mubr.f32.gmra.mrb[0].mxu0 %v5300
      %v5397 = vpop.f32.mrb[0].mxu0
      %v5398 = vadd.f32 0.0, %v5397
      %v5399 = vpop.f32.mrb[0].mxu0
      %v5400 = vadd.f32 0.0, %v5399
      %5401 = vmatprep.mubr.f32.mxu0 0.0
      %5402 = vmatmul.mubr.f32.gmra.mrb[0].mxu0 %v5301
      %v5403 = vpop.f32.mrb[0].mxu0
      %v5404 = vadd.f32 0.0, %v5403
      %v5405 = vpop.f32.mrb[0].mxu0
      %v5406 = vadd.f32 0.0, %v5405
      %5407 = vmatprep.mubr.f32.mxu0 0.0
      %5408 = vmatmul.mubr.f32.gmra.mrb[0].mxu0 %v5302
      %v5409 = vpop.f32.mrb[0].mxu0
      %v5410 = vadd.f32 0.0, %v5409
      %v5411 = vpop.f32.mrb[0].mxu0
      %v5412 = vadd.f32 0.0, %v5411
      %5413 = vmatprep.mubr.f32.mxu0 0.0
      %5414 = vmatmul.mubr.f32.gmra.mrb[0].mxu0 %v5303
      %v5415 = vpop.f32.mrb[0].mxu0
      %v5416 = vadd.f32 0.0, %v5415
      %v5417 = vpop.f32.mrb[0].mxu0
      %v5418 = vadd.f32 0.0, %v5417
      %5419 = vmatprep.mubr.f32.mxu0 0.0
      %5420 = vmatmul.mubr.f32.gmra.mrb[0].mxu0 %v5304
      %v5421 = vpop.f32.mrb[0].mxu0
      %v5422 = vadd.f32 0.0, %v5421
      %v5423 = vpop.f32.mrb[0].mxu0
      %v5424 = vadd.f32 0.0, %v5423
      %5425 = vmatprep.mubr.f32.mxu0 0.0
      %5426 = vmatmul.mubr.f32.gmra.mrb[0].mxu0 %v5305
      %v5427 = vpop.f32.mrb[0].mxu0
      %v5428 = vadd.f32 0.0, %v5427
      %v5429 = vpop.f32.mrb[0].mxu0
      %v5430 = vadd.f32 0.0, %v5429
      %5431 = vmatprep.mubr.f32.mxu0 0.0
      %5432 = vmatmul.mubr.f32.gmra.mrb[0].mxu0 %v5306
      %v5433 = vpop.f32.mrb[0].mxu0
      %v5434 = vadd.f32 0.0, %v5433
      %v5435 = vpop.f32.mrb[0].mxu0
      %v5436 = vadd.f32 0.0, %v5435
      %5437 = vmatprep.mubr.f32.mxu0 0.0
      %5438 = vmatmul.mubr.f32.gmra.mrb[0].mxu0 %v5307
      %v5439 = vpop.f32.mrb[0].mxu0
      %v5440 = vadd.f32 0.0, %v5439
      %v5441 = vpop.f32.mrb[0].mxu0
      %v5442 = vadd.f32 0.0, %v5441
      %5443 = vmatprep.mubr.f32.mxu0 0.0
      %5444 = vmatmul.mubr.f32.gmra.mrb[0].mxu0 %v5308
      %v5445 = vpop.f32.mrb[0].mxu0
      %v5446 = vadd.f32 0.0, %v5445
      %v5447 = vpop.f32.mrb[0].mxu0
      %v5448 = vadd.f32 0.0, %v5447
      %5449 = vmatprep.mubr.f32.mxu0 0.0
      %5450 = vmatmul.mubr.f32.gmra.mrb[0].mxu0 %v5309
      %v5451 = vpop.f32.mrb[0].mxu0
      %v5452 = vadd.f32 0.0, %v5451
      %v5453 = vpop.f32.mrb[0].mxu0
      %v5454 = vadd.f32 0.0, %v5453
      %5455 = vmatprep.mubr.f32.mxu0 0.0
      %5456 = vmatmul.mubr.f32.gmra.mrb[0].mxu0 %v5310
      %v5457 = vpop.f32.mrb[0].mxu0
      %v5458 = vadd.f32 0.0, %v5457
      %v5459 = vpop.f32.mrb[0].mxu0
      %v5460 = vadd.f32 0.0, %v5459
      %5461 = vmatprep.mubr.f32.mxu0 0.0
      %5462 = vmatmul.mubr.f32.gmra.mrb[0].mxu0 %v5311
      %v5463 = vpop.f32.mrb[0].mxu0
      %v5464 = vadd.f32 0.0, %v5463
      %v5465 = vpop.f32.mrb[0].mxu0
      %v5466 = vadd.f32 0.0, %v5465
      %5467 = vmatprep.mubr.f32.mxu0 0.0
      %5468 = vmatmul.mubr.f32.gmra.mrb[0].mxu0 %v5312
      %v5469 = vpop.f32.mrb[0].mxu0
      %v5470 = vadd.f32 0.0, %v5469
      %v5471 = vpop.f32.mrb[0].mxu0
      %v5472 = vadd.f32 0.0, %v5471
      %5473 = vdwg.mxu0
      %v5474 = vadd.f32 %v5264, %v5380
      %v5475 = vadd.f32 %v5265, %v5382
      %v5476 = vadd.f32 %v5266, %v5386
      %v5477 = vadd.f32 %v5267, %v5388
      %v5478 = vadd.f32 %v5268, %v5392
      %v5479 = vadd.f32 %v5269, %v5394
      %v5480 = vadd.f32 %v5270, %v5398
      %v5481 = vadd.f32 %v5271, %v5400
      %v5482 = vadd.f32 %v5272, %v5404
      %v5483 = vadd.f32 %v5273, %v5406
      %v5484 = vadd.f32 %v5274, %v5410
      %v5485 = vadd.f32 %v5275, %v5412
      %v5486 = vadd.f32 %v5276, %v5416
      %v5487 = vadd.f32 %v5277, %v5418
      %v5488 = vadd.f32 %v5278, %v5422
      %v5489 = vadd.f32 %v5279, %v5424
      %v5490 = vadd.f32 %v5280, %v5428
      %v5491 = vadd.f32 %v5281, %v5430
      %v5492 = vadd.f32 %v5282, %v5434
      %v5493 = vadd.f32 %v5283, %v5436
      %v5494 = vadd.f32 %v5284, %v5440
      %v5495 = vadd.f32 %v5285, %v5442
      %v5496 = vadd.f32 %v5286, %v5446
      %v5497 = vadd.f32 %v5287, %v5448
      %v5498 = vadd.f32 %v5288, %v5452
      %v5499 = vadd.f32 %v5289, %v5454
      %v5500 = vadd.f32 %v5290, %v5458
      %v5501 = vadd.f32 %v5291, %v5460
      %v5502 = vadd.f32 %v5292, %v5464
      %v5503 = vadd.f32 %v5293, %v5466
      %v5504 = vadd.f32 %v5294, %v5470
      %v5505 = vadd.f32 %v5295, %v5472
      %5506 = vst [vmem:[#allocation2] sm:$0xff] %v5474
      %5507 = vst [vmem:[#allocation2 + $0x8] sm:$0xff] %v5475
      %5508 = vst [vmem:[#allocation2 + $0x10] sm:$0xff] %v5476
      %5509 = vst [vmem:[#allocation2 + $0x18] sm:$0xff] %v5477
      %5510 = vst [vmem:[#allocation2 + $0x20] sm:$0xff] %v5478
      %5511 = vst [vmem:[#allocation2 + $0x28] sm:$0xff] %v5479
      %5512 = vst [vmem:[#allocation2 + $0x30] sm:$0xff] %v5480
      %5513 = vst [vmem:[#allocation2 + $0x38] sm:$0xff] %v5481
      %5514 = vst [vmem:[#allocation2 + $0x40] sm:$0xff] %v5482
      %5515 = vst [vmem:[#allocation2 + $0x48] sm:$0xff] %v5483
      %5516 = vst [vmem:[#allocation2 + $0x50] sm:$0xff] %v5484
      %5517 = vst [vmem:[#allocation2 + $0x58] sm:$0xff] %v5485
      %5518 = vst [vmem:[#allocation2 + $0x60] sm:$0xff] %v5486
      %5519 = vst [vmem:[#allocation2 + $0x68] sm:$0xff] %v5487
      %5520 = vst [vmem:[#allocation2 + $0x70] sm:$0xff] %v5488
      %5521 = vst [vmem:[#allocation2 + $0x78] sm:$0xff] %v5489
      %5522 = vst [vmem:[#allocation2 + $0x80] sm:$0xff] %v5490
      %5523 = vst [vmem:[#allocation2 + $0x88] sm:$0xff] %v5491
      %5524 = vst [vmem:[#allocation2 + $0x90] sm:$0xff] %v5492
      %5525 = vst [vmem:[#allocation2 + $0x98] sm:$0xff] %v5493
      %5526 = vst [vmem:[#allocation2 + $0xa0] sm:$0xff] %v5494
      %5527 = vst [vmem:[#allocation2 + $0xa8] sm:$0xff] %v5495
      %5528 = vst [vmem:[#allocation2 + $0xb0] sm:$0xff] %v5496
      %5529 = vst [vmem:[#allocation2 + $0xb8] sm:$0xff] %v5497
      %5530 = vst [vmem:[#allocation2 + $0xc0] sm:$0xff] %v5498
      %5531 = vst [vmem:[#allocation2 + $0xc8] sm:$0xff] %v5499
      %5532 = vst [vmem:[#allocation2 + $0xd0] sm:$0xff] %v5500
      %5533 = vst [vmem:[#allocation2 + $0xd8] sm:$0xff] %v5501
      %5534 = vst [vmem:[#allocation2 + $0xe0] sm:$0xff] %v5502
      %5535 = vst [vmem:[#allocation2 + $0xe8] sm:$0xff] %v5503
      %5536 = vst [vmem:[#allocation2 + $0xf0] sm:$0xff] %v5504
      %5537 = vst [vmem:[#allocation2 + $0xf8] sm:$0xff] %v5505
      %5538 = vrot.lane.b32.xlu0 %v4091, 1
      %v5539 = vpop.permute.xlu0 %5538
      %5540 = vrot.lane.b32.xlu0 %v4093, 1
      %v5541 = vpop.permute.xlu0 %5540
      %5542 = vrot.lane.b32.xlu0 %v4095, 1
      %v5543 = vpop.permute.xlu0 %5542
      %5544 = vrot.lane.b32.xlu0 %v4097, 1
      %v5545 = vpop.permute.xlu0 %5544
      %5546 = vrot.lane.b32.xlu0 %v4099, 1
      %v5547 = vpop.permute.xlu0 %5546
      %5548 = vrot.lane.b32.xlu0 %v4101, 1
      %v5549 = vpop.permute.xlu0 %5548
      %5550 = vrot.lane.b32.xlu0 %v4103, 1
      %v5551 = vpop.permute.xlu0 %5550
      %5552 = vrot.lane.b32.xlu0 %v4105, 1
      %v5553 = vpop.permute.xlu0 %5552
      %5554 = vrot.lane.b32.xlu0 %v4107, 1
      %v5555 = vpop.permute.xlu0 %5554
      %5556 = vrot.lane.b32.xlu0 %v4109, 1
      %v5557 = vpop.permute.xlu0 %5556
      %5558 = vrot.lane.b32.xlu0 %v4111, 1
      %v5559 = vpop.permute.xlu0 %5558
      %5560 = vrot.lane.b32.xlu0 %v4113, 1
      %v5561 = vpop.permute.xlu0 %5560
      %5562 = vrot.lane.b32.xlu0 %v4115, 1
      %v5563 = vpop.permute.xlu0 %5562
      %5564 = vrot.lane.b32.xlu0 %v4117, 1
      %v5565 = vpop.permute.xlu0 %5564
      %5566 = vrot.lane.b32.xlu0 %v4119, 1
      %v5567 = vpop.permute.xlu0 %5566
      %5568 = vrot.lane.b32.xlu0 %v4121, 1
      %v5569 = vpop.permute.xlu0 %5568
      %5570 = vrot.lane.b32.xlu0 %v4092, 1
      %v5571 = vpop.permute.xlu0 %5570
      %5572 = vrot.lane.b32.xlu0 %v4094, 1
      %v5573 = vpop.permute.xlu0 %5572
      %5574 = vrot.lane.b32.xlu0 %v4096, 1
      %v5575 = vpop.permute.xlu0 %5574
      %5576 = vrot.lane.b32.xlu0 %v4098, 1
      %v5577 = vpop.permute.xlu0 %5576
      %5578 = vrot.lane.b32.xlu0 %v4100, 1
      %v5579 = vpop.permute.xlu0 %5578
      %5580 = vrot.lane.b32.xlu0 %v4102, 1
      %v5581 = vpop.permute.xlu0 %5580
      %5582 = vrot.lane.b32.xlu0 %v4104, 1
      %v5583 = vpop.permute.xlu0 %5582
      %5584 = vrot.lane.b32.xlu0 %v4106, 1
      %v5585 = vpop.permute.xlu0 %5584
      %5586 = vrot.lane.b32.xlu0 %v4108, 1
      %v5587 = vpop.permute.xlu0 %5586
      %5588 = vrot.lane.b32.xlu0 %v4110, 1
      %v5589 = vpop.permute.xlu0 %5588
      %5590 = vrot.lane.b32.xlu0 %v4112, 1
      %v5591 = vpop.permute.xlu0 %5590
      %5592 = vrot.lane.b32.xlu0 %v4114, 1
      %v5593 = vpop.permute.xlu0 %5592
      %5594 = vrot.lane.b32.xlu0 %v4116, 1
      %v5595 = vpop.permute.xlu0 %5594
      %5596 = vrot.lane.b32.xlu0 %v4118, 1
      %v5597 = vpop.permute.xlu0 %5596
      %5598 = vrot.lane.b32.xlu0 %v4120, 1
      %v5599 = vpop.permute.xlu0 %5598
      %5600 = vrot.lane.b32.xlu0 %v4122, 1
      %v5601 = vpop.permute.xlu0 %5600
      %v5602 = vsel %vm1852, %v5539, %v5571
      %v5603 = vsel %vm1852, %v5541, %v5573
      %v5604 = vsel %vm1852, %v5543, %v5575
      %v5605 = vsel %vm1852, %v5545, %v5577
      %v5606 = vsel %vm1852, %v5547, %v5579
      %v5607 = vsel %vm1852, %v5549, %v5581
      %v5608 = vsel %vm1852, %v5551, %v5583
      %v5609 = vsel %vm1852, %v5553, %v5585
      %v5610 = vsel %vm1852, %v5555, %v5587
      %v5611 = vsel %vm1852, %v5557, %v5589
      %v5612 = vsel %vm1852, %v5559, %v5591
      %v5613 = vsel %vm1852, %v5561, %v5593
      %v5614 = vsel %vm1852, %v5563, %v5595
      %v5615 = vsel %vm1852, %v5565, %v5597
      %v5616 = vsel %vm1852, %v5567, %v5599
      %v5617 = vsel %vm1852, %v5569, %v5601
      %v5618 = vsel %vm1852, %v5571, %v5539
      %v5619 = vsel %vm1852, %v5573, %v5541
      %v5620 = vsel %vm1852, %v5575, %v5543
      %v5621 = vsel %vm1852, %v5577, %v5545
      %v5622 = vsel %vm1852, %v5579, %v5547
      %v5623 = vsel %vm1852, %v5581, %v5549
      %v5624 = vsel %vm1852, %v5583, %v5551
      %v5625 = vsel %vm1852, %v5585, %v5553
      %v5626 = vsel %vm1852, %v5587, %v5555
      %v5627 = vsel %vm1852, %v5589, %v5557
      %v5628 = vsel %vm1852, %v5591, %v5559
      %v5629 = vsel %vm1852, %v5593, %v5561
      %v5630 = vsel %vm1852, %v5595, %v5563
      %v5631 = vsel %vm1852, %v5597, %v5565
      %v5632 = vsel %vm1852, %v5599, %v5567
      %v5633 = vsel %vm1852, %v5601, %v5569
      %v5634 = vmul.f32 %v5618, %v322
      %v5635 = vmul.f32 %v5602, %v323
      %v5636 = vmul.f32 %v5619, %v322
      %v5637 = vmul.f32 %v5603, %v323
      %v5638 = vmul.f32 %v5620, %v322
      %v5639 = vmul.f32 %v5604, %v323
      %v5640 = vmul.f32 %v5621, %v322
      %v5641 = vmul.f32 %v5605, %v323
      %v5642 = vmul.f32 %v5622, %v322
      %v5643 = vmul.f32 %v5606, %v323
      %v5644 = vmul.f32 %v5623, %v322
      %v5645 = vmul.f32 %v5607, %v323
      %v5646 = vmul.f32 %v5624, %v322
      %v5647 = vmul.f32 %v5608, %v323
      %v5648 = vmul.f32 %v5625, %v322
      %v5649 = vmul.f32 %v5609, %v323
      %v5650 = vmul.f32 %v5626, %v322
      %v5651 = vmul.f32 %v5610, %v323
      %v5652 = vmul.f32 %v5627, %v322
      %v5653 = vmul.f32 %v5611, %v323
      %v5654 = vmul.f32 %v5628, %v322
      %v5655 = vmul.f32 %v5612, %v323
      %v5656 = vmul.f32 %v5629, %v322
      %v5657 = vmul.f32 %v5613, %v323
      %v5658 = vmul.f32 %v5630, %v322
      %v5659 = vmul.f32 %v5614, %v323
      %v5660 = vmul.f32 %v5631, %v322
      %v5661 = vmul.f32 %v5615, %v323
      %v5662 = vmul.f32 %v5632, %v322
      %v5663 = vmul.f32 %v5616, %v323
      %v5664 = vmul.f32 %v5633, %v322
      %v5665 = vmul.f32 %v5617, %v323
      %v5666 = vld [vmem:[#allocation2] sm:$0xff]
      %v5667 = vld [vmem:[#allocation2 + $0x8] sm:$0xff]
      %v5668 = vld [vmem:[#allocation2 + $0x10] sm:$0xff]
      %v5669 = vld [vmem:[#allocation2 + $0x18] sm:$0xff]
      %v5670 = vld [vmem:[#allocation2 + $0x20] sm:$0xff]
      %v5671 = vld [vmem:[#allocation2 + $0x28] sm:$0xff]
      %v5672 = vld [vmem:[#allocation2 + $0x30] sm:$0xff]
      %v5673 = vld [vmem:[#allocation2 + $0x38] sm:$0xff]
      %v5674 = vld [vmem:[#allocation2 + $0x40] sm:$0xff]
      %v5675 = vld [vmem:[#allocation2 + $0x48] sm:$0xff]
      %v5676 = vld [vmem:[#allocation2 + $0x50] sm:$0xff]
      %v5677 = vld [vmem:[#allocation2 + $0x58] sm:$0xff]
      %v5678 = vld [vmem:[#allocation2 + $0x60] sm:$0xff]
      %v5679 = vld [vmem:[#allocation2 + $0x68] sm:$0xff]
      %v5680 = vld [vmem:[#allocation2 + $0x70] sm:$0xff]
      %v5681 = vld [vmem:[#allocation2 + $0x78] sm:$0xff]
      %v5682 = vld [vmem:[#allocation2 + $0x80] sm:$0xff]
      %v5683 = vld [vmem:[#allocation2 + $0x88] sm:$0xff]
      %v5684 = vld [vmem:[#allocation2 + $0x90] sm:$0xff]
      %v5685 = vld [vmem:[#allocation2 + $0x98] sm:$0xff]
      %v5686 = vld [vmem:[#allocation2 + $0xa0] sm:$0xff]
      %v5687 = vld [vmem:[#allocation2 + $0xa8] sm:$0xff]
      %v5688 = vld [vmem:[#allocation2 + $0xb0] sm:$0xff]
      %v5689 = vld [vmem:[#allocation2 + $0xb8] sm:$0xff]
      %v5690 = vld [vmem:[#allocation2 + $0xc0] sm:$0xff]
      %v5691 = vld [vmem:[#allocation2 + $0xc8] sm:$0xff]
      %v5692 = vld [vmem:[#allocation2 + $0xd0] sm:$0xff]
      %v5693 = vld [vmem:[#allocation2 + $0xd8] sm:$0xff]
      %v5694 = vld [vmem:[#allocation2 + $0xe0] sm:$0xff]
      %v5695 = vld [vmem:[#allocation2 + $0xe8] sm:$0xff]
      %v5696 = vld [vmem:[#allocation2 + $0xf0] sm:$0xff]
      %v5697 = vld [vmem:[#allocation2 + $0xf8] sm:$0xff]
      %s5698 = scalar_lea.vmem %s4, 384
      %v5699 = vld [vmem:[%s5698] sm:$0xff]
      %v5700 = vld [vmem:[%s5698 + $0x8] sm:$0xff]
      %v5701 = vld [vmem:[%s5698 + $0x10] sm:$0xff]
      %v5702 = vld [vmem:[%s5698 + $0x18] sm:$0xff]
      %v5703 = vld [vmem:[%s5698 + $0x20] sm:$0xff]
      %v5704 = vld [vmem:[%s5698 + $0x28] sm:$0xff]
      %v5705 = vld [vmem:[%s5698 + $0x30] sm:$0xff]
      %v5706 = vld [vmem:[%s5698 + $0x38] sm:$0xff]
      %v5707 = vld [vmem:[%s5698 + $0x40] sm:$0xff]
      %v5708 = vld [vmem:[%s5698 + $0x48] sm:$0xff]
      %v5709 = vld [vmem:[%s5698 + $0x50] sm:$0xff]
      %v5710 = vld [vmem:[%s5698 + $0x58] sm:$0xff]
      %v5711 = vld [vmem:[%s5698 + $0x60] sm:$0xff]
      %v5712 = vld [vmem:[%s5698 + $0x68] sm:$0xff]
      %v5713 = vld [vmem:[%s5698 + $0x70] sm:$0xff]
      %v5714 = vld [vmem:[%s5698 + $0x78] sm:$0xff]
      %5715 = vmatprep.subr.mxu0 %v5635
      %5716 = vmatpush1.msra.mxu0 %v5634
      %5717 = vmatprep.subr.mxu0 %v5637
      %5718 = vmatpush1.msra.mxu0 %v5636
      %5719 = vmatprep.subr.mxu0 %v5639
      %5720 = vmatpush1.msra.mxu0 %v5638
      %5721 = vmatprep.subr.mxu0 %v5641
      %5722 = vmatpush1.msra.mxu0 %v5640
      %5723 = vmatprep.subr.mxu0 %v5643
      %5724 = vmatpush1.msra.mxu0 %v5642
      %5725 = vmatprep.subr.mxu0 %v5645
      %5726 = vmatpush1.msra.mxu0 %v5644
      %5727 = vmatprep.subr.mxu0 %v5647
      %5728 = vmatpush1.msra.mxu0 %v5646
      %5729 = vmatprep.subr.mxu0 %v5649
      %5730 = vmatpush1.msra.mxu0 %v5648
      %5731 = vmatprep.subr.mxu0 %v5651
      %5732 = vmatpush1.msra.mxu0 %v5650
      %5733 = vmatprep.subr.mxu0 %v5653
      %5734 = vmatpush1.msra.mxu0 %v5652
      %5735 = vmatprep.subr.mxu0 %v5655
      %5736 = vmatpush1.msra.mxu0 %v5654
      %5737 = vmatprep.subr.mxu0 %v5657
      %5738 = vmatpush1.msra.mxu0 %v5656
      %5739 = vmatprep.subr.mxu0 %v5659
      %5740 = vmatpush1.msra.mxu0 %v5658
      %5741 = vmatprep.subr.mxu0 %v5661
      %5742 = vmatpush1.msra.mxu0 %v5660
      %5743 = vmatprep.subr.mxu0 %v5663
      %5744 = vmatpush1.msra.mxu0 %v5662
      %5745 = vmatprep.subr.mxu0 %v5665
      %5746 = vmatpush1.msra.mxu0 %v5664
      %5747 = vmatprep.subr.mxu0 0.0
      %5748 = vmatpush1.msra.mxu0 0.0
      %5749 = vmatprep.subr.mxu0 0.0
      %5750 = vmatpush1.msra.mxu0 0.0
      %5751 = vmatprep.subr.mxu0 0.0
      %5752 = vmatpush1.msra.mxu0 0.0
      %5753 = vmatprep.subr.mxu0 0.0
      %5754 = vmatpush1.msra.mxu0 0.0
      %5755 = vmatprep.subr.mxu0 0.0
      %5756 = vmatpush1.msra.mxu0 0.0
      %5757 = vmatprep.subr.mxu0 0.0
      %5758 = vmatpush1.msra.mxu0 0.0
      %5759 = vmatprep.subr.mxu0 0.0
      %5760 = vmatpush1.msra.mxu0 0.0
      %5761 = vmatprep.subr.mxu0 0.0
      %5762 = vmatpush1.msra.mxu0 0.0
      %5763 = vmatprep.subr.mxu0 0.0
      %5764 = vmatpush1.msra.mxu0 0.0
      %5765 = vmatprep.subr.mxu0 0.0
      %5766 = vmatpush1.msra.mxu0 0.0
      %5767 = vmatprep.subr.mxu0 0.0
      %5768 = vmatpush1.msra.mxu0 0.0
      %5769 = vmatprep.subr.mxu0 0.0
      %5770 = vmatpush1.msra.mxu0 0.0
      %5771 = vmatprep.subr.mxu0 0.0
      %5772 = vmatpush1.msra.mxu0 0.0
      %5773 = vmatprep.subr.mxu0 0.0
      %5774 = vmatpush1.msra.mxu0 0.0
      %5775 = vmatprep.subr.mxu0 0.0
      %5776 = vmatpush1.msra.mxu0 0.0
      %5777 = vmatprep.subr.mxu0 0.0
      %5778 = vmatpush1.msra.mxu0 0.0
      %5779 = vmatprep.mubr.f32.mxu0 0.0
      %5780 = vmatmul.mubr.f32.gmra.mrb[0].mxu0 %v5699
      %v5781 = vpop.f32.mrb[0].mxu0
      %v5782 = vadd.f32 0.0, %v5781
      %v5783 = vpop.f32.mrb[0].mxu0
      %v5784 = vadd.f32 0.0, %v5783
      %5785 = vmatprep.mubr.f32.mxu0 0.0
      %5786 = vmatmul.mubr.f32.gmra.mrb[0].mxu0 %v5700
      %v5787 = vpop.f32.mrb[0].mxu0
      %v5788 = vadd.f32 0.0, %v5787
      %v5789 = vpop.f32.mrb[0].mxu0
      %v5790 = vadd.f32 0.0, %v5789
      %5791 = vmatprep.mubr.f32.mxu0 0.0
      %5792 = vmatmul.mubr.f32.gmra.mrb[0].mxu0 %v5701
      %v5793 = vpop.f32.mrb[0].mxu0
      %v5794 = vadd.f32 0.0, %v5793
      %v5795 = vpop.f32.mrb[0].mxu0
      %v5796 = vadd.f32 0.0, %v5795
      %5797 = vmatprep.mubr.f32.mxu0 0.0
      %5798 = vmatmul.mubr.f32.gmra.mrb[0].mxu0 %v5702
      %v5799 = vpop.f32.mrb[0].mxu0
      %v5800 = vadd.f32 0.0, %v5799
      %v5801 = vpop.f32.mrb[0].mxu0
      %v5802 = vadd.f32 0.0, %v5801
      %5803 = vmatprep.mubr.f32.mxu0 0.0
      %5804 = vmatmul.mubr.f32.gmra.mrb[0].mxu0 %v5703
      %v5805 = vpop.f32.mrb[0].mxu0
      %v5806 = vadd.f32 0.0, %v5805
      %v5807 = vpop.f32.mrb[0].mxu0
      %v5808 = vadd.f32 0.0, %v5807
      %5809 = vmatprep.mubr.f32.mxu0 0.0
      %5810 = vmatmul.mubr.f32.gmra.mrb[0].mxu0 %v5704
      %v5811 = vpop.f32.mrb[0].mxu0
      %v5812 = vadd.f32 0.0, %v5811
      %v5813 = vpop.f32.mrb[0].mxu0
      %v5814 = vadd.f32 0.0, %v5813
      %5815 = vmatprep.mubr.f32.mxu0 0.0
      %5816 = vmatmul.mubr.f32.gmra.mrb[0].mxu0 %v5705
      %v5817 = vpop.f32.mrb[0].mxu0
      %v5818 = vadd.f32 0.0, %v5817
      %v5819 = vpop.f32.mrb[0].mxu0
      %v5820 = vadd.f32 0.0, %v5819
      %5821 = vmatprep.mubr.f32.mxu0 0.0
      %5822 = vmatmul.mubr.f32.gmra.mrb[0].mxu0 %v5706
      %v5823 = vpop.f32.mrb[0].mxu0
      %v5824 = vadd.f32 0.0, %v5823
      %v5825 = vpop.f32.mrb[0].mxu0
      %v5826 = vadd.f32 0.0, %v5825
      %5827 = vmatprep.mubr.f32.mxu0 0.0
      %5828 = vmatmul.mubr.f32.gmra.mrb[0].mxu0 %v5707
      %v5829 = vpop.f32.mrb[0].mxu0
      %v5830 = vadd.f32 0.0, %v5829
      %v5831 = vpop.f32.mrb[0].mxu0
      %v5832 = vadd.f32 0.0, %v5831
      %5833 = vmatprep.mubr.f32.mxu0 0.0
      %5834 = vmatmul.mubr.f32.gmra.mrb[0].mxu0 %v5708
      %v5835 = vpop.f32.mrb[0].mxu0
      %v5836 = vadd.f32 0.0, %v5835
      %v5837 = vpop.f32.mrb[0].mxu0
      %v5838 = vadd.f32 0.0, %v5837
      %5839 = vmatprep.mubr.f32.mxu0 0.0
      %5840 = vmatmul.mubr.f32.gmra.mrb[0].mxu0 %v5709
      %v5841 = vpop.f32.mrb[0].mxu0
      %v5842 = vadd.f32 0.0, %v5841
      %v5843 = vpop.f32.mrb[0].mxu0
      %v5844 = vadd.f32 0.0, %v5843
      %5845 = vmatprep.mubr.f32.mxu0 0.0
      %5846 = vmatmul.mubr.f32.gmra.mrb[0].mxu0 %v5710
      %v5847 = vpop.f32.mrb[0].mxu0
      %v5848 = vadd.f32 0.0, %v5847
      %v5849 = vpop.f32.mrb[0].mxu0
      %v5850 = vadd.f32 0.0, %v5849
      %5851 = vmatprep.mubr.f32.mxu0 0.0
      %5852 = vmatmul.mubr.f32.gmra.mrb[0].mxu0 %v5711
      %v5853 = vpop.f32.mrb[0].mxu0
      %v5854 = vadd.f32 0.0, %v5853
      %v5855 = vpop.f32.mrb[0].mxu0
      %v5856 = vadd.f32 0.0, %v5855
      %5857 = vmatprep.mubr.f32.mxu0 0.0
      %5858 = vmatmul.mubr.f32.gmra.mrb[0].mxu0 %v5712
      %v5859 = vpop.f32.mrb[0].mxu0
      %v5860 = vadd.f32 0.0, %v5859
      %v5861 = vpop.f32.mrb[0].mxu0
      %v5862 = vadd.f32 0.0, %v5861
      %5863 = vmatprep.mubr.f32.mxu0 0.0
      %5864 = vmatmul.mubr.f32.gmra.mrb[0].mxu0 %v5713
      %v5865 = vpop.f32.mrb[0].mxu0
      %v5866 = vadd.f32 0.0, %v5865
      %v5867 = vpop.f32.mrb[0].mxu0
      %v5868 = vadd.f32 0.0, %v5867
      %5869 = vmatprep.mubr.f32.mxu0 0.0
      %5870 = vmatmul.mubr.f32.gmra.mrb[0].mxu0 %v5714
      %v5871 = vpop.f32.mrb[0].mxu0
      %v5872 = vadd.f32 0.0, %v5871
      %v5873 = vpop.f32.mrb[0].mxu0
      %v5874 = vadd.f32 0.0, %v5873
      %5875 = vdwg.mxu0
      %v5876 = vadd.f32 %v5666, %v5782
      %v5877 = vadd.f32 %v5667, %v5784
      %v5878 = vadd.f32 %v5668, %v5788
      %v5879 = vadd.f32 %v5669, %v5790
      %v5880 = vadd.f32 %v5670, %v5794
      %v5881 = vadd.f32 %v5671, %v5796
      %v5882 = vadd.f32 %v5672, %v5800
      %v5883 = vadd.f32 %v5673, %v5802
      %v5884 = vadd.f32 %v5674, %v5806
      %v5885 = vadd.f32 %v5675, %v5808
      %v5886 = vadd.f32 %v5676, %v5812
      %v5887 = vadd.f32 %v5677, %v5814
      %v5888 = vadd.f32 %v5678, %v5818
      %v5889 = vadd.f32 %v5679, %v5820
      %v5890 = vadd.f32 %v5680, %v5824
      %v5891 = vadd.f32 %v5681, %v5826
      %v5892 = vadd.f32 %v5682, %v5830
      %v5893 = vadd.f32 %v5683, %v5832
      %v5894 = vadd.f32 %v5684, %v5836
      %v5895 = vadd.f32 %v5685, %v5838
      %v5896 = vadd.f32 %v5686, %v5842
      %v5897 = vadd.f32 %v5687, %v5844
      %v5898 = vadd.f32 %v5688, %v5848
      %v5899 = vadd.f32 %v5689, %v5850
      %v5900 = vadd.f32 %v5690, %v5854
      %v5901 = vadd.f32 %v5691, %v5856
      %v5902 = vadd.f32 %v5692, %v5860
      %v5903 = vadd.f32 %v5693, %v5862
      %v5904 = vadd.f32 %v5694, %v5866
      %v5905 = vadd.f32 %v5695, %v5868
      %v5906 = vadd.f32 %v5696, %v5872
      %v5907 = vadd.f32 %v5697, %v5874
      %5908 = vst [vmem:[#allocation2] sm:$0xff] %v5876
      %5909 = vst [vmem:[#allocation2 + $0x8] sm:$0xff] %v5877
      %5910 = vst [vmem:[#allocation2 + $0x10] sm:$0xff] %v5878
      %5911 = vst [vmem:[#allocation2 + $0x18] sm:$0xff] %v5879
      %5912 = vst [vmem:[#allocation2 + $0x20] sm:$0xff] %v5880
      %5913 = vst [vmem:[#allocation2 + $0x28] sm:$0xff] %v5881
      %5914 = vst [vmem:[#allocation2 + $0x30] sm:$0xff] %v5882
      %5915 = vst [vmem:[#allocation2 + $0x38] sm:$0xff] %v5883
      %5916 = vst [vmem:[#allocation2 + $0x40] sm:$0xff] %v5884
      %5917 = vst [vmem:[#allocation2 + $0x48] sm:$0xff] %v5885
      %5918 = vst [vmem:[#allocation2 + $0x50] sm:$0xff] %v5886
      %5919 = vst [vmem:[#allocation2 + $0x58] sm:$0xff] %v5887
      %5920 = vst [vmem:[#allocation2 + $0x60] sm:$0xff] %v5888
      %5921 = vst [vmem:[#allocation2 + $0x68] sm:$0xff] %v5889
      %5922 = vst [vmem:[#allocation2 + $0x70] sm:$0xff] %v5890
      %5923 = vst [vmem:[#allocation2 + $0x78] sm:$0xff] %v5891
      %5924 = vst [vmem:[#allocation2 + $0x80] sm:$0xff] %v5892
      %5925 = vst [vmem:[#allocation2 + $0x88] sm:$0xff] %v5893
      %5926 = vst [vmem:[#allocation2 + $0x90] sm:$0xff] %v5894
      %5927 = vst [vmem:[#allocation2 + $0x98] sm:$0xff] %v5895
      %5928 = vst [vmem:[#allocation2 + $0xa0] sm:$0xff] %v5896
      %5929 = vst [vmem:[#allocation2 + $0xa8] sm:$0xff] %v5897
      %5930 = vst [vmem:[#allocation2 + $0xb0] sm:$0xff] %v5898
      %5931 = vst [vmem:[#allocation2 + $0xb8] sm:$0xff] %v5899
      %5932 = vst [vmem:[#allocation2 + $0xc0] sm:$0xff] %v5900
      %5933 = vst [vmem:[#allocation2 + $0xc8] sm:$0xff] %v5901
      %5934 = vst [vmem:[#allocation2 + $0xd0] sm:$0xff] %v5902
      %5935 = vst [vmem:[#allocation2 + $0xd8] sm:$0xff] %v5903
      %5936 = vst [vmem:[#allocation2 + $0xe0] sm:$0xff] %v5904
      %5937 = vst [vmem:[#allocation2 + $0xe8] sm:$0xff] %v5905
      %5938 = vst [vmem:[#allocation2 + $0xf0] sm:$0xff] %v5906
      %5939 = vst [vmem:[#allocation2 + $0xf8] sm:$0xff] %v5907
      %5940 = vrot.lane.b32.xlu0 %v4091, 127
      %v5941 = vpop.permute.xlu0 %5940
      %5942 = vrot.lane.b32.xlu0 %v4093, 127
      %v5943 = vpop.permute.xlu0 %5942
      %5944 = vrot.lane.b32.xlu0 %v4095, 127
      %v5945 = vpop.permute.xlu0 %5944
      %5946 = vrot.lane.b32.xlu0 %v4097, 127
      %v5947 = vpop.permute.xlu0 %5946
      %5948 = vrot.lane.b32.xlu0 %v4099, 127
      %v5949 = vpop.permute.xlu0 %5948
      %5950 = vrot.lane.b32.xlu0 %v4101, 127
      %v5951 = vpop.permute.xlu0 %5950
      %5952 = vrot.lane.b32.xlu0 %v4103, 127
      %v5953 = vpop.permute.xlu0 %5952
      %5954 = vrot.lane.b32.xlu0 %v4105, 127
      %v5955 = vpop.permute.xlu0 %5954
      %5956 = vrot.lane.b32.xlu0 %v4107, 127
      %v5957 = vpop.permute.xlu0 %5956
      %5958 = vrot.lane.b32.xlu0 %v4109, 127
      %v5959 = vpop.permute.xlu0 %5958
      %5960 = vrot.lane.b32.xlu0 %v4111, 127
      %v5961 = vpop.permute.xlu0 %5960
      %5962 = vrot.lane.b32.xlu0 %v4113, 127
      %v5963 = vpop.permute.xlu0 %5962
      %5964 = vrot.lane.b32.xlu0 %v4115, 127
      %v5965 = vpop.permute.xlu0 %5964
      %5966 = vrot.lane.b32.xlu0 %v4117, 127
      %v5967 = vpop.permute.xlu0 %5966
      %5968 = vrot.lane.b32.xlu0 %v4119, 127
      %v5969 = vpop.permute.xlu0 %5968
      %5970 = vrot.lane.b32.xlu0 %v4121, 127
      %v5971 = vpop.permute.xlu0 %5970
      %5972 = vrot.lane.b32.xlu0 %v4092, 127
      %v5973 = vpop.permute.xlu0 %5972
      %5974 = vrot.lane.b32.xlu0 %v4094, 127
      %v5975 = vpop.permute.xlu0 %5974
      %5976 = vrot.lane.b32.xlu0 %v4096, 127
      %v5977 = vpop.permute.xlu0 %5976
      %5978 = vrot.lane.b32.xlu0 %v4098, 127
      %v5979 = vpop.permute.xlu0 %5978
      %5980 = vrot.lane.b32.xlu0 %v4100, 127
      %v5981 = vpop.permute.xlu0 %5980
      %5982 = vrot.lane.b32.xlu0 %v4102, 127
      %v5983 = vpop.permute.xlu0 %5982
      %5984 = vrot.lane.b32.xlu0 %v4104, 127
      %v5985 = vpop.permute.xlu0 %5984
      %5986 = vrot.lane.b32.xlu0 %v4106, 127
      %v5987 = vpop.permute.xlu0 %5986
      %5988 = vrot.lane.b32.xlu0 %v4108, 127
      %v5989 = vpop.permute.xlu0 %5988
      %5990 = vrot.lane.b32.xlu0 %v4110, 127
      %v5991 = vpop.permute.xlu0 %5990
      %5992 = vrot.lane.b32.xlu0 %v4112, 127
      %v5993 = vpop.permute.xlu0 %5992
      %5994 = vrot.lane.b32.xlu0 %v4114, 127
      %v5995 = vpop.permute.xlu0 %5994
      %5996 = vrot.lane.b32.xlu0 %v4116, 127
      %v5997 = vpop.permute.xlu0 %5996
      %5998 = vrot.lane.b32.xlu0 %v4118, 127
      %v5999 = vpop.permute.xlu0 %5998
      %6000 = vrot.lane.b32.xlu0 %v4120, 127
      %v6001 = vpop.permute.xlu0 %6000
      %6002 = vrot.lane.b32.xlu0 %v4122, 127
      %v6003 = vpop.permute.xlu0 %6002
      %v6004 = vsel %vm2255, %v5941, %v5973
      %v6005 = vsel %vm2255, %v5943, %v5975
      %v6006 = vsel %vm2255, %v5945, %v5977
      %v6007 = vsel %vm2255, %v5947, %v5979
      %v6008 = vsel %vm2255, %v5949, %v5981
      %v6009 = vsel %vm2255, %v5951, %v5983
      %v6010 = vsel %vm2255, %v5953, %v5985
      %v6011 = vsel %vm2255, %v5955, %v5987
      %v6012 = vsel %vm2255, %v5957, %v5989
      %v6013 = vsel %vm2255, %v5959, %v5991
      %v6014 = vsel %vm2255, %v5961, %v5993
      %v6015 = vsel %vm2255, %v5963, %v5995
      %v6016 = vsel %vm2255, %v5965, %v5997
      %v6017 = vsel %vm2255, %v5967, %v5999
      %v6018 = vsel %vm2255, %v5969, %v6001
      %v6019 = vsel %vm2255, %v5971, %v6003
      %v6020 = vsel %vm2255, %v5973, %v5941
      %v6021 = vsel %vm2255, %v5975, %v5943
      %v6022 = vsel %vm2255, %v5977, %v5945
      %v6023 = vsel %vm2255, %v5979, %v5947
      %v6024 = vsel %vm2255, %v5981, %v5949
      %v6025 = vsel %vm2255, %v5983, %v5951
      %v6026 = vsel %vm2255, %v5985, %v5953
      %v6027 = vsel %vm2255, %v5987, %v5955
      %v6028 = vsel %vm2255, %v5989, %v5957
      %v6029 = vsel %vm2255, %v5991, %v5959
      %v6030 = vsel %vm2255, %v5993, %v5961
      %v6031 = vsel %vm2255, %v5995, %v5963
      %v6032 = vsel %vm2255, %v5997, %v5965
      %v6033 = vsel %vm2255, %v5999, %v5967
      %v6034 = vsel %vm2255, %v6001, %v5969
      %v6035 = vsel %vm2255, %v6003, %v5971
      %v6036 = vmul.f32 %v6004, %v324
      %v6037 = vmul.f32 %v6020, %v325
      %v6038 = vmul.f32 %v6005, %v324
      %v6039 = vmul.f32 %v6021, %v325
      %v6040 = vmul.f32 %v6006, %v324
      %v6041 = vmul.f32 %v6022, %v325
      %v6042 = vmul.f32 %v6007, %v324
      %v6043 = vmul.f32 %v6023, %v325
      %v6044 = vmul.f32 %v6008, %v324
      %v6045 = vmul.f32 %v6024, %v325
      %v6046 = vmul.f32 %v6009, %v324
      %v6047 = vmul.f32 %v6025, %v325
      %v6048 = vmul.f32 %v6010, %v324
      %v6049 = vmul.f32 %v6026, %v325
      %v6050 = vmul.f32 %v6011, %v324
      %v6051 = vmul.f32 %v6027, %v325
      %v6052 = vmul.f32 %v6012, %v324
      %v6053 = vmul.f32 %v6028, %v325
      %v6054 = vmul.f32 %v6013, %v324
      %v6055 = vmul.f32 %v6029, %v325
      %v6056 = vmul.f32 %v6014, %v324
      %v6057 = vmul.f32 %v6030, %v325
      %v6058 = vmul.f32 %v6015, %v324
      %v6059 = vmul.f32 %v6031, %v325
      %v6060 = vmul.f32 %v6016, %v324
      %v6061 = vmul.f32 %v6032, %v325
      %v6062 = vmul.f32 %v6017, %v324
      %v6063 = vmul.f32 %v6033, %v325
      %v6064 = vmul.f32 %v6018, %v324
      %v6065 = vmul.f32 %v6034, %v325
      %v6066 = vmul.f32 %v6019, %v324
      %v6067 = vmul.f32 %v6035, %v325
      %v6068 = vld [vmem:[#allocation2] sm:$0xff]
      %v6069 = vld [vmem:[#allocation2 + $0x8] sm:$0xff]
      %v6070 = vld [vmem:[#allocation2 + $0x10] sm:$0xff]
      %v6071 = vld [vmem:[#allocation2 + $0x18] sm:$0xff]
      %v6072 = vld [vmem:[#allocation2 + $0x20] sm:$0xff]
      %v6073 = vld [vmem:[#allocation2 + $0x28] sm:$0xff]
      %v6074 = vld [vmem:[#allocation2 + $0x30] sm:$0xff]
      %v6075 = vld [vmem:[#allocation2 + $0x38] sm:$0xff]
      %v6076 = vld [vmem:[#allocation2 + $0x40] sm:$0xff]
      %v6077 = vld [vmem:[#allocation2 + $0x48] sm:$0xff]
      %v6078 = vld [vmem:[#allocation2 + $0x50] sm:$0xff]
      %v6079 = vld [vmem:[#allocation2 + $0x58] sm:$0xff]
      %v6080 = vld [vmem:[#allocation2 + $0x60] sm:$0xff]
      %v6081 = vld [vmem:[#allocation2 + $0x68] sm:$0xff]
      %v6082 = vld [vmem:[#allocation2 + $0x70] sm:$0xff]
      %v6083 = vld [vmem:[#allocation2 + $0x78] sm:$0xff]
      %v6084 = vld [vmem:[#allocation2 + $0x80] sm:$0xff]
      %v6085 = vld [vmem:[#allocation2 + $0x88] sm:$0xff]
      %v6086 = vld [vmem:[#allocation2 + $0x90] sm:$0xff]
      %v6087 = vld [vmem:[#allocation2 + $0x98] sm:$0xff]
      %v6088 = vld [vmem:[#allocation2 + $0xa0] sm:$0xff]
      %v6089 = vld [vmem:[#allocation2 + $0xa8] sm:$0xff]
      %v6090 = vld [vmem:[#allocation2 + $0xb0] sm:$0xff]
      %v6091 = vld [vmem:[#allocation2 + $0xb8] sm:$0xff]
      %v6092 = vld [vmem:[#allocation2 + $0xc0] sm:$0xff]
      %v6093 = vld [vmem:[#allocation2 + $0xc8] sm:$0xff]
      %v6094 = vld [vmem:[#allocation2 + $0xd0] sm:$0xff]
      %v6095 = vld [vmem:[#allocation2 + $0xd8] sm:$0xff]
      %v6096 = vld [vmem:[#allocation2 + $0xe0] sm:$0xff]
      %v6097 = vld [vmem:[#allocation2 + $0xe8] sm:$0xff]
      %v6098 = vld [vmem:[#allocation2 + $0xf0] sm:$0xff]
      %v6099 = vld [vmem:[#allocation2 + $0xf8] sm:$0xff]
      %s6100 = scalar_lea.vmem %s4, 640
      %v6101 = vld [vmem:[%s6100] sm:$0xff]
      %v6102 = vld [vmem:[%s6100 + $0x8] sm:$0xff]
      %v6103 = vld [vmem:[%s6100 + $0x10] sm:$0xff]
      %v6104 = vld [vmem:[%s6100 + $0x18] sm:$0xff]
      %v6105 = vld [vmem:[%s6100 + $0x20] sm:$0xff]
      %v6106 = vld [vmem:[%s6100 + $0x28] sm:$0xff]
      %v6107 = vld [vmem:[%s6100 + $0x30] sm:$0xff]
      %v6108 = vld [vmem:[%s6100 + $0x38] sm:$0xff]
      %v6109 = vld [vmem:[%s6100 + $0x40] sm:$0xff]
      %v6110 = vld [vmem:[%s6100 + $0x48] sm:$0xff]
      %v6111 = vld [vmem:[%s6100 + $0x50] sm:$0xff]
      %v6112 = vld [vmem:[%s6100 + $0x58] sm:$0xff]
      %v6113 = vld [vmem:[%s6100 + $0x60] sm:$0xff]
      %v6114 = vld [vmem:[%s6100 + $0x68] sm:$0xff]
      %v6115 = vld [vmem:[%s6100 + $0x70] sm:$0xff]
      %v6116 = vld [vmem:[%s6100 + $0x78] sm:$0xff]
      %6117 = vmatprep.subr.mxu0 %v6037
      %6118 = vmatpush1.msra.mxu0 %v6036
      %6119 = vmatprep.subr.mxu0 %v6039
      %6120 = vmatpush1.msra.mxu0 %v6038
      %6121 = vmatprep.subr.mxu0 %v6041
      %6122 = vmatpush1.msra.mxu0 %v6040
      %6123 = vmatprep.subr.mxu0 %v6043
      %6124 = vmatpush1.msra.mxu0 %v6042
      %6125 = vmatprep.subr.mxu0 %v6045
      %6126 = vmatpush1.msra.mxu0 %v6044
      %6127 = vmatprep.subr.mxu0 %v6047
      %6128 = vmatpush1.msra.mxu0 %v6046
      %6129 = vmatprep.subr.mxu0 %v6049
      %6130 = vmatpush1.msra.mxu0 %v6048
      %6131 = vmatprep.subr.mxu0 %v6051
      %6132 = vmatpush1.msra.mxu0 %v6050
      %6133 = vmatprep.subr.mxu0 %v6053
      %6134 = vmatpush1.msra.mxu0 %v6052
      %6135 = vmatprep.subr.mxu0 %v6055
      %6136 = vmatpush1.msra.mxu0 %v6054
      %6137 = vmatprep.subr.mxu0 %v6057
      %6138 = vmatpush1.msra.mxu0 %v6056
      %6139 = vmatprep.subr.mxu0 %v6059
      %6140 = vmatpush1.msra.mxu0 %v6058
      %6141 = vmatprep.subr.mxu0 %v6061
      %6142 = vmatpush1.msra.mxu0 %v6060
      %6143 = vmatprep.subr.mxu0 %v6063
      %6144 = vmatpush1.msra.mxu0 %v6062
      %6145 = vmatprep.subr.mxu0 %v6065
      %6146 = vmatpush1.msra.mxu0 %v6064
      %6147 = vmatprep.subr.mxu0 %v6067
      %6148 = vmatpush1.msra.mxu0 %v6066
      %6149 = vmatprep.subr.mxu0 0.0
      %6150 = vmatpush1.msra.mxu0 0.0
      %6151 = vmatprep.subr.mxu0 0.0
      %6152 = vmatpush1.msra.mxu0 0.0
      %6153 = vmatprep.subr.mxu0 0.0
      %6154 = vmatpush1.msra.mxu0 0.0
      %6155 = vmatprep.subr.mxu0 0.0
      %6156 = vmatpush1.msra.mxu0 0.0
      %6157 = vmatprep.subr.mxu0 0.0
      %6158 = vmatpush1.msra.mxu0 0.0
      %6159 = vmatprep.subr.mxu0 0.0
      %6160 = vmatpush1.msra.mxu0 0.0
      %6161 = vmatprep.subr.mxu0 0.0
      %6162 = vmatpush1.msra.mxu0 0.0
      %6163 = vmatprep.subr.mxu0 0.0
      %6164 = vmatpush1.msra.mxu0 0.0
      %6165 = vmatprep.subr.mxu0 0.0
      %6166 = vmatpush1.msra.mxu0 0.0
      %6167 = vmatprep.subr.mxu0 0.0
      %6168 = vmatpush1.msra.mxu0 0.0
      %6169 = vmatprep.subr.mxu0 0.0
      %6170 = vmatpush1.msra.mxu0 0.0
      %6171 = vmatprep.subr.mxu0 0.0
      %6172 = vmatpush1.msra.mxu0 0.0
      %6173 = vmatprep.subr.mxu0 0.0
      %6174 = vmatpush1.msra.mxu0 0.0
      %6175 = vmatprep.subr.mxu0 0.0
      %6176 = vmatpush1.msra.mxu0 0.0
      %6177 = vmatprep.subr.mxu0 0.0
      %6178 = vmatpush1.msra.mxu0 0.0
      %6179 = vmatprep.subr.mxu0 0.0
      %6180 = vmatpush1.msra.mxu0 0.0
      %6181 = vmatprep.mubr.f32.mxu0 0.0
      %6182 = vmatmul.mubr.f32.gmra.mrb[0].mxu0 %v6101
      %v6183 = vpop.f32.mrb[0].mxu0
      %v6184 = vadd.f32 0.0, %v6183
      %v6185 = vpop.f32.mrb[0].mxu0
      %v6186 = vadd.f32 0.0, %v6185
      %6187 = vmatprep.mubr.f32.mxu0 0.0
      %6188 = vmatmul.mubr.f32.gmra.mrb[0].mxu0 %v6102
      %v6189 = vpop.f32.mrb[0].mxu0
      %v6190 = vadd.f32 0.0, %v6189
      %v6191 = vpop.f32.mrb[0].mxu0
      %v6192 = vadd.f32 0.0, %v6191
      %6193 = vmatprep.mubr.f32.mxu0 0.0
      %6194 = vmatmul.mubr.f32.gmra.mrb[0].mxu0 %v6103
      %v6195 = vpop.f32.mrb[0].mxu0
      %v6196 = vadd.f32 0.0, %v6195
      %v6197 = vpop.f32.mrb[0].mxu0
      %v6198 = vadd.f32 0.0, %v6197
      %6199 = vmatprep.mubr.f32.mxu0 0.0
      %6200 = vmatmul.mubr.f32.gmra.mrb[0].mxu0 %v6104
      %v6201 = vpop.f32.mrb[0].mxu0
      %v6202 = vadd.f32 0.0, %v6201
      %v6203 = vpop.f32.mrb[0].mxu0
      %v6204 = vadd.f32 0.0, %v6203
      %6205 = vmatprep.mubr.f32.mxu0 0.0
      %6206 = vmatmul.mubr.f32.gmra.mrb[0].mxu0 %v6105
      %v6207 = vpop.f32.mrb[0].mxu0
      %v6208 = vadd.f32 0.0, %v6207
      %v6209 = vpop.f32.mrb[0].mxu0
      %v6210 = vadd.f32 0.0, %v6209
      %6211 = vmatprep.mubr.f32.mxu0 0.0
      %6212 = vmatmul.mubr.f32.gmra.mrb[0].mxu0 %v6106
      %v6213 = vpop.f32.mrb[0].mxu0
      %v6214 = vadd.f32 0.0, %v6213
      %v6215 = vpop.f32.mrb[0].mxu0
      %v6216 = vadd.f32 0.0, %v6215
      %6217 = vmatprep.mubr.f32.mxu0 0.0
      %6218 = vmatmul.mubr.f32.gmra.mrb[0].mxu0 %v6107
      %v6219 = vpop.f32.mrb[0].mxu0
      %v6220 = vadd.f32 0.0, %v6219
      %v6221 = vpop.f32.mrb[0].mxu0
      %v6222 = vadd.f32 0.0, %v6221
      %6223 = vmatprep.mubr.f32.mxu0 0.0
      %6224 = vmatmul.mubr.f32.gmra.mrb[0].mxu0 %v6108
      %v6225 = vpop.f32.mrb[0].mxu0
      %v6226 = vadd.f32 0.0, %v6225
      %v6227 = vpop.f32.mrb[0].mxu0
      %v6228 = vadd.f32 0.0, %v6227
      %6229 = vmatprep.mubr.f32.mxu0 0.0
      %6230 = vmatmul.mubr.f32.gmra.mrb[0].mxu0 %v6109
      %v6231 = vpop.f32.mrb[0].mxu0
      %v6232 = vadd.f32 0.0, %v6231
      %v6233 = vpop.f32.mrb[0].mxu0
      %v6234 = vadd.f32 0.0, %v6233
      %6235 = vmatprep.mubr.f32.mxu0 0.0
      %6236 = vmatmul.mubr.f32.gmra.mrb[0].mxu0 %v6110
      %v6237 = vpop.f32.mrb[0].mxu0
      %v6238 = vadd.f32 0.0, %v6237
      %v6239 = vpop.f32.mrb[0].mxu0
      %v6240 = vadd.f32 0.0, %v6239
      %6241 = vmatprep.mubr.f32.mxu0 0.0
      %6242 = vmatmul.mubr.f32.gmra.mrb[0].mxu0 %v6111
      %v6243 = vpop.f32.mrb[0].mxu0
      %v6244 = vadd.f32 0.0, %v6243
      %v6245 = vpop.f32.mrb[0].mxu0
      %v6246 = vadd.f32 0.0, %v6245
      %6247 = vmatprep.mubr.f32.mxu0 0.0
      %6248 = vmatmul.mubr.f32.gmra.mrb[0].mxu0 %v6112
      %v6249 = vpop.f32.mrb[0].mxu0
      %v6250 = vadd.f32 0.0, %v6249
      %v6251 = vpop.f32.mrb[0].mxu0
      %v6252 = vadd.f32 0.0, %v6251
      %6253 = vmatprep.mubr.f32.mxu0 0.0
      %6254 = vmatmul.mubr.f32.gmra.mrb[0].mxu0 %v6113
      %v6255 = vpop.f32.mrb[0].mxu0
      %v6256 = vadd.f32 0.0, %v6255
      %v6257 = vpop.f32.mrb[0].mxu0
      %v6258 = vadd.f32 0.0, %v6257
      %6259 = vmatprep.mubr.f32.mxu0 0.0
      %6260 = vmatmul.mubr.f32.gmra.mrb[0].mxu0 %v6114
      %v6261 = vpop.f32.mrb[0].mxu0
      %v6262 = vadd.f32 0.0, %v6261
      %v6263 = vpop.f32.mrb[0].mxu0
      %v6264 = vadd.f32 0.0, %v6263
      %6265 = vmatprep.mubr.f32.mxu0 0.0
      %6266 = vmatmul.mubr.f32.gmra.mrb[0].mxu0 %v6115
      %v6267 = vpop.f32.mrb[0].mxu0
      %v6268 = vadd.f32 0.0, %v6267
      %v6269 = vpop.f32.mrb[0].mxu0
      %v6270 = vadd.f32 0.0, %v6269
      %6271 = vmatprep.mubr.f32.mxu0 0.0
      %6272 = vmatmul.mubr.f32.gmra.mrb[0].mxu0 %v6116
      %v6273 = vpop.f32.mrb[0].mxu0
      %v6274 = vadd.f32 0.0, %v6273
      %v6275 = vpop.f32.mrb[0].mxu0
      %v6276 = vadd.f32 0.0, %v6275
      %6277 = vdwg.mxu0
      %v6278 = vadd.f32 %v6068, %v6184
      %v6279 = vadd.f32 %v6069, %v6186
      %v6280 = vadd.f32 %v6070, %v6190
      %v6281 = vadd.f32 %v6071, %v6192
      %v6282 = vadd.f32 %v6072, %v6196
      %v6283 = vadd.f32 %v6073, %v6198
      %v6284 = vadd.f32 %v6074, %v6202
      %v6285 = vadd.f32 %v6075, %v6204
      %v6286 = vadd.f32 %v6076, %v6208
      %v6287 = vadd.f32 %v6077, %v6210
      %v6288 = vadd.f32 %v6078, %v6214
      %v6289 = vadd.f32 %v6079, %v6216
      %v6290 = vadd.f32 %v6080, %v6220
      %v6291 = vadd.f32 %v6081, %v6222
      %v6292 = vadd.f32 %v6082, %v6226
      %v6293 = vadd.f32 %v6083, %v6228
      %v6294 = vadd.f32 %v6084, %v6232
      %v6295 = vadd.f32 %v6085, %v6234
      %v6296 = vadd.f32 %v6086, %v6238
      %v6297 = vadd.f32 %v6087, %v6240
      %v6298 = vadd.f32 %v6088, %v6244
      %v6299 = vadd.f32 %v6089, %v6246
      %v6300 = vadd.f32 %v6090, %v6250
      %v6301 = vadd.f32 %v6091, %v6252
      %v6302 = vadd.f32 %v6092, %v6256
      %v6303 = vadd.f32 %v6093, %v6258
      %v6304 = vadd.f32 %v6094, %v6262
      %v6305 = vadd.f32 %v6095, %v6264
      %v6306 = vadd.f32 %v6096, %v6268
      %v6307 = vadd.f32 %v6097, %v6270
      %v6308 = vadd.f32 %v6098, %v6274
      %v6309 = vadd.f32 %v6099, %v6276
      %6310 = vst [vmem:[#allocation2] sm:$0xff] %v6278
      %6311 = vst [vmem:[#allocation2 + $0x8] sm:$0xff] %v6279
      %6312 = vst [vmem:[#allocation2 + $0x10] sm:$0xff] %v6280
      %6313 = vst [vmem:[#allocation2 + $0x18] sm:$0xff] %v6281
      %6314 = vst [vmem:[#allocation2 + $0x20] sm:$0xff] %v6282
      %6315 = vst [vmem:[#allocation2 + $0x28] sm:$0xff] %v6283
      %6316 = vst [vmem:[#allocation2 + $0x30] sm:$0xff] %v6284
      %6317 = vst [vmem:[#allocation2 + $0x38] sm:$0xff] %v6285
      %6318 = vst [vmem:[#allocation2 + $0x40] sm:$0xff] %v6286
      %6319 = vst [vmem:[#allocation2 + $0x48] sm:$0xff] %v6287
      %6320 = vst [vmem:[#allocation2 + $0x50] sm:$0xff] %v6288
      %6321 = vst [vmem:[#allocation2 + $0x58] sm:$0xff] %v6289
      %6322 = vst [vmem:[#allocation2 + $0x60] sm:$0xff] %v6290
      %6323 = vst [vmem:[#allocation2 + $0x68] sm:$0xff] %v6291
      %6324 = vst [vmem:[#allocation2 + $0x70] sm:$0xff] %v6292
      %6325 = vst [vmem:[#allocation2 + $0x78] sm:$0xff] %v6293
      %6326 = vst [vmem:[#allocation2 + $0x80] sm:$0xff] %v6294
      %6327 = vst [vmem:[#allocation2 + $0x88] sm:$0xff] %v6295
      %6328 = vst [vmem:[#allocation2 + $0x90] sm:$0xff] %v6296
      %6329 = vst [vmem:[#allocation2 + $0x98] sm:$0xff] %v6297
      %6330 = vst [vmem:[#allocation2 + $0xa0] sm:$0xff] %v6298
      %6331 = vst [vmem:[#allocation2 + $0xa8] sm:$0xff] %v6299
      %6332 = vst [vmem:[#allocation2 + $0xb0] sm:$0xff] %v6300
      %6333 = vst [vmem:[#allocation2 + $0xb8] sm:$0xff] %v6301
      %6334 = vst [vmem:[#allocation2 + $0xc0] sm:$0xff] %v6302
      %6335 = vst [vmem:[#allocation2 + $0xc8] sm:$0xff] %v6303
      %6336 = vst [vmem:[#allocation2 + $0xd0] sm:$0xff] %v6304
      %6337 = vst [vmem:[#allocation2 + $0xd8] sm:$0xff] %v6305
      %6338 = vst [vmem:[#allocation2 + $0xe0] sm:$0xff] %v6306
      %6339 = vst [vmem:[#allocation2 + $0xe8] sm:$0xff] %v6307
      %6340 = vst [vmem:[#allocation2 + $0xf0] sm:$0xff] %v6308
      %6341 = vst [vmem:[#allocation2 + $0xf8] sm:$0xff] %v6309
      %6342 = vrot.lane.b32.xlu0 %v4091, 113
      %v6343 = vpop.permute.xlu0 %6342
      %6344 = vrot.lane.b32.xlu0 %v4093, 113
      %v6345 = vpop.permute.xlu0 %6344
      %6346 = vrot.lane.b32.xlu0 %v4095, 113
      %v6347 = vpop.permute.xlu0 %6346
      %6348 = vrot.lane.b32.xlu0 %v4097, 113
      %v6349 = vpop.permute.xlu0 %6348
      %6350 = vrot.lane.b32.xlu0 %v4099, 113
      %v6351 = vpop.permute.xlu0 %6350
      %6352 = vrot.lane.b32.xlu0 %v4101, 113
      %v6353 = vpop.permute.xlu0 %6352
      %6354 = vrot.lane.b32.xlu0 %v4103, 113
      %v6355 = vpop.permute.xlu0 %6354
      %6356 = vrot.lane.b32.xlu0 %v4105, 113
      %v6357 = vpop.permute.xlu0 %6356
      %6358 = vrot.lane.b32.xlu0 %v4107, 113
      %v6359 = vpop.permute.xlu0 %6358
      %6360 = vrot.lane.b32.xlu0 %v4109, 113
      %v6361 = vpop.permute.xlu0 %6360
      %6362 = vrot.lane.b32.xlu0 %v4111, 113
      %v6363 = vpop.permute.xlu0 %6362
      %6364 = vrot.lane.b32.xlu0 %v4113, 113
      %v6365 = vpop.permute.xlu0 %6364
      %6366 = vrot.lane.b32.xlu0 %v4115, 113
      %v6367 = vpop.permute.xlu0 %6366
      %6368 = vrot.lane.b32.xlu0 %v4117, 113
      %v6369 = vpop.permute.xlu0 %6368
      %6370 = vrot.lane.b32.xlu0 %v4119, 113
      %v6371 = vpop.permute.xlu0 %6370
      %6372 = vrot.lane.b32.xlu0 %v4121, 113
      %v6373 = vpop.permute.xlu0 %6372
      %6374 = vrot.lane.b32.xlu0 %v4092, 113
      %v6375 = vpop.permute.xlu0 %6374
      %6376 = vrot.lane.b32.xlu0 %v4094, 113
      %v6377 = vpop.permute.xlu0 %6376
      %6378 = vrot.lane.b32.xlu0 %v4096, 113
      %v6379 = vpop.permute.xlu0 %6378
      %6380 = vrot.lane.b32.xlu0 %v4098, 113
      %v6381 = vpop.permute.xlu0 %6380
      %6382 = vrot.lane.b32.xlu0 %v4100, 113
      %v6383 = vpop.permute.xlu0 %6382
      %6384 = vrot.lane.b32.xlu0 %v4102, 113
      %v6385 = vpop.permute.xlu0 %6384
      %6386 = vrot.lane.b32.xlu0 %v4104, 113
      %v6387 = vpop.permute.xlu0 %6386
      %6388 = vrot.lane.b32.xlu0 %v4106, 113
      %v6389 = vpop.permute.xlu0 %6388
      %6390 = vrot.lane.b32.xlu0 %v4108, 113
      %v6391 = vpop.permute.xlu0 %6390
      %6392 = vrot.lane.b32.xlu0 %v4110, 113
      %v6393 = vpop.permute.xlu0 %6392
      %6394 = vrot.lane.b32.xlu0 %v4112, 113
      %v6395 = vpop.permute.xlu0 %6394
      %6396 = vrot.lane.b32.xlu0 %v4114, 113
      %v6397 = vpop.permute.xlu0 %6396
      %6398 = vrot.lane.b32.xlu0 %v4116, 113
      %v6399 = vpop.permute.xlu0 %6398
      %6400 = vrot.lane.b32.xlu0 %v4118, 113
      %v6401 = vpop.permute.xlu0 %6400
      %6402 = vrot.lane.b32.xlu0 %v4120, 113
      %v6403 = vpop.permute.xlu0 %6402
      %6404 = vrot.lane.b32.xlu0 %v4122, 113
      %v6405 = vpop.permute.xlu0 %6404
      %v6406 = vsel %vm2658, %v6343, %v6375
      %v6407 = vsel %vm2658, %v6345, %v6377
      %v6408 = vsel %vm2658, %v6347, %v6379
      %v6409 = vsel %vm2658, %v6349, %v6381
      %v6410 = vsel %vm2658, %v6351, %v6383
      %v6411 = vsel %vm2658, %v6353, %v6385
      %v6412 = vsel %vm2658, %v6355, %v6387
      %v6413 = vsel %vm2658, %v6357, %v6389
      %v6414 = vsel %vm2658, %v6359, %v6391
      %v6415 = vsel %vm2658, %v6361, %v6393
      %v6416 = vsel %vm2658, %v6363, %v6395
      %v6417 = vsel %vm2658, %v6365, %v6397
      %v6418 = vsel %vm2658, %v6367, %v6399
      %v6419 = vsel %vm2658, %v6369, %v6401
      %v6420 = vsel %vm2658, %v6371, %v6403
      %v6421 = vsel %vm2658, %v6373, %v6405
      %v6422 = vsel %vm2658, %v6375, %v6343
      %v6423 = vsel %vm2658, %v6377, %v6345
      %v6424 = vsel %vm2658, %v6379, %v6347
      %v6425 = vsel %vm2658, %v6381, %v6349
      %v6426 = vsel %vm2658, %v6383, %v6351
      %v6427 = vsel %vm2658, %v6385, %v6353
      %v6428 = vsel %vm2658, %v6387, %v6355
      %v6429 = vsel %vm2658, %v6389, %v6357
      %v6430 = vsel %vm2658, %v6391, %v6359
      %v6431 = vsel %vm2658, %v6393, %v6361
      %v6432 = vsel %vm2658, %v6395, %v6363
      %v6433 = vsel %vm2658, %v6397, %v6365
      %v6434 = vsel %vm2658, %v6399, %v6367
      %v6435 = vsel %vm2658, %v6401, %v6369
      %v6436 = vsel %vm2658, %v6403, %v6371
      %v6437 = vsel %vm2658, %v6405, %v6373
      %v6438 = vmul.f32 %v6406, %v330
      %v6439 = vmul.f32 %v6422, %v331
      %v6440 = vmul.f32 %v6407, %v330
      %v6441 = vmul.f32 %v6423, %v331
      %v6442 = vmul.f32 %v6408, %v330
      %v6443 = vmul.f32 %v6424, %v331
      %v6444 = vmul.f32 %v6409, %v330
      %v6445 = vmul.f32 %v6425, %v331
      %v6446 = vmul.f32 %v6410, %v330
      %v6447 = vmul.f32 %v6426, %v331
      %v6448 = vmul.f32 %v6411, %v330
      %v6449 = vmul.f32 %v6427, %v331
      %v6450 = vmul.f32 %v6412, %v330
      %v6451 = vmul.f32 %v6428, %v331
      %v6452 = vmul.f32 %v6413, %v330
      %v6453 = vmul.f32 %v6429, %v331
      %v6454 = vmul.f32 %v6414, %v330
      %v6455 = vmul.f32 %v6430, %v331
      %v6456 = vmul.f32 %v6415, %v330
      %v6457 = vmul.f32 %v6431, %v331
      %v6458 = vmul.f32 %v6416, %v330
      %v6459 = vmul.f32 %v6432, %v331
      %v6460 = vmul.f32 %v6417, %v330
      %v6461 = vmul.f32 %v6433, %v331
      %v6462 = vmul.f32 %v6418, %v330
      %v6463 = vmul.f32 %v6434, %v331
      %v6464 = vmul.f32 %v6419, %v330
      %v6465 = vmul.f32 %v6435, %v331
      %v6466 = vmul.f32 %v6420, %v330
      %v6467 = vmul.f32 %v6436, %v331
      %v6468 = vmul.f32 %v6421, %v330
      %v6469 = vmul.f32 %v6437, %v331
      %v6470 = vld [vmem:[#allocation2] sm:$0xff]
      %v6471 = vld [vmem:[#allocation2 + $0x8] sm:$0xff]
      %v6472 = vld [vmem:[#allocation2 + $0x10] sm:$0xff]
      %v6473 = vld [vmem:[#allocation2 + $0x18] sm:$0xff]
      %v6474 = vld [vmem:[#allocation2 + $0x20] sm:$0xff]
      %v6475 = vld [vmem:[#allocation2 + $0x28] sm:$0xff]
      %v6476 = vld [vmem:[#allocation2 + $0x30] sm:$0xff]
      %v6477 = vld [vmem:[#allocation2 + $0x38] sm:$0xff]
      %v6478 = vld [vmem:[#allocation2 + $0x40] sm:$0xff]
      %v6479 = vld [vmem:[#allocation2 + $0x48] sm:$0xff]
      %v6480 = vld [vmem:[#allocation2 + $0x50] sm:$0xff]
      %v6481 = vld [vmem:[#allocation2 + $0x58] sm:$0xff]
      %v6482 = vld [vmem:[#allocation2 + $0x60] sm:$0xff]
      %v6483 = vld [vmem:[#allocation2 + $0x68] sm:$0xff]
      %v6484 = vld [vmem:[#allocation2 + $0x70] sm:$0xff]
      %v6485 = vld [vmem:[#allocation2 + $0x78] sm:$0xff]
      %v6486 = vld [vmem:[#allocation2 + $0x80] sm:$0xff]
      %v6487 = vld [vmem:[#allocation2 + $0x88] sm:$0xff]
      %v6488 = vld [vmem:[#allocation2 + $0x90] sm:$0xff]
      %v6489 = vld [vmem:[#allocation2 + $0x98] sm:$0xff]
      %v6490 = vld [vmem:[#allocation2 + $0xa0] sm:$0xff]
      %v6491 = vld [vmem:[#allocation2 + $0xa8] sm:$0xff]
      %v6492 = vld [vmem:[#allocation2 + $0xb0] sm:$0xff]
      %v6493 = vld [vmem:[#allocation2 + $0xb8] sm:$0xff]
      %v6494 = vld [vmem:[#allocation2 + $0xc0] sm:$0xff]
      %v6495 = vld [vmem:[#allocation2 + $0xc8] sm:$0xff]
      %v6496 = vld [vmem:[#allocation2 + $0xd0] sm:$0xff]
      %v6497 = vld [vmem:[#allocation2 + $0xd8] sm:$0xff]
      %v6498 = vld [vmem:[#allocation2 + $0xe0] sm:$0xff]
      %v6499 = vld [vmem:[#allocation2 + $0xe8] sm:$0xff]
      %v6500 = vld [vmem:[#allocation2 + $0xf0] sm:$0xff]
      %v6501 = vld [vmem:[#allocation2 + $0xf8] sm:$0xff]
      %s6502 = scalar_lea.vmem %s4, 768
      %v6503 = vld [vmem:[%s6502] sm:$0xff]
      %v6504 = vld [vmem:[%s6502 + $0x8] sm:$0xff]
      %v6505 = vld [vmem:[%s6502 + $0x10] sm:$0xff]
      %v6506 = vld [vmem:[%s6502 + $0x18] sm:$0xff]
      %v6507 = vld [vmem:[%s6502 + $0x20] sm:$0xff]
      %v6508 = vld [vmem:[%s6502 + $0x28] sm:$0xff]
      %v6509 = vld [vmem:[%s6502 + $0x30] sm:$0xff]
      %v6510 = vld [vmem:[%s6502 + $0x38] sm:$0xff]
      %v6511 = vld [vmem:[%s6502 + $0x40] sm:$0xff]
      %v6512 = vld [vmem:[%s6502 + $0x48] sm:$0xff]
      %v6513 = vld [vmem:[%s6502 + $0x50] sm:$0xff]
      %v6514 = vld [vmem:[%s6502 + $0x58] sm:$0xff]
      %v6515 = vld [vmem:[%s6502 + $0x60] sm:$0xff]
      %v6516 = vld [vmem:[%s6502 + $0x68] sm:$0xff]
      %v6517 = vld [vmem:[%s6502 + $0x70] sm:$0xff]
      %v6518 = vld [vmem:[%s6502 + $0x78] sm:$0xff]
      %6519 = vmatprep.subr.mxu0 %v6439
      %6520 = vmatpush1.msra.mxu0 %v6438
      %6521 = vmatprep.subr.mxu0 %v6441
      %6522 = vmatpush1.msra.mxu0 %v6440
      %6523 = vmatprep.subr.mxu0 %v6443
      %6524 = vmatpush1.msra.mxu0 %v6442
      %6525 = vmatprep.subr.mxu0 %v6445
      %6526 = vmatpush1.msra.mxu0 %v6444
      %6527 = vmatprep.subr.mxu0 %v6447
      %6528 = vmatpush1.msra.mxu0 %v6446
      %6529 = vmatprep.subr.mxu0 %v6449
      %6530 = vmatpush1.msra.mxu0 %v6448
      %6531 = vmatprep.subr.mxu0 %v6451
      %6532 = vmatpush1.msra.mxu0 %v6450
      %6533 = vmatprep.subr.mxu0 %v6453
      %6534 = vmatpush1.msra.mxu0 %v6452
      %6535 = vmatprep.subr.mxu0 %v6455
      %6536 = vmatpush1.msra.mxu0 %v6454
      %6537 = vmatprep.subr.mxu0 %v6457
      %6538 = vmatpush1.msra.mxu0 %v6456
      %6539 = vmatprep.subr.mxu0 %v6459
      %6540 = vmatpush1.msra.mxu0 %v6458
      %6541 = vmatprep.subr.mxu0 %v6461
      %6542 = vmatpush1.msra.mxu0 %v6460
      %6543 = vmatprep.subr.mxu0 %v6463
      %6544 = vmatpush1.msra.mxu0 %v6462
      %6545 = vmatprep.subr.mxu0 %v6465
      %6546 = vmatpush1.msra.mxu0 %v6464
      %6547 = vmatprep.subr.mxu0 %v6467
      %6548 = vmatpush1.msra.mxu0 %v6466
      %6549 = vmatprep.subr.mxu0 %v6469
      %6550 = vmatpush1.msra.mxu0 %v6468
      %6551 = vmatprep.subr.mxu0 0.0
      %6552 = vmatpush1.msra.mxu0 0.0
      %6553 = vmatprep.subr.mxu0 0.0
      %6554 = vmatpush1.msra.mxu0 0.0
      %6555 = vmatprep.subr.mxu0 0.0
      %6556 = vmatpush1.msra.mxu0 0.0
      %6557 = vmatprep.subr.mxu0 0.0
      %6558 = vmatpush1.msra.mxu0 0.0
      %6559 = vmatprep.subr.mxu0 0.0
      %6560 = vmatpush1.msra.mxu0 0.0
      %6561 = vmatprep.subr.mxu0 0.0
      %6562 = vmatpush1.msra.mxu0 0.0
      %6563 = vmatprep.subr.mxu0 0.0
      %6564 = vmatpush1.msra.mxu0 0.0
      %6565 = vmatprep.subr.mxu0 0.0
      %6566 = vmatpush1.msra.mxu0 0.0
      %6567 = vmatprep.subr.mxu0 0.0
      %6568 = vmatpush1.msra.mxu0 0.0
      %6569 = vmatprep.subr.mxu0 0.0
      %6570 = vmatpush1.msra.mxu0 0.0
      %6571 = vmatprep.subr.mxu0 0.0
      %6572 = vmatpush1.msra.mxu0 0.0
      %6573 = vmatprep.subr.mxu0 0.0
      %6574 = vmatpush1.msra.mxu0 0.0
      %6575 = vmatprep.subr.mxu0 0.0
      %6576 = vmatpush1.msra.mxu0 0.0
      %6577 = vmatprep.subr.mxu0 0.0
      %6578 = vmatpush1.msra.mxu0 0.0
      %6579 = vmatprep.subr.mxu0 0.0
      %6580 = vmatpush1.msra.mxu0 0.0
      %6581 = vmatprep.subr.mxu0 0.0
      %6582 = vmatpush1.msra.mxu0 0.0
      %6583 = vmatprep.mubr.f32.mxu0 0.0
      %6584 = vmatmul.mubr.f32.gmra.mrb[0].mxu0 %v6503
      %v6585 = vpop.f32.mrb[0].mxu0
      %v6586 = vadd.f32 0.0, %v6585
      %v6587 = vpop.f32.mrb[0].mxu0
      %v6588 = vadd.f32 0.0, %v6587
      %6589 = vmatprep.mubr.f32.mxu0 0.0
      %6590 = vmatmul.mubr.f32.gmra.mrb[0].mxu0 %v6504
      %v6591 = vpop.f32.mrb[0].mxu0
      %v6592 = vadd.f32 0.0, %v6591
      %v6593 = vpop.f32.mrb[0].mxu0
      %v6594 = vadd.f32 0.0, %v6593
      %6595 = vmatprep.mubr.f32.mxu0 0.0
      %6596 = vmatmul.mubr.f32.gmra.mrb[0].mxu0 %v6505
      %v6597 = vpop.f32.mrb[0].mxu0
      %v6598 = vadd.f32 0.0, %v6597
      %v6599 = vpop.f32.mrb[0].mxu0
      %v6600 = vadd.f32 0.0, %v6599
      %6601 = vmatprep.mubr.f32.mxu0 0.0
      %6602 = vmatmul.mubr.f32.gmra.mrb[0].mxu0 %v6506
      %v6603 = vpop.f32.mrb[0].mxu0
      %v6604 = vadd.f32 0.0, %v6603
      %v6605 = vpop.f32.mrb[0].mxu0
      %v6606 = vadd.f32 0.0, %v6605
      %6607 = vmatprep.mubr.f32.mxu0 0.0
      %6608 = vmatmul.mubr.f32.gmra.mrb[0].mxu0 %v6507
      %v6609 = vpop.f32.mrb[0].mxu0
      %v6610 = vadd.f32 0.0, %v6609
      %v6611 = vpop.f32.mrb[0].mxu0
      %v6612 = vadd.f32 0.0, %v6611
      %6613 = vmatprep.mubr.f32.mxu0 0.0
      %6614 = vmatmul.mubr.f32.gmra.mrb[0].mxu0 %v6508
      %v6615 = vpop.f32.mrb[0].mxu0
      %v6616 = vadd.f32 0.0, %v6615
      %v6617 = vpop.f32.mrb[0].mxu0
      %v6618 = vadd.f32 0.0, %v6617
      %6619 = vmatprep.mubr.f32.mxu0 0.0
      %6620 = vmatmul.mubr.f32.gmra.mrb[0].mxu0 %v6509
      %v6621 = vpop.f32.mrb[0].mxu0
      %v6622 = vadd.f32 0.0, %v6621
      %v6623 = vpop.f32.mrb[0].mxu0
      %v6624 = vadd.f32 0.0, %v6623
      %6625 = vmatprep.mubr.f32.mxu0 0.0
      %6626 = vmatmul.mubr.f32.gmra.mrb[0].mxu0 %v6510
      %v6627 = vpop.f32.mrb[0].mxu0
      %v6628 = vadd.f32 0.0, %v6627
      %v6629 = vpop.f32.mrb[0].mxu0
      %v6630 = vadd.f32 0.0, %v6629
      %6631 = vmatprep.mubr.f32.mxu0 0.0
      %6632 = vmatmul.mubr.f32.gmra.mrb[0].mxu0 %v6511
      %v6633 = vpop.f32.mrb[0].mxu0
      %v6634 = vadd.f32 0.0, %v6633
      %v6635 = vpop.f32.mrb[0].mxu0
      %v6636 = vadd.f32 0.0, %v6635
      %6637 = vmatprep.mubr.f32.mxu0 0.0
      %6638 = vmatmul.mubr.f32.gmra.mrb[0].mxu0 %v6512
      %v6639 = vpop.f32.mrb[0].mxu0
      %v6640 = vadd.f32 0.0, %v6639
      %v6641 = vpop.f32.mrb[0].mxu0
      %v6642 = vadd.f32 0.0, %v6641
      %6643 = vmatprep.mubr.f32.mxu0 0.0
      %6644 = vmatmul.mubr.f32.gmra.mrb[0].mxu0 %v6513
      %v6645 = vpop.f32.mrb[0].mxu0
      %v6646 = vadd.f32 0.0, %v6645
      %v6647 = vpop.f32.mrb[0].mxu0
      %v6648 = vadd.f32 0.0, %v6647
      %6649 = vmatprep.mubr.f32.mxu0 0.0
      %6650 = vmatmul.mubr.f32.gmra.mrb[0].mxu0 %v6514
      %v6651 = vpop.f32.mrb[0].mxu0
      %v6652 = vadd.f32 0.0, %v6651
      %v6653 = vpop.f32.mrb[0].mxu0
      %v6654 = vadd.f32 0.0, %v6653
      %6655 = vmatprep.mubr.f32.mxu0 0.0
      %6656 = vmatmul.mubr.f32.gmra.mrb[0].mxu0 %v6515
      %v6657 = vpop.f32.mrb[0].mxu0
      %v6658 = vadd.f32 0.0, %v6657
      %v6659 = vpop.f32.mrb[0].mxu0
      %v6660 = vadd.f32 0.0, %v6659
      %6661 = vmatprep.mubr.f32.mxu0 0.0
      %6662 = vmatmul.mubr.f32.gmra.mrb[0].mxu0 %v6516
      %v6663 = vpop.f32.mrb[0].mxu0
      %v6664 = vadd.f32 0.0, %v6663
      %v6665 = vpop.f32.mrb[0].mxu0
      %v6666 = vadd.f32 0.0, %v6665
      %6667 = vmatprep.mubr.f32.mxu0 0.0
      %6668 = vmatmul.mubr.f32.gmra.mrb[0].mxu0 %v6517
      %v6669 = vpop.f32.mrb[0].mxu0
      %v6670 = vadd.f32 0.0, %v6669
      %v6671 = vpop.f32.mrb[0].mxu0
      %v6672 = vadd.f32 0.0, %v6671
      %6673 = vmatprep.mubr.f32.mxu0 0.0
      %6674 = vmatmul.mubr.f32.gmra.mrb[0].mxu0 %v6518
      %v6675 = vpop.f32.mrb[0].mxu0
      %v6676 = vadd.f32 0.0, %v6675
      %v6677 = vpop.f32.mrb[0].mxu0
      %v6678 = vadd.f32 0.0, %v6677
      %6679 = vdwg.mxu0
      %v6680 = vadd.f32 %v6470, %v6586
      %v6681 = vadd.f32 %v6471, %v6588
      %v6682 = vadd.f32 %v6472, %v6592
      %v6683 = vadd.f32 %v6473, %v6594
      %v6684 = vadd.f32 %v6474, %v6598
      %v6685 = vadd.f32 %v6475, %v6600
      %v6686 = vadd.f32 %v6476, %v6604
      %v6687 = vadd.f32 %v6477, %v6606
      %v6688 = vadd.f32 %v6478, %v6610
      %v6689 = vadd.f32 %v6479, %v6612
      %v6690 = vadd.f32 %v6480, %v6616
      %v6691 = vadd.f32 %v6481, %v6618
      %v6692 = vadd.f32 %v6482, %v6622
      %v6693 = vadd.f32 %v6483, %v6624
      %v6694 = vadd.f32 %v6484, %v6628
      %v6695 = vadd.f32 %v6485, %v6630
      %v6696 = vadd.f32 %v6486, %v6634
      %v6697 = vadd.f32 %v6487, %v6636
      %v6698 = vadd.f32 %v6488, %v6640
      %v6699 = vadd.f32 %v6489, %v6642
      %v6700 = vadd.f32 %v6490, %v6646
      %v6701 = vadd.f32 %v6491, %v6648
      %v6702 = vadd.f32 %v6492, %v6652
      %v6703 = vadd.f32 %v6493, %v6654
      %v6704 = vadd.f32 %v6494, %v6658
      %v6705 = vadd.f32 %v6495, %v6660
      %v6706 = vadd.f32 %v6496, %v6664
      %v6707 = vadd.f32 %v6497, %v6666
      %v6708 = vadd.f32 %v6498, %v6670
      %v6709 = vadd.f32 %v6499, %v6672
      %v6710 = vadd.f32 %v6500, %v6676
      %v6711 = vadd.f32 %v6501, %v6678
      %6712 = vst [vmem:[#allocation2] sm:$0xff] %v6680
      %6713 = vst [vmem:[#allocation2 + $0x8] sm:$0xff] %v6681
      %6714 = vst [vmem:[#allocation2 + $0x10] sm:$0xff] %v6682
      %6715 = vst [vmem:[#allocation2 + $0x18] sm:$0xff] %v6683
      %6716 = vst [vmem:[#allocation2 + $0x20] sm:$0xff] %v6684
      %6717 = vst [vmem:[#allocation2 + $0x28] sm:$0xff] %v6685
      %6718 = vst [vmem:[#allocation2 + $0x30] sm:$0xff] %v6686
      %6719 = vst [vmem:[#allocation2 + $0x38] sm:$0xff] %v6687
      %6720 = vst [vmem:[#allocation2 + $0x40] sm:$0xff] %v6688
      %6721 = vst [vmem:[#allocation2 + $0x48] sm:$0xff] %v6689
      %6722 = vst [vmem:[#allocation2 + $0x50] sm:$0xff] %v6690
      %6723 = vst [vmem:[#allocation2 + $0x58] sm:$0xff] %v6691
      %6724 = vst [vmem:[#allocation2 + $0x60] sm:$0xff] %v6692
      %6725 = vst [vmem:[#allocation2 + $0x68] sm:$0xff] %v6693
      %6726 = vst [vmem:[#allocation2 + $0x70] sm:$0xff] %v6694
      %6727 = vst [vmem:[#allocation2 + $0x78] sm:$0xff] %v6695
      %6728 = vst [vmem:[#allocation2 + $0x80] sm:$0xff] %v6696
      %6729 = vst [vmem:[#allocation2 + $0x88] sm:$0xff] %v6697
      %6730 = vst [vmem:[#allocation2 + $0x90] sm:$0xff] %v6698
      %6731 = vst [vmem:[#allocation2 + $0x98] sm:$0xff] %v6699
      %6732 = vst [vmem:[#allocation2 + $0xa0] sm:$0xff] %v6700
      %6733 = vst [vmem:[#allocation2 + $0xa8] sm:$0xff] %v6701
      %6734 = vst [vmem:[#allocation2 + $0xb0] sm:$0xff] %v6702
      %6735 = vst [vmem:[#allocation2 + $0xb8] sm:$0xff] %v6703
      %6736 = vst [vmem:[#allocation2 + $0xc0] sm:$0xff] %v6704
      %6737 = vst [vmem:[#allocation2 + $0xc8] sm:$0xff] %v6705
      %6738 = vst [vmem:[#allocation2 + $0xd0] sm:$0xff] %v6706
      %6739 = vst [vmem:[#allocation2 + $0xd8] sm:$0xff] %v6707
      %6740 = vst [vmem:[#allocation2 + $0xe0] sm:$0xff] %v6708
      %6741 = vst [vmem:[#allocation2 + $0xe8] sm:$0xff] %v6709
      %6742 = vst [vmem:[#allocation2 + $0xf0] sm:$0xff] %v6710
      %6743 = vst [vmem:[#allocation2 + $0xf8] sm:$0xff] %v6711
      %6744 = vrot.lane.b32.xlu0 %v4091, 112
      %v6745 = vpop.permute.xlu0 %6744
      %6746 = vrot.lane.b32.xlu0 %v4093, 112
      %v6747 = vpop.permute.xlu0 %6746
      %6748 = vrot.lane.b32.xlu0 %v4095, 112
      %v6749 = vpop.permute.xlu0 %6748
      %6750 = vrot.lane.b32.xlu0 %v4097, 112
      %v6751 = vpop.permute.xlu0 %6750
      %6752 = vrot.lane.b32.xlu0 %v4099, 112
      %v6753 = vpop.permute.xlu0 %6752
      %6754 = vrot.lane.b32.xlu0 %v4101, 112
      %v6755 = vpop.permute.xlu0 %6754
      %6756 = vrot.lane.b32.xlu0 %v4103, 112
      %v6757 = vpop.permute.xlu0 %6756
      %6758 = vrot.lane.b32.xlu0 %v4105, 112
      %v6759 = vpop.permute.xlu0 %6758
      %6760 = vrot.lane.b32.xlu0 %v4107, 112
      %v6761 = vpop.permute.xlu0 %6760
      %6762 = vrot.lane.b32.xlu0 %v4109, 112
      %v6763 = vpop.permute.xlu0 %6762
      %6764 = vrot.lane.b32.xlu0 %v4111, 112
      %v6765 = vpop.permute.xlu0 %6764
      %6766 = vrot.lane.b32.xlu0 %v4113, 112
      %v6767 = vpop.permute.xlu0 %6766
      %6768 = vrot.lane.b32.xlu0 %v4115, 112
      %v6769 = vpop.permute.xlu0 %6768
      %6770 = vrot.lane.b32.xlu0 %v4117, 112
      %v6771 = vpop.permute.xlu0 %6770
      %6772 = vrot.lane.b32.xlu0 %v4119, 112
      %v6773 = vpop.permute.xlu0 %6772
      %6774 = vrot.lane.b32.xlu0 %v4121, 112
      %v6775 = vpop.permute.xlu0 %6774
      %6776 = vrot.lane.b32.xlu0 %v4092, 112
      %v6777 = vpop.permute.xlu0 %6776
      %6778 = vrot.lane.b32.xlu0 %v4094, 112
      %v6779 = vpop.permute.xlu0 %6778
      %6780 = vrot.lane.b32.xlu0 %v4096, 112
      %v6781 = vpop.permute.xlu0 %6780
      %6782 = vrot.lane.b32.xlu0 %v4098, 112
      %v6783 = vpop.permute.xlu0 %6782
      %6784 = vrot.lane.b32.xlu0 %v4100, 112
      %v6785 = vpop.permute.xlu0 %6784
      %6786 = vrot.lane.b32.xlu0 %v4102, 112
      %v6787 = vpop.permute.xlu0 %6786
      %6788 = vrot.lane.b32.xlu0 %v4104, 112
      %v6789 = vpop.permute.xlu0 %6788
      %6790 = vrot.lane.b32.xlu0 %v4106, 112
      %v6791 = vpop.permute.xlu0 %6790
      %6792 = vrot.lane.b32.xlu0 %v4108, 112
      %v6793 = vpop.permute.xlu0 %6792
      %6794 = vrot.lane.b32.xlu0 %v4110, 112
      %v6795 = vpop.permute.xlu0 %6794
      %6796 = vrot.lane.b32.xlu0 %v4112, 112
      %v6797 = vpop.permute.xlu0 %6796
      %6798 = vrot.lane.b32.xlu0 %v4114, 112
      %v6799 = vpop.permute.xlu0 %6798
      %6800 = vrot.lane.b32.xlu0 %v4116, 112
      %v6801 = vpop.permute.xlu0 %6800
      %6802 = vrot.lane.b32.xlu0 %v4118, 112
      %v6803 = vpop.permute.xlu0 %6802
      %6804 = vrot.lane.b32.xlu0 %v4120, 112
      %v6805 = vpop.permute.xlu0 %6804
      %6806 = vrot.lane.b32.xlu0 %v4122, 112
      %v6807 = vpop.permute.xlu0 %6806
      %v6808 = vsel %vm3061, %v6745, %v6777
      %v6809 = vsel %vm3061, %v6747, %v6779
      %v6810 = vsel %vm3061, %v6749, %v6781
      %v6811 = vsel %vm3061, %v6751, %v6783
      %v6812 = vsel %vm3061, %v6753, %v6785
      %v6813 = vsel %vm3061, %v6755, %v6787
      %v6814 = vsel %vm3061, %v6757, %v6789
      %v6815 = vsel %vm3061, %v6759, %v6791
      %v6816 = vsel %vm3061, %v6761, %v6793
      %v6817 = vsel %vm3061, %v6763, %v6795
      %v6818 = vsel %vm3061, %v6765, %v6797
      %v6819 = vsel %vm3061, %v6767, %v6799
      %v6820 = vsel %vm3061, %v6769, %v6801
      %v6821 = vsel %vm3061, %v6771, %v6803
      %v6822 = vsel %vm3061, %v6773, %v6805
      %v6823 = vsel %vm3061, %v6775, %v6807
      %v6824 = vsel %vm3061, %v6777, %v6745
      %v6825 = vsel %vm3061, %v6779, %v6747
      %v6826 = vsel %vm3061, %v6781, %v6749
      %v6827 = vsel %vm3061, %v6783, %v6751
      %v6828 = vsel %vm3061, %v6785, %v6753
      %v6829 = vsel %vm3061, %v6787, %v6755
      %v6830 = vsel %vm3061, %v6789, %v6757
      %v6831 = vsel %vm3061, %v6791, %v6759
      %v6832 = vsel %vm3061, %v6793, %v6761
      %v6833 = vsel %vm3061, %v6795, %v6763
      %v6834 = vsel %vm3061, %v6797, %v6765
      %v6835 = vsel %vm3061, %v6799, %v6767
      %v6836 = vsel %vm3061, %v6801, %v6769
      %v6837 = vsel %vm3061, %v6803, %v6771
      %v6838 = vsel %vm3061, %v6805, %v6773
      %v6839 = vsel %vm3061, %v6807, %v6775
      %v6840 = vmul.f32 %v6808, %v332
      %v6841 = vmul.f32 %v6824, %v333
      %v6842 = vmul.f32 %v6809, %v332
      %v6843 = vmul.f32 %v6825, %v333
      %v6844 = vmul.f32 %v6810, %v332
      %v6845 = vmul.f32 %v6826, %v333
      %v6846 = vmul.f32 %v6811, %v332
      %v6847 = vmul.f32 %v6827, %v333
      %v6848 = vmul.f32 %v6812, %v332
      %v6849 = vmul.f32 %v6828, %v333
      %v6850 = vmul.f32 %v6813, %v332
      %v6851 = vmul.f32 %v6829, %v333
      %v6852 = vmul.f32 %v6814, %v332
      %v6853 = vmul.f32 %v6830, %v333
      %v6854 = vmul.f32 %v6815, %v332
      %v6855 = vmul.f32 %v6831, %v333
      %v6856 = vmul.f32 %v6816, %v332
      %v6857 = vmul.f32 %v6832, %v333
      %v6858 = vmul.f32 %v6817, %v332
      %v6859 = vmul.f32 %v6833, %v333
      %v6860 = vmul.f32 %v6818, %v332
      %v6861 = vmul.f32 %v6834, %v333
      %v6862 = vmul.f32 %v6819, %v332
      %v6863 = vmul.f32 %v6835, %v333
      %v6864 = vmul.f32 %v6820, %v332
      %v6865 = vmul.f32 %v6836, %v333
      %v6866 = vmul.f32 %v6821, %v332
      %v6867 = vmul.f32 %v6837, %v333
      %v6868 = vmul.f32 %v6822, %v332
      %v6869 = vmul.f32 %v6838, %v333
      %v6870 = vmul.f32 %v6823, %v332
      %v6871 = vmul.f32 %v6839, %v333
      %v6872 = vld [vmem:[#allocation2] sm:$0xff]
      %v6873 = vld [vmem:[#allocation2 + $0x8] sm:$0xff]
      %v6874 = vld [vmem:[#allocation2 + $0x10] sm:$0xff]
      %v6875 = vld [vmem:[#allocation2 + $0x18] sm:$0xff]
      %v6876 = vld [vmem:[#allocation2 + $0x20] sm:$0xff]
      %v6877 = vld [vmem:[#allocation2 + $0x28] sm:$0xff]
      %v6878 = vld [vmem:[#allocation2 + $0x30] sm:$0xff]
      %v6879 = vld [vmem:[#allocation2 + $0x38] sm:$0xff]
      %v6880 = vld [vmem:[#allocation2 + $0x40] sm:$0xff]
      %v6881 = vld [vmem:[#allocation2 + $0x48] sm:$0xff]
      %v6882 = vld [vmem:[#allocation2 + $0x50] sm:$0xff]
      %v6883 = vld [vmem:[#allocation2 + $0x58] sm:$0xff]
      %v6884 = vld [vmem:[#allocation2 + $0x60] sm:$0xff]
      %v6885 = vld [vmem:[#allocation2 + $0x68] sm:$0xff]
      %v6886 = vld [vmem:[#allocation2 + $0x70] sm:$0xff]
      %v6887 = vld [vmem:[#allocation2 + $0x78] sm:$0xff]
      %v6888 = vld [vmem:[#allocation2 + $0x80] sm:$0xff]
      %v6889 = vld [vmem:[#allocation2 + $0x88] sm:$0xff]
      %v6890 = vld [vmem:[#allocation2 + $0x90] sm:$0xff]
      %v6891 = vld [vmem:[#allocation2 + $0x98] sm:$0xff]
      %v6892 = vld [vmem:[#allocation2 + $0xa0] sm:$0xff]
      %v6893 = vld [vmem:[#allocation2 + $0xa8] sm:$0xff]
      %v6894 = vld [vmem:[#allocation2 + $0xb0] sm:$0xff]
      %v6895 = vld [vmem:[#allocation2 + $0xb8] sm:$0xff]
      %v6896 = vld [vmem:[#allocation2 + $0xc0] sm:$0xff]
      %v6897 = vld [vmem:[#allocation2 + $0xc8] sm:$0xff]
      %v6898 = vld [vmem:[#allocation2 + $0xd0] sm:$0xff]
      %v6899 = vld [vmem:[#allocation2 + $0xd8] sm:$0xff]
      %v6900 = vld [vmem:[#allocation2 + $0xe0] sm:$0xff]
      %v6901 = vld [vmem:[#allocation2 + $0xe8] sm:$0xff]
      %v6902 = vld [vmem:[#allocation2 + $0xf0] sm:$0xff]
      %v6903 = vld [vmem:[#allocation2 + $0xf8] sm:$0xff]
      %s6904 = scalar_lea.vmem %s4, 896
      %v6905 = vld [vmem:[%s6904] sm:$0xff]
      %v6906 = vld [vmem:[%s6904 + $0x8] sm:$0xff]
      %v6907 = vld [vmem:[%s6904 + $0x10] sm:$0xff]
      %v6908 = vld [vmem:[%s6904 + $0x18] sm:$0xff]
      %v6909 = vld [vmem:[%s6904 + $0x20] sm:$0xff]
      %v6910 = vld [vmem:[%s6904 + $0x28] sm:$0xff]
      %v6911 = vld [vmem:[%s6904 + $0x30] sm:$0xff]
      %v6912 = vld [vmem:[%s6904 + $0x38] sm:$0xff]
      %v6913 = vld [vmem:[%s6904 + $0x40] sm:$0xff]
      %v6914 = vld [vmem:[%s6904 + $0x48] sm:$0xff]
      %v6915 = vld [vmem:[%s6904 + $0x50] sm:$0xff]
      %v6916 = vld [vmem:[%s6904 + $0x58] sm:$0xff]
      %v6917 = vld [vmem:[%s6904 + $0x60] sm:$0xff]
      %v6918 = vld [vmem:[%s6904 + $0x68] sm:$0xff]
      %v6919 = vld [vmem:[%s6904 + $0x70] sm:$0xff]
      %v6920 = vld [vmem:[%s6904 + $0x78] sm:$0xff]
      %6921 = vmatprep.subr.mxu0 %v6841
      %6922 = vmatpush1.msra.mxu0 %v6840
      %6923 = vmatprep.subr.mxu0 %v6843
      %6924 = vmatpush1.msra.mxu0 %v6842
      %6925 = vmatprep.subr.mxu0 %v6845
      %6926 = vmatpush1.msra.mxu0 %v6844
      %6927 = vmatprep.subr.mxu0 %v6847
      %6928 = vmatpush1.msra.mxu0 %v6846
      %6929 = vmatprep.subr.mxu0 %v6849
      %6930 = vmatpush1.msra.mxu0 %v6848
      %6931 = vmatprep.subr.mxu0 %v6851
      %6932 = vmatpush1.msra.mxu0 %v6850
      %6933 = vmatprep.subr.mxu0 %v6853
      %6934 = vmatpush1.msra.mxu0 %v6852
      %6935 = vmatprep.subr.mxu0 %v6855
      %6936 = vmatpush1.msra.mxu0 %v6854
      %6937 = vmatprep.subr.mxu0 %v6857
      %6938 = vmatpush1.msra.mxu0 %v6856
      %6939 = vmatprep.subr.mxu0 %v6859
      %6940 = vmatpush1.msra.mxu0 %v6858
      %6941 = vmatprep.subr.mxu0 %v6861
      %6942 = vmatpush1.msra.mxu0 %v6860
      %6943 = vmatprep.subr.mxu0 %v6863
      %6944 = vmatpush1.msra.mxu0 %v6862
      %6945 = vmatprep.subr.mxu0 %v6865
      %6946 = vmatpush1.msra.mxu0 %v6864
      %6947 = vmatprep.subr.mxu0 %v6867
      %6948 = vmatpush1.msra.mxu0 %v6866
      %6949 = vmatprep.subr.mxu0 %v6869
      %6950 = vmatpush1.msra.mxu0 %v6868
      %6951 = vmatprep.subr.mxu0 %v6871
      %6952 = vmatpush1.msra.mxu0 %v6870
      %6953 = vmatprep.subr.mxu0 0.0
      %6954 = vmatpush1.msra.mxu0 0.0
      %6955 = vmatprep.subr.mxu0 0.0
      %6956 = vmatpush1.msra.mxu0 0.0
      %6957 = vmatprep.subr.mxu0 0.0
      %6958 = vmatpush1.msra.mxu0 0.0
      %6959 = vmatprep.subr.mxu0 0.0
      %6960 = vmatpush1.msra.mxu0 0.0
      %6961 = vmatprep.subr.mxu0 0.0
      %6962 = vmatpush1.msra.mxu0 0.0
      %6963 = vmatprep.subr.mxu0 0.0
      %6964 = vmatpush1.msra.mxu0 0.0
      %6965 = vmatprep.subr.mxu0 0.0
      %6966 = vmatpush1.msra.mxu0 0.0
      %6967 = vmatprep.subr.mxu0 0.0
      %6968 = vmatpush1.msra.mxu0 0.0
      %6969 = vmatprep.subr.mxu0 0.0
      %6970 = vmatpush1.msra.mxu0 0.0
      %6971 = vmatprep.subr.mxu0 0.0
      %6972 = vmatpush1.msra.mxu0 0.0
      %6973 = vmatprep.subr.mxu0 0.0
      %6974 = vmatpush1.msra.mxu0 0.0
      %6975 = vmatprep.subr.mxu0 0.0
      %6976 = vmatpush1.msra.mxu0 0.0
      %6977 = vmatprep.subr.mxu0 0.0
      %6978 = vmatpush1.msra.mxu0 0.0
      %6979 = vmatprep.subr.mxu0 0.0
      %6980 = vmatpush1.msra.mxu0 0.0
      %6981 = vmatprep.subr.mxu0 0.0
      %6982 = vmatpush1.msra.mxu0 0.0
      %6983 = vmatprep.subr.mxu0 0.0
      %6984 = vmatpush1.msra.mxu0 0.0
      %6985 = vmatprep.mubr.f32.mxu0 0.0
      %6986 = vmatmul.mubr.f32.gmra.mrb[0].mxu0 %v6905
      %v6987 = vpop.f32.mrb[0].mxu0
      %v6988 = vadd.f32 0.0, %v6987
      %v6989 = vpop.f32.mrb[0].mxu0
      %v6990 = vadd.f32 0.0, %v6989
      %6991 = vmatprep.mubr.f32.mxu0 0.0
      %6992 = vmatmul.mubr.f32.gmra.mrb[0].mxu0 %v6906
      %v6993 = vpop.f32.mrb[0].mxu0
      %v6994 = vadd.f32 0.0, %v6993
      %v6995 = vpop.f32.mrb[0].mxu0
      %v6996 = vadd.f32 0.0, %v6995
      %6997 = vmatprep.mubr.f32.mxu0 0.0
      %6998 = vmatmul.mubr.f32.gmra.mrb[0].mxu0 %v6907
      %v6999 = vpop.f32.mrb[0].mxu0
      %v7000 = vadd.f32 0.0, %v6999
      %v7001 = vpop.f32.mrb[0].mxu0
      %v7002 = vadd.f32 0.0, %v7001
      %7003 = vmatprep.mubr.f32.mxu0 0.0
      %7004 = vmatmul.mubr.f32.gmra.mrb[0].mxu0 %v6908
      %v7005 = vpop.f32.mrb[0].mxu0
      %v7006 = vadd.f32 0.0, %v7005
      %v7007 = vpop.f32.mrb[0].mxu0
      %v7008 = vadd.f32 0.0, %v7007
      %7009 = vmatprep.mubr.f32.mxu0 0.0
      %7010 = vmatmul.mubr.f32.gmra.mrb[0].mxu0 %v6909
      %v7011 = vpop.f32.mrb[0].mxu0
      %v7012 = vadd.f32 0.0, %v7011
      %v7013 = vpop.f32.mrb[0].mxu0
      %v7014 = vadd.f32 0.0, %v7013
      %7015 = vmatprep.mubr.f32.mxu0 0.0
      %7016 = vmatmul.mubr.f32.gmra.mrb[0].mxu0 %v6910
      %v7017 = vpop.f32.mrb[0].mxu0
      %v7018 = vadd.f32 0.0, %v7017
      %v7019 = vpop.f32.mrb[0].mxu0
      %v7020 = vadd.f32 0.0, %v7019
      %7021 = vmatprep.mubr.f32.mxu0 0.0
      %7022 = vmatmul.mubr.f32.gmra.mrb[0].mxu0 %v6911
      %v7023 = vpop.f32.mrb[0].mxu0
      %v7024 = vadd.f32 0.0, %v7023
      %v7025 = vpop.f32.mrb[0].mxu0
      %v7026 = vadd.f32 0.0, %v7025
      %7027 = vmatprep.mubr.f32.mxu0 0.0
      %7028 = vmatmul.mubr.f32.gmra.mrb[0].mxu0 %v6912
      %v7029 = vpop.f32.mrb[0].mxu0
      %v7030 = vadd.f32 0.0, %v7029
      %v7031 = vpop.f32.mrb[0].mxu0
      %v7032 = vadd.f32 0.0, %v7031
      %7033 = vmatprep.mubr.f32.mxu0 0.0
      %7034 = vmatmul.mubr.f32.gmra.mrb[0].mxu0 %v6913
      %v7035 = vpop.f32.mrb[0].mxu0
      %v7036 = vadd.f32 0.0, %v7035
      %v7037 = vpop.f32.mrb[0].mxu0
      %v7038 = vadd.f32 0.0, %v7037
      %7039 = vmatprep.mubr.f32.mxu0 0.0
      %7040 = vmatmul.mubr.f32.gmra.mrb[0].mxu0 %v6914
      %v7041 = vpop.f32.mrb[0].mxu0
      %v7042 = vadd.f32 0.0, %v7041
      %v7043 = vpop.f32.mrb[0].mxu0
      %v7044 = vadd.f32 0.0, %v7043
      %7045 = vmatprep.mubr.f32.mxu0 0.0
      %7046 = vmatmul.mubr.f32.gmra.mrb[0].mxu0 %v6915
      %v7047 = vpop.f32.mrb[0].mxu0
      %v7048 = vadd.f32 0.0, %v7047
      %v7049 = vpop.f32.mrb[0].mxu0
      %v7050 = vadd.f32 0.0, %v7049
      %7051 = vmatprep.mubr.f32.mxu0 0.0
      %7052 = vmatmul.mubr.f32.gmra.mrb[0].mxu0 %v6916
      %v7053 = vpop.f32.mrb[0].mxu0
      %v7054 = vadd.f32 0.0, %v7053
      %v7055 = vpop.f32.mrb[0].mxu0
      %v7056 = vadd.f32 0.0, %v7055
      %7057 = vmatprep.mubr.f32.mxu0 0.0
      %7058 = vmatmul.mubr.f32.gmra.mrb[0].mxu0 %v6917
      %v7059 = vpop.f32.mrb[0].mxu0
      %v7060 = vadd.f32 0.0, %v7059
      %v7061 = vpop.f32.mrb[0].mxu0
      %v7062 = vadd.f32 0.0, %v7061
      %7063 = vmatprep.mubr.f32.mxu0 0.0
      %7064 = vmatmul.mubr.f32.gmra.mrb[0].mxu0 %v6918
      %v7065 = vpop.f32.mrb[0].mxu0
      %v7066 = vadd.f32 0.0, %v7065
      %v7067 = vpop.f32.mrb[0].mxu0
      %v7068 = vadd.f32 0.0, %v7067
      %7069 = vmatprep.mubr.f32.mxu0 0.0
      %7070 = vmatmul.mubr.f32.gmra.mrb[0].mxu0 %v6919
      %v7071 = vpop.f32.mrb[0].mxu0
      %v7072 = vadd.f32 0.0, %v7071
      %v7073 = vpop.f32.mrb[0].mxu0
      %v7074 = vadd.f32 0.0, %v7073
      %7075 = vmatprep.mubr.f32.mxu0 0.0
      %7076 = vmatmul.mubr.f32.gmra.mrb[0].mxu0 %v6920
      %v7077 = vpop.f32.mrb[0].mxu0
      %v7078 = vadd.f32 0.0, %v7077
      %v7079 = vpop.f32.mrb[0].mxu0
      %v7080 = vadd.f32 0.0, %v7079
      %7081 = vdwg.mxu0
      %v7082 = vadd.f32 %v6872, %v6988
      %v7083 = vadd.f32 %v6873, %v6990
      %v7084 = vadd.f32 %v6874, %v6994
      %v7085 = vadd.f32 %v6875, %v6996
      %v7086 = vadd.f32 %v6876, %v7000
      %v7087 = vadd.f32 %v6877, %v7002
      %v7088 = vadd.f32 %v6878, %v7006
      %v7089 = vadd.f32 %v6879, %v7008
      %v7090 = vadd.f32 %v6880, %v7012
      %v7091 = vadd.f32 %v6881, %v7014
      %v7092 = vadd.f32 %v6882, %v7018
      %v7093 = vadd.f32 %v6883, %v7020
      %v7094 = vadd.f32 %v6884, %v7024
      %v7095 = vadd.f32 %v6885, %v7026
      %v7096 = vadd.f32 %v6886, %v7030
      %v7097 = vadd.f32 %v6887, %v7032
      %v7098 = vadd.f32 %v6888, %v7036
      %v7099 = vadd.f32 %v6889, %v7038
      %v7100 = vadd.f32 %v6890, %v7042
      %v7101 = vadd.f32 %v6891, %v7044
      %v7102 = vadd.f32 %v6892, %v7048
      %v7103 = vadd.f32 %v6893, %v7050
      %v7104 = vadd.f32 %v6894, %v7054
      %v7105 = vadd.f32 %v6895, %v7056
      %v7106 = vadd.f32 %v6896, %v7060
      %v7107 = vadd.f32 %v6897, %v7062
      %v7108 = vadd.f32 %v6898, %v7066
      %v7109 = vadd.f32 %v6899, %v7068
      %v7110 = vadd.f32 %v6900, %v7072
      %v7111 = vadd.f32 %v6901, %v7074
      %v7112 = vadd.f32 %v6902, %v7078
      %v7113 = vadd.f32 %v6903, %v7080
      %7114 = vst [vmem:[#allocation2] sm:$0xff] %v7082
      %7115 = vst [vmem:[#allocation2 + $0x8] sm:$0xff] %v7083
      %7116 = vst [vmem:[#allocation2 + $0x10] sm:$0xff] %v7084
      %7117 = vst [vmem:[#allocation2 + $0x18] sm:$0xff] %v7085
      %7118 = vst [vmem:[#allocation2 + $0x20] sm:$0xff] %v7086
      %7119 = vst [vmem:[#allocation2 + $0x28] sm:$0xff] %v7087
      %7120 = vst [vmem:[#allocation2 + $0x30] sm:$0xff] %v7088
      %7121 = vst [vmem:[#allocation2 + $0x38] sm:$0xff] %v7089
      %7122 = vst [vmem:[#allocation2 + $0x40] sm:$0xff] %v7090
      %7123 = vst [vmem:[#allocation2 + $0x48] sm:$0xff] %v7091
      %7124 = vst [vmem:[#allocation2 + $0x50] sm:$0xff] %v7092
      %7125 = vst [vmem:[#allocation2 + $0x58] sm:$0xff] %v7093
      %7126 = vst [vmem:[#allocation2 + $0x60] sm:$0xff] %v7094
      %7127 = vst [vmem:[#allocation2 + $0x68] sm:$0xff] %v7095
      %7128 = vst [vmem:[#allocation2 + $0x70] sm:$0xff] %v7096
      %7129 = vst [vmem:[#allocation2 + $0x78] sm:$0xff] %v7097
      %7130 = vst [vmem:[#allocation2 + $0x80] sm:$0xff] %v7098
      %7131 = vst [vmem:[#allocation2 + $0x88] sm:$0xff] %v7099
      %7132 = vst [vmem:[#allocation2 + $0x90] sm:$0xff] %v7100
      %7133 = vst [vmem:[#allocation2 + $0x98] sm:$0xff] %v7101
      %7134 = vst [vmem:[#allocation2 + $0xa0] sm:$0xff] %v7102
      %7135 = vst [vmem:[#allocation2 + $0xa8] sm:$0xff] %v7103
      %7136 = vst [vmem:[#allocation2 + $0xb0] sm:$0xff] %v7104
      %7137 = vst [vmem:[#allocation2 + $0xb8] sm:$0xff] %v7105
      %7138 = vst [vmem:[#allocation2 + $0xc0] sm:$0xff] %v7106
      %7139 = vst [vmem:[#allocation2 + $0xc8] sm:$0xff] %v7107
      %7140 = vst [vmem:[#allocation2 + $0xd0] sm:$0xff] %v7108
      %7141 = vst [vmem:[#allocation2 + $0xd8] sm:$0xff] %v7109
      %7142 = vst [vmem:[#allocation2 + $0xe0] sm:$0xff] %v7110
      %7143 = vst [vmem:[#allocation2 + $0xe8] sm:$0xff] %v7111
      %7144 = vst [vmem:[#allocation2 + $0xf0] sm:$0xff] %v7112
      %7145 = vst [vmem:[#allocation2 + $0xf8] sm:$0xff] %v7113
      %7146 = vrot.lane.b32.xlu0 %v4091, 111
      %v7147 = vpop.permute.xlu0 %7146
      %7148 = vrot.lane.b32.xlu0 %v4093, 111
      %v7149 = vpop.permute.xlu0 %7148
      %7150 = vrot.lane.b32.xlu0 %v4095, 111
      %v7151 = vpop.permute.xlu0 %7150
      %7152 = vrot.lane.b32.xlu0 %v4097, 111
      %v7153 = vpop.permute.xlu0 %7152
      %7154 = vrot.lane.b32.xlu0 %v4099, 111
      %v7155 = vpop.permute.xlu0 %7154
      %7156 = vrot.lane.b32.xlu0 %v4101, 111
      %v7157 = vpop.permute.xlu0 %7156
      %7158 = vrot.lane.b32.xlu0 %v4103, 111
      %v7159 = vpop.permute.xlu0 %7158
      %7160 = vrot.lane.b32.xlu0 %v4105, 111
      %v7161 = vpop.permute.xlu0 %7160
      %7162 = vrot.lane.b32.xlu0 %v4107, 111
      %v7163 = vpop.permute.xlu0 %7162
      %7164 = vrot.lane.b32.xlu0 %v4109, 111
      %v7165 = vpop.permute.xlu0 %7164
      %7166 = vrot.lane.b32.xlu0 %v4111, 111
      %v7167 = vpop.permute.xlu0 %7166
      %7168 = vrot.lane.b32.xlu0 %v4113, 111
      %v7169 = vpop.permute.xlu0 %7168
      %7170 = vrot.lane.b32.xlu0 %v4115, 111
      %v7171 = vpop.permute.xlu0 %7170
      %7172 = vrot.lane.b32.xlu0 %v4117, 111
      %v7173 = vpop.permute.xlu0 %7172
      %7174 = vrot.lane.b32.xlu0 %v4119, 111
      %v7175 = vpop.permute.xlu0 %7174
      %7176 = vrot.lane.b32.xlu0 %v4121, 111
      %v7177 = vpop.permute.xlu0 %7176
      %7178 = vrot.lane.b32.xlu0 %v4092, 111
      %v7179 = vpop.permute.xlu0 %7178
      %7180 = vrot.lane.b32.xlu0 %v4094, 111
      %v7181 = vpop.permute.xlu0 %7180
      %7182 = vrot.lane.b32.xlu0 %v4096, 111
      %v7183 = vpop.permute.xlu0 %7182
      %7184 = vrot.lane.b32.xlu0 %v4098, 111
      %v7185 = vpop.permute.xlu0 %7184
      %7186 = vrot.lane.b32.xlu0 %v4100, 111
      %v7187 = vpop.permute.xlu0 %7186
      %7188 = vrot.lane.b32.xlu0 %v4102, 111
      %v7189 = vpop.permute.xlu0 %7188
      %7190 = vrot.lane.b32.xlu0 %v4104, 111
      %v7191 = vpop.permute.xlu0 %7190
      %7192 = vrot.lane.b32.xlu0 %v4106, 111
      %v7193 = vpop.permute.xlu0 %7192
      %7194 = vrot.lane.b32.xlu0 %v4108, 111
      %v7195 = vpop.permute.xlu0 %7194
      %7196 = vrot.lane.b32.xlu0 %v4110, 111
      %v7197 = vpop.permute.xlu0 %7196
      %7198 = vrot.lane.b32.xlu0 %v4112, 111
      %v7199 = vpop.permute.xlu0 %7198
      %7200 = vrot.lane.b32.xlu0 %v4114, 111
      %v7201 = vpop.permute.xlu0 %7200
      %7202 = vrot.lane.b32.xlu0 %v4116, 111
      %v7203 = vpop.permute.xlu0 %7202
      %7204 = vrot.lane.b32.xlu0 %v4118, 111
      %v7205 = vpop.permute.xlu0 %7204
      %7206 = vrot.lane.b32.xlu0 %v4120, 111
      %v7207 = vpop.permute.xlu0 %7206
      %7208 = vrot.lane.b32.xlu0 %v4122, 111
      %v7209 = vpop.permute.xlu0 %7208
      %v7210 = vsel %vm3464, %v7147, %v7179
      %v7211 = vsel %vm3464, %v7149, %v7181
      %v7212 = vsel %vm3464, %v7151, %v7183
      %v7213 = vsel %vm3464, %v7153, %v7185
      %v7214 = vsel %vm3464, %v7155, %v7187
      %v7215 = vsel %vm3464, %v7157, %v7189
      %v7216 = vsel %vm3464, %v7159, %v7191
      %v7217 = vsel %vm3464, %v7161, %v7193
      %v7218 = vsel %vm3464, %v7163, %v7195
      %v7219 = vsel %vm3464, %v7165, %v7197
      %v7220 = vsel %vm3464, %v7167, %v7199
      %v7221 = vsel %vm3464, %v7169, %v7201
      %v7222 = vsel %vm3464, %v7171, %v7203
      %v7223 = vsel %vm3464, %v7173, %v7205
      %v7224 = vsel %vm3464, %v7175, %v7207
      %v7225 = vsel %vm3464, %v7177, %v7209
      %v7226 = vsel %vm3464, %v7179, %v7147
      %v7227 = vsel %vm3464, %v7181, %v7149
      %v7228 = vsel %vm3464, %v7183, %v7151
      %v7229 = vsel %vm3464, %v7185, %v7153
      %v7230 = vsel %vm3464, %v7187, %v7155
      %v7231 = vsel %vm3464, %v7189, %v7157
      %v7232 = vsel %vm3464, %v7191, %v7159
      %v7233 = vsel %vm3464, %v7193, %v7161
      %v7234 = vsel %vm3464, %v7195, %v7163
      %v7235 = vsel %vm3464, %v7197, %v7165
      %v7236 = vsel %vm3464, %v7199, %v7167
      %v7237 = vsel %vm3464, %v7201, %v7169
      %v7238 = vsel %vm3464, %v7203, %v7171
      %v7239 = vsel %vm3464, %v7205, %v7173
      %v7240 = vsel %vm3464, %v7207, %v7175
      %v7241 = vsel %vm3464, %v7209, %v7177
      %v7242 = vmul.f32 %v7210, %v336
      %v7243 = vmul.f32 %v7226, %v337
      %v7244 = vmul.f32 %v7211, %v336
      %v7245 = vmul.f32 %v7227, %v337
      %v7246 = vmul.f32 %v7212, %v336
      %v7247 = vmul.f32 %v7228, %v337
      %v7248 = vmul.f32 %v7213, %v336
      %v7249 = vmul.f32 %v7229, %v337
      %v7250 = vmul.f32 %v7214, %v336
      %v7251 = vmul.f32 %v7230, %v337
      %v7252 = vmul.f32 %v7215, %v336
      %v7253 = vmul.f32 %v7231, %v337
      %v7254 = vmul.f32 %v7216, %v336
      %v7255 = vmul.f32 %v7232, %v337
      %v7256 = vmul.f32 %v7217, %v336
      %v7257 = vmul.f32 %v7233, %v337
      %v7258 = vmul.f32 %v7218, %v336
      %v7259 = vmul.f32 %v7234, %v337
      %v7260 = vmul.f32 %v7219, %v336
      %v7261 = vmul.f32 %v7235, %v337
      %v7262 = vmul.f32 %v7220, %v336
      %v7263 = vmul.f32 %v7236, %v337
      %v7264 = vmul.f32 %v7221, %v336
      %v7265 = vmul.f32 %v7237, %v337
      %v7266 = vmul.f32 %v7222, %v336
      %v7267 = vmul.f32 %v7238, %v337
      %v7268 = vmul.f32 %v7223, %v336
      %v7269 = vmul.f32 %v7239, %v337
      %v7270 = vmul.f32 %v7224, %v336
      %v7271 = vmul.f32 %v7240, %v337
      %v7272 = vmul.f32 %v7225, %v336
      %v7273 = vmul.f32 %v7241, %v337
      %v7274 = vld [vmem:[#allocation2] sm:$0xff]
      %v7275 = vld [vmem:[#allocation2 + $0x8] sm:$0xff]
      %v7276 = vld [vmem:[#allocation2 + $0x10] sm:$0xff]
      %v7277 = vld [vmem:[#allocation2 + $0x18] sm:$0xff]
      %v7278 = vld [vmem:[#allocation2 + $0x20] sm:$0xff]
      %v7279 = vld [vmem:[#allocation2 + $0x28] sm:$0xff]
      %v7280 = vld [vmem:[#allocation2 + $0x30] sm:$0xff]
      %v7281 = vld [vmem:[#allocation2 + $0x38] sm:$0xff]
      %v7282 = vld [vmem:[#allocation2 + $0x40] sm:$0xff]
      %v7283 = vld [vmem:[#allocation2 + $0x48] sm:$0xff]
      %v7284 = vld [vmem:[#allocation2 + $0x50] sm:$0xff]
      %v7285 = vld [vmem:[#allocation2 + $0x58] sm:$0xff]
      %v7286 = vld [vmem:[#allocation2 + $0x60] sm:$0xff]
      %v7287 = vld [vmem:[#allocation2 + $0x68] sm:$0xff]
      %v7288 = vld [vmem:[#allocation2 + $0x70] sm:$0xff]
      %v7289 = vld [vmem:[#allocation2 + $0x78] sm:$0xff]
      %v7290 = vld [vmem:[#allocation2 + $0x80] sm:$0xff]
      %v7291 = vld [vmem:[#allocation2 + $0x88] sm:$0xff]
      %v7292 = vld [vmem:[#allocation2 + $0x90] sm:$0xff]
      %v7293 = vld [vmem:[#allocation2 + $0x98] sm:$0xff]
      %v7294 = vld [vmem:[#allocation2 + $0xa0] sm:$0xff]
      %v7295 = vld [vmem:[#allocation2 + $0xa8] sm:$0xff]
      %v7296 = vld [vmem:[#allocation2 + $0xb0] sm:$0xff]
      %v7297 = vld [vmem:[#allocation2 + $0xb8] sm:$0xff]
      %v7298 = vld [vmem:[#allocation2 + $0xc0] sm:$0xff]
      %v7299 = vld [vmem:[#allocation2 + $0xc8] sm:$0xff]
      %v7300 = vld [vmem:[#allocation2 + $0xd0] sm:$0xff]
      %v7301 = vld [vmem:[#allocation2 + $0xd8] sm:$0xff]
      %v7302 = vld [vmem:[#allocation2 + $0xe0] sm:$0xff]
      %v7303 = vld [vmem:[#allocation2 + $0xe8] sm:$0xff]
      %v7304 = vld [vmem:[#allocation2 + $0xf0] sm:$0xff]
      %v7305 = vld [vmem:[#allocation2 + $0xf8] sm:$0xff]
      %s7306 = scalar_lea.vmem %s4, 1024
      %v7307 = vld [vmem:[%s7306] sm:$0xff]
      %v7308 = vld [vmem:[%s7306 + $0x8] sm:$0xff]
      %v7309 = vld [vmem:[%s7306 + $0x10] sm:$0xff]
      %v7310 = vld [vmem:[%s7306 + $0x18] sm:$0xff]
      %v7311 = vld [vmem:[%s7306 + $0x20] sm:$0xff]
      %v7312 = vld [vmem:[%s7306 + $0x28] sm:$0xff]
      %v7313 = vld [vmem:[%s7306 + $0x30] sm:$0xff]
      %v7314 = vld [vmem:[%s7306 + $0x38] sm:$0xff]
      %v7315 = vld [vmem:[%s7306 + $0x40] sm:$0xff]
      %v7316 = vld [vmem:[%s7306 + $0x48] sm:$0xff]
      %v7317 = vld [vmem:[%s7306 + $0x50] sm:$0xff]
      %v7318 = vld [vmem:[%s7306 + $0x58] sm:$0xff]
      %v7319 = vld [vmem:[%s7306 + $0x60] sm:$0xff]
      %v7320 = vld [vmem:[%s7306 + $0x68] sm:$0xff]
      %v7321 = vld [vmem:[%s7306 + $0x70] sm:$0xff]
      %v7322 = vld [vmem:[%s7306 + $0x78] sm:$0xff]
      %7323 = vmatprep.subr.mxu0 %v7243
      %7324 = vmatpush1.msra.mxu0 %v7242
      %7325 = vmatprep.subr.mxu0 %v7245
      %7326 = vmatpush1.msra.mxu0 %v7244
      %7327 = vmatprep.subr.mxu0 %v7247
      %7328 = vmatpush1.msra.mxu0 %v7246
      %7329 = vmatprep.subr.mxu0 %v7249
      %7330 = vmatpush1.msra.mxu0 %v7248
      %7331 = vmatprep.subr.mxu0 %v7251
      %7332 = vmatpush1.msra.mxu0 %v7250
      %7333 = vmatprep.subr.mxu0 %v7253
      %7334 = vmatpush1.msra.mxu0 %v7252
      %7335 = vmatprep.subr.mxu0 %v7255
      %7336 = vmatpush1.msra.mxu0 %v7254
      %7337 = vmatprep.subr.mxu0 %v7257
      %7338 = vmatpush1.msra.mxu0 %v7256
      %7339 = vmatprep.subr.mxu0 %v7259
      %7340 = vmatpush1.msra.mxu0 %v7258
      %7341 = vmatprep.subr.mxu0 %v7261
      %7342 = vmatpush1.msra.mxu0 %v7260
      %7343 = vmatprep.subr.mxu0 %v7263
      %7344 = vmatpush1.msra.mxu0 %v7262
      %7345 = vmatprep.subr.mxu0 %v7265
      %7346 = vmatpush1.msra.mxu0 %v7264
      %7347 = vmatprep.subr.mxu0 %v7267
      %7348 = vmatpush1.msra.mxu0 %v7266
      %7349 = vmatprep.subr.mxu0 %v7269
      %7350 = vmatpush1.msra.mxu0 %v7268
      %7351 = vmatprep.subr.mxu0 %v7271
      %7352 = vmatpush1.msra.mxu0 %v7270
      %7353 = vmatprep.subr.mxu0 %v7273
      %7354 = vmatpush1.msra.mxu0 %v7272
      %7355 = vmatprep.subr.mxu0 0.0
      %7356 = vmatpush1.msra.mxu0 0.0
      %7357 = vmatprep.subr.mxu0 0.0
      %7358 = vmatpush1.msra.mxu0 0.0
      %7359 = vmatprep.subr.mxu0 0.0
      %7360 = vmatpush1.msra.mxu0 0.0
      %7361 = vmatprep.subr.mxu0 0.0
      %7362 = vmatpush1.msra.mxu0 0.0
      %7363 = vmatprep.subr.mxu0 0.0
      %7364 = vmatpush1.msra.mxu0 0.0
      %7365 = vmatprep.subr.mxu0 0.0
      %7366 = vmatpush1.msra.mxu0 0.0
      %7367 = vmatprep.subr.mxu0 0.0
      %7368 = vmatpush1.msra.mxu0 0.0
      %7369 = vmatprep.subr.mxu0 0.0
      %7370 = vmatpush1.msra.mxu0 0.0
      %7371 = vmatprep.subr.mxu0 0.0
      %7372 = vmatpush1.msra.mxu0 0.0
      %7373 = vmatprep.subr.mxu0 0.0
      %7374 = vmatpush1.msra.mxu0 0.0
      %7375 = vmatprep.subr.mxu0 0.0
      %7376 = vmatpush1.msra.mxu0 0.0
      %7377 = vmatprep.subr.mxu0 0.0
      %7378 = vmatpush1.msra.mxu0 0.0
      %7379 = vmatprep.subr.mxu0 0.0
      %7380 = vmatpush1.msra.mxu0 0.0
      %7381 = vmatprep.subr.mxu0 0.0
      %7382 = vmatpush1.msra.mxu0 0.0
      %7383 = vmatprep.subr.mxu0 0.0
      %7384 = vmatpush1.msra.mxu0 0.0
      %7385 = vmatprep.subr.mxu0 0.0
      %7386 = vmatpush1.msra.mxu0 0.0
      %7387 = vmatprep.mubr.f32.mxu0 0.0
      %7388 = vmatmul.mubr.f32.gmra.mrb[0].mxu0 %v7307
      %v7389 = vpop.f32.mrb[0].mxu0
      %v7390 = vadd.f32 0.0, %v7389
      %v7391 = vpop.f32.mrb[0].mxu0
      %v7392 = vadd.f32 0.0, %v7391
      %7393 = vmatprep.mubr.f32.mxu0 0.0
      %7394 = vmatmul.mubr.f32.gmra.mrb[0].mxu0 %v7308
      %v7395 = vpop.f32.mrb[0].mxu0
      %v7396 = vadd.f32 0.0, %v7395
      %v7397 = vpop.f32.mrb[0].mxu0
      %v7398 = vadd.f32 0.0, %v7397
      %7399 = vmatprep.mubr.f32.mxu0 0.0
      %7400 = vmatmul.mubr.f32.gmra.mrb[0].mxu0 %v7309
      %v7401 = vpop.f32.mrb[0].mxu0
      %v7402 = vadd.f32 0.0, %v7401
      %v7403 = vpop.f32.mrb[0].mxu0
      %v7404 = vadd.f32 0.0, %v7403
      %7405 = vmatprep.mubr.f32.mxu0 0.0
      %7406 = vmatmul.mubr.f32.gmra.mrb[0].mxu0 %v7310
      %v7407 = vpop.f32.mrb[0].mxu0
      %v7408 = vadd.f32 0.0, %v7407
      %v7409 = vpop.f32.mrb[0].mxu0
      %v7410 = vadd.f32 0.0, %v7409
      %7411 = vmatprep.mubr.f32.mxu0 0.0
      %7412 = vmatmul.mubr.f32.gmra.mrb[0].mxu0 %v7311
      %v7413 = vpop.f32.mrb[0].mxu0
      %v7414 = vadd.f32 0.0, %v7413
      %v7415 = vpop.f32.mrb[0].mxu0
      %v7416 = vadd.f32 0.0, %v7415
      %7417 = vmatprep.mubr.f32.mxu0 0.0
      %7418 = vmatmul.mubr.f32.gmra.mrb[0].mxu0 %v7312
      %v7419 = vpop.f32.mrb[0].mxu0
      %v7420 = vadd.f32 0.0, %v7419
      %v7421 = vpop.f32.mrb[0].mxu0
      %v7422 = vadd.f32 0.0, %v7421
      %7423 = vmatprep.mubr.f32.mxu0 0.0
      %7424 = vmatmul.mubr.f32.gmra.mrb[0].mxu0 %v7313
      %v7425 = vpop.f32.mrb[0].mxu0
      %v7426 = vadd.f32 0.0, %v7425
      %v7427 = vpop.f32.mrb[0].mxu0
      %v7428 = vadd.f32 0.0, %v7427
      %7429 = vmatprep.mubr.f32.mxu0 0.0
      %7430 = vmatmul.mubr.f32.gmra.mrb[0].mxu0 %v7314
      %v7431 = vpop.f32.mrb[0].mxu0
      %v7432 = vadd.f32 0.0, %v7431
      %v7433 = vpop.f32.mrb[0].mxu0
      %v7434 = vadd.f32 0.0, %v7433
      %7435 = vmatprep.mubr.f32.mxu0 0.0
      %7436 = vmatmul.mubr.f32.gmra.mrb[0].mxu0 %v7315
      %v7437 = vpop.f32.mrb[0].mxu0
      %v7438 = vadd.f32 0.0, %v7437
      %v7439 = vpop.f32.mrb[0].mxu0
      %v7440 = vadd.f32 0.0, %v7439
      %7441 = vmatprep.mubr.f32.mxu0 0.0
      %7442 = vmatmul.mubr.f32.gmra.mrb[0].mxu0 %v7316
      %v7443 = vpop.f32.mrb[0].mxu0
      %v7444 = vadd.f32 0.0, %v7443
      %v7445 = vpop.f32.mrb[0].mxu0
      %v7446 = vadd.f32 0.0, %v7445
      %7447 = vmatprep.mubr.f32.mxu0 0.0
      %7448 = vmatmul.mubr.f32.gmra.mrb[0].mxu0 %v7317
      %v7449 = vpop.f32.mrb[0].mxu0
      %v7450 = vadd.f32 0.0, %v7449
      %v7451 = vpop.f32.mrb[0].mxu0
      %v7452 = vadd.f32 0.0, %v7451
      %7453 = vmatprep.mubr.f32.mxu0 0.0
      %7454 = vmatmul.mubr.f32.gmra.mrb[0].mxu0 %v7318
      %v7455 = vpop.f32.mrb[0].mxu0
      %v7456 = vadd.f32 0.0, %v7455
      %v7457 = vpop.f32.mrb[0].mxu0
      %v7458 = vadd.f32 0.0, %v7457
      %7459 = vmatprep.mubr.f32.mxu0 0.0
      %7460 = vmatmul.mubr.f32.gmra.mrb[0].mxu0 %v7319
      %v7461 = vpop.f32.mrb[0].mxu0
      %v7462 = vadd.f32 0.0, %v7461
      %v7463 = vpop.f32.mrb[0].mxu0
      %v7464 = vadd.f32 0.0, %v7463
      %7465 = vmatprep.mubr.f32.mxu0 0.0
      %7466 = vmatmul.mubr.f32.gmra.mrb[0].mxu0 %v7320
      %v7467 = vpop.f32.mrb[0].mxu0
      %v7468 = vadd.f32 0.0, %v7467
      %v7469 = vpop.f32.mrb[0].mxu0
      %v7470 = vadd.f32 0.0, %v7469
      %7471 = vmatprep.mubr.f32.mxu0 0.0
      %7472 = vmatmul.mubr.f32.gmra.mrb[0].mxu0 %v7321
      %v7473 = vpop.f32.mrb[0].mxu0
      %v7474 = vadd.f32 0.0, %v7473
      %v7475 = vpop.f32.mrb[0].mxu0
      %v7476 = vadd.f32 0.0, %v7475
      %7477 = vmatprep.mubr.f32.mxu0 0.0
      %7478 = vmatmul.mubr.f32.gmra.mrb[0].mxu0 %v7322
      %v7479 = vpop.f32.mrb[0].mxu0
      %v7480 = vadd.f32 0.0, %v7479
      %v7481 = vpop.f32.mrb[0].mxu0
      %v7482 = vadd.f32 0.0, %v7481
      %7483 = vdwg.mxu0
      %v7484 = vadd.f32 %v7274, %v7390
      %v7485 = vadd.f32 %v7275, %v7392
      %v7486 = vadd.f32 %v7276, %v7396
      %v7487 = vadd.f32 %v7277, %v7398
      %v7488 = vadd.f32 %v7278, %v7402
      %v7489 = vadd.f32 %v7279, %v7404
      %v7490 = vadd.f32 %v7280, %v7408
      %v7491 = vadd.f32 %v7281, %v7410
      %v7492 = vadd.f32 %v7282, %v7414
      %v7493 = vadd.f32 %v7283, %v7416
      %v7494 = vadd.f32 %v7284, %v7420
      %v7495 = vadd.f32 %v7285, %v7422
      %v7496 = vadd.f32 %v7286, %v7426
      %v7497 = vadd.f32 %v7287, %v7428
      %v7498 = vadd.f32 %v7288, %v7432
      %v7499 = vadd.f32 %v7289, %v7434
      %v7500 = vadd.f32 %v7290, %v7438
      %v7501 = vadd.f32 %v7291, %v7440
      %v7502 = vadd.f32 %v7292, %v7444
      %v7503 = vadd.f32 %v7293, %v7446
      %v7504 = vadd.f32 %v7294, %v7450
      %v7505 = vadd.f32 %v7295, %v7452
      %v7506 = vadd.f32 %v7296, %v7456
      %v7507 = vadd.f32 %v7297, %v7458
      %v7508 = vadd.f32 %v7298, %v7462
      %v7509 = vadd.f32 %v7299, %v7464
      %v7510 = vadd.f32 %v7300, %v7468
      %v7511 = vadd.f32 %v7301, %v7470
      %v7512 = vadd.f32 %v7302, %v7474
      %v7513 = vadd.f32 %v7303, %v7476
      %v7514 = vadd.f32 %v7304, %v7480
      %v7515 = vadd.f32 %v7305, %v7482
      %7516 = vst [vmem:[#allocation2] sm:$0xff] %v7484
      %7517 = vst [vmem:[#allocation2 + $0x8] sm:$0xff] %v7485
      %7518 = vst [vmem:[#allocation2 + $0x10] sm:$0xff] %v7486
      %7519 = vst [vmem:[#allocation2 + $0x18] sm:$0xff] %v7487
      %7520 = vst [vmem:[#allocation2 + $0x20] sm:$0xff] %v7488
      %7521 = vst [vmem:[#allocation2 + $0x28] sm:$0xff] %v7489
      %7522 = vst [vmem:[#allocation2 + $0x30] sm:$0xff] %v7490
      %7523 = vst [vmem:[#allocation2 + $0x38] sm:$0xff] %v7491
      %7524 = vst [vmem:[#allocation2 + $0x40] sm:$0xff] %v7492
      %7525 = vst [vmem:[#allocation2 + $0x48] sm:$0xff] %v7493
      %7526 = vst [vmem:[#allocation2 + $0x50] sm:$0xff] %v7494
      %7527 = vst [vmem:[#allocation2 + $0x58] sm:$0xff] %v7495
      %7528 = vst [vmem:[#allocation2 + $0x60] sm:$0xff] %v7496
      %7529 = vst [vmem:[#allocation2 + $0x68] sm:$0xff] %v7497
      %7530 = vst [vmem:[#allocation2 + $0x70] sm:$0xff] %v7498
      %7531 = vst [vmem:[#allocation2 + $0x78] sm:$0xff] %v7499
      %7532 = vst [vmem:[#allocation2 + $0x80] sm:$0xff] %v7500
      %7533 = vst [vmem:[#allocation2 + $0x88] sm:$0xff] %v7501
      %7534 = vst [vmem:[#allocation2 + $0x90] sm:$0xff] %v7502
      %7535 = vst [vmem:[#allocation2 + $0x98] sm:$0xff] %v7503
      %7536 = vst [vmem:[#allocation2 + $0xa0] sm:$0xff] %v7504
      %7537 = vst [vmem:[#allocation2 + $0xa8] sm:$0xff] %v7505
      %7538 = vst [vmem:[#allocation2 + $0xb0] sm:$0xff] %v7506
      %7539 = vst [vmem:[#allocation2 + $0xb8] sm:$0xff] %v7507
      %7540 = vst [vmem:[#allocation2 + $0xc0] sm:$0xff] %v7508
      %7541 = vst [vmem:[#allocation2 + $0xc8] sm:$0xff] %v7509
      %7542 = vst [vmem:[#allocation2 + $0xd0] sm:$0xff] %v7510
      %7543 = vst [vmem:[#allocation2 + $0xd8] sm:$0xff] %v7511
      %7544 = vst [vmem:[#allocation2 + $0xe0] sm:$0xff] %v7512
      %7545 = vst [vmem:[#allocation2 + $0xe8] sm:$0xff] %v7513
      %7546 = vst [vmem:[#allocation2 + $0xf0] sm:$0xff] %v7514
      %7547 = vst [vmem:[#allocation2 + $0xf8] sm:$0xff] %v7515
      %v7548 = vld [vmem:[#allocation2] sm:$0xff]
      %v7549 = vld [vmem:[#allocation2 + $0x8] sm:$0xff]
      %v7550 = vld [vmem:[#allocation2 + $0x10] sm:$0xff]
      %v7551 = vld [vmem:[#allocation2 + $0x18] sm:$0xff]
      %v7552 = vld [vmem:[#allocation2 + $0x20] sm:$0xff]
      %v7553 = vld [vmem:[#allocation2 + $0x28] sm:$0xff]
      %v7554 = vld [vmem:[#allocation2 + $0x30] sm:$0xff]
      %v7555 = vld [vmem:[#allocation2 + $0x38] sm:$0xff]
      %v7556 = vld [vmem:[#allocation2 + $0x40] sm:$0xff]
      %v7557 = vld [vmem:[#allocation2 + $0x48] sm:$0xff]
      %v7558 = vld [vmem:[#allocation2 + $0x50] sm:$0xff]
      %v7559 = vld [vmem:[#allocation2 + $0x58] sm:$0xff]
      %v7560 = vld [vmem:[#allocation2 + $0x60] sm:$0xff]
      %v7561 = vld [vmem:[#allocation2 + $0x68] sm:$0xff]
      %v7562 = vld [vmem:[#allocation2 + $0x70] sm:$0xff]
      %v7563 = vld [vmem:[#allocation2 + $0x78] sm:$0xff]
      %v7564 = vld [vmem:[#allocation2 + $0x80] sm:$0xff]
      %v7565 = vld [vmem:[#allocation2 + $0x88] sm:$0xff]
      %v7566 = vld [vmem:[#allocation2 + $0x90] sm:$0xff]
      %v7567 = vld [vmem:[#allocation2 + $0x98] sm:$0xff]
      %v7568 = vld [vmem:[#allocation2 + $0xa0] sm:$0xff]
      %v7569 = vld [vmem:[#allocation2 + $0xa8] sm:$0xff]
      %v7570 = vld [vmem:[#allocation2 + $0xb0] sm:$0xff]
      %v7571 = vld [vmem:[#allocation2 + $0xb8] sm:$0xff]
      %v7572 = vld [vmem:[#allocation2 + $0xc0] sm:$0xff]
      %v7573 = vld [vmem:[#allocation2 + $0xc8] sm:$0xff]
      %v7574 = vld [vmem:[#allocation2 + $0xd0] sm:$0xff]
      %v7575 = vld [vmem:[#allocation2 + $0xd8] sm:$0xff]
      %v7576 = vld [vmem:[#allocation2 + $0xe0] sm:$0xff]
      %v7577 = vld [vmem:[#allocation2 + $0xe8] sm:$0xff]
      %v7578 = vld [vmem:[#allocation2 + $0xf0] sm:$0xff]
      %v7579 = vld [vmem:[#allocation2 + $0xf8] sm:$0xff]
      %v7580 = vld [vmem:[%s5] sm:$0xff]
      %v7581 = vld [vmem:[%s5 + $0x8] sm:$0xff]
      %v7582 = vld [vmem:[%s5 + $0x10] sm:$0xff]
      %v7583 = vld [vmem:[%s5 + $0x18] sm:$0xff]
      %v7584 = vld [vmem:[%s5 + $0x20] sm:$0xff]
      %v7585 = vld [vmem:[%s5 + $0x28] sm:$0xff]
      %v7586 = vld [vmem:[%s5 + $0x30] sm:$0xff]
      %v7587 = vld [vmem:[%s5 + $0x38] sm:$0xff]
      %v7588 = vld [vmem:[%s5 + $0x40] sm:$0xff]
      %v7589 = vld [vmem:[%s5 + $0x48] sm:$0xff]
      %v7590 = vld [vmem:[%s5 + $0x50] sm:$0xff]
      %v7591 = vld [vmem:[%s5 + $0x58] sm:$0xff]
      %v7592 = vld [vmem:[%s5 + $0x60] sm:$0xff]
      %v7593 = vld [vmem:[%s5 + $0x68] sm:$0xff]
      %v7594 = vld [vmem:[%s5 + $0x70] sm:$0xff]
      %v7595 = vld [vmem:[%s5 + $0x78] sm:$0xff]
      %7597 = vset.pattern.permute.xlu0 0
      %7598 = vperm.xlu0 %7597, %v7580
      %v7599 = vpop.permute.xlu0 %7598
      %7602 = vset.pattern.permute.xlu0 0
      %7603 = vperm.xlu0 %7602, %v7581
      %v7604 = vpop.permute.xlu0 %7603
      %7607 = vset.pattern.permute.xlu0 0
      %7608 = vperm.xlu0 %7607, %v7582
      %v7609 = vpop.permute.xlu0 %7608
      %7612 = vset.pattern.permute.xlu0 0
      %7613 = vperm.xlu0 %7612, %v7583
      %v7614 = vpop.permute.xlu0 %7613
      %7617 = vset.pattern.permute.xlu0 0
      %7618 = vperm.xlu0 %7617, %v7584
      %v7619 = vpop.permute.xlu0 %7618
      %7622 = vset.pattern.permute.xlu0 0
      %7623 = vperm.xlu0 %7622, %v7585
      %v7624 = vpop.permute.xlu0 %7623
      %7627 = vset.pattern.permute.xlu0 0
      %7628 = vperm.xlu0 %7627, %v7586
      %v7629 = vpop.permute.xlu0 %7628
      %7632 = vset.pattern.permute.xlu0 0
      %7633 = vperm.xlu0 %7632, %v7587
      %v7634 = vpop.permute.xlu0 %7633
      %7637 = vset.pattern.permute.xlu0 0
      %7638 = vperm.xlu0 %7637, %v7588
      %v7639 = vpop.permute.xlu0 %7638
      %7642 = vset.pattern.permute.xlu0 0
      %7643 = vperm.xlu0 %7642, %v7589
      %v7644 = vpop.permute.xlu0 %7643
      %7647 = vset.pattern.permute.xlu0 0
      %7648 = vperm.xlu0 %7647, %v7590
      %v7649 = vpop.permute.xlu0 %7648
      %7652 = vset.pattern.permute.xlu0 0
      %7653 = vperm.xlu0 %7652, %v7591
      %v7654 = vpop.permute.xlu0 %7653
      %7657 = vset.pattern.permute.xlu0 0
      %7658 = vperm.xlu0 %7657, %v7592
      %v7659 = vpop.permute.xlu0 %7658
      %7662 = vset.pattern.permute.xlu0 0
      %7663 = vperm.xlu0 %7662, %v7593
      %v7664 = vpop.permute.xlu0 %7663
      %7667 = vset.pattern.permute.xlu0 0
      %7668 = vperm.xlu0 %7667, %v7594
      %v7669 = vpop.permute.xlu0 %7668
      %7672 = vset.pattern.permute.xlu0 0
      %7673 = vperm.xlu0 %7672, %v7595
      %v7674 = vpop.permute.xlu0 %7673
      %v7676 = vmul.f32 %v7548, %v7599
      %v7677 = vmul.f32 %v7549, %v7599
      %v7678 = vmul.f32 %v7550, %v7604
      %v7679 = vmul.f32 %v7551, %v7604
      %v7680 = vmul.f32 %v7552, %v7609
      %v7681 = vmul.f32 %v7553, %v7609
      %v7682 = vmul.f32 %v7554, %v7614
      %v7683 = vmul.f32 %v7555, %v7614
      %v7684 = vmul.f32 %v7556, %v7619
      %v7685 = vmul.f32 %v7557, %v7619
      %v7686 = vmul.f32 %v7558, %v7624
      %v7687 = vmul.f32 %v7559, %v7624
      %v7688 = vmul.f32 %v7560, %v7629
      %v7689 = vmul.f32 %v7561, %v7629
      %v7690 = vmul.f32 %v7562, %v7634
      %v7691 = vmul.f32 %v7563, %v7634
      %v7692 = vmul.f32 %v7564, %v7639
      %v7693 = vmul.f32 %v7565, %v7639
      %v7694 = vmul.f32 %v7566, %v7644
      %v7695 = vmul.f32 %v7567, %v7644
      %v7696 = vmul.f32 %v7568, %v7649
      %v7697 = vmul.f32 %v7569, %v7649
      %v7698 = vmul.f32 %v7570, %v7654
      %v7699 = vmul.f32 %v7571, %v7654
      %v7700 = vmul.f32 %v7572, %v7659
      %v7701 = vmul.f32 %v7573, %v7659
      %v7702 = vmul.f32 %v7574, %v7664
      %v7703 = vmul.f32 %v7575, %v7664
      %v7704 = vmul.f32 %v7576, %v7669
      %v7705 = vmul.f32 %v7577, %v7669
      %v7706 = vmul.f32 %v7578, %v7674
      %v7707 = vmul.f32 %v7579, %v7674
      %v7708 = vld [vmem:[%s6] sm:$0xff]
      %v7709 = vld [vmem:[%s6 + $0x8] sm:$0xff]
      %v7710 = vld [vmem:[%s6 + $0x10] sm:$0xff]
      %v7711 = vld [vmem:[%s6 + $0x18] sm:$0xff]
      %v7712 = vld [vmem:[%s6 + $0x20] sm:$0xff]
      %v7713 = vld [vmem:[%s6 + $0x28] sm:$0xff]
      %v7714 = vld [vmem:[%s6 + $0x30] sm:$0xff]
      %v7715 = vld [vmem:[%s6 + $0x38] sm:$0xff]
      %v7716 = vld [vmem:[%s6 + $0x40] sm:$0xff]
      %v7717 = vld [vmem:[%s6 + $0x48] sm:$0xff]
      %v7718 = vld [vmem:[%s6 + $0x50] sm:$0xff]
      %v7719 = vld [vmem:[%s6 + $0x58] sm:$0xff]
      %v7720 = vld [vmem:[%s6 + $0x60] sm:$0xff]
      %v7721 = vld [vmem:[%s6 + $0x68] sm:$0xff]
      %v7722 = vld [vmem:[%s6 + $0x70] sm:$0xff]
      %v7723 = vld [vmem:[%s6 + $0x78] sm:$0xff]
      %7725 = vset.pattern.permute.xlu0 0
      %7726 = vperm.xlu0 %7725, %v7708
      %v7727 = vpop.permute.xlu0 %7726
      %7730 = vset.pattern.permute.xlu0 0
      %7731 = vperm.xlu0 %7730, %v7709
      %v7732 = vpop.permute.xlu0 %7731
      %7735 = vset.pattern.permute.xlu0 0
      %7736 = vperm.xlu0 %7735, %v7710
      %v7737 = vpop.permute.xlu0 %7736
      %7740 = vset.pattern.permute.xlu0 0
      %7741 = vperm.xlu0 %7740, %v7711
      %v7742 = vpop.permute.xlu0 %7741
      %7745 = vset.pattern.permute.xlu0 0
      %7746 = vperm.xlu0 %7745, %v7712
      %v7747 = vpop.permute.xlu0 %7746
      %7750 = vset.pattern.permute.xlu0 0
      %7751 = vperm.xlu0 %7750, %v7713
      %v7752 = vpop.permute.xlu0 %7751
      %7755 = vset.pattern.permute.xlu0 0
      %7756 = vperm.xlu0 %7755, %v7714
      %v7757 = vpop.permute.xlu0 %7756
      %7760 = vset.pattern.permute.xlu0 0
      %7761 = vperm.xlu0 %7760, %v7715
      %v7762 = vpop.permute.xlu0 %7761
      %7765 = vset.pattern.permute.xlu0 0
      %7766 = vperm.xlu0 %7765, %v7716
      %v7767 = vpop.permute.xlu0 %7766
      %7770 = vset.pattern.permute.xlu0 0
      %7771 = vperm.xlu0 %7770, %v7717
      %v7772 = vpop.permute.xlu0 %7771
      %7775 = vset.pattern.permute.xlu0 0
      %7776 = vperm.xlu0 %7775, %v7718
      %v7777 = vpop.permute.xlu0 %7776
      %7780 = vset.pattern.permute.xlu0 0
      %7781 = vperm.xlu0 %7780, %v7719
      %v7782 = vpop.permute.xlu0 %7781
      %7785 = vset.pattern.permute.xlu0 0
      %7786 = vperm.xlu0 %7785, %v7720
      %v7787 = vpop.permute.xlu0 %7786
      %7790 = vset.pattern.permute.xlu0 0
      %7791 = vperm.xlu0 %7790, %v7721
      %v7792 = vpop.permute.xlu0 %7791
      %7795 = vset.pattern.permute.xlu0 0
      %7796 = vperm.xlu0 %7795, %v7722
      %v7797 = vpop.permute.xlu0 %7796
      %7800 = vset.pattern.permute.xlu0 0
      %7801 = vperm.xlu0 %7800, %v7723
      %v7802 = vpop.permute.xlu0 %7801
      %v7804 = vadd.f32 %v7676, %v7727
      %v7805 = vadd.f32 %v7677, %v7727
      %v7806 = vadd.f32 %v7678, %v7732
      %v7807 = vadd.f32 %v7679, %v7732
      %v7808 = vadd.f32 %v7680, %v7737
      %v7809 = vadd.f32 %v7681, %v7737
      %v7810 = vadd.f32 %v7682, %v7742
      %v7811 = vadd.f32 %v7683, %v7742
      %v7812 = vadd.f32 %v7684, %v7747
      %v7813 = vadd.f32 %v7685, %v7747
      %v7814 = vadd.f32 %v7686, %v7752
      %v7815 = vadd.f32 %v7687, %v7752
      %v7816 = vadd.f32 %v7688, %v7757
      %v7817 = vadd.f32 %v7689, %v7757
      %v7818 = vadd.f32 %v7690, %v7762
      %v7819 = vadd.f32 %v7691, %v7762
      %v7820 = vadd.f32 %v7692, %v7767
      %v7821 = vadd.f32 %v7693, %v7767
      %v7822 = vadd.f32 %v7694, %v7772
      %v7823 = vadd.f32 %v7695, %v7772
      %v7824 = vadd.f32 %v7696, %v7777
      %v7825 = vadd.f32 %v7697, %v7777
      %v7826 = vadd.f32 %v7698, %v7782
      %v7827 = vadd.f32 %v7699, %v7782
      %v7828 = vadd.f32 %v7700, %v7787
      %v7829 = vadd.f32 %v7701, %v7787
      %v7830 = vadd.f32 %v7702, %v7792
      %v7831 = vadd.f32 %v7703, %v7792
      %v7832 = vadd.f32 %v7704, %v7797
      %v7833 = vadd.f32 %v7705, %v7797
      %v7834 = vadd.f32 %v7706, %v7802
      %v7835 = vadd.f32 %v7707, %v7802
      %v7836 = vmax.f32 %v7804, 0.0
      %v7837 = vmax.f32 %v7805, 0.0
      %v7838 = vmax.f32 %v7806, 0.0
      %v7839 = vmax.f32 %v7807, 0.0
      %v7840 = vmax.f32 %v7808, 0.0
      %v7841 = vmax.f32 %v7809, 0.0
      %v7842 = vmax.f32 %v7810, 0.0
      %v7843 = vmax.f32 %v7811, 0.0
      %v7844 = vmax.f32 %v7812, 0.0
      %v7845 = vmax.f32 %v7813, 0.0
      %v7846 = vmax.f32 %v7814, 0.0
      %v7847 = vmax.f32 %v7815, 0.0
      %v7848 = vmax.f32 %v7816, 0.0
      %v7849 = vmax.f32 %v7817, 0.0
      %v7850 = vmax.f32 %v7818, 0.0
      %v7851 = vmax.f32 %v7819, 0.0
      %v7852 = vmax.f32 %v7820, 0.0
      %v7853 = vmax.f32 %v7821, 0.0
      %v7854 = vmax.f32 %v7822, 0.0
      %v7855 = vmax.f32 %v7823, 0.0
      %v7856 = vmax.f32 %v7824, 0.0
      %v7857 = vmax.f32 %v7825, 0.0
      %v7858 = vmax.f32 %v7826, 0.0
      %v7859 = vmax.f32 %v7827, 0.0
      %v7860 = vmax.f32 %v7828, 0.0
      %v7861 = vmax.f32 %v7829, 0.0
      %v7862 = vmax.f32 %v7830, 0.0
      %v7863 = vmax.f32 %v7831, 0.0
      %v7864 = vmax.f32 %v7832, 0.0
      %v7865 = vmax.f32 %v7833, 0.0
      %v7866 = vmax.f32 %v7834, 0.0
      %v7867 = vmax.f32 %v7835, 0.0
      %7868 = vst [vmem:[%s278] sm:$0xff] %v7836
      %7869 = vst [vmem:[%s278 + $0x8] sm:$0xff] %v7837
      %7870 = vst [vmem:[%s278 + $0x10] sm:$0xff] %v7838
      %7871 = vst [vmem:[%s278 + $0x18] sm:$0xff] %v7839
      %7872 = vst [vmem:[%s278 + $0x20] sm:$0xff] %v7840
      %7873 = vst [vmem:[%s278 + $0x28] sm:$0xff] %v7841
      %7874 = vst [vmem:[%s278 + $0x30] sm:$0xff] %v7842
      %7875 = vst [vmem:[%s278 + $0x38] sm:$0xff] %v7843
      %7876 = vst [vmem:[%s278 + $0x40] sm:$0xff] %v7844
      %7877 = vst [vmem:[%s278 + $0x48] sm:$0xff] %v7845
      %7878 = vst [vmem:[%s278 + $0x50] sm:$0xff] %v7846
      %7879 = vst [vmem:[%s278 + $0x58] sm:$0xff] %v7847
      %7880 = vst [vmem:[%s278 + $0x60] sm:$0xff] %v7848
      %7881 = vst [vmem:[%s278 + $0x68] sm:$0xff] %v7849
      %7882 = vst [vmem:[%s278 + $0x70] sm:$0xff] %v7850
      %7883 = vst [vmem:[%s278 + $0x78] sm:$0xff] %v7851
      %7884 = vst [vmem:[%s278 + $0x80] sm:$0xff] %v7852
      %7885 = vst [vmem:[%s278 + $0x88] sm:$0xff] %v7853
      %7886 = vst [vmem:[%s278 + $0x90] sm:$0xff] %v7854
      %7887 = vst [vmem:[%s278 + $0x98] sm:$0xff] %v7855
      %7888 = vst [vmem:[%s278 + $0xa0] sm:$0xff] %v7856
      %7889 = vst [vmem:[%s278 + $0xa8] sm:$0xff] %v7857
      %7890 = vst [vmem:[%s278 + $0xb0] sm:$0xff] %v7858
      %7891 = vst [vmem:[%s278 + $0xb8] sm:$0xff] %v7859
      %7892 = vst [vmem:[%s278 + $0xc0] sm:$0xff] %v7860
      %7893 = vst [vmem:[%s278 + $0xc8] sm:$0xff] %v7861
      %7894 = vst [vmem:[%s278 + $0xd0] sm:$0xff] %v7862
      %7895 = vst [vmem:[%s278 + $0xd8] sm:$0xff] %v7863
      %7896 = vst [vmem:[%s278 + $0xe0] sm:$0xff] %v7864
      %7897 = vst [vmem:[%s278 + $0xe8] sm:$0xff] %v7865
      %7898 = vst [vmem:[%s278 + $0xf0] sm:$0xff] %v7866
      %7899 = vst [vmem:[%s278 + $0xf8] sm:$0xff] %v7867
      %p7900 = scmp.lt.s32.totalorder %s18, 1
      %s7901 = scalar_select %p7900, %s18, 1
      %s7902 = smul.addr %s7901, 32
      %s7903 = smul.addr %s7902, 8
      %s7904 = scalar_lea.vmem %s7, %s7903
      // Predicated region
      $region49: #{conv_block_forward.1} parent=47 // pred_check
        %p7905 = pneg %p188
      $region50: #{conv_block_forward.1} parent=47 // pred_check_branch
        %7907 = sbr.rel (%p7905) target = $region52
      $region51: #{conv_block_forward.1} parent=47 // pred_region
        _
      $region52: #{conv_block_forward.1} parent=47 // pred_fallthru
        _
    $region48: #{conv_block_forward.1} parent=5 // pred_fallthru
      _
    %p7908 = scmp.le.s32.totalorder 2, %s13
    // Predicated region
    $region53: #{conv_block_forward.1} parent=5 // pred_check
      %p7909 = pneg %p7908
    $region54: #{conv_block_forward.1} parent=5 // pred_check_branch
      %7911 = sbr.rel (%p7909) target = $region56
    $region55: #{conv_block_forward.1} parent=5 // pred_region
      %s7912 = ssub.s32 %s13, 2
      // Predicated region
      $region57: #{conv_block_forward.1} parent=55 // pred_check
        %p7913 = pneg %p194
      $region58: #{conv_block_forward.1} parent=55 // pred_check_branch
        %7915 = sbr.rel (%p7913) target = $region60
      $region59: #{conv_block_forward.1} parent=55 // pred_region
        %p7916 = scmp.lt.s32.totalorder %s19, 1
        %s7917 = scalar_select %p7916, %s19, 1
        %s7918 = smul.addr %s7917, 32
        %s7919 = smul.addr %s7918, 8
        %s7920 = scalar_lea.vmem %s7, %s7919
      $region60: #{conv_block_forward.1} parent=55 // pred_fallthru
        _
    $region56: #{conv_block_forward.1} parent=5 // pred_fallthru
      _
  $region6: #{conv_block_forward.1} parent=0 // loop_footer
    %s17 = sadd.s32 1, %s13
  $region7: #{conv_block_forward.1} parent=0 // loop_footer_branch
    %12 = sbr.rel target = $region3
  $region8: #{conv_block_forward.1} parent=0 // loop_exit
    _

</llo_original>
